<compile_context>
chip_gen: v6e
topology: v6e:2x2x1
jax: 0.10.0
libtpu: 0.0.40
codegen_flags: <defaults>
</compile_context>

<pallas_src>
import functools

import jax
import jax.numpy as jnp
from jax.experimental import pallas as pl
from jax.experimental.pallas import tpu as pltpu

EPS = 1e-5
VMEM_LIMIT = 48 * 1024 * 1024   # under v7x's 64 MiB physical VMEM, plenty on v5e/v6e

BLOCKS = (3, 4, 23, 3)          # ResNet-101
PLANES = (64, 128, 256, 512)
EXPANSION = 4


def _cp(*sems):
    return pltpu.CompilerParams(dimension_semantics=sems, vmem_limit_bytes=VMEM_LIMIT)


def _ru(x, m):
    return (x + m - 1) // m * m


# --------------------------- fused MXU matmul kernels ---------------------------
# Single-K-block design (every K in this net is <= 2048): one dot per (i, j) grid step,
# bias / residual / ReLU fused in the epilogue, both grid axes "parallel".

def _mm_kernel(x_ref, w_ref, b_ref, o_ref, *, relu):
    out = jnp.dot(x_ref[...], w_ref[...], preferred_element_type=jnp.float32) + b_ref[...]
    if relu:
        out = jnp.maximum(out, 0.0)
    o_ref[...] = out.astype(o_ref.dtype)


def _mm_res_kernel(x_ref, w_ref, b_ref, r_ref, o_ref, *, relu):
    out = (jnp.dot(x_ref[...], w_ref[...], preferred_element_type=jnp.float32)
           + b_ref[...] + r_ref[...].astype(jnp.float32))
    if relu:
        out = jnp.maximum(out, 0.0)
    o_ref[...] = out.astype(o_ref.dtype)


def _pick_tm(m):
    """Largest M tile <= 512 that divides m (multiple of 8, or all of a small m)."""
    if m <= 512:
        return m
    for d in range(512, 7, -8):
        if m % d == 0:
            return d
    return 512          # rare fallback; rows get zero-padded


@functools.partial(jax.jit, static_argnames=("relu", "out_dtype"))
def matmul_bias_act(x, w, b, residual=None, *, relu, out_dtype=jnp.float32):
    """(M,K) @ (K,N) + b [+ residual], optional fused ReLU. bf16 MXU, f32 accumulate.
    Weights / bias arrive pre-packed (bf16 / (1,N) f32); K is never tiled (K <= 2048)."""
    M, K = x.shape
    N = w.shape[1]

    # Lane-pad tiny N (e.g. num_classes=2) so the store path stays clean.
    if N % 8 != 0:
        Np = _ru(N, 128)
        w = jnp.pad(w, ((0, 0), (0, Np - N)))
        b = jnp.pad(b, ((0, 0), (0, Np - N)))
    else:
        Np = N
    tn = min(512, Np) if Np % 128 == 0 else Np

    Mp = _ru(M, 8)
    tm = _pick_tm(Mp)
    Mp = _ru(Mp, tm)

    xb = x.astype(jnp.bfloat16)
    if Mp != M:
        xb = jnp.pad(xb, ((0, Mp - M), (0, 0)))

    x_spec = pl.BlockSpec((tm, K), lambda i, j: (i, 0))
    w_spec = pl.BlockSpec((K, tn), lambda i, j: (0, j))
    b_spec = pl.BlockSpec((1, tn), lambda i, j: (0, j))
    o_spec = pl.BlockSpec((tm, tn), lambda i, j: (i, j))

    if residual is None:
        kernel = functools.partial(_mm_kernel, relu=relu)
        in_specs = [x_spec, w_spec, b_spec]
        args = (xb, w, b)
    else:
        rb = residual.astype(jnp.bfloat16)
        if Np != N:
            rb = jnp.pad(rb, ((0, 0), (0, Np - N)))
        if Mp != M:
            rb = jnp.pad(rb, ((0, Mp - M), (0, 0)))
        kernel = functools.partial(_mm_res_kernel, relu=relu)
        in_specs = [x_spec, w_spec, b_spec, pl.BlockSpec((tm, tn), lambda i, j: (i, j))]
        args = (xb, w, b, rb)

    out = pl.pallas_call(
        kernel,
        out_shape=jax.ShapeDtypeStruct((Mp, Np), out_dtype),
        grid=(Mp // tm, Np // tn),
        in_specs=in_specs,
        out_specs=o_spec,
        compiler_params=_cp("parallel", "parallel"),
    )(*args)
    return out[:M, :N]


# ------------------------- generic shifted-tap conv kernel -------------------------
# KHxKW "valid" stride-1 conv over a pre-padded NHWC image.  The wrapper builds KW
# column-shifted copies in HBM (width padded to a multiple of 8), so every in-kernel tap
# is a sublane-aligned static row shift sliced straight off the ref and fed to the MXU.
# No im2col matrix in HBM, no unaligned VMEM re-tiling copies.

def _conv_taps_kernel(x_ref, w_ref, b_ref, o_ref, *, KH, KW, Cin, Wr, Lo, relu):
    acc = None
    for kh in range(KH):
        off = kh * Wr                                   # static, multiple of 8
        for kw in range(KW):
            tap = x_ref[kw, 0, pl.ds(off, Lo), :]       # (Lo, Cin), aligned slice
            wk = w_ref[pl.ds((kh * KW + kw) * Cin, Cin), :]
            d = jnp.dot(tap, wk, preferred_element_type=jnp.float32)
            acc = d if acc is None else acc + d
    out = acc + b_ref[...]
    if relu:
        out = jnp.maximum(out, 0.0)
    o_ref[0] = out.astype(o_ref.dtype)


@functools.partial(jax.jit, static_argnames=("KH", "KW", "relu"))
def conv_taps(xp, w_packed, b_packed, *, KH, KW, relu=True):
    """Valid KHxKW / stride-1 conv over pre-padded NHWC xp -> (B, Ho, Wo, Cout) bf16."""
    B, Hp, Wp, Cin = xp.shape
    Cout = w_packed.shape[1]
    Ho, Wo = Hp - KH + 1, Wp - KW + 1
    Wr = _ru(Wo, 8)
    Wneed = Wr + KW - 1
    if Wp < Wneed:
        xp = jnp.pad(xp, ((0, 0), (0, 0), (0, Wneed - Wp), (0, 0)))
    xp = xp.astype(jnp.bfloat16)
    # KW column-shifted copies -> every tap becomes a pure (8-aligned) row shift.
    xs = jnp.stack([xp[:, :, s:s + Wr, :] for s in range(KW)], axis=0)
    FL = Hp * Wr
    xs = xs.reshape(KW, B, FL, Cin)
    Lo = Ho * Wr

    tn = min(256, Cout) if Cout % 128 == 0 else Cout
    y = pl.pallas_call(
        functools.partial(_conv_taps_kernel,
                          KH=KH, KW=KW, Cin=Cin, Wr=Wr, Lo=Lo, relu=relu),
        out_shape=jax.ShapeDtypeStruct((B, Lo, Cout), jnp.bfloat16),
        grid=(B, Cout // tn),
        in_specs=[
            pl.BlockSpec((KW, 1, FL, Cin), lambda b, j: (0, b, 0, 0)),
            pl.BlockSpec((KH * KW * Cin, tn), lambda b, j: (0, j)),
            pl.BlockSpec((1, tn), lambda b, j: (0, j)),
        ],
        out_specs=pl.BlockSpec((1, Lo, tn), lambda b, j: (b, 0, j)),
        compiler_params=_cp("parallel", "parallel"),
    )(xs, w_packed, b_packed)
    return y.reshape(B, Ho, Wr, Cout)[:, :, :Wo, :]


def _space_to_depth2(x):
    B, H, W, C = x.shape                                # H, W even
    x = x.reshape(B, H // 2, 2, W // 2, 2, C)
    return x.transpose(0, 1, 3, 2, 4, 5).reshape(B, H // 2, W // 2, 4 * C)


@functools.partial(jax.jit, static_argnames=("stride", "relu"))
def conv3x3(x, w_packed, b_packed, *, stride, relu=True):
    """3x3 conv, pad 1 (BN folded). stride 2 is reformulated as 2x2-space-to-depth +
    2x2-tap conv, so no stride-1 over-compute / over-sized HBM writeback."""
    B, H, W, C = x.shape
    if stride == 1:
        xp = jnp.pad(x, ((0, 0), (1, 1), (1, 1), (0, 0)))
        return conv_taps(xp, w_packed, b_packed, KH=3, KW=3, relu=relu)
    xp = jnp.pad(x, ((0, 0), (1, 1 + H % 2), (1, 1 + W % 2), (0, 0)))
    return conv_taps(_space_to_depth2(xp), w_packed, b_packed, KH=2, KW=2, relu=relu)


@functools.partial(jax.jit, static_argnames=("stride", "relu", "out_dtype"))
def conv1x1(x, w_packed, b_packed, residual=None, *, stride=1, relu=True,
            out_dtype=jnp.bfloat16):
    """1x1 conv (BN folded) as one fused matmul; stride handled by subsampling the input;
    residual (if given) is added + ReLU'd inside the matmul epilogue."""
    if stride > 1:
        x = x[:, ::stride, ::stride, :]
    B, H, W, Cin = x.shape
    Cout = w_packed.shape[1]
    res2 = None if residual is None else residual.reshape(B * H * W, Cout)
    y = matmul_bias_act(x.reshape(B * H * W, Cin), w_packed, b_packed, res2,
                        relu=relu, out_dtype=out_dtype)
    return y.reshape(B, H, W, Cout)


@jax.jit
def conv_stem(x, w_packed, b_packed):
    """7x7 / stride 2 / pad 3 stem conv + BN + ReLU via 2x2 space-to-depth -> 4x4-tap
    valid conv (no 49-tap im2col patch matrix in HBM)."""
    B, H, W, C = x.shape
    xp = jnp.pad(x, ((0, 0), (3, 3 + H % 2), (3, 3 + W % 2), (0, 0)))
    y = _space_to_depth2(xp)                            # (B, Hh, Wh, 12)
    y = jnp.pad(y, ((0, 0), (0, 0), (0, 0), (0, 4)))    # 12 -> 16 ch (aligned tap slices)
    return conv_taps(y, w_packed, b_packed, KH=4, KW=4, relu=True)


# -------------------------------- pooling kernels --------------------------------

def _maxpool_kernel(x_ref, o_ref, *, Ho):
    m = None
    for kh in range(3):
        for kw in range(3):
            t = x_ref[(kh % 2) * 3 + kw, 0, pl.ds(kh // 2, Ho), :, :]   # (Ho, Wo, C)
            m = t if m is None else jnp.maximum(m, t)
    o_ref[0] = m


@jax.jit
def maxpool_3x3_s2_p1(x):
    """MaxPool2d(3, stride=2, padding=1).  The wrapper pre-splits the padded input into
    the 6 (row-parity x column-shift) planes so the kernel's 9 taps are plain leading-dim
    slices and only the stride-2 output map is ever written to HBM."""
    B, H, W, C = x.shape
    Ho = (H - 1) // 2 + 1
    Wo = (W - 1) // 2 + 1
    pb = 2 * Ho - H + 1
    pr = max(0, 2 * Wo - W)
    xp = jnp.pad(x, ((0, 0), (1, pb), (1, pr), (0, 0)), constant_values=-jnp.inf)
    planes = []
    for p in range(2):                                  # row parity
        rows = xp[:, p::2, :, :][:, :Ho + 1]
        for j in range(3):                              # column tap
            planes.append(rows[:, :, j::2, :][:, :, :Wo, :])
    xr = jnp.stack(planes, axis=0)                      # (6, B, Ho+1, Wo, C)
    return pl.pallas_call(
        functools.partial(_maxpool_kernel, Ho=Ho),
        out_shape=jax.ShapeDtypeStruct((B, Ho, Wo, C), x.dtype),
        grid=(B,),
        in_specs=[pl.BlockSpec((6, 1, Ho + 1, Wo, C), lambda b: (0, b, 0, 0, 0))],
        out_specs=pl.BlockSpec((1, Ho, Wo, C), lambda b: (b, 0, 0, 0)),
        compiler_params=_cp("parallel"),
    )(xr)


def _gap_kernel(x_ref, o_ref):
    o_ref[...] = jnp.mean(x_ref[...].astype(jnp.float32), axis=1)


@jax.jit
def global_avg_pool(x):
    """AdaptiveAvgPool2d((1,1)) + Flatten -> (B, C) in f32."""
    B, H, W, C = x.shape
    xf = x.reshape(B, H * W, C)
    return pl.pallas_call(
        _gap_kernel,
        out_shape=jax.ShapeDtypeStruct((B, C), jnp.float32),
        grid=(B,),
        in_specs=[pl.BlockSpec((1, H * W, C), lambda b: (b, 0, 0))],
        out_specs=pl.BlockSpec((1, C), lambda b: (b, 0)),
        compiler_params=_cp("parallel"),
    )(xf)


# ---------------------------------- parameters ----------------------------------

class KeyGen:
    def __init__(self, seed):
        self.key = jax.random.PRNGKey(seed)

    def __call__(self):
        self.key, sub = jax.random.split(self.key)
        return sub


def fold_bn(w_oihw, gamma, beta, mean, var):
    """Fold inference-mode BN into conv: returns HWIO weight and bias."""
    scale = gamma / jnp.sqrt(var + EPS)
    w_hwio = jnp.transpose(w_oihw, (2, 3, 1, 0))
    return w_hwio * scale[None, None, None, :], beta - mean * scale


def init_conv_bn(kg, cin, cout, k):
    fan_in = cin * k * k
    w = jax.random.normal(kg(), (cout, cin, k, k), jnp.float32) * (1.0 / fan_in) ** 0.5
    gamma = jax.random.uniform(kg(), (cout,), jnp.float32, 0.5, 1.5)
    beta = jax.random.normal(kg(), (cout,), jnp.float32) * 0.1
    mean = jax.random.normal(kg(), (cout,), jnp.float32) * 0.1
    var = jax.random.uniform(kg(), (cout,), jnp.float32, 0.5, 1.5)
    return fold_bn(w, gamma, beta, mean, var)


def init_linear(kg, cin, cout):
    bound = cin ** -0.5
    w = jax.random.uniform(kg(), (cout, cin), jnp.float32, -bound, bound)
    b = jax.random.uniform(kg(), (cout,), jnp.float32, -bound, bound)
    return jnp.transpose(w), b                          # (cin, cout), (cout,)


def _bias(b):
    return b.reshape(1, -1).astype(jnp.float32)


def pack_1x1(w_hwio, b):
    cin, cout = w_hwio.shape[2], w_hwio.shape[3]
    return w_hwio.reshape(cin, cout).astype(jnp.bfloat16), _bias(b)


def pack_linear(w, b):
    return w.astype(jnp.bfloat16), _bias(b)


def pack_3x3(w_hwio, b, *, stride):
    kh, kw, cin, cout = w_hwio.shape
    if stride == 1:
        return w_hwio.reshape(kh * kw * cin, cout).astype(jnp.bfloat16), _bias(b)
    # stride 2: fold into a 2x2-tap conv over the 2x2-space-to-depth'd input.
    w4 = jnp.pad(w_hwio, ((0, 1), (0, 1), (0, 0), (0, 0)))             # 3x3 -> 4x4 (zeros)
    w2 = (w4.reshape(2, 2, 2, 2, cin, cout).transpose(0, 2, 1, 3, 4, 5)
            .reshape(2 * 2 * 4 * cin, cout))
    return w2.astype(jnp.bfloat16), _bias(b)


def pack_stem(w_hwio, b):
    cout = w_hwio.shape[3]
    w8 = jnp.pad(w_hwio, ((0, 1), (0, 1), (0, 0), (0, 0)))             # 7x7 -> 8x8 (zeros)
    w2 = (w8.reshape(4, 2, 4, 2, 3, cout).transpose(0, 2, 1, 3, 4, 5)
            .reshape(4, 4, 12, cout))
    w2 = jnp.pad(w2, ((0, 0), (0, 0), (0, 4), (0, 0)))                 # 12 -> 16 channels
    return w2.reshape(4 * 4 * 16, cout).astype(jnp.bfloat16), _bias(b)


def init_params(seed=0, num_classes=2):
    kg = KeyGen(seed)
    params = {"stem": pack_stem(*init_conv_bn(kg, 3, 64, 7))}
    inplanes = 64
    layers = []
    for li, (planes, nblocks) in enumerate(zip(PLANES, BLOCKS)):
        layer_stride = 1 if li == 0 else 2
        blocks = []
        for bi in range(nblocks):
            s = layer_stride if bi == 0 else 1
            blk = {
                "conv1": pack_1x1(*init_conv_bn(kg, inplanes, planes, 1)),
                "conv2": pack_3x3(*init_conv_bn(kg, planes, planes, 3), stride=s),
                "conv3": pack_1x1(*init_conv_bn(kg, planes, planes * EXPANSION, 1)),
                "stride": s,
            }
            if bi == 0 and (s != 1 or inplanes != planes * EXPANSION):
                blk["down"] = pack_1x1(*init_conv_bn(kg, inplanes, planes * EXPANSION, 1))
            blocks.append(blk)
            inplanes = planes * EXPANSION
        layers.append(blocks)
    params["layers"] = layers
    params["fc1"] = pack_linear(*init_linear(kg, 2048, 1024))
    params["fc2"] = pack_linear(*init_linear(kg, 1024, 1024))
    params["fc3"] = pack_linear(*init_linear(kg, 1024, num_classes))
    return params


# ----------------------------------- forward -----------------------------------

def bottleneck(x, blk):
    s = blk["stride"]
    out = conv1x1(x, *blk["conv1"], relu=True)
    out = conv3x3(out, *blk["conv2"], stride=s, relu=True)
    if "down" in blk:
        identity = conv1x1(x, *blk["down"], stride=s, relu=False)
    else:
        identity = x
    # conv3 + BN bias, residual add and final ReLU all fused in the matmul epilogue
    return conv1x1(out, *blk["conv3"], identity, relu=True)


def custom_resnet101_forward(params, x_nchw):
    x = jnp.transpose(x_nchw, (0, 2, 3, 1)).astype(jnp.float32)   # NCHW -> NHWC
    x = conv_stem(x, *params["stem"])                             # conv1 + bn1 + relu
    x = maxpool_3x3_s2_p1(x)                                      # maxpool
    for blocks in params["layers"]:                               # layer1..layer4
        for blk in blocks:
            x = bottleneck(x, blk)
    x = global_avg_pool(x)                                        # avgpool + Flatten
    x = matmul_bias_act(x, *params["fc1"], relu=True, out_dtype=jnp.float32)
    x = matmul_bias_act(x, *params["fc2"], relu=True, out_dtype=jnp.float32)
    x = matmul_bias_act(x, *params["fc3"], relu=False, out_dtype=jnp.float32)
    return x


if __name__ == "__main__":
    params = init_params(seed=0, num_classes=2)
    x = jax.random.normal(jax.random.PRNGKey(0), (2, 3, 32, 32), jnp.float32)  # NCHW
    logits = custom_resnet101_forward(params, x)
    jax.block_until_ready(logits)
    assert logits.shape == (2, 2), logits.shape
    print("KERNEL_OK")
</pallas_src>

<mosaic_0001>
module attributes {stable_mosaic.version = 11 : i64} {
  func.func @_conv_taps_kernel(%arg0: i32, %arg1: i32, %arg2: memref<4x1x304x16xbf16, #tpu.memory_space<vmem>>, %arg3: memref<256x64xbf16, #tpu.memory_space<vmem>>, %arg4: memref<1x64xf32, #tpu.memory_space<vmem>>, %arg5: memref<1x256x64xbf16, #tpu.memory_space<vmem>>) attributes {dimension_semantics = [#tpu.dimension_semantics<parallel>, #tpu.dimension_semantics<parallel>], iteration_bounds = array<i64: 2, 1>, scalar_prefetch = 0 : i64, scratch_operands = 0 : i64, tpu.core_type = #tpu.core_type<tc>, window_params = [{transform_indices = @transform_0, window_bounds = array<i64: 4, 1, 304, 16>}, {transform_indices = @transform_1, window_bounds = array<i64: 256, 64>}, {transform_indices = @transform_2, window_bounds = array<i64: 1, 64>}, {transform_indices = @transform_3, window_bounds = array<i64: 1, 256, 64>}]} {
    %c0 = arith.constant 0 : index
    %c0_0 = arith.constant 0 : index
    %c0_1 = arith.constant 0 : index
    %c0_2 = arith.constant 0 : index
    %0 = vector.load %arg2[%c0, %c0_0, %c0_1, %c0_2] : memref<4x1x304x16xbf16, #tpu.memory_space<vmem>>, vector<1x1x256x16xbf16>
    %1 = vector.shape_cast %0 : vector<1x1x256x16xbf16> to vector<256x16xbf16>
    %c0_3 = arith.constant 0 : index
    %c0_4 = arith.constant 0 : index
    %2 = vector.load %arg3[%c0_3, %c0_4] : memref<256x64xbf16, #tpu.memory_space<vmem>>, vector<16x64xbf16>
    %cst = arith.constant dense<0.000000e+00> : vector<256x64xf32>
    %3 = tpu.matmul %1, %2, %cst {dimension_numbers = #tpu.dot_dimension_numbers<[1], [0], [0], [1], [0, 0, 1, 1], [], []>} : vector<256x16xbf16>, vector<16x64xbf16>, vector<256x64xf32> -> vector<256x64xf32>
    %c1 = arith.constant 1 : index
    %c0_5 = arith.constant 0 : index
    %c0_6 = arith.constant 0 : index
    %c0_7 = arith.constant 0 : index
    %4 = vector.load %arg2[%c1, %c0_5, %c0_6, %c0_7] : memref<4x1x304x16xbf16, #tpu.memory_space<vmem>>, vector<1x1x256x16xbf16>
    %5 = vector.shape_cast %4 : vector<1x1x256x16xbf16> to vector<256x16xbf16>
    %c16 = arith.constant 16 : index
    %c0_8 = arith.constant 0 : index
    %6 = vector.load %arg3[%c16, %c0_8] : memref<256x64xbf16, #tpu.memory_space<vmem>>, vector<16x64xbf16>
    %cst_9 = arith.constant dense<0.000000e+00> : vector<256x64xf32>
    %7 = tpu.matmul %5, %6, %cst_9 {dimension_numbers = #tpu.dot_dimension_numbers<[1], [0], [0], [1], [0, 0, 1, 1], [], []>} : vector<256x16xbf16>, vector<16x64xbf16>, vector<256x64xf32> -> vector<256x64xf32>
    %8 = arith.addf %3, %7 : vector<256x64xf32>
    %c2 = arith.constant 2 : index
    %c0_10 = arith.constant 0 : index
    %c0_11 = arith.constant 0 : index
    %c0_12 = arith.constant 0 : index
    %9 = vector.load %arg2[%c2, %c0_10, %c0_11, %c0_12] : memref<4x1x304x16xbf16, #tpu.memory_space<vmem>>, vector<1x1x256x16xbf16>
    %10 = vector.shape_cast %9 : vector<1x1x256x16xbf16> to vector<256x16xbf16>
    %c32 = arith.constant 32 : index
    %c0_13 = arith.constant 0 : index
    %11 = vector.load %arg3[%c32, %c0_13] : memref<256x64xbf16, #tpu.memory_space<vmem>>, vector<16x64xbf16>
    %cst_14 = arith.constant dense<0.000000e+00> : vector<256x64xf32>
    %12 = tpu.matmul %10, %11, %cst_14 {dimension_numbers = #tpu.dot_dimension_numbers<[1], [0], [0], [1], [0, 0, 1, 1], [], []>} : vector<256x16xbf16>, vector<16x64xbf16>, vector<256x64xf32> -> vector<256x64xf32>
    %13 = arith.addf %8, %12 : vector<256x64xf32>
    %c3 = arith.constant 3 : index
    %c0_15 = arith.constant 0 : index
    %c0_16 = arith.constant 0 : index
    %c0_17 = arith.constant 0 : index
    %14 = vector.load %arg2[%c3, %c0_15, %c0_16, %c0_17] : memref<4x1x304x16xbf16, #tpu.memory_space<vmem>>, vector<1x1x256x16xbf16>
    %15 = vector.shape_cast %14 : vector<1x1x256x16xbf16> to vector<256x16xbf16>
    %c48 = arith.constant 48 : index
    %c0_18 = arith.constant 0 : index
    %16 = vector.load %arg3[%c48, %c0_18] : memref<256x64xbf16, #tpu.memory_space<vmem>>, vector<16x64xbf16>
    %cst_19 = arith.constant dense<0.000000e+00> : vector<256x64xf32>
    %17 = tpu.matmul %15, %16, %cst_19 {dimension_numbers = #tpu.dot_dimension_numbers<[1], [0], [0], [1], [0, 0, 1, 1], [], []>} : vector<256x16xbf16>, vector<16x64xbf16>, vector<256x64xf32> -> vector<256x64xf32>
    %18 = arith.addf %13, %17 : vector<256x64xf32>
    %c0_20 = arith.constant 0 : index
    %c0_21 = arith.constant 0 : index
    %c16_22 = arith.constant 16 : index
    %c0_23 = arith.constant 0 : index
    %19 = vector.load %arg2[%c0_20, %c0_21, %c16_22, %c0_23] : memref<4x1x304x16xbf16, #tpu.memory_space<vmem>>, vector<1x1x256x16xbf16>
    %20 = vector.shape_cast %19 : vector<1x1x256x16xbf16> to vector<256x16xbf16>
    %c64 = arith.constant 64 : index
    %c0_24 = arith.constant 0 : index
    %21 = vector.load %arg3[%c64, %c0_24] : memref<256x64xbf16, #tpu.memory_space<vmem>>, vector<16x64xbf16>
    %cst_25 = arith.constant dense<0.000000e+00> : vector<256x64xf32>
    %22 = tpu.matmul %20, %21, %cst_25 {dimension_numbers = #tpu.dot_dimension_numbers<[1], [0], [0], [1], [0, 0, 1, 1], [], []>} : vector<256x16xbf16>, vector<16x64xbf16>, vector<256x64xf32> -> vector<256x64xf32>
    %23 = arith.addf %18, %22 : vector<256x64xf32>
    %c1_26 = arith.constant 1 : index
    %c0_27 = arith.constant 0 : index
    %c16_28 = arith.constant 16 : index
    %c0_29 = arith.constant 0 : index
    %24 = vector.load %arg2[%c1_26, %c0_27, %c16_28, %c0_29] : memref<4x1x304x16xbf16, #tpu.memory_space<vmem>>, vector<1x1x256x16xbf16>
    %25 = vector.shape_cast %24 : vector<1x1x256x16xbf16> to vector<256x16xbf16>
    %c80 = arith.constant 80 : index
    %c0_30 = arith.constant 0 : index
    %26 = vector.load %arg3[%c80, %c0_30] : memref<256x64xbf16, #tpu.memory_space<vmem>>, vector<16x64xbf16>
    %cst_31 = arith.constant dense<0.000000e+00> : vector<256x64xf32>
    %27 = tpu.matmul %25, %26, %cst_31 {dimension_numbers = #tpu.dot_dimension_numbers<[1], [0], [0], [1], [0, 0, 1, 1], [], []>} : vector<256x16xbf16>, vector<16x64xbf16>, vector<256x64xf32> -> vector<256x64xf32>
    %28 = arith.addf %23, %27 : vector<256x64xf32>
    %c2_32 = arith.constant 2 : index
    %c0_33 = arith.constant 0 : index
    %c16_34 = arith.constant 16 : index
    %c0_35 = arith.constant 0 : index
    %29 = vector.load %arg2[%c2_32, %c0_33, %c16_34, %c0_35] : memref<4x1x304x16xbf16, #tpu.memory_space<vmem>>, vector<1x1x256x16xbf16>
    %30 = vector.shape_cast %29 : vector<1x1x256x16xbf16> to vector<256x16xbf16>
    %c96 = arith.constant 96 : index
    %c0_36 = arith.constant 0 : index
    %31 = vector.load %arg3[%c96, %c0_36] : memref<256x64xbf16, #tpu.memory_space<vmem>>, vector<16x64xbf16>
    %cst_37 = arith.constant dense<0.000000e+00> : vector<256x64xf32>
    %32 = tpu.matmul %30, %31, %cst_37 {dimension_numbers = #tpu.dot_dimension_numbers<[1], [0], [0], [1], [0, 0, 1, 1], [], []>} : vector<256x16xbf16>, vector<16x64xbf16>, vector<256x64xf32> -> vector<256x64xf32>
    %33 = arith.addf %28, %32 : vector<256x64xf32>
    %c3_38 = arith.constant 3 : index
    %c0_39 = arith.constant 0 : index
    %c16_40 = arith.constant 16 : index
    %c0_41 = arith.constant 0 : index
    %34 = vector.load %arg2[%c3_38, %c0_39, %c16_40, %c0_41] : memref<4x1x304x16xbf16, #tpu.memory_space<vmem>>, vector<1x1x256x16xbf16>
    %35 = vector.shape_cast %34 : vector<1x1x256x16xbf16> to vector<256x16xbf16>
    %c112 = arith.constant 112 : index
    %c0_42 = arith.constant 0 : index
    %36 = vector.load %arg3[%c112, %c0_42] : memref<256x64xbf16, #tpu.memory_space<vmem>>, vector<16x64xbf16>
    %cst_43 = arith.constant dense<0.000000e+00> : vector<256x64xf32>
    %37 = tpu.matmul %35, %36, %cst_43 {dimension_numbers = #tpu.dot_dimension_numbers<[1], [0], [0], [1], [0, 0, 1, 1], [], []>} : vector<256x16xbf16>, vector<16x64xbf16>, vector<256x64xf32> -> vector<256x64xf32>
    %38 = arith.addf %33, %37 : vector<256x64xf32>
    %c0_44 = arith.constant 0 : index
    %c0_45 = arith.constant 0 : index
    %c32_46 = arith.constant 32 : index
    %c0_47 = arith.constant 0 : index
    %39 = vector.load %arg2[%c0_44, %c0_45, %c32_46, %c0_47] : memref<4x1x304x16xbf16, #tpu.memory_space<vmem>>, vector<1x1x256x16xbf16>
    %40 = vector.shape_cast %39 : vector<1x1x256x16xbf16> to vector<256x16xbf16>
    %c128 = arith.constant 128 : index
    %c0_48 = arith.constant 0 : index
    %41 = vector.load %arg3[%c128, %c0_48] : memref<256x64xbf16, #tpu.memory_space<vmem>>, vector<16x64xbf16>
    %cst_49 = arith.constant dense<0.000000e+00> : vector<256x64xf32>
    %42 = tpu.matmul %40, %41, %cst_49 {dimension_numbers = #tpu.dot_dimension_numbers<[1], [0], [0], [1], [0, 0, 1, 1], [], []>} : vector<256x16xbf16>, vector<16x64xbf16>, vector<256x64xf32> -> vector<256x64xf32>
    %43 = arith.addf %38, %42 : vector<256x64xf32>
    %c1_50 = arith.constant 1 : index
    %c0_51 = arith.constant 0 : index
    %c32_52 = arith.constant 32 : index
    %c0_53 = arith.constant 0 : index
    %44 = vector.load %arg2[%c1_50, %c0_51, %c32_52, %c0_53] : memref<4x1x304x16xbf16, #tpu.memory_space<vmem>>, vector<1x1x256x16xbf16>
    %45 = vector.shape_cast %44 : vector<1x1x256x16xbf16> to vector<256x16xbf16>
    %c144 = arith.constant 144 : index
    %c0_54 = arith.constant 0 : index
    %46 = vector.load %arg3[%c144, %c0_54] : memref<256x64xbf16, #tpu.memory_space<vmem>>, vector<16x64xbf16>
    %cst_55 = arith.constant dense<0.000000e+00> : vector<256x64xf32>
    %47 = tpu.matmul %45, %46, %cst_55 {dimension_numbers = #tpu.dot_dimension_numbers<[1], [0], [0], [1], [0, 0, 1, 1], [], []>} : vector<256x16xbf16>, vector<16x64xbf16>, vector<256x64xf32> -> vector<256x64xf32>
    %48 = arith.addf %43, %47 : vector<256x64xf32>
    %c2_56 = arith.constant 2 : index
    %c0_57 = arith.constant 0 : index
    %c32_58 = arith.constant 32 : index
    %c0_59 = arith.constant 0 : index
    %49 = vector.load %arg2[%c2_56, %c0_57, %c32_58, %c0_59] : memref<4x1x304x16xbf16, #tpu.memory_space<vmem>>, vector<1x1x256x16xbf16>
    %50 = vector.shape_cast %49 : vector<1x1x256x16xbf16> to vector<256x16xbf16>
    %c160 = arith.constant 160 : index
    %c0_60 = arith.constant 0 : index
    %51 = vector.load %arg3[%c160, %c0_60] : memref<256x64xbf16, #tpu.memory_space<vmem>>, vector<16x64xbf16>
    %cst_61 = arith.constant dense<0.000000e+00> : vector<256x64xf32>
    %52 = tpu.matmul %50, %51, %cst_61 {dimension_numbers = #tpu.dot_dimension_numbers<[1], [0], [0], [1], [0, 0, 1, 1], [], []>} : vector<256x16xbf16>, vector<16x64xbf16>, vector<256x64xf32> -> vector<256x64xf32>
    %53 = arith.addf %48, %52 : vector<256x64xf32>
    %c3_62 = arith.constant 3 : index
    %c0_63 = arith.constant 0 : index
    %c32_64 = arith.constant 32 : index
    %c0_65 = arith.constant 0 : index
    %54 = vector.load %arg2[%c3_62, %c0_63, %c32_64, %c0_65] : memref<4x1x304x16xbf16, #tpu.memory_space<vmem>>, vector<1x1x256x16xbf16>
    %55 = vector.shape_cast %54 : vector<1x1x256x16xbf16> to vector<256x16xbf16>
    %c176 = arith.constant 176 : index
    %c0_66 = arith.constant 0 : index
    %56 = vector.load %arg3[%c176, %c0_66] : memref<256x64xbf16, #tpu.memory_space<vmem>>, vector<16x64xbf16>
    %cst_67 = arith.constant dense<0.000000e+00> : vector<256x64xf32>
    %57 = tpu.matmul %55, %56, %cst_67 {dimension_numbers = #tpu.dot_dimension_numbers<[1], [0], [0], [1], [0, 0, 1, 1], [], []>} : vector<256x16xbf16>, vector<16x64xbf16>, vector<256x64xf32> -> vector<256x64xf32>
    %58 = arith.addf %53, %57 : vector<256x64xf32>
    %c0_68 = arith.constant 0 : index
    %c0_69 = arith.constant 0 : index
    %c48_70 = arith.constant 48 : index
    %c0_71 = arith.constant 0 : index
    %59 = vector.load %arg2[%c0_68, %c0_69, %c48_70, %c0_71] : memref<4x1x304x16xbf16, #tpu.memory_space<vmem>>, vector<1x1x256x16xbf16>
    %60 = vector.shape_cast %59 : vector<1x1x256x16xbf16> to vector<256x16xbf16>
    %c192 = arith.constant 192 : index
    %c0_72 = arith.constant 0 : index
    %61 = vector.load %arg3[%c192, %c0_72] : memref<256x64xbf16, #tpu.memory_space<vmem>>, vector<16x64xbf16>
    %cst_73 = arith.constant dense<0.000000e+00> : vector<256x64xf32>
    %62 = tpu.matmul %60, %61, %cst_73 {dimension_numbers = #tpu.dot_dimension_numbers<[1], [0], [0], [1], [0, 0, 1, 1], [], []>} : vector<256x16xbf16>, vector<16x64xbf16>, vector<256x64xf32> -> vector<256x64xf32>
    %63 = arith.addf %58, %62 : vector<256x64xf32>
    %c1_74 = arith.constant 1 : index
    %c0_75 = arith.constant 0 : index
    %c48_76 = arith.constant 48 : index
    %c0_77 = arith.constant 0 : index
    %64 = vector.load %arg2[%c1_74, %c0_75, %c48_76, %c0_77] : memref<4x1x304x16xbf16, #tpu.memory_space<vmem>>, vector<1x1x256x16xbf16>
    %65 = vector.shape_cast %64 : vector<1x1x256x16xbf16> to vector<256x16xbf16>
    %c208 = arith.constant 208 : index
    %c0_78 = arith.constant 0 : index
    %66 = vector.load %arg3[%c208, %c0_78] : memref<256x64xbf16, #tpu.memory_space<vmem>>, vector<16x64xbf16>
    %cst_79 = arith.constant dense<0.000000e+00> : vector<256x64xf32>
    %67 = tpu.matmul %65, %66, %cst_79 {dimension_numbers = #tpu.dot_dimension_numbers<[1], [0], [0], [1], [0, 0, 1, 1], [], []>} : vector<256x16xbf16>, vector<16x64xbf16>, vector<256x64xf32> -> vector<256x64xf32>
    %68 = arith.addf %63, %67 : vector<256x64xf32>
    %c2_80 = arith.constant 2 : index
    %c0_81 = arith.constant 0 : index
    %c48_82 = arith.constant 48 : index
    %c0_83 = arith.constant 0 : index
    %69 = vector.load %arg2[%c2_80, %c0_81, %c48_82, %c0_83] : memref<4x1x304x16xbf16, #tpu.memory_space<vmem>>, vector<1x1x256x16xbf16>
    %70 = vector.shape_cast %69 : vector<1x1x256x16xbf16> to vector<256x16xbf16>
    %c224 = arith.constant 224 : index
    %c0_84 = arith.constant 0 : index
    %71 = vector.load %arg3[%c224, %c0_84] : memref<256x64xbf16, #tpu.memory_space<vmem>>, vector<16x64xbf16>
    %cst_85 = arith.constant dense<0.000000e+00> : vector<256x64xf32>
    %72 = tpu.matmul %70, %71, %cst_85 {dimension_numbers = #tpu.dot_dimension_numbers<[1], [0], [0], [1], [0, 0, 1, 1], [], []>} : vector<256x16xbf16>, vector<16x64xbf16>, vector<256x64xf32> -> vector<256x64xf32>
    %73 = arith.addf %68, %72 : vector<256x64xf32>
    %c3_86 = arith.constant 3 : index
    %c0_87 = arith.constant 0 : index
    %c48_88 = arith.constant 48 : index
    %c0_89 = arith.constant 0 : index
    %74 = vector.load %arg2[%c3_86, %c0_87, %c48_88, %c0_89] : memref<4x1x304x16xbf16, #tpu.memory_space<vmem>>, vector<1x1x256x16xbf16>
    %75 = vector.shape_cast %74 : vector<1x1x256x16xbf16> to vector<256x16xbf16>
    %c240 = arith.constant 240 : index
    %c0_90 = arith.constant 0 : index
    %76 = vector.load %arg3[%c240, %c0_90] : memref<256x64xbf16, #tpu.memory_space<vmem>>, vector<16x64xbf16>
    %cst_91 = arith.constant dense<0.000000e+00> : vector<256x64xf32>
    %77 = tpu.matmul %75, %76, %cst_91 {dimension_numbers = #tpu.dot_dimension_numbers<[1], [0], [0], [1], [0, 0, 1, 1], [], []>} : vector<256x16xbf16>, vector<16x64xbf16>, vector<256x64xf32> -> vector<256x64xf32>
    %78 = arith.addf %73, %77 : vector<256x64xf32>
    %c0_92 = arith.constant 0 : index
    %c0_93 = arith.constant 0 : index
    %79 = vector.load %arg4[%c0_92, %c0_93] : memref<1x64xf32, #tpu.memory_space<vmem>>, vector<1x64xf32>
    %80 = vector.broadcast %79 : vector<1x64xf32> to vector<256x64xf32>
    %81 = arith.addf %78, %80 : vector<256x64xf32>
    %cst_94 = arith.constant 0.000000e+00 : f32
    %82 = vector.broadcast %cst_94 : f32 to vector<256x64xf32>
    %83 = arith.maximumf %81, %82 : vector<256x64xf32>
    %84 = arith.truncf %83 : vector<256x64xf32> to vector<256x64xbf16>
    %c0_95 = arith.constant 0 : index
    %c0_96 = arith.constant 0 : index
    %c0_97 = arith.constant 0 : index
    %85 = vector.load %arg5[%c0_95, %c0_96, %c0_97] : memref<1x256x64xbf16, #tpu.memory_space<vmem>>, vector<1x256x64xbf16>
    %86 = vector.shape_cast %85 : vector<1x256x64xbf16> to vector<256x64xbf16>
    %87 = vector.shape_cast %84 : vector<256x64xbf16> to vector<1x256x64xbf16>
    tpu.vector_store %arg5[%c0_95, %c0_96, %c0_97], %87 {strides = array<i32>} : memref<1x256x64xbf16, #tpu.memory_space<vmem>>, vector<1x256x64xbf16>,
    return
  }
  func.func @transform_0(%arg0: i32, %arg1: i32) -> (i32, i32, i32, i32) {
    %c0_i32 = arith.constant 0 : i32
    %c0_i32_0 = arith.constant 0 : i32
    %c0_i32_1 = arith.constant 0 : i32
    %c0_i32_2 = arith.constant 0 : i32
    return %c0_i32, %arg0, %c0_i32_0, %c0_i32_1 : i32, i32, i32, i32
  }
  func.func @transform_1(%arg0: i32, %arg1: i32) -> (i32, i32) {
    %c0_i32 = arith.constant 0 : i32
    %c0_i32_0 = arith.constant 0 : i32
    return %c0_i32, %arg1 : i32, i32
  }
  func.func @transform_2(%arg0: i32, %arg1: i32) -> (i32, i32) {
    %c0_i32 = arith.constant 0 : i32
    %c0_i32_0 = arith.constant 0 : i32
    return %c0_i32, %arg1 : i32, i32
  }
  func.func @transform_3(%arg0: i32, %arg1: i32) -> (i32, i32, i32) {
    %c0_i32 = arith.constant 0 : i32
    %c0_i32_0 = arith.constant 0 : i32
    return %arg0, %c0_i32, %arg1 : i32, i32, i32
  }
}

</mosaic_0001>

<llo_original>
// kernel: conv_taps.1
$region0: #{conv_taps.1}
  #allocation0 [shape = 'u32[]', space=smem, size = 0x4, offset = 0x4, fixed_abs, tag = 'smem constant byte address 0x4 - core index']
  #allocation1 [shape = 'u32[144,128]{1,0:T(1,128)}', space=vmem, size = 0x12000, scoped, tag = 'internal scratch']
  %s0 = inlined_call_operand.vmem [shape: bf16[4,2,304,16], index: 0, kind: input, shape index: {}]
  %s1 = inlined_call_operand.vmem [shape: bf16[256,64], index: 1, kind: input, shape index: {}]
  %s2 = inlined_call_operand.vmem [shape: f32[1,64], index: 2, kind: input, shape index: {}]
  %s3 = inlined_call_operand.hbm [shape: bf16[2,256,64], index: 3, kind: output, shape index: {}]
  %s4 = sld [smem:[#allocation0]]
  $region86: #{conv_taps.1} parent=0
    _
  %s6 = ssub.s32 1, %s4
  %s7 = scalar_select 0, %s6, %s4
  $region1: #{conv_taps.1} parent=0
    #allocation2 [shape = 'u8[622592]{0}', space=vmem, size = 0x98000, scoped, tag = 'input window, operand 0']
    #allocation3 [shape = 'u8[131072]{0}', space=vmem, size = 0x20000, scoped, tag = 'output window, operand 0']
    #allocation4 [shape = 's32[2]{0}', space=sflag, size = 0x8, scoped, tag = 'scoped memory for conv_taps.1']
    %8 = vsyncpa [#allocation4], 0
    %s9 = scalar_lea.sflag [#allocation4], 1
    %10 = vsyncpa %s9, 0
    loop: start=0, step=1, limit=4
    $region2: #{conv_taps.1} parent=1 // loop_pre_header
      _
    $region3: #{conv_taps.1} parent=1 // loop_header
      %s12 = sphi 0, %s16
      %p13 = scmp.ge.s32.totalorder %s12, 4
      %s19 = sphi 0, %s31
      %s20 = sphi 0, %s27
      %s21 = sphi 0, %s19
      %s22 = sphi 0, %s20
      %s23 = sphi 0, %s21
      %s24 = sphi 0, %s22
      %s34 = sphi 0, %s36
      %s37 = sphi 0, %s34
      %s38 = sphi 0, %s37
      %s54 = sphi 0, %s38
      %s60 = sphi 0, %s62
      %s63 = sphi 0, %s60
      %s64 = sphi 0, %s63
      %s80 = sphi 0, %s64
      %s86 = sphi 0, %s88
      %s89 = sphi 0, %s86
      %s90 = sphi 0, %s89
      %s106 = sphi 0, %s90
      %s114 = sphi 0, %s116
      %s117 = sphi 0, %s114
      %s118 = sphi 0, %s117
      %s134 = sphi 0, %s118
    $region4: #{conv_taps.1} parent=1 // loop_header_branch
      %15 = sbr.rel (%p13) target = $region8
    $region5: #{conv_taps.1} parent=1 // loop_body
      %s17 = ssub.s32 %s12, 1
      %s18 = ssub.s32 %s12, 2
      %s25 = sadd.s32 1, %s20
      %p26 = scmp.ge.s32.totalorder %s25, 1
      %s27 = scalar_select %p26, 0, %s25
      %s28 = sadd.s32 1, %s19
      %s29 = scalar_select %p26, %s28, %s19
      %p30 = scmp.ge.s32.totalorder %s29, 2
      %s31 = scalar_select %p30, 0, %s29
      %s32 = ssub.s32 %s19, %s31
      %p33 = scmp.eq.s32.totalorder %s32, 0
      %s35 = sadd.s32 %s34, 1
      %s36 = scalar_select %p33, %s34, %s35
      %p39 = pneg %p33
      %p40 = scmp.eq.s32.totalorder %s12, 1
      %p41 = por %p39, %p40
      %p42 = scmp.ne.s32.totalorder %s34, %s37
      %p43 = scmp.eq.s32.totalorder %s12, 0
      %p44 = por %p42, %p43
      %p45 = scmp.ne.s32.totalorder %s34, %s37
      %p46 = scmp.eq.s32.totalorder %s17, 1
      %p47 = por %p45, %p46
      %p48 = scmp.ne.s32.totalorder %s37, %s38
      %p49 = scmp.eq.s32.totalorder %s17, 0
      %p50 = por %p48, %p49
      %p51 = scmp.ne.s32.totalorder %s37, %s38
      %p52 = scmp.eq.s32.totalorder %s18, 1
      %p53 = por %p51, %p52
      %p55 = scmp.ne.s32.totalorder %s38, %s54
      %p56 = scmp.eq.s32.totalorder %s18, 0
      %p57 = por %p55, %p56
      %s58 = ssub.s32 %s20, %s27
      %p59 = scmp.eq.s32.totalorder %s58, 0
      %s61 = sadd.s32 %s60, 1
      %s62 = scalar_select %p59, %s60, %s61
      %p65 = pneg %p59
      %p66 = scmp.eq.s32.totalorder %s12, 1
      %p67 = por %p65, %p66
      %p68 = scmp.ne.s32.totalorder %s60, %s63
      %p69 = scmp.eq.s32.totalorder %s12, 0
      %p70 = por %p68, %p69
      %p71 = scmp.ne.s32.totalorder %s60, %s63
      %p72 = scmp.eq.s32.totalorder %s17, 1
      %p73 = por %p71, %p72
      %p74 = scmp.ne.s32.totalorder %s63, %s64
      %p75 = scmp.eq.s32.totalorder %s17, 0
      %p76 = por %p74, %p75
      %p77 = scmp.ne.s32.totalorder %s63, %s64
      %p78 = scmp.eq.s32.totalorder %s18, 1
      %p79 = por %p77, %p78
      %p81 = scmp.ne.s32.totalorder %s64, %s80
      %p82 = scmp.eq.s32.totalorder %s18, 0
      %p83 = por %p81, %p82
      %s84 = ssub.s32 %s20, %s27
      %p85 = scmp.eq.s32.totalorder %s84, 0
      %s87 = sadd.s32 %s86, 1
      %s88 = scalar_select %p85, %s86, %s87
      %p91 = pneg %p85
      %p92 = scmp.eq.s32.totalorder %s12, 1
      %p93 = por %p91, %p92
      %p94 = scmp.ne.s32.totalorder %s86, %s89
      %p95 = scmp.eq.s32.totalorder %s12, 0
      %p96 = por %p94, %p95
      %p97 = scmp.ne.s32.totalorder %s86, %s89
      %p98 = scmp.eq.s32.totalorder %s17, 1
      %p99 = por %p97, %p98
      %p100 = scmp.ne.s32.totalorder %s89, %s90
      %p101 = scmp.eq.s32.totalorder %s17, 0
      %p102 = por %p100, %p101
      %p103 = scmp.ne.s32.totalorder %s89, %s90
      %p104 = scmp.eq.s32.totalorder %s18, 1
      %p105 = por %p103, %p104
      %p107 = scmp.ne.s32.totalorder %s90, %s106
      %p108 = scmp.eq.s32.totalorder %s18, 0
      %p109 = por %p107, %p108
      %s110 = ssub.s32 %s19, %s31
      %s111 = ssub.s32 %s20, %s27
      %s112 = sor.u32 %s110, %s111
      %p113 = scmp.eq.s32.totalorder %s112, 0
      %s115 = sadd.s32 %s114, 1
      %s116 = scalar_select %p113, %s114, %s115
      %p119 = pneg %p113
      %p120 = scmp.eq.s32.totalorder %s12, 1
      %p121 = por %p119, %p120
      %p122 = scmp.ne.s32.totalorder %s114, %s117
      %p123 = scmp.eq.s32.totalorder %s12, 0
      %p124 = por %p122, %p123
      %p125 = scmp.ne.s32.totalorder %s114, %s117
      %p126 = scmp.eq.s32.totalorder %s17, 1
      %p127 = por %p125, %p126
      %p128 = scmp.ne.s32.totalorder %s117, %s118
      %p129 = scmp.eq.s32.totalorder %s17, 0
      %p130 = por %p128, %p129
      %p131 = scmp.ne.s32.totalorder %s117, %s118
      %p132 = scmp.eq.s32.totalorder %s18, 1
      %p133 = por %p131, %p132
      %p135 = scmp.ne.s32.totalorder %s118, %s134
      %p136 = scmp.eq.s32.totalorder %s18, 0
      %p137 = por %p135, %p136
      %p138 = scmp.le.s32.totalorder 1, %s12
      %p139 = scmp.lt.s32.totalorder %s12, 3
      %p140 = pnand %p138, %p139
      %p141 = pneg %p140
      // Predicated region
      $region9: #{conv_taps.1} parent=5 // pred_check
        _
      $region10: #{conv_taps.1} parent=5 // pred_check_branch
        %143 = sbr.rel (%p140) target = $region12
      $region11: #{conv_taps.1} parent=5 // pred_region
        %s144 = ssub.s32 %s12, 1
        // Predicated region
        $region13: #{conv_taps.1} parent=11 // pred_check
          %p145 = pneg %p76
        $region14: #{conv_taps.1} parent=11 // pred_check_branch
          %147 = sbr.rel (%p145) target = $region16
        $region15: #{conv_taps.1} parent=11 // pred_region
          %p148 = scmp.lt.s32.totalorder %s22, 0
          %s149 = scalar_select %p148, %s22, 0
          %s150 = smul.addr %s149, 4
          %s151 = scalar_lea.vmem %s1, %s150
        $region16: #{conv_taps.1} parent=11 // pred_fallthru
          _
        // Predicated region
        $region17: #{conv_taps.1} parent=11 // pred_check
          %p152 = pneg %p102
        $region18: #{conv_taps.1} parent=11 // pred_check_branch
          %154 = sbr.rel (%p152) target = $region20
        $region19: #{conv_taps.1} parent=11 // pred_region
          %p155 = scmp.lt.s32.totalorder %s22, 0
          %s156 = scalar_select %p155, %s22, 0
          %s157 = scalar_lea.vmem %s2, %s156
        $region20: #{conv_taps.1} parent=11 // pred_fallthru
          _
      $region12: #{conv_taps.1} parent=5 // pred_fallthru
        _
      %p158 = scmp.lt.s32.totalorder %s12, 2
      // Predicated region
      $region21: #{conv_taps.1} parent=5 // pred_check
        %p159 = pneg %p158
      $region22: #{conv_taps.1} parent=5 // pred_check_branch
        %161 = sbr.rel (%p159) target = $region24
      $region23: #{conv_taps.1} parent=5 // pred_region
        // Predicated region
        $region25: #{conv_taps.1} parent=23 // pred_check
          %p162 = pneg %p44
        $region26: #{conv_taps.1} parent=23 // pred_check_branch
          %164 = sbr.rel (%p162) target = $region28
        $region27: #{conv_taps.1} parent=23 // pred_region
          %s165 = sand.u32 %s34, 1
          %s166 = sand.u32 %s34, 1
          %s167 = smul.addr %s166, 608
          %s168 = scalar_lea.vmem [#allocation2], %s167
          %s169 = smul.addr %s19, 38
          %s170 = smul.addr %s169, 4
          %s171 = scalar_lea.vmem %s0, %s170
          // Predicated region
          $region29: #{conv_taps.1} parent=27 // pred_check
            _
          $region30: #{conv_taps.1} parent=27 // pred_check_branch
            %173 = sbr.rel (0) target = $region32
          $region31: #{conv_taps.1} parent=27 // pred_region
            // Predicated region
            $region33: #{conv_taps.1} parent=31 // pred_check
              _
            $region34: #{conv_taps.1} parent=31 // pred_check_branch
              %175 = sbr.rel target = $region36
            $region35: #{conv_taps.1} parent=31 // pred_region
              // Predicated region
              $region48: #{conv_taps.1} parent=35 // pred_check
                _
              $region49: #{conv_taps.1} parent=35 // pred_check_branch
                %493 = sbr.rel (0) target = $region51
              $region50: #{conv_taps.1} parent=35 // pred_region
                loop: start=0, step=1, limit=1
                $region52: #{conv_taps.1} parent=50 // loop_pre_header
                  _
                $region53: #{conv_taps.1} parent=50 // loop_header
                  %s495 = sphi 0, %s499
                  %p496 = scmp.ge.s32.totalorder %s495, 1
                  %s500 = sphi %s171, %s171
                  %s501 = sphi %s168, %s168
                $region54: #{conv_taps.1} parent=50 // loop_header_branch
                  %498 = sbr.rel (%p496) target = $region58
                $region55: #{conv_taps.1} parent=50 // loop_body
                  _
                $region56: #{conv_taps.1} parent=50 // loop_footer
                  %s499 = sadd.s32 1, %s495
                $region57: #{conv_taps.1} parent=50 // loop_footer_branch
                  %494 = sbr.rel target = $region53
                $region58: #{conv_taps.1} parent=50 // loop_exit
                  _
                %s503 = ssub.s32 16, 1
                loop: start=0, step=1, limit=1
                $region59: #{conv_taps.1} parent=50 // loop_pre_header
                  _
                $region60: #{conv_taps.1} parent=50 // loop_header
                  %s505 = sphi 0, %s509
                  %p506 = scmp.ge.s32.totalorder %s505, 1
                  %s510 = sphi %s171, %s171
                  %s511 = sphi %s168, %s168
                $region61: #{conv_taps.1} parent=50 // loop_header_branch
                  %508 = sbr.rel (%p506) target = $region65
                $region62: #{conv_taps.1} parent=50 // loop_body
                  %v512 = vld [vmem:[%s510] sm:%s503]
                  %513 = vst [vmem:[%s511] sm:%s503] %v512
                  %v514 = vld [vmem:[%s510 + $0x4] sm:%s503]
                  %515 = vst [vmem:[%s511 + $0x4] sm:%s503] %v514
                  %v516 = vld [vmem:[%s510 + $0x8] sm:%s503]
                  %517 = vst [vmem:[%s511 + $0x8] sm:%s503] %v516
                  %v518 = vld [vmem:[%s510 + $0xc] sm:%s503]
                  %519 = vst [vmem:[%s511 + $0xc] sm:%s503] %v518
                  %v520 = vld [vmem:[%s510 + $0x10] sm:%s503]
                  %521 = vst [vmem:[%s511 + $0x10] sm:%s503] %v520
                  %v522 = vld [vmem:[%s510 + $0x14] sm:%s503]
                  %523 = vst [vmem:[%s511 + $0x14] sm:%s503] %v522
                  %v524 = vld [vmem:[%s510 + $0x18] sm:%s503]
                  %525 = vst [vmem:[%s511 + $0x18] sm:%s503] %v524
                  %v526 = vld [vmem:[%s510 + $0x1c] sm:%s503]
                  %527 = vst [vmem:[%s511 + $0x1c] sm:%s503] %v526
                  %v528 = vld [vmem:[%s510 + $0x20] sm:%s503]
                  %529 = vst [vmem:[%s511 + $0x20] sm:%s503] %v528
                  %v530 = vld [vmem:[%s510 + $0x24] sm:%s503]
                  %531 = vst [vmem:[%s511 + $0x24] sm:%s503] %v530
                  %v532 = vld [vmem:[%s510 + $0x28] sm:%s503]
                  %533 = vst [vmem:[%s511 + $0x28] sm:%s503] %v532
                  %v534 = vld [vmem:[%s510 + $0x2c] sm:%s503]
                  %535 = vst [vmem:[%s511 + $0x2c] sm:%s503] %v534
                  %v536 = vld [vmem:[%s510 + $0x30] sm:%s503]
                  %537 = vst [vmem:[%s511 + $0x30] sm:%s503] %v536
                  %v538 = vld [vmem:[%s510 + $0x34] sm:%s503]
                  %539 = vst [vmem:[%s511 + $0x34] sm:%s503] %v538
                  %v540 = vld [vmem:[%s510 + $0x38] sm:%s503]
                  %541 = vst [vmem:[%s511 + $0x38] sm:%s503] %v540
                  %v542 = vld [vmem:[%s510 + $0x3c] sm:%s503]
                  %543 = vst [vmem:[%s511 + $0x3c] sm:%s503] %v542
                  %v544 = vld [vmem:[%s510 + $0x40] sm:%s503]
                  %545 = vst [vmem:[%s511 + $0x40] sm:%s503] %v544
                  %v546 = vld [vmem:[%s510 + $0x44] sm:%s503]
                  %547 = vst [vmem:[%s511 + $0x44] sm:%s503] %v546
                  %v548 = vld [vmem:[%s510 + $0x48] sm:%s503]
                  %549 = vst [vmem:[%s511 + $0x48] sm:%s503] %v548
                  %v550 = vld [vmem:[%s510 + $0x4c] sm:%s503]
                  %551 = vst [vmem:[%s511 + $0x4c] sm:%s503] %v550
                  %v552 = vld [vmem:[%s510 + $0x50] sm:%s503]
                  %553 = vst [vmem:[%s511 + $0x50] sm:%s503] %v552
                  %v554 = vld [vmem:[%s510 + $0x54] sm:%s503]
                  %555 = vst [vmem:[%s511 + $0x54] sm:%s503] %v554
                  %v556 = vld [vmem:[%s510 + $0x58] sm:%s503]
                  %557 = vst [vmem:[%s511 + $0x58] sm:%s503] %v556
                  %v558 = vld [vmem:[%s510 + $0x5c] sm:%s503]
                  %559 = vst [vmem:[%s511 + $0x5c] sm:%s503] %v558
                  %v560 = vld [vmem:[%s510 + $0x60] sm:%s503]
                  %561 = vst [vmem:[%s511 + $0x60] sm:%s503] %v560
                  %v562 = vld [vmem:[%s510 + $0x64] sm:%s503]
                  %563 = vst [vmem:[%s511 + $0x64] sm:%s503] %v562
                  %v564 = vld [vmem:[%s510 + $0x68] sm:%s503]
                  %565 = vst [vmem:[%s511 + $0x68] sm:%s503] %v564
                  %v566 = vld [vmem:[%s510 + $0x6c] sm:%s503]
                  %567 = vst [vmem:[%s511 + $0x6c] sm:%s503] %v566
                  %v568 = vld [vmem:[%s510 + $0x70] sm:%s503]
                  %569 = vst [vmem:[%s511 + $0x70] sm:%s503] %v568
                  %v570 = vld [vmem:[%s510 + $0x74] sm:%s503]
                  %571 = vst [vmem:[%s511 + $0x74] sm:%s503] %v570
                  %v572 = vld [vmem:[%s510 + $0x78] sm:%s503]
                  %573 = vst [vmem:[%s511 + $0x78] sm:%s503] %v572
                  %v574 = vld [vmem:[%s510 + $0x7c] sm:%s503]
                  %575 = vst [vmem:[%s511 + $0x7c] sm:%s503] %v574
                  %v576 = vld [vmem:[%s510 + $0x80] sm:%s503]
                  %577 = vst [vmem:[%s511 + $0x80] sm:%s503] %v576
                  %v578 = vld [vmem:[%s510 + $0x84] sm:%s503]
                  %579 = vst [vmem:[%s511 + $0x84] sm:%s503] %v578
                  %v580 = vld [vmem:[%s510 + $0x88] sm:%s503]
                  %581 = vst [vmem:[%s511 + $0x88] sm:%s503] %v580
                  %v582 = vld [vmem:[%s510 + $0x8c] sm:%s503]
                  %583 = vst [vmem:[%s511 + $0x8c] sm:%s503] %v582
                  %v584 = vld [vmem:[%s510 + $0x90] sm:%s503]
                  %585 = vst [vmem:[%s511 + $0x90] sm:%s503] %v584
                  %v586 = vld [vmem:[%s510 + $0x94] sm:%s503]
                  %587 = vst [vmem:[%s511 + $0x94] sm:%s503] %v586
                  %v588 = vld [vmem:[%s510 + $0x130] sm:%s503]
                  %589 = vst [vmem:[%s511 + $0x98] sm:%s503] %v588
                  %v590 = vld [vmem:[%s510 + $0x134] sm:%s503]
                  %591 = vst [vmem:[%s511 + $0x9c] sm:%s503] %v590
                  %v592 = vld [vmem:[%s510 + $0x138] sm:%s503]
                  %593 = vst [vmem:[%s511 + $0xa0] sm:%s503] %v592
                  %v594 = vld [vmem:[%s510 + $0x13c] sm:%s503]
                  %595 = vst [vmem:[%s511 + $0xa4] sm:%s503] %v594
                  %v596 = vld [vmem:[%s510 + $0x140] sm:%s503]
                  %597 = vst [vmem:[%s511 + $0xa8] sm:%s503] %v596
                  %v598 = vld [vmem:[%s510 + $0x144] sm:%s503]
                  %599 = vst [vmem:[%s511 + $0xac] sm:%s503] %v598
                  %v600 = vld [vmem:[%s510 + $0x148] sm:%s503]
                  %601 = vst [vmem:[%s511 + $0xb0] sm:%s503] %v600
                  %v602 = vld [vmem:[%s510 + $0x14c] sm:%s503]
                  %603 = vst [vmem:[%s511 + $0xb4] sm:%s503] %v602
                  %v604 = vld [vmem:[%s510 + $0x150] sm:%s503]
                  %605 = vst [vmem:[%s511 + $0xb8] sm:%s503] %v604
                  %v606 = vld [vmem:[%s510 + $0x154] sm:%s503]
                  %607 = vst [vmem:[%s511 + $0xbc] sm:%s503] %v606
                  %v608 = vld [vmem:[%s510 + $0x158] sm:%s503]
                  %609 = vst [vmem:[%s511 + $0xc0] sm:%s503] %v608
                  %v610 = vld [vmem:[%s510 + $0x15c] sm:%s503]
                  %611 = vst [vmem:[%s511 + $0xc4] sm:%s503] %v610
                  %v612 = vld [vmem:[%s510 + $0x160] sm:%s503]
                  %613 = vst [vmem:[%s511 + $0xc8] sm:%s503] %v612
                  %v614 = vld [vmem:[%s510 + $0x164] sm:%s503]
                  %615 = vst [vmem:[%s511 + $0xcc] sm:%s503] %v614
                  %v616 = vld [vmem:[%s510 + $0x168] sm:%s503]
                  %617 = vst [vmem:[%s511 + $0xd0] sm:%s503] %v616
                  %v618 = vld [vmem:[%s510 + $0x16c] sm:%s503]
                  %619 = vst [vmem:[%s511 + $0xd4] sm:%s503] %v618
                  %v620 = vld [vmem:[%s510 + $0x170] sm:%s503]
                  %621 = vst [vmem:[%s511 + $0xd8] sm:%s503] %v620
                  %v622 = vld [vmem:[%s510 + $0x174] sm:%s503]
                  %623 = vst [vmem:[%s511 + $0xdc] sm:%s503] %v622
                  %v624 = vld [vmem:[%s510 + $0x178] sm:%s503]
                  %625 = vst [vmem:[%s511 + $0xe0] sm:%s503] %v624
                  %v626 = vld [vmem:[%s510 + $0x17c] sm:%s503]
                  %627 = vst [vmem:[%s511 + $0xe4] sm:%s503] %v626
                  %v628 = vld [vmem:[%s510 + $0x180] sm:%s503]
                  %629 = vst [vmem:[%s511 + $0xe8] sm:%s503] %v628
                  %v630 = vld [vmem:[%s510 + $0x184] sm:%s503]
                  %631 = vst [vmem:[%s511 + $0xec] sm:%s503] %v630
                  %v632 = vld [vmem:[%s510 + $0x188] sm:%s503]
                  %633 = vst [vmem:[%s511 + $0xf0] sm:%s503] %v632
                  %v634 = vld [vmem:[%s510 + $0x18c] sm:%s503]
                  %635 = vst [vmem:[%s511 + $0xf4] sm:%s503] %v634
                  %v636 = vld [vmem:[%s510 + $0x190] sm:%s503]
                  %637 = vst [vmem:[%s511 + $0xf8] sm:%s503] %v636
                  %v638 = vld [vmem:[%s510 + $0x194] sm:%s503]
                  %639 = vst [vmem:[%s511 + $0xfc] sm:%s503] %v638
                  %v640 = vld [vmem:[%s510 + $0x198] sm:%s503]
                  %641 = vst [vmem:[%s511 + $0x100] sm:%s503] %v640
                  %v642 = vld [vmem:[%s510 + $0x19c] sm:%s503]
                  %643 = vst [vmem:[%s511 + $0x104] sm:%s503] %v642
                  %v644 = vld [vmem:[%s510 + $0x1a0] sm:%s503]
                  %645 = vst [vmem:[%s511 + $0x108] sm:%s503] %v644
                  %v646 = vld [vmem:[%s510 + $0x1a4] sm:%s503]
                  %647 = vst [vmem:[%s511 + $0x10c] sm:%s503] %v646
                  %v648 = vld [vmem:[%s510 + $0x1a8] sm:%s503]
                  %649 = vst [vmem:[%s511 + $0x110] sm:%s503] %v648
                  %v650 = vld [vmem:[%s510 + $0x1ac] sm:%s503]
                  %651 = vst [vmem:[%s511 + $0x114] sm:%s503] %v650
                  %v652 = vld [vmem:[%s510 + $0x1b0] sm:%s503]
                  %653 = vst [vmem:[%s511 + $0x118] sm:%s503] %v652
                  %v654 = vld [vmem:[%s510 + $0x1b4] sm:%s503]
                  %655 = vst [vmem:[%s511 + $0x11c] sm:%s503] %v654
                  %v656 = vld [vmem:[%s510 + $0x1b8] sm:%s503]
                  %657 = vst [vmem:[%s511 + $0x120] sm:%s503] %v656
                  %v658 = vld [vmem:[%s510 + $0x1bc] sm:%s503]
                  %659 = vst [vmem:[%s511 + $0x124] sm:%s503] %v658
                  %v660 = vld [vmem:[%s510 + $0x1c0] sm:%s503]
                  %661 = vst [vmem:[%s511 + $0x128] sm:%s503] %v660
                  %v662 = vld [vmem:[%s510 + $0x1c4] sm:%s503]
                  %663 = vst [vmem:[%s511 + $0x12c] sm:%s503] %v662
                  %v664 = vld [vmem:[%s510 + $0x260] sm:%s503]
                  %665 = vst [vmem:[%s511 + $0x130] sm:%s503] %v664
                  %v666 = vld [vmem:[%s510 + $0x264] sm:%s503]
                  %667 = vst [vmem:[%s511 + $0x134] sm:%s503] %v666
                  %v668 = vld [vmem:[%s510 + $0x268] sm:%s503]
                  %669 = vst [vmem:[%s511 + $0x138] sm:%s503] %v668
                  %v670 = vld [vmem:[%s510 + $0x26c] sm:%s503]
                  %671 = vst [vmem:[%s511 + $0x13c] sm:%s503] %v670
                  %v672 = vld [vmem:[%s510 + $0x270] sm:%s503]
                  %673 = vst [vmem:[%s511 + $0x140] sm:%s503] %v672
                  %v674 = vld [vmem:[%s510 + $0x274] sm:%s503]
                  %675 = vst [vmem:[%s511 + $0x144] sm:%s503] %v674
                  %v676 = vld [vmem:[%s510 + $0x278] sm:%s503]
                  %677 = vst [vmem:[%s511 + $0x148] sm:%s503] %v676
                  %v678 = vld [vmem:[%s510 + $0x27c] sm:%s503]
                  %679 = vst [vmem:[%s511 + $0x14c] sm:%s503] %v678
                  %v680 = vld [vmem:[%s510 + $0x280] sm:%s503]
                  %681 = vst [vmem:[%s511 + $0x150] sm:%s503] %v680
                  %v682 = vld [vmem:[%s510 + $0x284] sm:%s503]
                  %683 = vst [vmem:[%s511 + $0x154] sm:%s503] %v682
                  %v684 = vld [vmem:[%s510 + $0x288] sm:%s503]
                  %685 = vst [vmem:[%s511 + $0x158] sm:%s503] %v684
                  %v686 = vld [vmem:[%s510 + $0x28c] sm:%s503]
                  %687 = vst [vmem:[%s511 + $0x15c] sm:%s503] %v686
                  %v688 = vld [vmem:[%s510 + $0x290] sm:%s503]
                  %689 = vst [vmem:[%s511 + $0x160] sm:%s503] %v688
                  %v690 = vld [vmem:[%s510 + $0x294] sm:%s503]
                  %691 = vst [vmem:[%s511 + $0x164] sm:%s503] %v690
                  %v692 = vld [vmem:[%s510 + $0x298] sm:%s503]
                  %693 = vst [vmem:[%s511 + $0x168] sm:%s503] %v692
                  %v694 = vld [vmem:[%s510 + $0x29c] sm:%s503]
                  %695 = vst [vmem:[%s511 + $0x16c] sm:%s503] %v694
                  %v696 = vld [vmem:[%s510 + $0x2a0] sm:%s503]
                  %697 = vst [vmem:[%s511 + $0x170] sm:%s503] %v696
                  %v698 = vld [vmem:[%s510 + $0x2a4] sm:%s503]
                  %699 = vst [vmem:[%s511 + $0x174] sm:%s503] %v698
                  %v700 = vld [vmem:[%s510 + $0x2a8] sm:%s503]
                  %701 = vst [vmem:[%s511 + $0x178] sm:%s503] %v700
                  %v702 = vld [vmem:[%s510 + $0x2ac] sm:%s503]
                  %703 = vst [vmem:[%s511 + $0x17c] sm:%s503] %v702
                  %v704 = vld [vmem:[%s510 + $0x2b0] sm:%s503]
                  %705 = vst [vmem:[%s511 + $0x180] sm:%s503] %v704
                  %v706 = vld [vmem:[%s510 + $0x2b4] sm:%s503]
                  %707 = vst [vmem:[%s511 + $0x184] sm:%s503] %v706
                  %v708 = vld [vmem:[%s510 + $0x2b8] sm:%s503]
                  %709 = vst [vmem:[%s511 + $0x188] sm:%s503] %v708
                  %v710 = vld [vmem:[%s510 + $0x2bc] sm:%s503]
                  %711 = vst [vmem:[%s511 + $0x18c] sm:%s503] %v710
                  %v712 = vld [vmem:[%s510 + $0x2c0] sm:%s503]
                  %713 = vst [vmem:[%s511 + $0x190] sm:%s503] %v712
                  %v714 = vld [vmem:[%s510 + $0x2c4] sm:%s503]
                  %715 = vst [vmem:[%s511 + $0x194] sm:%s503] %v714
                  %v716 = vld [vmem:[%s510 + $0x2c8] sm:%s503]
                  %717 = vst [vmem:[%s511 + $0x198] sm:%s503] %v716
                  %v718 = vld [vmem:[%s510 + $0x2cc] sm:%s503]
                  %719 = vst [vmem:[%s511 + $0x19c] sm:%s503] %v718
                  %v720 = vld [vmem:[%s510 + $0x2d0] sm:%s503]
                  %721 = vst [vmem:[%s511 + $0x1a0] sm:%s503] %v720
                  %v722 = vld [vmem:[%s510 + $0x2d4] sm:%s503]
                  %723 = vst [vmem:[%s511 + $0x1a4] sm:%s503] %v722
                  %v724 = vld [vmem:[%s510 + $0x2d8] sm:%s503]
                  %725 = vst [vmem:[%s511 + $0x1a8] sm:%s503] %v724
                  %v726 = vld [vmem:[%s510 + $0x2dc] sm:%s503]
                  %727 = vst [vmem:[%s511 + $0x1ac] sm:%s503] %v726
                  %v728 = vld [vmem:[%s510 + $0x2e0] sm:%s503]
                  %729 = vst [vmem:[%s511 + $0x1b0] sm:%s503] %v728
                  %v730 = vld [vmem:[%s510 + $0x2e4] sm:%s503]
                  %731 = vst [vmem:[%s511 + $0x1b4] sm:%s503] %v730
                  %v732 = vld [vmem:[%s510 + $0x2e8] sm:%s503]
                  %733 = vst [vmem:[%s511 + $0x1b8] sm:%s503] %v732
                  %v734 = vld [vmem:[%s510 + $0x2ec] sm:%s503]
                  %735 = vst [vmem:[%s511 + $0x1bc] sm:%s503] %v734
                  %v736 = vld [vmem:[%s510 + $0x2f0] sm:%s503]
                  %737 = vst [vmem:[%s511 + $0x1c0] sm:%s503] %v736
                  %v738 = vld [vmem:[%s510 + $0x2f4] sm:%s503]
                  %739 = vst [vmem:[%s511 + $0x1c4] sm:%s503] %v738
                  %v740 = vld [vmem:[%s510 + $0x390] sm:%s503]
                  %741 = vst [vmem:[%s511 + $0x1c8] sm:%s503] %v740
                  %v742 = vld [vmem:[%s510 + $0x394] sm:%s503]
                  %743 = vst [vmem:[%s511 + $0x1cc] sm:%s503] %v742
                  %v744 = vld [vmem:[%s510 + $0x398] sm:%s503]
                  %745 = vst [vmem:[%s511 + $0x1d0] sm:%s503] %v744
                  %v746 = vld [vmem:[%s510 + $0x39c] sm:%s503]
                  %747 = vst [vmem:[%s511 + $0x1d4] sm:%s503] %v746
                  %v748 = vld [vmem:[%s510 + $0x3a0] sm:%s503]
                  %749 = vst [vmem:[%s511 + $0x1d8] sm:%s503] %v748
                  %v750 = vld [vmem:[%s510 + $0x3a4] sm:%s503]
                  %751 = vst [vmem:[%s511 + $0x1dc] sm:%s503] %v750
                  %v752 = vld [vmem:[%s510 + $0x3a8] sm:%s503]
                  %753 = vst [vmem:[%s511 + $0x1e0] sm:%s503] %v752
                  %v754 = vld [vmem:[%s510 + $0x3ac] sm:%s503]
                  %755 = vst [vmem:[%s511 + $0x1e4] sm:%s503] %v754
                  %v756 = vld [vmem:[%s510 + $0x3b0] sm:%s503]
                  %757 = vst [vmem:[%s511 + $0x1e8] sm:%s503] %v756
                  %v758 = vld [vmem:[%s510 + $0x3b4] sm:%s503]
                  %759 = vst [vmem:[%s511 + $0x1ec] sm:%s503] %v758
                  %v760 = vld [vmem:[%s510 + $0x3b8] sm:%s503]
                  %761 = vst [vmem:[%s511 + $0x1f0] sm:%s503] %v760
                  %v762 = vld [vmem:[%s510 + $0x3bc] sm:%s503]
                  %763 = vst [vmem:[%s511 + $0x1f4] sm:%s503] %v762
                  %v764 = vld [vmem:[%s510 + $0x3c0] sm:%s503]
                  %765 = vst [vmem:[%s511 + $0x1f8] sm:%s503] %v764
                  %v766 = vld [vmem:[%s510 + $0x3c4] sm:%s503]
                  %767 = vst [vmem:[%s511 + $0x1fc] sm:%s503] %v766
                  %v768 = vld [vmem:[%s510 + $0x3c8] sm:%s503]
                  %769 = vst [vmem:[%s511 + $0x200] sm:%s503] %v768
                  %v770 = vld [vmem:[%s510 + $0x3cc] sm:%s503]
                  %771 = vst [vmem:[%s511 + $0x204] sm:%s503] %v770
                  %v772 = vld [vmem:[%s510 + $0x3d0] sm:%s503]
                  %773 = vst [vmem:[%s511 + $0x208] sm:%s503] %v772
                  %v774 = vld [vmem:[%s510 + $0x3d4] sm:%s503]
                  %775 = vst [vmem:[%s511 + $0x20c] sm:%s503] %v774
                  %v776 = vld [vmem:[%s510 + $0x3d8] sm:%s503]
                  %777 = vst [vmem:[%s511 + $0x210] sm:%s503] %v776
                  %v778 = vld [vmem:[%s510 + $0x3dc] sm:%s503]
                  %779 = vst [vmem:[%s511 + $0x214] sm:%s503] %v778
                  %v780 = vld [vmem:[%s510 + $0x3e0] sm:%s503]
                  %781 = vst [vmem:[%s511 + $0x218] sm:%s503] %v780
                  %v782 = vld [vmem:[%s510 + $0x3e4] sm:%s503]
                  %783 = vst [vmem:[%s511 + $0x21c] sm:%s503] %v782
                  %v784 = vld [vmem:[%s510 + $0x3e8] sm:%s503]
                  %785 = vst [vmem:[%s511 + $0x220] sm:%s503] %v784
                  %v786 = vld [vmem:[%s510 + $0x3ec] sm:%s503]
                  %787 = vst [vmem:[%s511 + $0x224] sm:%s503] %v786
                  %v788 = vld [vmem:[%s510 + $0x3f0] sm:%s503]
                  %789 = vst [vmem:[%s511 + $0x228] sm:%s503] %v788
                  %v790 = vld [vmem:[%s510 + $0x3f4] sm:%s503]
                  %791 = vst [vmem:[%s511 + $0x22c] sm:%s503] %v790
                  %v792 = vld [vmem:[%s510 + $0x3f8] sm:%s503]
                  %793 = vst [vmem:[%s511 + $0x230] sm:%s503] %v792
                  %v794 = vld [vmem:[%s510 + $0x3fc] sm:%s503]
                  %795 = vst [vmem:[%s511 + $0x234] sm:%s503] %v794
                  %v796 = vld [vmem:[%s510 + $0x400] sm:%s503]
                  %797 = vst [vmem:[%s511 + $0x238] sm:%s503] %v796
                  %v798 = vld [vmem:[%s510 + $0x404] sm:%s503]
                  %799 = vst [vmem:[%s511 + $0x23c] sm:%s503] %v798
                  %v800 = vld [vmem:[%s510 + $0x408] sm:%s503]
                  %801 = vst [vmem:[%s511 + $0x240] sm:%s503] %v800
                  %v802 = vld [vmem:[%s510 + $0x40c] sm:%s503]
                  %803 = vst [vmem:[%s511 + $0x244] sm:%s503] %v802
                  %v804 = vld [vmem:[%s510 + $0x410] sm:%s503]
                  %805 = vst [vmem:[%s511 + $0x248] sm:%s503] %v804
                  %v806 = vld [vmem:[%s510 + $0x414] sm:%s503]
                  %807 = vst [vmem:[%s511 + $0x24c] sm:%s503] %v806
                  %v808 = vld [vmem:[%s510 + $0x418] sm:%s503]
                  %809 = vst [vmem:[%s511 + $0x250] sm:%s503] %v808
                  %v810 = vld [vmem:[%s510 + $0x41c] sm:%s503]
                  %811 = vst [vmem:[%s511 + $0x254] sm:%s503] %v810
                  %v812 = vld [vmem:[%s510 + $0x420] sm:%s503]
                  %813 = vst [vmem:[%s511 + $0x258] sm:%s503] %v812
                  %v814 = vld [vmem:[%s510 + $0x424] sm:%s503]
                  %815 = vst [vmem:[%s511 + $0x25c] sm:%s503] %v814
                $region63: #{conv_taps.1} parent=50 // loop_footer
                  %s509 = sadd.s32 1, %s505
                $region64: #{conv_taps.1} parent=50 // loop_footer_branch
                  %504 = sbr.rel target = $region60
                $region65: #{conv_taps.1} parent=50 // loop_exit
                  _
              $region51: #{conv_taps.1} parent=35 // pred_fallthru
                _
            $region36: #{conv_taps.1} parent=31 // pred_fallthru
              _
            // Predicated region
            $region37: #{conv_taps.1} parent=31 // pred_check
              _
            $region38: #{conv_taps.1} parent=31 // pred_check_branch
              %177 = sbr.rel (0) target = $region40
            $region39: #{conv_taps.1} parent=31 // pred_region
              %s179 = ssub.s32 16, 1
              loop: start=0, step=1, limit=1
              $region41: #{conv_taps.1} parent=39 // loop_pre_header
                _
              $region42: #{conv_taps.1} parent=39 // loop_header
                %s181 = sphi 0, %s185
                %p182 = scmp.ge.s32.totalorder %s181, 1
                %s186 = sphi %s171, %s171
                %s187 = sphi %s168, %s168
              $region43: #{conv_taps.1} parent=39 // loop_header_branch
                %184 = sbr.rel (%p182) target = $region47
              $region44: #{conv_taps.1} parent=39 // loop_body
                %v188 = vld [vmem:[%s186] sm:%s179]
                %189 = vst [vmem:[%s187] sm:%s179] %v188
                %v190 = vld [vmem:[%s186 + $0x4] sm:%s179]
                %191 = vst [vmem:[%s187 + $0x4] sm:%s179] %v190
                %v192 = vld [vmem:[%s186 + $0x8] sm:%s179]
                %193 = vst [vmem:[%s187 + $0x8] sm:%s179] %v192
                %v194 = vld [vmem:[%s186 + $0xc] sm:%s179]
                %195 = vst [vmem:[%s187 + $0xc] sm:%s179] %v194
                %v196 = vld [vmem:[%s186 + $0x10] sm:%s179]
                %197 = vst [vmem:[%s187 + $0x10] sm:%s179] %v196
                %v198 = vld [vmem:[%s186 + $0x14] sm:%s179]
                %199 = vst [vmem:[%s187 + $0x14] sm:%s179] %v198
                %v200 = vld [vmem:[%s186 + $0x18] sm:%s179]
                %201 = vst [vmem:[%s187 + $0x18] sm:%s179] %v200
                %v202 = vld [vmem:[%s186 + $0x1c] sm:%s179]
                %203 = vst [vmem:[%s187 + $0x1c] sm:%s179] %v202
                %v204 = vld [vmem:[%s186 + $0x20] sm:%s179]
                %205 = vst [vmem:[%s187 + $0x20] sm:%s179] %v204
                %v206 = vld [vmem:[%s186 + $0x24] sm:%s179]
                %207 = vst [vmem:[%s187 + $0x24] sm:%s179] %v206
                %v208 = vld [vmem:[%s186 + $0x28] sm:%s179]
                %209 = vst [vmem:[%s187 + $0x28] sm:%s179] %v208
                %v210 = vld [vmem:[%s186 + $0x2c] sm:%s179]
                %211 = vst [vmem:[%s187 + $0x2c] sm:%s179] %v210
                %v212 = vld [vmem:[%s186 + $0x30] sm:%s179]
                %213 = vst [vmem:[%s187 + $0x30] sm:%s179] %v212
                %v214 = vld [vmem:[%s186 + $0x34] sm:%s179]
                %215 = vst [vmem:[%s187 + $0x34] sm:%s179] %v214
                %v216 = vld [vmem:[%s186 + $0x38] sm:%s179]
                %217 = vst [vmem:[%s187 + $0x38] sm:%s179] %v216
                %v218 = vld [vmem:[%s186 + $0x3c] sm:%s179]
                %219 = vst [vmem:[%s187 + $0x3c] sm:%s179] %v218
                %v220 = vld [vmem:[%s186 + $0x40] sm:%s179]
                %221 = vst [vmem:[%s187 + $0x40] sm:%s179] %v220
                %v222 = vld [vmem:[%s186 + $0x44] sm:%s179]
                %223 = vst [vmem:[%s187 + $0x44] sm:%s179] %v222
                %v224 = vld [vmem:[%s186 + $0x48] sm:%s179]
                %225 = vst [vmem:[%s187 + $0x48] sm:%s179] %v224
                %v226 = vld [vmem:[%s186 + $0x4c] sm:%s179]
                %227 = vst [vmem:[%s187 + $0x4c] sm:%s179] %v226
                %v228 = vld [vmem:[%s186 + $0x50] sm:%s179]
                %229 = vst [vmem:[%s187 + $0x50] sm:%s179] %v228
                %v230 = vld [vmem:[%s186 + $0x54] sm:%s179]
                %231 = vst [vmem:[%s187 + $0x54] sm:%s179] %v230
                %v232 = vld [vmem:[%s186 + $0x58] sm:%s179]
                %233 = vst [vmem:[%s187 + $0x58] sm:%s179] %v232
                %v234 = vld [vmem:[%s186 + $0x5c] sm:%s179]
                %235 = vst [vmem:[%s187 + $0x5c] sm:%s179] %v234
                %v236 = vld [vmem:[%s186 + $0x60] sm:%s179]
                %237 = vst [vmem:[%s187 + $0x60] sm:%s179] %v236
                %v238 = vld [vmem:[%s186 + $0x64] sm:%s179]
                %239 = vst [vmem:[%s187 + $0x64] sm:%s179] %v238
                %v240 = vld [vmem:[%s186 + $0x68] sm:%s179]
                %241 = vst [vmem:[%s187 + $0x68] sm:%s179] %v240
                %v242 = vld [vmem:[%s186 + $0x6c] sm:%s179]
                %243 = vst [vmem:[%s187 + $0x6c] sm:%s179] %v242
                %v244 = vld [vmem:[%s186 + $0x70] sm:%s179]
                %245 = vst [vmem:[%s187 + $0x70] sm:%s179] %v244
                %v246 = vld [vmem:[%s186 + $0x74] sm:%s179]
                %247 = vst [vmem:[%s187 + $0x74] sm:%s179] %v246
                %v248 = vld [vmem:[%s186 + $0x78] sm:%s179]
                %249 = vst [vmem:[%s187 + $0x78] sm:%s179] %v248
                %v250 = vld [vmem:[%s186 + $0x7c] sm:%s179]
                %251 = vst [vmem:[%s187 + $0x7c] sm:%s179] %v250
                %v252 = vld [vmem:[%s186 + $0x80] sm:%s179]
                %253 = vst [vmem:[%s187 + $0x80] sm:%s179] %v252
                %v254 = vld [vmem:[%s186 + $0x84] sm:%s179]
                %255 = vst [vmem:[%s187 + $0x84] sm:%s179] %v254
                %v256 = vld [vmem:[%s186 + $0x88] sm:%s179]
                %257 = vst [vmem:[%s187 + $0x88] sm:%s179] %v256
                %v258 = vld [vmem:[%s186 + $0x8c] sm:%s179]
                %259 = vst [vmem:[%s187 + $0x8c] sm:%s179] %v258
                %v260 = vld [vmem:[%s186 + $0x90] sm:%s179]
                %261 = vst [vmem:[%s187 + $0x90] sm:%s179] %v260
                %v262 = vld [vmem:[%s186 + $0x94] sm:%s179]
                %263 = vst [vmem:[%s187 + $0x94] sm:%s179] %v262
                %v264 = vld [vmem:[%s186 + $0x130] sm:%s179]
                %265 = vst [vmem:[%s187 + $0x98] sm:%s179] %v264
                %v266 = vld [vmem:[%s186 + $0x134] sm:%s179]
                %267 = vst [vmem:[%s187 + $0x9c] sm:%s179] %v266
                %v268 = vld [vmem:[%s186 + $0x138] sm:%s179]
                %269 = vst [vmem:[%s187 + $0xa0] sm:%s179] %v268
                %v270 = vld [vmem:[%s186 + $0x13c] sm:%s179]
                %271 = vst [vmem:[%s187 + $0xa4] sm:%s179] %v270
                %v272 = vld [vmem:[%s186 + $0x140] sm:%s179]
                %273 = vst [vmem:[%s187 + $0xa8] sm:%s179] %v272
                %v274 = vld [vmem:[%s186 + $0x144] sm:%s179]
                %275 = vst [vmem:[%s187 + $0xac] sm:%s179] %v274
                %v276 = vld [vmem:[%s186 + $0x148] sm:%s179]
                %277 = vst [vmem:[%s187 + $0xb0] sm:%s179] %v276
                %v278 = vld [vmem:[%s186 + $0x14c] sm:%s179]
                %279 = vst [vmem:[%s187 + $0xb4] sm:%s179] %v278
                %v280 = vld [vmem:[%s186 + $0x150] sm:%s179]
                %281 = vst [vmem:[%s187 + $0xb8] sm:%s179] %v280
                %v282 = vld [vmem:[%s186 + $0x154] sm:%s179]
                %283 = vst [vmem:[%s187 + $0xbc] sm:%s179] %v282
                %v284 = vld [vmem:[%s186 + $0x158] sm:%s179]
                %285 = vst [vmem:[%s187 + $0xc0] sm:%s179] %v284
                %v286 = vld [vmem:[%s186 + $0x15c] sm:%s179]
                %287 = vst [vmem:[%s187 + $0xc4] sm:%s179] %v286
                %v288 = vld [vmem:[%s186 + $0x160] sm:%s179]
                %289 = vst [vmem:[%s187 + $0xc8] sm:%s179] %v288
                %v290 = vld [vmem:[%s186 + $0x164] sm:%s179]
                %291 = vst [vmem:[%s187 + $0xcc] sm:%s179] %v290
                %v292 = vld [vmem:[%s186 + $0x168] sm:%s179]
                %293 = vst [vmem:[%s187 + $0xd0] sm:%s179] %v292
                %v294 = vld [vmem:[%s186 + $0x16c] sm:%s179]
                %295 = vst [vmem:[%s187 + $0xd4] sm:%s179] %v294
                %v296 = vld [vmem:[%s186 + $0x170] sm:%s179]
                %297 = vst [vmem:[%s187 + $0xd8] sm:%s179] %v296
                %v298 = vld [vmem:[%s186 + $0x174] sm:%s179]
                %299 = vst [vmem:[%s187 + $0xdc] sm:%s179] %v298
                %v300 = vld [vmem:[%s186 + $0x178] sm:%s179]
                %301 = vst [vmem:[%s187 + $0xe0] sm:%s179] %v300
                %v302 = vld [vmem:[%s186 + $0x17c] sm:%s179]
                %303 = vst [vmem:[%s187 + $0xe4] sm:%s179] %v302
                %v304 = vld [vmem:[%s186 + $0x180] sm:%s179]
                %305 = vst [vmem:[%s187 + $0xe8] sm:%s179] %v304
                %v306 = vld [vmem:[%s186 + $0x184] sm:%s179]
                %307 = vst [vmem:[%s187 + $0xec] sm:%s179] %v306
                %v308 = vld [vmem:[%s186 + $0x188] sm:%s179]
                %309 = vst [vmem:[%s187 + $0xf0] sm:%s179] %v308
                %v310 = vld [vmem:[%s186 + $0x18c] sm:%s179]
                %311 = vst [vmem:[%s187 + $0xf4] sm:%s179] %v310
                %v312 = vld [vmem:[%s186 + $0x190] sm:%s179]
                %313 = vst [vmem:[%s187 + $0xf8] sm:%s179] %v312
                %v314 = vld [vmem:[%s186 + $0x194] sm:%s179]
                %315 = vst [vmem:[%s187 + $0xfc] sm:%s179] %v314
                %v316 = vld [vmem:[%s186 + $0x198] sm:%s179]
                %317 = vst [vmem:[%s187 + $0x100] sm:%s179] %v316
                %v318 = vld [vmem:[%s186 + $0x19c] sm:%s179]
                %319 = vst [vmem:[%s187 + $0x104] sm:%s179] %v318
                %v320 = vld [vmem:[%s186 + $0x1a0] sm:%s179]
                %321 = vst [vmem:[%s187 + $0x108] sm:%s179] %v320
                %v322 = vld [vmem:[%s186 + $0x1a4] sm:%s179]
                %323 = vst [vmem:[%s187 + $0x10c] sm:%s179] %v322
                %v324 = vld [vmem:[%s186 + $0x1a8] sm:%s179]
                %325 = vst [vmem:[%s187 + $0x110] sm:%s179] %v324
                %v326 = vld [vmem:[%s186 + $0x1ac] sm:%s179]
                %327 = vst [vmem:[%s187 + $0x114] sm:%s179] %v326
                %v328 = vld [vmem:[%s186 + $0x1b0] sm:%s179]
                %329 = vst [vmem:[%s187 + $0x118] sm:%s179] %v328
                %v330 = vld [vmem:[%s186 + $0x1b4] sm:%s179]
                %331 = vst [vmem:[%s187 + $0x11c] sm:%s179] %v330
                %v332 = vld [vmem:[%s186 + $0x1b8] sm:%s179]
                %333 = vst [vmem:[%s187 + $0x120] sm:%s179] %v332
                %v334 = vld [vmem:[%s186 + $0x1bc] sm:%s179]
                %335 = vst [vmem:[%s187 + $0x124] sm:%s179] %v334
                %v336 = vld [vmem:[%s186 + $0x1c0] sm:%s179]
                %337 = vst [vmem:[%s187 + $0x128] sm:%s179] %v336
                %v338 = vld [vmem:[%s186 + $0x1c4] sm:%s179]
                %339 = vst [vmem:[%s187 + $0x12c] sm:%s179] %v338
                %v340 = vld [vmem:[%s186 + $0x260] sm:%s179]
                %341 = vst [vmem:[%s187 + $0x130] sm:%s179] %v340
                %v342 = vld [vmem:[%s186 + $0x264] sm:%s179]
                %343 = vst [vmem:[%s187 + $0x134] sm:%s179] %v342
                %v344 = vld [vmem:[%s186 + $0x268] sm:%s179]
                %345 = vst [vmem:[%s187 + $0x138] sm:%s179] %v344
                %v346 = vld [vmem:[%s186 + $0x26c] sm:%s179]
                %347 = vst [vmem:[%s187 + $0x13c] sm:%s179] %v346
                %v348 = vld [vmem:[%s186 + $0x270] sm:%s179]
                %349 = vst [vmem:[%s187 + $0x140] sm:%s179] %v348
                %v350 = vld [vmem:[%s186 + $0x274] sm:%s179]
                %351 = vst [vmem:[%s187 + $0x144] sm:%s179] %v350
                %v352 = vld [vmem:[%s186 + $0x278] sm:%s179]
                %353 = vst [vmem:[%s187 + $0x148] sm:%s179] %v352
                %v354 = vld [vmem:[%s186 + $0x27c] sm:%s179]
                %355 = vst [vmem:[%s187 + $0x14c] sm:%s179] %v354
                %v356 = vld [vmem:[%s186 + $0x280] sm:%s179]
                %357 = vst [vmem:[%s187 + $0x150] sm:%s179] %v356
                %v358 = vld [vmem:[%s186 + $0x284] sm:%s179]
                %359 = vst [vmem:[%s187 + $0x154] sm:%s179] %v358
                %v360 = vld [vmem:[%s186 + $0x288] sm:%s179]
                %361 = vst [vmem:[%s187 + $0x158] sm:%s179] %v360
                %v362 = vld [vmem:[%s186 + $0x28c] sm:%s179]
                %363 = vst [vmem:[%s187 + $0x15c] sm:%s179] %v362
                %v364 = vld [vmem:[%s186 + $0x290] sm:%s179]
                %365 = vst [vmem:[%s187 + $0x160] sm:%s179] %v364
                %v366 = vld [vmem:[%s186 + $0x294] sm:%s179]
                %367 = vst [vmem:[%s187 + $0x164] sm:%s179] %v366
                %v368 = vld [vmem:[%s186 + $0x298] sm:%s179]
                %369 = vst [vmem:[%s187 + $0x168] sm:%s179] %v368
                %v370 = vld [vmem:[%s186 + $0x29c] sm:%s179]
                %371 = vst [vmem:[%s187 + $0x16c] sm:%s179] %v370
                %v372 = vld [vmem:[%s186 + $0x2a0] sm:%s179]
                %373 = vst [vmem:[%s187 + $0x170] sm:%s179] %v372
                %v374 = vld [vmem:[%s186 + $0x2a4] sm:%s179]
                %375 = vst [vmem:[%s187 + $0x174] sm:%s179] %v374
                %v376 = vld [vmem:[%s186 + $0x2a8] sm:%s179]
                %377 = vst [vmem:[%s187 + $0x178] sm:%s179] %v376
                %v378 = vld [vmem:[%s186 + $0x2ac] sm:%s179]
                %379 = vst [vmem:[%s187 + $0x17c] sm:%s179] %v378
                %v380 = vld [vmem:[%s186 + $0x2b0] sm:%s179]
                %381 = vst [vmem:[%s187 + $0x180] sm:%s179] %v380
                %v382 = vld [vmem:[%s186 + $0x2b4] sm:%s179]
                %383 = vst [vmem:[%s187 + $0x184] sm:%s179] %v382
                %v384 = vld [vmem:[%s186 + $0x2b8] sm:%s179]
                %385 = vst [vmem:[%s187 + $0x188] sm:%s179] %v384
                %v386 = vld [vmem:[%s186 + $0x2bc] sm:%s179]
                %387 = vst [vmem:[%s187 + $0x18c] sm:%s179] %v386
                %v388 = vld [vmem:[%s186 + $0x2c0] sm:%s179]
                %389 = vst [vmem:[%s187 + $0x190] sm:%s179] %v388
                %v390 = vld [vmem:[%s186 + $0x2c4] sm:%s179]
                %391 = vst [vmem:[%s187 + $0x194] sm:%s179] %v390
                %v392 = vld [vmem:[%s186 + $0x2c8] sm:%s179]
                %393 = vst [vmem:[%s187 + $0x198] sm:%s179] %v392
                %v394 = vld [vmem:[%s186 + $0x2cc] sm:%s179]
                %395 = vst [vmem:[%s187 + $0x19c] sm:%s179] %v394
                %v396 = vld [vmem:[%s186 + $0x2d0] sm:%s179]
                %397 = vst [vmem:[%s187 + $0x1a0] sm:%s179] %v396
                %v398 = vld [vmem:[%s186 + $0x2d4] sm:%s179]
                %399 = vst [vmem:[%s187 + $0x1a4] sm:%s179] %v398
                %v400 = vld [vmem:[%s186 + $0x2d8] sm:%s179]
                %401 = vst [vmem:[%s187 + $0x1a8] sm:%s179] %v400
                %v402 = vld [vmem:[%s186 + $0x2dc] sm:%s179]
                %403 = vst [vmem:[%s187 + $0x1ac] sm:%s179] %v402
                %v404 = vld [vmem:[%s186 + $0x2e0] sm:%s179]
                %405 = vst [vmem:[%s187 + $0x1b0] sm:%s179] %v404
                %v406 = vld [vmem:[%s186 + $0x2e4] sm:%s179]
                %407 = vst [vmem:[%s187 + $0x1b4] sm:%s179] %v406
                %v408 = vld [vmem:[%s186 + $0x2e8] sm:%s179]
                %409 = vst [vmem:[%s187 + $0x1b8] sm:%s179] %v408
                %v410 = vld [vmem:[%s186 + $0x2ec] sm:%s179]
                %411 = vst [vmem:[%s187 + $0x1bc] sm:%s179] %v410
                %v412 = vld [vmem:[%s186 + $0x2f0] sm:%s179]
                %413 = vst [vmem:[%s187 + $0x1c0] sm:%s179] %v412
                %v414 = vld [vmem:[%s186 + $0x2f4] sm:%s179]
                %415 = vst [vmem:[%s187 + $0x1c4] sm:%s179] %v414
                %v416 = vld [vmem:[%s186 + $0x390] sm:%s179]
                %417 = vst [vmem:[%s187 + $0x1c8] sm:%s179] %v416
                %v418 = vld [vmem:[%s186 + $0x394] sm:%s179]
                %419 = vst [vmem:[%s187 + $0x1cc] sm:%s179] %v418
                %v420 = vld [vmem:[%s186 + $0x398] sm:%s179]
                %421 = vst [vmem:[%s187 + $0x1d0] sm:%s179] %v420
                %v422 = vld [vmem:[%s186 + $0x39c] sm:%s179]
                %423 = vst [vmem:[%s187 + $0x1d4] sm:%s179] %v422
                %v424 = vld [vmem:[%s186 + $0x3a0] sm:%s179]
                %425 = vst [vmem:[%s187 + $0x1d8] sm:%s179] %v424
                %v426 = vld [vmem:[%s186 + $0x3a4] sm:%s179]
                %427 = vst [vmem:[%s187 + $0x1dc] sm:%s179] %v426
                %v428 = vld [vmem:[%s186 + $0x3a8] sm:%s179]
                %429 = vst [vmem:[%s187 + $0x1e0] sm:%s179] %v428
                %v430 = vld [vmem:[%s186 + $0x3ac] sm:%s179]
                %431 = vst [vmem:[%s187 + $0x1e4] sm:%s179] %v430
                %v432 = vld [vmem:[%s186 + $0x3b0] sm:%s179]
                %433 = vst [vmem:[%s187 + $0x1e8] sm:%s179] %v432
                %v434 = vld [vmem:[%s186 + $0x3b4] sm:%s179]
                %435 = vst [vmem:[%s187 + $0x1ec] sm:%s179] %v434
                %v436 = vld [vmem:[%s186 + $0x3b8] sm:%s179]
                %437 = vst [vmem:[%s187 + $0x1f0] sm:%s179] %v436
                %v438 = vld [vmem:[%s186 + $0x3bc] sm:%s179]
                %439 = vst [vmem:[%s187 + $0x1f4] sm:%s179] %v438
                %v440 = vld [vmem:[%s186 + $0x3c0] sm:%s179]
                %441 = vst [vmem:[%s187 + $0x1f8] sm:%s179] %v440
                %v442 = vld [vmem:[%s186 + $0x3c4] sm:%s179]
                %443 = vst [vmem:[%s187 + $0x1fc] sm:%s179] %v442
                %v444 = vld [vmem:[%s186 + $0x3c8] sm:%s179]
                %445 = vst [vmem:[%s187 + $0x200] sm:%s179] %v444
                %v446 = vld [vmem:[%s186 + $0x3cc] sm:%s179]
                %447 = vst [vmem:[%s187 + $0x204] sm:%s179] %v446
                %v448 = vld [vmem:[%s186 + $0x3d0] sm:%s179]
                %449 = vst [vmem:[%s187 + $0x208] sm:%s179] %v448
                %v450 = vld [vmem:[%s186 + $0x3d4] sm:%s179]
                %451 = vst [vmem:[%s187 + $0x20c] sm:%s179] %v450
                %v452 = vld [vmem:[%s186 + $0x3d8] sm:%s179]
                %453 = vst [vmem:[%s187 + $0x210] sm:%s179] %v452
                %v454 = vld [vmem:[%s186 + $0x3dc] sm:%s179]
                %455 = vst [vmem:[%s187 + $0x214] sm:%s179] %v454
                %v456 = vld [vmem:[%s186 + $0x3e0] sm:%s179]
                %457 = vst [vmem:[%s187 + $0x218] sm:%s179] %v456
                %v458 = vld [vmem:[%s186 + $0x3e4] sm:%s179]
                %459 = vst [vmem:[%s187 + $0x21c] sm:%s179] %v458
                %v460 = vld [vmem:[%s186 + $0x3e8] sm:%s179]
                %461 = vst [vmem:[%s187 + $0x220] sm:%s179] %v460
                %v462 = vld [vmem:[%s186 + $0x3ec] sm:%s179]
                %463 = vst [vmem:[%s187 + $0x224] sm:%s179] %v462
                %v464 = vld [vmem:[%s186 + $0x3f0] sm:%s179]
                %465 = vst [vmem:[%s187 + $0x228] sm:%s179] %v464
                %v466 = vld [vmem:[%s186 + $0x3f4] sm:%s179]
                %467 = vst [vmem:[%s187 + $0x22c] sm:%s179] %v466
                %v468 = vld [vmem:[%s186 + $0x3f8] sm:%s179]
                %469 = vst [vmem:[%s187 + $0x230] sm:%s179] %v468
                %v470 = vld [vmem:[%s186 + $0x3fc] sm:%s179]
                %471 = vst [vmem:[%s187 + $0x234] sm:%s179] %v470
                %v472 = vld [vmem:[%s186 + $0x400] sm:%s179]
                %473 = vst [vmem:[%s187 + $0x238] sm:%s179] %v472
                %v474 = vld [vmem:[%s186 + $0x404] sm:%s179]
                %475 = vst [vmem:[%s187 + $0x23c] sm:%s179] %v474
                %v476 = vld [vmem:[%s186 + $0x408] sm:%s179]
                %477 = vst [vmem:[%s187 + $0x240] sm:%s179] %v476
                %v478 = vld [vmem:[%s186 + $0x40c] sm:%s179]
                %479 = vst [vmem:[%s187 + $0x244] sm:%s179] %v478
                %v480 = vld [vmem:[%s186 + $0x410] sm:%s179]
                %481 = vst [vmem:[%s187 + $0x248] sm:%s179] %v480
                %v482 = vld [vmem:[%s186 + $0x414] sm:%s179]
                %483 = vst [vmem:[%s187 + $0x24c] sm:%s179] %v482
                %v484 = vld [vmem:[%s186 + $0x418] sm:%s179]
                %485 = vst [vmem:[%s187 + $0x250] sm:%s179] %v484
                %v486 = vld [vmem:[%s186 + $0x41c] sm:%s179]
                %487 = vst [vmem:[%s187 + $0x254] sm:%s179] %v486
                %v488 = vld [vmem:[%s186 + $0x420] sm:%s179]
                %489 = vst [vmem:[%s187 + $0x258] sm:%s179] %v488
                %v490 = vld [vmem:[%s186 + $0x424] sm:%s179]
                %491 = vst [vmem:[%s187 + $0x25c] sm:%s179] %v490
              $region45: #{conv_taps.1} parent=39 // loop_footer
                %s185 = sadd.s32 1, %s181
              $region46: #{conv_taps.1} parent=39 // loop_footer_branch
                %180 = sbr.rel target = $region42
              $region47: #{conv_taps.1} parent=39 // loop_exit
                _
            $region40: #{conv_taps.1} parent=31 // pred_fallthru
              _
          $region32: #{conv_taps.1} parent=27 // pred_fallthru
            _
          %816 = vnop
        $region28: #{conv_taps.1} parent=23 // pred_fallthru
          _
      $region24: #{conv_taps.1} parent=5 // pred_fallthru
        _
      %p817 = scmp.le.s32.totalorder 1, %s12
      %p818 = scmp.lt.s32.totalorder %s12, 3
      %p819 = pnand %p817, %p818
      %p820 = pneg %p819
      // Predicated region
      $region66: #{conv_taps.1} parent=5 // pred_check
        _
      $region67: #{conv_taps.1} parent=5 // pred_check_branch
        %822 = sbr.rel (%p819) target = $region69
      $region68: #{conv_taps.1} parent=5 // pred_region
        %s823 = ssub.s32 %s12, 1
        %s824 = sand.u32 %s37, 1
        %s825 = sand.u32 %s37, 1
        %s826 = smul.addr %s825, 608
        %s827 = scalar_lea.vmem [#allocation2], %s826
        // Predicated region
        $region70: #{conv_taps.1} parent=68 // pred_check
          %p828 = pneg %p50
        $region71: #{conv_taps.1} parent=68 // pred_check_branch
          %830 = sbr.rel (%p828) target = $region73
        $region72: #{conv_taps.1} parent=68 // pred_region
          _
        $region73: #{conv_taps.1} parent=68 // pred_fallthru
          _
        %s831 = sand.u32 %s37, 1
        %s832 = sand.u32 %s37, 1
        %s833 = smul.addr %s832, 608
        %s834 = scalar_lea.vmem [#allocation2], %s833
        %p835 = pneg %p50
        %p836 = pneg %p47
        %p837 = scmp.lt.s32.totalorder %s22, 0
        %s838 = scalar_select %p837, %s22, 0
        %s839 = smul.addr %s838, 4
        %s840 = scalar_lea.vmem %s1, %s839
        %p841 = pneg %p76
        %p842 = pneg %p73
        %p843 = scmp.lt.s32.totalorder %s22, 0
        %s844 = scalar_select %p843, %s22, 0
        %s845 = scalar_lea.vmem %s2, %s844
        %p846 = pneg %p102
        %p847 = pneg %p99
        %p848 = pneg %p130
        %p849 = pneg %p127
        %s850 = sand.u32 %s117, 1
        %s851 = scalar_lea.sflag [#allocation4], %s850
        %s852 = sand.u32 %s117, 1
        %s853 = smul.addr %s852, 128
        %s854 = scalar_lea.vmem [#allocation3], %s853
        %p855 = scmp.lt.s32.totalorder %s22, 0
        %s856 = scalar_select %p855, %s22, 0
        %s857 = smul.addr %s856, 4
        %s858 = scalar_lea.vmem %s1, %s857
        %p859 = scmp.lt.s32.totalorder %s22, 0
        %s860 = scalar_select %p859, %s22, 0
        %s861 = scalar_lea.vmem %s2, %s860
        %v863 = vld [vmem:[%s827] sm:$0xf]
        %v864 = vld [vmem:[%s827 + $0x4] sm:$0xf]
        %v865 = vld [vmem:[%s827 + $0x8] sm:$0xf]
        %v866 = vld [vmem:[%s827 + $0xc] sm:$0xf]
        %v867 = vld [vmem:[%s827 + $0x10] sm:$0xf]
        %v868 = vld [vmem:[%s827 + $0x14] sm:$0xf]
        %v869 = vld [vmem:[%s827 + $0x18] sm:$0xf]
        %v870 = vld [vmem:[%s827 + $0x1c] sm:$0xf]
        %v871 = vld [vmem:[%s827 + $0x20] sm:$0xf]
        %v872 = vld [vmem:[%s827 + $0x24] sm:$0xf]
        %v873 = vld [vmem:[%s827 + $0x28] sm:$0xf]
        %v874 = vld [vmem:[%s827 + $0x2c] sm:$0xf]
        %v875 = vld [vmem:[%s827 + $0x30] sm:$0xf]
        %v876 = vld [vmem:[%s827 + $0x34] sm:$0xf]
        %v877 = vld [vmem:[%s827 + $0x38] sm:$0xf]
        %v878 = vld [vmem:[%s827 + $0x3c] sm:$0xf]
        %v879 = vld [vmem:[%s827 + $0x40] sm:$0xf]
        %v880 = vld [vmem:[%s827 + $0x44] sm:$0xf]
        %v881 = vld [vmem:[%s827 + $0x48] sm:$0xf]
        %v882 = vld [vmem:[%s827 + $0x4c] sm:$0xf]
        %v883 = vld [vmem:[%s827 + $0x50] sm:$0xf]
        %v884 = vld [vmem:[%s827 + $0x54] sm:$0xf]
        %v885 = vld [vmem:[%s827 + $0x58] sm:$0xf]
        %v886 = vld [vmem:[%s827 + $0x5c] sm:$0xf]
        %v887 = vld [vmem:[%s827 + $0x60] sm:$0xf]
        %v888 = vld [vmem:[%s827 + $0x64] sm:$0xf]
        %v889 = vld [vmem:[%s827 + $0x68] sm:$0xf]
        %v890 = vld [vmem:[%s827 + $0x6c] sm:$0xf]
        %v891 = vld [vmem:[%s827 + $0x70] sm:$0xf]
        %v892 = vld [vmem:[%s827 + $0x74] sm:$0xf]
        %v893 = vld [vmem:[%s827 + $0x78] sm:$0xf]
        %v894 = vld [vmem:[%s827 + $0x7c] sm:$0xf]
        %v895 = vld [vmem:[%s858] sm:$0xf]
        %v896 = vld [vmem:[%s858 + $0x4] sm:$0xf]
        %s897 = scalar_lea.vmem %s827, 152 [#allocation2]
        %v898 = vld [vmem:[%s897] sm:$0xf]
        %v899 = vld [vmem:[%s897 + $0x4] sm:$0xf]
        %v900 = vld [vmem:[%s897 + $0x8] sm:$0xf]
        %v901 = vld [vmem:[%s897 + $0xc] sm:$0xf]
        %v902 = vld [vmem:[%s897 + $0x10] sm:$0xf]
        %v903 = vld [vmem:[%s897 + $0x14] sm:$0xf]
        %v904 = vld [vmem:[%s897 + $0x18] sm:$0xf]
        %v905 = vld [vmem:[%s897 + $0x1c] sm:$0xf]
        %v906 = vld [vmem:[%s897 + $0x20] sm:$0xf]
        %v907 = vld [vmem:[%s897 + $0x24] sm:$0xf]
        %v908 = vld [vmem:[%s897 + $0x28] sm:$0xf]
        %v909 = vld [vmem:[%s897 + $0x2c] sm:$0xf]
        %v910 = vld [vmem:[%s897 + $0x30] sm:$0xf]
        %v911 = vld [vmem:[%s897 + $0x34] sm:$0xf]
        %v912 = vld [vmem:[%s897 + $0x38] sm:$0xf]
        %v913 = vld [vmem:[%s897 + $0x3c] sm:$0xf]
        %v914 = vld [vmem:[%s897 + $0x40] sm:$0xf]
        %v915 = vld [vmem:[%s897 + $0x44] sm:$0xf]
        %v916 = vld [vmem:[%s897 + $0x48] sm:$0xf]
        %v917 = vld [vmem:[%s897 + $0x4c] sm:$0xf]
        %v918 = vld [vmem:[%s897 + $0x50] sm:$0xf]
        %v919 = vld [vmem:[%s897 + $0x54] sm:$0xf]
        %v920 = vld [vmem:[%s897 + $0x58] sm:$0xf]
        %v921 = vld [vmem:[%s897 + $0x5c] sm:$0xf]
        %v922 = vld [vmem:[%s897 + $0x60] sm:$0xf]
        %v923 = vld [vmem:[%s897 + $0x64] sm:$0xf]
        %v924 = vld [vmem:[%s897 + $0x68] sm:$0xf]
        %v925 = vld [vmem:[%s897 + $0x6c] sm:$0xf]
        %v926 = vld [vmem:[%s897 + $0x70] sm:$0xf]
        %v927 = vld [vmem:[%s897 + $0x74] sm:$0xf]
        %v928 = vld [vmem:[%s897 + $0x78] sm:$0xf]
        %v929 = vld [vmem:[%s897 + $0x7c] sm:$0xf]
        %v930 = vld [vmem:[%s858 + $0x8] sm:$0xf]
        %v931 = vld [vmem:[%s858 + $0xc] sm:$0xf]
        %v964 = vunpack.c.l.b16 %v898
        %v965 = vunpack.c.l.b16 %v899
        %v966 = vunpack.c.l.b16 %v900
        %v967 = vunpack.c.l.b16 %v901
        %v968 = vunpack.c.l.b16 %v902
        %v969 = vunpack.c.l.b16 %v903
        %v970 = vunpack.c.l.b16 %v904
        %v971 = vunpack.c.l.b16 %v905
        %v972 = vunpack.c.l.b16 %v906
        %v973 = vunpack.c.l.b16 %v907
        %v974 = vunpack.c.l.b16 %v908
        %v975 = vunpack.c.l.b16 %v909
        %v976 = vunpack.c.l.b16 %v910
        %v977 = vunpack.c.l.b16 %v911
        %v978 = vunpack.c.l.b16 %v912
        %v979 = vunpack.c.l.b16 %v913
        %v980 = vunpack.c.l.b16 %v914
        %v981 = vunpack.c.l.b16 %v915
        %v982 = vunpack.c.l.b16 %v916
        %v983 = vunpack.c.l.b16 %v917
        %v984 = vunpack.c.l.b16 %v918
        %v985 = vunpack.c.l.b16 %v919
        %v986 = vunpack.c.l.b16 %v920
        %v987 = vunpack.c.l.b16 %v921
        %v988 = vunpack.c.l.b16 %v922
        %v989 = vunpack.c.l.b16 %v923
        %v990 = vunpack.c.l.b16 %v924
        %v991 = vunpack.c.l.b16 %v925
        %v992 = vunpack.c.l.b16 %v926
        %v993 = vunpack.c.l.b16 %v927
        %v994 = vunpack.c.l.b16 %v928
        %v995 = vunpack.c.l.b16 %v929
        %v996 = vpack.c.b16 %v965, %v964
        %v997 = vpack.c.b16 %v967, %v966
        %v998 = vpack.c.b16 %v969, %v968
        %v999 = vpack.c.b16 %v971, %v970
        %v1000 = vpack.c.b16 %v973, %v972
        %v1001 = vpack.c.b16 %v975, %v974
        %v1002 = vpack.c.b16 %v977, %v976
        %v1003 = vpack.c.b16 %v979, %v978
        %v1004 = vpack.c.b16 %v981, %v980
        %v1005 = vpack.c.b16 %v983, %v982
        %v1006 = vpack.c.b16 %v985, %v984
        %v1007 = vpack.c.b16 %v987, %v986
        %v1008 = vpack.c.b16 %v989, %v988
        %v1009 = vpack.c.b16 %v991, %v990
        %v1010 = vpack.c.b16 %v993, %v992
        %v1011 = vpack.c.b16 %v995, %v994
        %v1014 = vunpack.c.l.b16 %v930
        %v1015 = vunpack.c.l.b16 %v931
        %v1016 = vpack.c.b16 %v1015, %v1014
        %vm1018 = vcmask 130048
        %v1020 = vsel %vm1018, %v996, 0
        %v1023 = vsel %vm1018, %v997, 0
        %v1026 = vsel %vm1018, %v998, 0
        %v1029 = vsel %vm1018, %v999, 0
        %v1032 = vsel %vm1018, %v1000, 0
        %v1035 = vsel %vm1018, %v1001, 0
        %v1038 = vsel %vm1018, %v1002, 0
        %v1041 = vsel %vm1018, %v1003, 0
        %v1044 = vsel %vm1018, %v1004, 0
        %v1047 = vsel %vm1018, %v1005, 0
        %v1050 = vsel %vm1018, %v1006, 0
        %v1053 = vsel %vm1018, %v1007, 0
        %v1056 = vsel %vm1018, %v1008, 0
        %v1059 = vsel %vm1018, %v1009, 0
        %v1062 = vsel %vm1018, %v1010, 0
        %v1065 = vsel %vm1018, %v1011, 0
        %1067 = vmatprep.subr.bf16.mxu0 0
        %1068 = vmatpush1.bf16.msra.mxu0 0
        %1069 = vmatprep.subr.bf16.mxu0 0
        %1070 = vmatpush1.bf16.msra.mxu0 0
        %1071 = vmatprep.subr.bf16.mxu0 0
        %1072 = vmatpush1.bf16.msra.mxu0 0
        %1073 = vmatprep.subr.bf16.mxu0 0
        %1074 = vmatpush1.bf16.msra.mxu0 0
        %1075 = vmatprep.subr.bf16.mxu0 0
        %1076 = vmatpush1.bf16.msra.mxu0 0
        %1077 = vmatprep.subr.bf16.mxu0 0
        %1078 = vmatpush1.bf16.msra.mxu0 0
        %1079 = vmatprep.subr.bf16.mxu0 0
        %1080 = vmatpush1.bf16.msra.mxu0 0
        %1081 = vmatprep.subr.bf16.mxu0 0
        %1082 = vmatpush1.bf16.msra.mxu0 %v1016
        %1083 = vmatprep.subr.bf16.mxu0 0
        %1084 = vmatpush2.bf16.msra.mxu0 0
        %1085 = vmatprep.subr.bf16.mxu0 0
        %1086 = vmatpush2.bf16.msra.mxu0 0
        %1087 = vmatprep.subr.bf16.mxu0 0
        %1088 = vmatpush2.bf16.msra.mxu0 0
        %1089 = vmatprep.subr.bf16.mxu0 0
        %1090 = vmatpush2.bf16.msra.mxu0 0
        %1091 = vmatprep.subr.bf16.mxu0 0
        %1092 = vmatpush2.bf16.msra.mxu0 0
        %1093 = vmatprep.subr.bf16.mxu0 0
        %1094 = vmatpush2.bf16.msra.mxu0 0
        %1095 = vmatprep.subr.bf16.mxu0 0
        %1096 = vmatpush2.bf16.msra.mxu0 0
        %1097 = vmatprep.subr.bf16.mxu0 0
        %1098 = vmatpush2.bf16.msra.mxu0 0
        %1099 = vmatprep.mubr.bf16.mxu0 0
        %1100 = vmatmul.mubr.bf16.gmra.mxu0 %v1020
        %v1101 = vpop.f32.mrf.mxu0
        %v1102 = vadd.f32 0.0, %v1101
        %v1103 = vpop.f32.mrf.mxu0
        %v1104 = vpop.f32.mrf.mxu0
        %v1105 = vadd.f32 0.0, %v1104
        %v1106 = vpop.f32.mrf.mxu0
        %1107 = vmatprep.mubr.bf16.mxu0 0
        %1108 = vmatmul.mubr.bf16.gmra.mxu0 %v1023
        %v1109 = vpop.f32.mrf.mxu0
        %v1110 = vadd.f32 0.0, %v1109
        %v1111 = vpop.f32.mrf.mxu0
        %v1112 = vpop.f32.mrf.mxu0
        %v1113 = vadd.f32 0.0, %v1112
        %v1114 = vpop.f32.mrf.mxu0
        %1115 = vmatprep.mubr.bf16.mxu0 0
        %1116 = vmatmul.mubr.bf16.gmra.mxu0 %v1026
        %v1117 = vpop.f32.mrf.mxu0
        %v1118 = vadd.f32 0.0, %v1117
        %v1119 = vpop.f32.mrf.mxu0
        %v1120 = vpop.f32.mrf.mxu0
        %v1121 = vadd.f32 0.0, %v1120
        %v1122 = vpop.f32.mrf.mxu0
        %1123 = vmatprep.mubr.bf16.mxu0 0
        %1124 = vmatmul.mubr.bf16.gmra.mxu0 %v1029
        %v1125 = vpop.f32.mrf.mxu0
        %v1126 = vadd.f32 0.0, %v1125
        %v1127 = vpop.f32.mrf.mxu0
        %v1128 = vpop.f32.mrf.mxu0
        %v1129 = vadd.f32 0.0, %v1128
        %v1130 = vpop.f32.mrf.mxu0
        %1131 = vmatprep.mubr.bf16.mxu0 0
        %1132 = vmatmul.mubr.bf16.gmra.mxu0 %v1032
        %v1133 = vpop.f32.mrf.mxu0
        %v1134 = vadd.f32 0.0, %v1133
        %v1135 = vpop.f32.mrf.mxu0
        %v1136 = vpop.f32.mrf.mxu0
        %v1137 = vadd.f32 0.0, %v1136
        %v1138 = vpop.f32.mrf.mxu0
        %1139 = vmatprep.mubr.bf16.mxu0 0
        %1140 = vmatmul.mubr.bf16.gmra.mxu0 %v1035
        %v1141 = vpop.f32.mrf.mxu0
        %v1142 = vadd.f32 0.0, %v1141
        %v1143 = vpop.f32.mrf.mxu0
        %v1144 = vpop.f32.mrf.mxu0
        %v1145 = vadd.f32 0.0, %v1144
        %v1146 = vpop.f32.mrf.mxu0
        %1147 = vmatprep.mubr.bf16.mxu0 0
        %1148 = vmatmul.mubr.bf16.gmra.mxu0 %v1038
        %v1149 = vpop.f32.mrf.mxu0
        %v1150 = vadd.f32 0.0, %v1149
        %v1151 = vpop.f32.mrf.mxu0
        %v1152 = vpop.f32.mrf.mxu0
        %v1153 = vadd.f32 0.0, %v1152
        %v1154 = vpop.f32.mrf.mxu0
        %1155 = vmatprep.mubr.bf16.mxu0 0
        %1156 = vmatmul.mubr.bf16.gmra.mxu0 %v1041
        %v1157 = vpop.f32.mrf.mxu0
        %v1158 = vadd.f32 0.0, %v1157
        %v1159 = vpop.f32.mrf.mxu0
        %v1160 = vpop.f32.mrf.mxu0
        %v1161 = vadd.f32 0.0, %v1160
        %v1162 = vpop.f32.mrf.mxu0
        %1163 = vmatprep.mubr.bf16.mxu0 0
        %1164 = vmatmul.mubr.bf16.gmra.mxu0 %v1044
        %v1165 = vpop.f32.mrf.mxu0
        %v1166 = vadd.f32 0.0, %v1165
        %v1167 = vpop.f32.mrf.mxu0
        %v1168 = vpop.f32.mrf.mxu0
        %v1169 = vadd.f32 0.0, %v1168
        %v1170 = vpop.f32.mrf.mxu0
        %1171 = vmatprep.mubr.bf16.mxu0 0
        %1172 = vmatmul.mubr.bf16.gmra.mxu0 %v1047
        %v1173 = vpop.f32.mrf.mxu0
        %v1174 = vadd.f32 0.0, %v1173
        %v1175 = vpop.f32.mrf.mxu0
        %v1176 = vpop.f32.mrf.mxu0
        %v1177 = vadd.f32 0.0, %v1176
        %v1178 = vpop.f32.mrf.mxu0
        %1179 = vmatprep.mubr.bf16.mxu0 0
        %1180 = vmatmul.mubr.bf16.gmra.mxu0 %v1050
        %v1181 = vpop.f32.mrf.mxu0
        %v1182 = vadd.f32 0.0, %v1181
        %v1183 = vpop.f32.mrf.mxu0
        %v1184 = vpop.f32.mrf.mxu0
        %v1185 = vadd.f32 0.0, %v1184
        %v1186 = vpop.f32.mrf.mxu0
        %1187 = vmatprep.mubr.bf16.mxu0 0
        %1188 = vmatmul.mubr.bf16.gmra.mxu0 %v1053
        %v1189 = vpop.f32.mrf.mxu0
        %v1190 = vadd.f32 0.0, %v1189
        %v1191 = vpop.f32.mrf.mxu0
        %v1192 = vpop.f32.mrf.mxu0
        %v1193 = vadd.f32 0.0, %v1192
        %v1194 = vpop.f32.mrf.mxu0
        %1195 = vmatprep.mubr.bf16.mxu0 0
        %1196 = vmatmul.mubr.bf16.gmra.mxu0 %v1056
        %v1197 = vpop.f32.mrf.mxu0
        %v1198 = vadd.f32 0.0, %v1197
        %v1199 = vpop.f32.mrf.mxu0
        %v1200 = vpop.f32.mrf.mxu0
        %v1201 = vadd.f32 0.0, %v1200
        %v1202 = vpop.f32.mrf.mxu0
        %1203 = vmatprep.mubr.bf16.mxu0 0
        %1204 = vmatmul.mubr.bf16.gmra.mxu0 %v1059
        %v1205 = vpop.f32.mrf.mxu0
        %v1206 = vadd.f32 0.0, %v1205
        %v1207 = vpop.f32.mrf.mxu0
        %v1208 = vpop.f32.mrf.mxu0
        %v1209 = vadd.f32 0.0, %v1208
        %v1210 = vpop.f32.mrf.mxu0
        %1211 = vmatprep.mubr.bf16.mxu0 0
        %1212 = vmatmul.mubr.bf16.gmra.mxu0 %v1062
        %v1213 = vpop.f32.mrf.mxu0
        %v1214 = vadd.f32 0.0, %v1213
        %v1215 = vpop.f32.mrf.mxu0
        %v1216 = vpop.f32.mrf.mxu0
        %v1217 = vadd.f32 0.0, %v1216
        %v1218 = vpop.f32.mrf.mxu0
        %1219 = vmatprep.mubr.bf16.mxu0 0
        %1220 = vmatmul.mubr.bf16.gmra.mxu0 %v1065
        %v1221 = vpop.f32.mrf.mxu0
        %v1222 = vadd.f32 0.0, %v1221
        %v1223 = vpop.f32.mrf.mxu0
        %v1224 = vpop.f32.mrf.mxu0
        %v1225 = vadd.f32 0.0, %v1224
        %v1226 = vpop.f32.mrf.mxu0
        %1227 = vdwg.mxu0
        %v1260 = vunpack.c.l.b16 %v863
        %v1261 = vunpack.c.l.b16 %v864
        %v1262 = vunpack.c.l.b16 %v865
        %v1263 = vunpack.c.l.b16 %v866
        %v1264 = vunpack.c.l.b16 %v867
        %v1265 = vunpack.c.l.b16 %v868
        %v1266 = vunpack.c.l.b16 %v869
        %v1267 = vunpack.c.l.b16 %v870
        %v1268 = vunpack.c.l.b16 %v871
        %v1269 = vunpack.c.l.b16 %v872
        %v1270 = vunpack.c.l.b16 %v873
        %v1271 = vunpack.c.l.b16 %v874
        %v1272 = vunpack.c.l.b16 %v875
        %v1273 = vunpack.c.l.b16 %v876
        %v1274 = vunpack.c.l.b16 %v877
        %v1275 = vunpack.c.l.b16 %v878
        %v1276 = vunpack.c.l.b16 %v879
        %v1277 = vunpack.c.l.b16 %v880
        %v1278 = vunpack.c.l.b16 %v881
        %v1279 = vunpack.c.l.b16 %v882
        %v1280 = vunpack.c.l.b16 %v883
        %v1281 = vunpack.c.l.b16 %v884
        %v1282 = vunpack.c.l.b16 %v885
        %v1283 = vunpack.c.l.b16 %v886
        %v1284 = vunpack.c.l.b16 %v887
        %v1285 = vunpack.c.l.b16 %v888
        %v1286 = vunpack.c.l.b16 %v889
        %v1287 = vunpack.c.l.b16 %v890
        %v1288 = vunpack.c.l.b16 %v891
        %v1289 = vunpack.c.l.b16 %v892
        %v1290 = vunpack.c.l.b16 %v893
        %v1291 = vunpack.c.l.b16 %v894
        %v1292 = vpack.c.b16 %v1261, %v1260
        %v1293 = vpack.c.b16 %v1263, %v1262
        %v1294 = vpack.c.b16 %v1265, %v1264
        %v1295 = vpack.c.b16 %v1267, %v1266
        %v1296 = vpack.c.b16 %v1269, %v1268
        %v1297 = vpack.c.b16 %v1271, %v1270
        %v1298 = vpack.c.b16 %v1273, %v1272
        %v1299 = vpack.c.b16 %v1275, %v1274
        %v1300 = vpack.c.b16 %v1277, %v1276
        %v1301 = vpack.c.b16 %v1279, %v1278
        %v1302 = vpack.c.b16 %v1281, %v1280
        %v1303 = vpack.c.b16 %v1283, %v1282
        %v1304 = vpack.c.b16 %v1285, %v1284
        %v1305 = vpack.c.b16 %v1287, %v1286
        %v1306 = vpack.c.b16 %v1289, %v1288
        %v1307 = vpack.c.b16 %v1291, %v1290
        %v1310 = vunpack.c.l.b16 %v895
        %v1311 = vunpack.c.l.b16 %v896
        %v1312 = vpack.c.b16 %v1311, %v1310
        %v1315 = vsel %vm1018, %v1292, 0
        %v1318 = vsel %vm1018, %v1293, 0
        %v1321 = vsel %vm1018, %v1294, 0
        %v1324 = vsel %vm1018, %v1295, 0
        %v1327 = vsel %vm1018, %v1296, 0
        %v1330 = vsel %vm1018, %v1297, 0
        %v1333 = vsel %vm1018, %v1298, 0
        %v1336 = vsel %vm1018, %v1299, 0
        %v1339 = vsel %vm1018, %v1300, 0
        %v1342 = vsel %vm1018, %v1301, 0
        %v1345 = vsel %vm1018, %v1302, 0
        %v1348 = vsel %vm1018, %v1303, 0
        %v1351 = vsel %vm1018, %v1304, 0
        %v1354 = vsel %vm1018, %v1305, 0
        %v1357 = vsel %vm1018, %v1306, 0
        %v1360 = vsel %vm1018, %v1307, 0
        %1362 = vmatprep.subr.bf16.mxu0 0
        %1363 = vmatpush1.bf16.msra.mxu0 0
        %1364 = vmatprep.subr.bf16.mxu0 0
        %1365 = vmatpush1.bf16.msra.mxu0 0
        %1366 = vmatprep.subr.bf16.mxu0 0
        %1367 = vmatpush1.bf16.msra.mxu0 0
        %1368 = vmatprep.subr.bf16.mxu0 0
        %1369 = vmatpush1.bf16.msra.mxu0 0
        %1370 = vmatprep.subr.bf16.mxu0 0
        %1371 = vmatpush1.bf16.msra.mxu0 0
        %1372 = vmatprep.subr.bf16.mxu0 0
        %1373 = vmatpush1.bf16.msra.mxu0 0
        %1374 = vmatprep.subr.bf16.mxu0 0
        %1375 = vmatpush1.bf16.msra.mxu0 0
        %1376 = vmatprep.subr.bf16.mxu0 0
        %1377 = vmatpush1.bf16.msra.mxu0 %v1312
        %1378 = vmatprep.subr.bf16.mxu0 0
        %1379 = vmatpush2.bf16.msra.mxu0 0
        %1380 = vmatprep.subr.bf16.mxu0 0
        %1381 = vmatpush2.bf16.msra.mxu0 0
        %1382 = vmatprep.subr.bf16.mxu0 0
        %1383 = vmatpush2.bf16.msra.mxu0 0
        %1384 = vmatprep.subr.bf16.mxu0 0
        %1385 = vmatpush2.bf16.msra.mxu0 0
        %1386 = vmatprep.subr.bf16.mxu0 0
        %1387 = vmatpush2.bf16.msra.mxu0 0
        %1388 = vmatprep.subr.bf16.mxu0 0
        %1389 = vmatpush2.bf16.msra.mxu0 0
        %1390 = vmatprep.subr.bf16.mxu0 0
        %1391 = vmatpush2.bf16.msra.mxu0 0
        %1392 = vmatprep.subr.bf16.mxu0 0
        %1393 = vmatpush2.bf16.msra.mxu0 0
        %1394 = vmatprep.mubr.bf16.mxu0 0
        %1395 = vmatmul.mubr.bf16.gmra.mxu0 %v1315
        %v1396 = vpop.f32.mrf.mxu0
        %v1397 = vadd.f32 %v1102, %v1396
        %v1398 = vpop.f32.mrf.mxu0
        %v1399 = vpop.f32.mrf.mxu0
        %v1400 = vadd.f32 %v1105, %v1399
        %v1401 = vpop.f32.mrf.mxu0
        %1402 = vmatprep.mubr.bf16.mxu0 0
        %1403 = vmatmul.mubr.bf16.gmra.mxu0 %v1318
        %v1404 = vpop.f32.mrf.mxu0
        %v1405 = vadd.f32 %v1110, %v1404
        %v1406 = vpop.f32.mrf.mxu0
        %v1407 = vpop.f32.mrf.mxu0
        %v1408 = vadd.f32 %v1113, %v1407
        %v1409 = vpop.f32.mrf.mxu0
        %1410 = vmatprep.mubr.bf16.mxu0 0
        %1411 = vmatmul.mubr.bf16.gmra.mxu0 %v1321
        %v1412 = vpop.f32.mrf.mxu0
        %v1413 = vadd.f32 %v1118, %v1412
        %v1414 = vpop.f32.mrf.mxu0
        %v1415 = vpop.f32.mrf.mxu0
        %v1416 = vadd.f32 %v1121, %v1415
        %v1417 = vpop.f32.mrf.mxu0
        %1418 = vmatprep.mubr.bf16.mxu0 0
        %1419 = vmatmul.mubr.bf16.gmra.mxu0 %v1324
        %v1420 = vpop.f32.mrf.mxu0
        %v1421 = vadd.f32 %v1126, %v1420
        %v1422 = vpop.f32.mrf.mxu0
        %v1423 = vpop.f32.mrf.mxu0
        %v1424 = vadd.f32 %v1129, %v1423
        %v1425 = vpop.f32.mrf.mxu0
        %1426 = vmatprep.mubr.bf16.mxu0 0
        %1427 = vmatmul.mubr.bf16.gmra.mxu0 %v1327
        %v1428 = vpop.f32.mrf.mxu0
        %v1429 = vadd.f32 %v1134, %v1428
        %v1430 = vpop.f32.mrf.mxu0
        %v1431 = vpop.f32.mrf.mxu0
        %v1432 = vadd.f32 %v1137, %v1431
        %v1433 = vpop.f32.mrf.mxu0
        %1434 = vmatprep.mubr.bf16.mxu0 0
        %1435 = vmatmul.mubr.bf16.gmra.mxu0 %v1330
        %v1436 = vpop.f32.mrf.mxu0
        %v1437 = vadd.f32 %v1142, %v1436
        %v1438 = vpop.f32.mrf.mxu0
        %v1439 = vpop.f32.mrf.mxu0
        %v1440 = vadd.f32 %v1145, %v1439
        %v1441 = vpop.f32.mrf.mxu0
        %1442 = vmatprep.mubr.bf16.mxu0 0
        %1443 = vmatmul.mubr.bf16.gmra.mxu0 %v1333
        %v1444 = vpop.f32.mrf.mxu0
        %v1445 = vadd.f32 %v1150, %v1444
        %v1446 = vpop.f32.mrf.mxu0
        %v1447 = vpop.f32.mrf.mxu0
        %v1448 = vadd.f32 %v1153, %v1447
        %v1449 = vpop.f32.mrf.mxu0
        %1450 = vmatprep.mubr.bf16.mxu0 0
        %1451 = vmatmul.mubr.bf16.gmra.mxu0 %v1336
        %v1452 = vpop.f32.mrf.mxu0
        %v1453 = vadd.f32 %v1158, %v1452
        %v1454 = vpop.f32.mrf.mxu0
        %v1455 = vpop.f32.mrf.mxu0
        %v1456 = vadd.f32 %v1161, %v1455
        %v1457 = vpop.f32.mrf.mxu0
        %1458 = vmatprep.mubr.bf16.mxu0 0
        %1459 = vmatmul.mubr.bf16.gmra.mxu0 %v1339
        %v1460 = vpop.f32.mrf.mxu0
        %v1461 = vadd.f32 %v1166, %v1460
        %v1462 = vpop.f32.mrf.mxu0
        %v1463 = vpop.f32.mrf.mxu0
        %v1464 = vadd.f32 %v1169, %v1463
        %v1465 = vpop.f32.mrf.mxu0
        %1466 = vmatprep.mubr.bf16.mxu0 0
        %1467 = vmatmul.mubr.bf16.gmra.mxu0 %v1342
        %v1468 = vpop.f32.mrf.mxu0
        %v1469 = vadd.f32 %v1174, %v1468
        %v1470 = vpop.f32.mrf.mxu0
        %v1471 = vpop.f32.mrf.mxu0
        %v1472 = vadd.f32 %v1177, %v1471
        %v1473 = vpop.f32.mrf.mxu0
        %1474 = vmatprep.mubr.bf16.mxu0 0
        %1475 = vmatmul.mubr.bf16.gmra.mxu0 %v1345
        %v1476 = vpop.f32.mrf.mxu0
        %v1477 = vadd.f32 %v1182, %v1476
        %v1478 = vpop.f32.mrf.mxu0
        %v1479 = vpop.f32.mrf.mxu0
        %v1480 = vadd.f32 %v1185, %v1479
        %v1481 = vpop.f32.mrf.mxu0
        %1482 = vmatprep.mubr.bf16.mxu0 0
        %1483 = vmatmul.mubr.bf16.gmra.mxu0 %v1348
        %v1484 = vpop.f32.mrf.mxu0
        %v1485 = vadd.f32 %v1190, %v1484
        %v1486 = vpop.f32.mrf.mxu0
        %v1487 = vpop.f32.mrf.mxu0
        %v1488 = vadd.f32 %v1193, %v1487
        %v1489 = vpop.f32.mrf.mxu0
        %1490 = vmatprep.mubr.bf16.mxu0 0
        %1491 = vmatmul.mubr.bf16.gmra.mxu0 %v1351
        %v1492 = vpop.f32.mrf.mxu0
        %v1493 = vadd.f32 %v1198, %v1492
        %v1494 = vpop.f32.mrf.mxu0
        %v1495 = vpop.f32.mrf.mxu0
        %v1496 = vadd.f32 %v1201, %v1495
        %v1497 = vpop.f32.mrf.mxu0
        %1498 = vmatprep.mubr.bf16.mxu0 0
        %1499 = vmatmul.mubr.bf16.gmra.mxu0 %v1354
        %v1500 = vpop.f32.mrf.mxu0
        %v1501 = vadd.f32 %v1206, %v1500
        %v1502 = vpop.f32.mrf.mxu0
        %v1503 = vpop.f32.mrf.mxu0
        %v1504 = vadd.f32 %v1209, %v1503
        %v1505 = vpop.f32.mrf.mxu0
        %1506 = vmatprep.mubr.bf16.mxu0 0
        %1507 = vmatmul.mubr.bf16.gmra.mxu0 %v1357
        %v1508 = vpop.f32.mrf.mxu0
        %v1509 = vadd.f32 %v1214, %v1508
        %v1510 = vpop.f32.mrf.mxu0
        %v1511 = vpop.f32.mrf.mxu0
        %v1512 = vadd.f32 %v1217, %v1511
        %v1513 = vpop.f32.mrf.mxu0
        %1514 = vmatprep.mubr.bf16.mxu0 0
        %1515 = vmatmul.mubr.bf16.gmra.mxu0 %v1360
        %v1516 = vpop.f32.mrf.mxu0
        %v1517 = vadd.f32 %v1222, %v1516
        %v1518 = vpop.f32.mrf.mxu0
        %v1519 = vpop.f32.mrf.mxu0
        %v1520 = vadd.f32 %v1225, %v1519
        %v1521 = vpop.f32.mrf.mxu0
        %1522 = vdwg.mxu0
        %s1523 = scalar_lea.vmem %s827, 304 [#allocation2]
        %v1524 = vld [vmem:[%s1523] sm:$0xf]
        %v1525 = vld [vmem:[%s1523 + $0x4] sm:$0xf]
        %v1526 = vld [vmem:[%s1523 + $0x8] sm:$0xf]
        %v1527 = vld [vmem:[%s1523 + $0xc] sm:$0xf]
        %v1528 = vld [vmem:[%s1523 + $0x10] sm:$0xf]
        %v1529 = vld [vmem:[%s1523 + $0x14] sm:$0xf]
        %v1530 = vld [vmem:[%s1523 + $0x18] sm:$0xf]
        %v1531 = vld [vmem:[%s1523 + $0x1c] sm:$0xf]
        %v1532 = vld [vmem:[%s1523 + $0x20] sm:$0xf]
        %v1533 = vld [vmem:[%s1523 + $0x24] sm:$0xf]
        %v1534 = vld [vmem:[%s1523 + $0x28] sm:$0xf]
        %v1535 = vld [vmem:[%s1523 + $0x2c] sm:$0xf]
        %v1536 = vld [vmem:[%s1523 + $0x30] sm:$0xf]
        %v1537 = vld [vmem:[%s1523 + $0x34] sm:$0xf]
        %v1538 = vld [vmem:[%s1523 + $0x38] sm:$0xf]
        %v1539 = vld [vmem:[%s1523 + $0x3c] sm:$0xf]
        %v1540 = vld [vmem:[%s1523 + $0x40] sm:$0xf]
        %v1541 = vld [vmem:[%s1523 + $0x44] sm:$0xf]
        %v1542 = vld [vmem:[%s1523 + $0x48] sm:$0xf]
        %v1543 = vld [vmem:[%s1523 + $0x4c] sm:$0xf]
        %v1544 = vld [vmem:[%s1523 + $0x50] sm:$0xf]
        %v1545 = vld [vmem:[%s1523 + $0x54] sm:$0xf]
        %v1546 = vld [vmem:[%s1523 + $0x58] sm:$0xf]
        %v1547 = vld [vmem:[%s1523 + $0x5c] sm:$0xf]
        %v1548 = vld [vmem:[%s1523 + $0x60] sm:$0xf]
        %v1549 = vld [vmem:[%s1523 + $0x64] sm:$0xf]
        %v1550 = vld [vmem:[%s1523 + $0x68] sm:$0xf]
        %v1551 = vld [vmem:[%s1523 + $0x6c] sm:$0xf]
        %v1552 = vld [vmem:[%s1523 + $0x70] sm:$0xf]
        %v1553 = vld [vmem:[%s1523 + $0x74] sm:$0xf]
        %v1554 = vld [vmem:[%s1523 + $0x78] sm:$0xf]
        %v1555 = vld [vmem:[%s1523 + $0x7c] sm:$0xf]
        %v1556 = vld [vmem:[%s858 + $0x10] sm:$0xf]
        %v1557 = vld [vmem:[%s858 + $0x14] sm:$0xf]
        %v1590 = vunpack.c.l.b16 %v1524
        %v1591 = vunpack.c.l.b16 %v1525
        %v1592 = vunpack.c.l.b16 %v1526
        %v1593 = vunpack.c.l.b16 %v1527
        %v1594 = vunpack.c.l.b16 %v1528
        %v1595 = vunpack.c.l.b16 %v1529
        %v1596 = vunpack.c.l.b16 %v1530
        %v1597 = vunpack.c.l.b16 %v1531
        %v1598 = vunpack.c.l.b16 %v1532
        %v1599 = vunpack.c.l.b16 %v1533
        %v1600 = vunpack.c.l.b16 %v1534
        %v1601 = vunpack.c.l.b16 %v1535
        %v1602 = vunpack.c.l.b16 %v1536
        %v1603 = vunpack.c.l.b16 %v1537
        %v1604 = vunpack.c.l.b16 %v1538
        %v1605 = vunpack.c.l.b16 %v1539
        %v1606 = vunpack.c.l.b16 %v1540
        %v1607 = vunpack.c.l.b16 %v1541
        %v1608 = vunpack.c.l.b16 %v1542
        %v1609 = vunpack.c.l.b16 %v1543
        %v1610 = vunpack.c.l.b16 %v1544
        %v1611 = vunpack.c.l.b16 %v1545
        %v1612 = vunpack.c.l.b16 %v1546
        %v1613 = vunpack.c.l.b16 %v1547
        %v1614 = vunpack.c.l.b16 %v1548
        %v1615 = vunpack.c.l.b16 %v1549
        %v1616 = vunpack.c.l.b16 %v1550
        %v1617 = vunpack.c.l.b16 %v1551
        %v1618 = vunpack.c.l.b16 %v1552
        %v1619 = vunpack.c.l.b16 %v1553
        %v1620 = vunpack.c.l.b16 %v1554
        %v1621 = vunpack.c.l.b16 %v1555
        %v1622 = vpack.c.b16 %v1591, %v1590
        %v1623 = vpack.c.b16 %v1593, %v1592
        %v1624 = vpack.c.b16 %v1595, %v1594
        %v1625 = vpack.c.b16 %v1597, %v1596
        %v1626 = vpack.c.b16 %v1599, %v1598
        %v1627 = vpack.c.b16 %v1601, %v1600
        %v1628 = vpack.c.b16 %v1603, %v1602
        %v1629 = vpack.c.b16 %v1605, %v1604
        %v1630 = vpack.c.b16 %v1607, %v1606
        %v1631 = vpack.c.b16 %v1609, %v1608
        %v1632 = vpack.c.b16 %v1611, %v1610
        %v1633 = vpack.c.b16 %v1613, %v1612
        %v1634 = vpack.c.b16 %v1615, %v1614
        %v1635 = vpack.c.b16 %v1617, %v1616
        %v1636 = vpack.c.b16 %v1619, %v1618
        %v1637 = vpack.c.b16 %v1621, %v1620
        %v1640 = vunpack.c.l.b16 %v1556
        %v1641 = vunpack.c.l.b16 %v1557
        %v1642 = vpack.c.b16 %v1641, %v1640
        %v1645 = vsel %vm1018, %v1622, 0
        %v1648 = vsel %vm1018, %v1623, 0
        %v1651 = vsel %vm1018, %v1624, 0
        %v1654 = vsel %vm1018, %v1625, 0
        %v1657 = vsel %vm1018, %v1626, 0
        %v1660 = vsel %vm1018, %v1627, 0
        %v1663 = vsel %vm1018, %v1628, 0
        %v1666 = vsel %vm1018, %v1629, 0
        %v1669 = vsel %vm1018, %v1630, 0
        %v1672 = vsel %vm1018, %v1631, 0
        %v1675 = vsel %vm1018, %v1632, 0
        %v1678 = vsel %vm1018, %v1633, 0
        %v1681 = vsel %vm1018, %v1634, 0
        %v1684 = vsel %vm1018, %v1635, 0
        %v1687 = vsel %vm1018, %v1636, 0
        %v1690 = vsel %vm1018, %v1637, 0
        %1692 = vmatprep.subr.bf16.mxu0 0
        %1693 = vmatpush1.bf16.msra.mxu0 0
        %1694 = vmatprep.subr.bf16.mxu0 0
        %1695 = vmatpush1.bf16.msra.mxu0 0
        %1696 = vmatprep.subr.bf16.mxu0 0
        %1697 = vmatpush1.bf16.msra.mxu0 0
        %1698 = vmatprep.subr.bf16.mxu0 0
        %1699 = vmatpush1.bf16.msra.mxu0 0
        %1700 = vmatprep.subr.bf16.mxu0 0
        %1701 = vmatpush1.bf16.msra.mxu0 0
        %1702 = vmatprep.subr.bf16.mxu0 0
        %1703 = vmatpush1.bf16.msra.mxu0 0
        %1704 = vmatprep.subr.bf16.mxu0 0
        %1705 = vmatpush1.bf16.msra.mxu0 0
        %1706 = vmatprep.subr.bf16.mxu0 0
        %1707 = vmatpush1.bf16.msra.mxu0 %v1642
        %1708 = vmatprep.subr.bf16.mxu0 0
        %1709 = vmatpush2.bf16.msra.mxu0 0
        %1710 = vmatprep.subr.bf16.mxu0 0
        %1711 = vmatpush2.bf16.msra.mxu0 0
        %1712 = vmatprep.subr.bf16.mxu0 0
        %1713 = vmatpush2.bf16.msra.mxu0 0
        %1714 = vmatprep.subr.bf16.mxu0 0
        %1715 = vmatpush2.bf16.msra.mxu0 0
        %1716 = vmatprep.subr.bf16.mxu0 0
        %1717 = vmatpush2.bf16.msra.mxu0 0
        %1718 = vmatprep.subr.bf16.mxu0 0
        %1719 = vmatpush2.bf16.msra.mxu0 0
        %1720 = vmatprep.subr.bf16.mxu0 0
        %1721 = vmatpush2.bf16.msra.mxu0 0
        %1722 = vmatprep.subr.bf16.mxu0 0
        %1723 = vmatpush2.bf16.msra.mxu0 0
        %1724 = vmatprep.mubr.bf16.mxu0 0
        %1725 = vmatmul.mubr.bf16.gmra.mxu0 %v1645
        %v1726 = vpop.f32.mrf.mxu0
        %v1727 = vadd.f32 0.0, %v1726
        %v1728 = vpop.f32.mrf.mxu0
        %v1729 = vpop.f32.mrf.mxu0
        %v1730 = vadd.f32 0.0, %v1729
        %v1731 = vpop.f32.mrf.mxu0
        %1732 = vmatprep.mubr.bf16.mxu0 0
        %1733 = vmatmul.mubr.bf16.gmra.mxu0 %v1648
        %v1734 = vpop.f32.mrf.mxu0
        %v1735 = vadd.f32 0.0, %v1734
        %v1736 = vpop.f32.mrf.mxu0
        %v1737 = vpop.f32.mrf.mxu0
        %v1738 = vadd.f32 0.0, %v1737
        %v1739 = vpop.f32.mrf.mxu0
        %1740 = vmatprep.mubr.bf16.mxu0 0
        %1741 = vmatmul.mubr.bf16.gmra.mxu0 %v1651
        %v1742 = vpop.f32.mrf.mxu0
        %v1743 = vadd.f32 0.0, %v1742
        %v1744 = vpop.f32.mrf.mxu0
        %v1745 = vpop.f32.mrf.mxu0
        %v1746 = vadd.f32 0.0, %v1745
        %v1747 = vpop.f32.mrf.mxu0
        %1748 = vmatprep.mubr.bf16.mxu0 0
        %1749 = vmatmul.mubr.bf16.gmra.mxu0 %v1654
        %v1750 = vpop.f32.mrf.mxu0
        %v1751 = vadd.f32 0.0, %v1750
        %v1752 = vpop.f32.mrf.mxu0
        %v1753 = vpop.f32.mrf.mxu0
        %v1754 = vadd.f32 0.0, %v1753
        %v1755 = vpop.f32.mrf.mxu0
        %1756 = vmatprep.mubr.bf16.mxu0 0
        %1757 = vmatmul.mubr.bf16.gmra.mxu0 %v1657
        %v1758 = vpop.f32.mrf.mxu0
        %v1759 = vadd.f32 0.0, %v1758
        %v1760 = vpop.f32.mrf.mxu0
        %v1761 = vpop.f32.mrf.mxu0
        %v1762 = vadd.f32 0.0, %v1761
        %v1763 = vpop.f32.mrf.mxu0
        %1764 = vmatprep.mubr.bf16.mxu0 0
        %1765 = vmatmul.mubr.bf16.gmra.mxu0 %v1660
        %v1766 = vpop.f32.mrf.mxu0
        %v1767 = vadd.f32 0.0, %v1766
        %v1768 = vpop.f32.mrf.mxu0
        %v1769 = vpop.f32.mrf.mxu0
        %v1770 = vadd.f32 0.0, %v1769
        %v1771 = vpop.f32.mrf.mxu0
        %1772 = vmatprep.mubr.bf16.mxu0 0
        %1773 = vmatmul.mubr.bf16.gmra.mxu0 %v1663
        %v1774 = vpop.f32.mrf.mxu0
        %v1775 = vadd.f32 0.0, %v1774
        %v1776 = vpop.f32.mrf.mxu0
        %v1777 = vpop.f32.mrf.mxu0
        %v1778 = vadd.f32 0.0, %v1777
        %v1779 = vpop.f32.mrf.mxu0
        %1780 = vmatprep.mubr.bf16.mxu0 0
        %1781 = vmatmul.mubr.bf16.gmra.mxu0 %v1666
        %v1782 = vpop.f32.mrf.mxu0
        %v1783 = vadd.f32 0.0, %v1782
        %v1784 = vpop.f32.mrf.mxu0
        %v1785 = vpop.f32.mrf.mxu0
        %v1786 = vadd.f32 0.0, %v1785
        %v1787 = vpop.f32.mrf.mxu0
        %1788 = vmatprep.mubr.bf16.mxu0 0
        %1789 = vmatmul.mubr.bf16.gmra.mxu0 %v1669
        %v1790 = vpop.f32.mrf.mxu0
        %v1791 = vadd.f32 0.0, %v1790
        %v1792 = vpop.f32.mrf.mxu0
        %v1793 = vpop.f32.mrf.mxu0
        %v1794 = vadd.f32 0.0, %v1793
        %v1795 = vpop.f32.mrf.mxu0
        %1796 = vmatprep.mubr.bf16.mxu0 0
        %1797 = vmatmul.mubr.bf16.gmra.mxu0 %v1672
        %v1798 = vpop.f32.mrf.mxu0
        %v1799 = vadd.f32 0.0, %v1798
        %v1800 = vpop.f32.mrf.mxu0
        %v1801 = vpop.f32.mrf.mxu0
        %v1802 = vadd.f32 0.0, %v1801
        %v1803 = vpop.f32.mrf.mxu0
        %1804 = vmatprep.mubr.bf16.mxu0 0
        %1805 = vmatmul.mubr.bf16.gmra.mxu0 %v1675
        %v1806 = vpop.f32.mrf.mxu0
        %v1807 = vadd.f32 0.0, %v1806
        %v1808 = vpop.f32.mrf.mxu0
        %v1809 = vpop.f32.mrf.mxu0
        %v1810 = vadd.f32 0.0, %v1809
        %v1811 = vpop.f32.mrf.mxu0
        %1812 = vmatprep.mubr.bf16.mxu0 0
        %1813 = vmatmul.mubr.bf16.gmra.mxu0 %v1678
        %v1814 = vpop.f32.mrf.mxu0
        %v1815 = vadd.f32 0.0, %v1814
        %v1816 = vpop.f32.mrf.mxu0
        %v1817 = vpop.f32.mrf.mxu0
        %v1818 = vadd.f32 0.0, %v1817
        %v1819 = vpop.f32.mrf.mxu0
        %1820 = vmatprep.mubr.bf16.mxu0 0
        %1821 = vmatmul.mubr.bf16.gmra.mxu0 %v1681
        %v1822 = vpop.f32.mrf.mxu0
        %v1823 = vadd.f32 0.0, %v1822
        %v1824 = vpop.f32.mrf.mxu0
        %v1825 = vpop.f32.mrf.mxu0
        %v1826 = vadd.f32 0.0, %v1825
        %v1827 = vpop.f32.mrf.mxu0
        %1828 = vmatprep.mubr.bf16.mxu0 0
        %1829 = vmatmul.mubr.bf16.gmra.mxu0 %v1684
        %v1830 = vpop.f32.mrf.mxu0
        %v1831 = vadd.f32 0.0, %v1830
        %v1832 = vpop.f32.mrf.mxu0
        %v1833 = vpop.f32.mrf.mxu0
        %v1834 = vadd.f32 0.0, %v1833
        %v1835 = vpop.f32.mrf.mxu0
        %1836 = vmatprep.mubr.bf16.mxu0 0
        %1837 = vmatmul.mubr.bf16.gmra.mxu0 %v1687
        %v1838 = vpop.f32.mrf.mxu0
        %v1839 = vadd.f32 0.0, %v1838
        %v1840 = vpop.f32.mrf.mxu0
        %v1841 = vpop.f32.mrf.mxu0
        %v1842 = vadd.f32 0.0, %v1841
        %v1843 = vpop.f32.mrf.mxu0
        %1844 = vmatprep.mubr.bf16.mxu0 0
        %1845 = vmatmul.mubr.bf16.gmra.mxu0 %v1690
        %v1846 = vpop.f32.mrf.mxu0
        %v1847 = vadd.f32 0.0, %v1846
        %v1848 = vpop.f32.mrf.mxu0
        %v1849 = vpop.f32.mrf.mxu0
        %v1850 = vadd.f32 0.0, %v1849
        %v1851 = vpop.f32.mrf.mxu0
        %1852 = vdwg.mxu0
        %v1853 = vadd.f32 %v1397, %v1727
        %v1854 = vadd.f32 %v1400, %v1730
        %v1855 = vadd.f32 %v1405, %v1735
        %v1856 = vadd.f32 %v1408, %v1738
        %v1857 = vadd.f32 %v1413, %v1743
        %v1858 = vadd.f32 %v1416, %v1746
        %v1859 = vadd.f32 %v1421, %v1751
        %v1860 = vadd.f32 %v1424, %v1754
        %v1861 = vadd.f32 %v1429, %v1759
        %v1862 = vadd.f32 %v1432, %v1762
        %v1863 = vadd.f32 %v1437, %v1767
        %v1864 = vadd.f32 %v1440, %v1770
        %v1865 = vadd.f32 %v1445, %v1775
        %v1866 = vadd.f32 %v1448, %v1778
        %v1867 = vadd.f32 %v1453, %v1783
        %v1868 = vadd.f32 %v1456, %v1786
        %v1869 = vadd.f32 %v1461, %v1791
        %v1870 = vadd.f32 %v1464, %v1794
        %v1871 = vadd.f32 %v1469, %v1799
        %v1872 = vadd.f32 %v1472, %v1802
        %v1873 = vadd.f32 %v1477, %v1807
        %v1874 = vadd.f32 %v1480, %v1810
        %v1875 = vadd.f32 %v1485, %v1815
        %v1876 = vadd.f32 %v1488, %v1818
        %v1877 = vadd.f32 %v1493, %v1823
        %v1878 = vadd.f32 %v1496, %v1826
        %v1879 = vadd.f32 %v1501, %v1831
        %v1880 = vadd.f32 %v1504, %v1834
        %v1881 = vadd.f32 %v1509, %v1839
        %v1882 = vadd.f32 %v1512, %v1842
        %v1883 = vadd.f32 %v1517, %v1847
        %v1884 = vadd.f32 %v1520, %v1850
        %s1885 = scalar_lea.vmem %s827, 456 [#allocation2]
        %v1886 = vld [vmem:[%s1885] sm:$0xf]
        %v1887 = vld [vmem:[%s1885 + $0x4] sm:$0xf]
        %v1888 = vld [vmem:[%s1885 + $0x8] sm:$0xf]
        %v1889 = vld [vmem:[%s1885 + $0xc] sm:$0xf]
        %v1890 = vld [vmem:[%s1885 + $0x10] sm:$0xf]
        %v1891 = vld [vmem:[%s1885 + $0x14] sm:$0xf]
        %v1892 = vld [vmem:[%s1885 + $0x18] sm:$0xf]
        %v1893 = vld [vmem:[%s1885 + $0x1c] sm:$0xf]
        %v1894 = vld [vmem:[%s1885 + $0x20] sm:$0xf]
        %v1895 = vld [vmem:[%s1885 + $0x24] sm:$0xf]
        %v1896 = vld [vmem:[%s1885 + $0x28] sm:$0xf]
        %v1897 = vld [vmem:[%s1885 + $0x2c] sm:$0xf]
        %v1898 = vld [vmem:[%s1885 + $0x30] sm:$0xf]
        %v1899 = vld [vmem:[%s1885 + $0x34] sm:$0xf]
        %v1900 = vld [vmem:[%s1885 + $0x38] sm:$0xf]
        %v1901 = vld [vmem:[%s1885 + $0x3c] sm:$0xf]
        %v1902 = vld [vmem:[%s1885 + $0x40] sm:$0xf]
        %v1903 = vld [vmem:[%s1885 + $0x44] sm:$0xf]
        %v1904 = vld [vmem:[%s1885 + $0x48] sm:$0xf]
        %v1905 = vld [vmem:[%s1885 + $0x4c] sm:$0xf]
        %v1906 = vld [vmem:[%s1885 + $0x50] sm:$0xf]
        %v1907 = vld [vmem:[%s1885 + $0x54] sm:$0xf]
        %v1908 = vld [vmem:[%s1885 + $0x58] sm:$0xf]
        %v1909 = vld [vmem:[%s1885 + $0x5c] sm:$0xf]
        %v1910 = vld [vmem:[%s1885 + $0x60] sm:$0xf]
        %v1911 = vld [vmem:[%s1885 + $0x64] sm:$0xf]
        %v1912 = vld [vmem:[%s1885 + $0x68] sm:$0xf]
        %v1913 = vld [vmem:[%s1885 + $0x6c] sm:$0xf]
        %v1914 = vld [vmem:[%s1885 + $0x70] sm:$0xf]
        %v1915 = vld [vmem:[%s1885 + $0x74] sm:$0xf]
        %v1916 = vld [vmem:[%s1885 + $0x78] sm:$0xf]
        %v1917 = vld [vmem:[%s1885 + $0x7c] sm:$0xf]
        %v1918 = vld [vmem:[%s858 + $0x18] sm:$0xf]
        %v1919 = vld [vmem:[%s858 + $0x1c] sm:$0xf]
        %v1952 = vunpack.c.l.b16 %v1886
        %v1953 = vunpack.c.l.b16 %v1887
        %v1954 = vunpack.c.l.b16 %v1888
        %v1955 = vunpack.c.l.b16 %v1889
        %v1956 = vunpack.c.l.b16 %v1890
        %v1957 = vunpack.c.l.b16 %v1891
        %v1958 = vunpack.c.l.b16 %v1892
        %v1959 = vunpack.c.l.b16 %v1893
        %v1960 = vunpack.c.l.b16 %v1894
        %v1961 = vunpack.c.l.b16 %v1895
        %v1962 = vunpack.c.l.b16 %v1896
        %v1963 = vunpack.c.l.b16 %v1897
        %v1964 = vunpack.c.l.b16 %v1898
        %v1965 = vunpack.c.l.b16 %v1899
        %v1966 = vunpack.c.l.b16 %v1900
        %v1967 = vunpack.c.l.b16 %v1901
        %v1968 = vunpack.c.l.b16 %v1902
        %v1969 = vunpack.c.l.b16 %v1903
        %v1970 = vunpack.c.l.b16 %v1904
        %v1971 = vunpack.c.l.b16 %v1905
        %v1972 = vunpack.c.l.b16 %v1906
        %v1973 = vunpack.c.l.b16 %v1907
        %v1974 = vunpack.c.l.b16 %v1908
        %v1975 = vunpack.c.l.b16 %v1909
        %v1976 = vunpack.c.l.b16 %v1910
        %v1977 = vunpack.c.l.b16 %v1911
        %v1978 = vunpack.c.l.b16 %v1912
        %v1979 = vunpack.c.l.b16 %v1913
        %v1980 = vunpack.c.l.b16 %v1914
        %v1981 = vunpack.c.l.b16 %v1915
        %v1982 = vunpack.c.l.b16 %v1916
        %v1983 = vunpack.c.l.b16 %v1917
        %v1984 = vpack.c.b16 %v1953, %v1952
        %v1985 = vpack.c.b16 %v1955, %v1954
        %v1986 = vpack.c.b16 %v1957, %v1956
        %v1987 = vpack.c.b16 %v1959, %v1958
        %v1988 = vpack.c.b16 %v1961, %v1960
        %v1989 = vpack.c.b16 %v1963, %v1962
        %v1990 = vpack.c.b16 %v1965, %v1964
        %v1991 = vpack.c.b16 %v1967, %v1966
        %v1992 = vpack.c.b16 %v1969, %v1968
        %v1993 = vpack.c.b16 %v1971, %v1970
        %v1994 = vpack.c.b16 %v1973, %v1972
        %v1995 = vpack.c.b16 %v1975, %v1974
        %v1996 = vpack.c.b16 %v1977, %v1976
        %v1997 = vpack.c.b16 %v1979, %v1978
        %v1998 = vpack.c.b16 %v1981, %v1980
        %v1999 = vpack.c.b16 %v1983, %v1982
        %v2002 = vunpack.c.l.b16 %v1918
        %v2003 = vunpack.c.l.b16 %v1919
        %v2004 = vpack.c.b16 %v2003, %v2002
        %v2007 = vsel %vm1018, %v1984, 0
        %v2010 = vsel %vm1018, %v1985, 0
        %v2013 = vsel %vm1018, %v1986, 0
        %v2016 = vsel %vm1018, %v1987, 0
        %v2019 = vsel %vm1018, %v1988, 0
        %v2022 = vsel %vm1018, %v1989, 0
        %v2025 = vsel %vm1018, %v1990, 0
        %v2028 = vsel %vm1018, %v1991, 0
        %v2031 = vsel %vm1018, %v1992, 0
        %v2034 = vsel %vm1018, %v1993, 0
        %v2037 = vsel %vm1018, %v1994, 0
        %v2040 = vsel %vm1018, %v1995, 0
        %v2043 = vsel %vm1018, %v1996, 0
        %v2046 = vsel %vm1018, %v1997, 0
        %v2049 = vsel %vm1018, %v1998, 0
        %v2052 = vsel %vm1018, %v1999, 0
        %2054 = vmatprep.subr.bf16.mxu0 0
        %2055 = vmatpush1.bf16.msra.mxu0 0
        %2056 = vmatprep.subr.bf16.mxu0 0
        %2057 = vmatpush1.bf16.msra.mxu0 0
        %2058 = vmatprep.subr.bf16.mxu0 0
        %2059 = vmatpush1.bf16.msra.mxu0 0
        %2060 = vmatprep.subr.bf16.mxu0 0
        %2061 = vmatpush1.bf16.msra.mxu0 0
        %2062 = vmatprep.subr.bf16.mxu0 0
        %2063 = vmatpush1.bf16.msra.mxu0 0
        %2064 = vmatprep.subr.bf16.mxu0 0
        %2065 = vmatpush1.bf16.msra.mxu0 0
        %2066 = vmatprep.subr.bf16.mxu0 0
        %2067 = vmatpush1.bf16.msra.mxu0 0
        %2068 = vmatprep.subr.bf16.mxu0 0
        %2069 = vmatpush1.bf16.msra.mxu0 %v2004
        %2070 = vmatprep.subr.bf16.mxu0 0
        %2071 = vmatpush2.bf16.msra.mxu0 0
        %2072 = vmatprep.subr.bf16.mxu0 0
        %2073 = vmatpush2.bf16.msra.mxu0 0
        %2074 = vmatprep.subr.bf16.mxu0 0
        %2075 = vmatpush2.bf16.msra.mxu0 0
        %2076 = vmatprep.subr.bf16.mxu0 0
        %2077 = vmatpush2.bf16.msra.mxu0 0
        %2078 = vmatprep.subr.bf16.mxu0 0
        %2079 = vmatpush2.bf16.msra.mxu0 0
        %2080 = vmatprep.subr.bf16.mxu0 0
        %2081 = vmatpush2.bf16.msra.mxu0 0
        %2082 = vmatprep.subr.bf16.mxu0 0
        %2083 = vmatpush2.bf16.msra.mxu0 0
        %2084 = vmatprep.subr.bf16.mxu0 0
        %2085 = vmatpush2.bf16.msra.mxu0 0
        %2086 = vmatprep.mubr.bf16.mxu0 0
        %2087 = vmatmul.mubr.bf16.gmra.mxu0 %v2007
        %v2088 = vpop.f32.mrf.mxu0
        %v2089 = vadd.f32 0.0, %v2088
        %v2090 = vpop.f32.mrf.mxu0
        %v2091 = vpop.f32.mrf.mxu0
        %v2092 = vadd.f32 0.0, %v2091
        %v2093 = vpop.f32.mrf.mxu0
        %2094 = vmatprep.mubr.bf16.mxu0 0
        %2095 = vmatmul.mubr.bf16.gmra.mxu0 %v2010
        %v2096 = vpop.f32.mrf.mxu0
        %v2097 = vadd.f32 0.0, %v2096
        %v2098 = vpop.f32.mrf.mxu0
        %v2099 = vpop.f32.mrf.mxu0
        %v2100 = vadd.f32 0.0, %v2099
        %v2101 = vpop.f32.mrf.mxu0
        %2102 = vmatprep.mubr.bf16.mxu0 0
        %2103 = vmatmul.mubr.bf16.gmra.mxu0 %v2013
        %v2104 = vpop.f32.mrf.mxu0
        %v2105 = vadd.f32 0.0, %v2104
        %v2106 = vpop.f32.mrf.mxu0
        %v2107 = vpop.f32.mrf.mxu0
        %v2108 = vadd.f32 0.0, %v2107
        %v2109 = vpop.f32.mrf.mxu0
        %2110 = vmatprep.mubr.bf16.mxu0 0
        %2111 = vmatmul.mubr.bf16.gmra.mxu0 %v2016
        %v2112 = vpop.f32.mrf.mxu0
        %v2113 = vadd.f32 0.0, %v2112
        %v2114 = vpop.f32.mrf.mxu0
        %v2115 = vpop.f32.mrf.mxu0
        %v2116 = vadd.f32 0.0, %v2115
        %v2117 = vpop.f32.mrf.mxu0
        %2118 = vmatprep.mubr.bf16.mxu0 0
        %2119 = vmatmul.mubr.bf16.gmra.mxu0 %v2019
        %v2120 = vpop.f32.mrf.mxu0
        %v2121 = vadd.f32 0.0, %v2120
        %v2122 = vpop.f32.mrf.mxu0
        %v2123 = vpop.f32.mrf.mxu0
        %v2124 = vadd.f32 0.0, %v2123
        %v2125 = vpop.f32.mrf.mxu0
        %2126 = vmatprep.mubr.bf16.mxu0 0
        %2127 = vmatmul.mubr.bf16.gmra.mxu0 %v2022
        %v2128 = vpop.f32.mrf.mxu0
        %v2129 = vadd.f32 0.0, %v2128
        %v2130 = vpop.f32.mrf.mxu0
        %v2131 = vpop.f32.mrf.mxu0
        %v2132 = vadd.f32 0.0, %v2131
        %v2133 = vpop.f32.mrf.mxu0
        %2134 = vmatprep.mubr.bf16.mxu0 0
        %2135 = vmatmul.mubr.bf16.gmra.mxu0 %v2025
        %v2136 = vpop.f32.mrf.mxu0
        %v2137 = vadd.f32 0.0, %v2136
        %v2138 = vpop.f32.mrf.mxu0
        %v2139 = vpop.f32.mrf.mxu0
        %v2140 = vadd.f32 0.0, %v2139
        %v2141 = vpop.f32.mrf.mxu0
        %2142 = vmatprep.mubr.bf16.mxu0 0
        %2143 = vmatmul.mubr.bf16.gmra.mxu0 %v2028
        %v2144 = vpop.f32.mrf.mxu0
        %v2145 = vadd.f32 0.0, %v2144
        %v2146 = vpop.f32.mrf.mxu0
        %v2147 = vpop.f32.mrf.mxu0
        %v2148 = vadd.f32 0.0, %v2147
        %v2149 = vpop.f32.mrf.mxu0
        %2150 = vmatprep.mubr.bf16.mxu0 0
        %2151 = vmatmul.mubr.bf16.gmra.mxu0 %v2031
        %v2152 = vpop.f32.mrf.mxu0
        %v2153 = vadd.f32 0.0, %v2152
        %v2154 = vpop.f32.mrf.mxu0
        %v2155 = vpop.f32.mrf.mxu0
        %v2156 = vadd.f32 0.0, %v2155
        %v2157 = vpop.f32.mrf.mxu0
        %2158 = vmatprep.mubr.bf16.mxu0 0
        %2159 = vmatmul.mubr.bf16.gmra.mxu0 %v2034
        %v2160 = vpop.f32.mrf.mxu0
        %v2161 = vadd.f32 0.0, %v2160
        %v2162 = vpop.f32.mrf.mxu0
        %v2163 = vpop.f32.mrf.mxu0
        %v2164 = vadd.f32 0.0, %v2163
        %v2165 = vpop.f32.mrf.mxu0
        %2166 = vmatprep.mubr.bf16.mxu0 0
        %2167 = vmatmul.mubr.bf16.gmra.mxu0 %v2037
        %v2168 = vpop.f32.mrf.mxu0
        %v2169 = vadd.f32 0.0, %v2168
        %v2170 = vpop.f32.mrf.mxu0
        %v2171 = vpop.f32.mrf.mxu0
        %v2172 = vadd.f32 0.0, %v2171
        %v2173 = vpop.f32.mrf.mxu0
        %2174 = vmatprep.mubr.bf16.mxu0 0
        %2175 = vmatmul.mubr.bf16.gmra.mxu0 %v2040
        %v2176 = vpop.f32.mrf.mxu0
        %v2177 = vadd.f32 0.0, %v2176
        %v2178 = vpop.f32.mrf.mxu0
        %v2179 = vpop.f32.mrf.mxu0
        %v2180 = vadd.f32 0.0, %v2179
        %v2181 = vpop.f32.mrf.mxu0
        %2182 = vmatprep.mubr.bf16.mxu0 0
        %2183 = vmatmul.mubr.bf16.gmra.mxu0 %v2043
        %v2184 = vpop.f32.mrf.mxu0
        %v2185 = vadd.f32 0.0, %v2184
        %v2186 = vpop.f32.mrf.mxu0
        %v2187 = vpop.f32.mrf.mxu0
        %v2188 = vadd.f32 0.0, %v2187
        %v2189 = vpop.f32.mrf.mxu0
        %2190 = vmatprep.mubr.bf16.mxu0 0
        %2191 = vmatmul.mubr.bf16.gmra.mxu0 %v2046
        %v2192 = vpop.f32.mrf.mxu0
        %v2193 = vadd.f32 0.0, %v2192
        %v2194 = vpop.f32.mrf.mxu0
        %v2195 = vpop.f32.mrf.mxu0
        %v2196 = vadd.f32 0.0, %v2195
        %v2197 = vpop.f32.mrf.mxu0
        %2198 = vmatprep.mubr.bf16.mxu0 0
        %2199 = vmatmul.mubr.bf16.gmra.mxu0 %v2049
        %v2200 = vpop.f32.mrf.mxu0
        %v2201 = vadd.f32 0.0, %v2200
        %v2202 = vpop.f32.mrf.mxu0
        %v2203 = vpop.f32.mrf.mxu0
        %v2204 = vadd.f32 0.0, %v2203
        %v2205 = vpop.f32.mrf.mxu0
        %2206 = vmatprep.mubr.bf16.mxu0 0
        %2207 = vmatmul.mubr.bf16.gmra.mxu0 %v2052
        %v2208 = vpop.f32.mrf.mxu0
        %v2209 = vadd.f32 0.0, %v2208
        %v2210 = vpop.f32.mrf.mxu0
        %v2211 = vpop.f32.mrf.mxu0
        %v2212 = vadd.f32 0.0, %v2211
        %v2213 = vpop.f32.mrf.mxu0
        %2214 = vdwg.mxu0
        %v2215 = vadd.f32 %v1853, %v2089
        %v2216 = vadd.f32 %v1854, %v2092
        %v2217 = vadd.f32 %v1855, %v2097
        %v2218 = vadd.f32 %v1856, %v2100
        %v2219 = vadd.f32 %v1857, %v2105
        %v2220 = vadd.f32 %v1858, %v2108
        %v2221 = vadd.f32 %v1859, %v2113
        %v2222 = vadd.f32 %v1860, %v2116
        %v2223 = vadd.f32 %v1861, %v2121
        %v2224 = vadd.f32 %v1862, %v2124
        %v2225 = vadd.f32 %v1863, %v2129
        %v2226 = vadd.f32 %v1864, %v2132
        %v2227 = vadd.f32 %v1865, %v2137
        %v2228 = vadd.f32 %v1866, %v2140
        %v2229 = vadd.f32 %v1867, %v2145
        %v2230 = vadd.f32 %v1868, %v2148
        %v2231 = vadd.f32 %v1869, %v2153
        %v2232 = vadd.f32 %v1870, %v2156
        %v2233 = vadd.f32 %v1871, %v2161
        %v2234 = vadd.f32 %v1872, %v2164
        %v2235 = vadd.f32 %v1873, %v2169
        %v2236 = vadd.f32 %v1874, %v2172
        %v2237 = vadd.f32 %v1875, %v2177
        %v2238 = vadd.f32 %v1876, %v2180
        %v2239 = vadd.f32 %v1877, %v2185
        %v2240 = vadd.f32 %v1878, %v2188
        %v2241 = vadd.f32 %v1879, %v2193
        %v2242 = vadd.f32 %v1880, %v2196
        %v2243 = vadd.f32 %v1881, %v2201
        %v2244 = vadd.f32 %v1882, %v2204
        %v2245 = vadd.f32 %v1883, %v2209
        %v2246 = vadd.f32 %v1884, %v2212
        %v2247 = vld [vmem:[%s827 + $0x8] sm:$0xf]
        %v2248 = vld [vmem:[%s827 + $0xc] sm:$0xf]
        %v2249 = vld [vmem:[%s827 + $0x10] sm:$0xf]
        %v2250 = vld [vmem:[%s827 + $0x14] sm:$0xf]
        %v2251 = vld [vmem:[%s827 + $0x18] sm:$0xf]
        %v2252 = vld [vmem:[%s827 + $0x1c] sm:$0xf]
        %v2253 = vld [vmem:[%s827 + $0x20] sm:$0xf]
        %v2254 = vld [vmem:[%s827 + $0x24] sm:$0xf]
        %v2255 = vld [vmem:[%s827 + $0x28] sm:$0xf]
        %v2256 = vld [vmem:[%s827 + $0x2c] sm:$0xf]
        %v2257 = vld [vmem:[%s827 + $0x30] sm:$0xf]
        %v2258 = vld [vmem:[%s827 + $0x34] sm:$0xf]
        %v2259 = vld [vmem:[%s827 + $0x38] sm:$0xf]
        %v2260 = vld [vmem:[%s827 + $0x3c] sm:$0xf]
        %v2261 = vld [vmem:[%s827 + $0x40] sm:$0xf]
        %v2262 = vld [vmem:[%s827 + $0x44] sm:$0xf]
        %v2263 = vld [vmem:[%s827 + $0x48] sm:$0xf]
        %v2264 = vld [vmem:[%s827 + $0x4c] sm:$0xf]
        %v2265 = vld [vmem:[%s827 + $0x50] sm:$0xf]
        %v2266 = vld [vmem:[%s827 + $0x54] sm:$0xf]
        %v2267 = vld [vmem:[%s827 + $0x58] sm:$0xf]
        %v2268 = vld [vmem:[%s827 + $0x5c] sm:$0xf]
        %v2269 = vld [vmem:[%s827 + $0x60] sm:$0xf]
        %v2270 = vld [vmem:[%s827 + $0x64] sm:$0xf]
        %v2271 = vld [vmem:[%s827 + $0x68] sm:$0xf]
        %v2272 = vld [vmem:[%s827 + $0x6c] sm:$0xf]
        %v2273 = vld [vmem:[%s827 + $0x70] sm:$0xf]
        %v2274 = vld [vmem:[%s827 + $0x74] sm:$0xf]
        %v2275 = vld [vmem:[%s827 + $0x78] sm:$0xf]
        %v2276 = vld [vmem:[%s827 + $0x7c] sm:$0xf]
        %v2277 = vld [vmem:[%s827 + $0x80] sm:$0xf]
        %v2278 = vld [vmem:[%s827 + $0x84] sm:$0xf]
        %v2279 = vld [vmem:[%s858 + $0x20] sm:$0xf]
        %v2280 = vld [vmem:[%s858 + $0x24] sm:$0xf]
        %v2313 = vunpack.c.l.b16 %v2247
        %v2314 = vunpack.c.l.b16 %v2248
        %v2315 = vunpack.c.l.b16 %v2249
        %v2316 = vunpack.c.l.b16 %v2250
        %v2317 = vunpack.c.l.b16 %v2251
        %v2318 = vunpack.c.l.b16 %v2252
        %v2319 = vunpack.c.l.b16 %v2253
        %v2320 = vunpack.c.l.b16 %v2254
        %v2321 = vunpack.c.l.b16 %v2255
        %v2322 = vunpack.c.l.b16 %v2256
        %v2323 = vunpack.c.l.b16 %v2257
        %v2324 = vunpack.c.l.b16 %v2258
        %v2325 = vunpack.c.l.b16 %v2259
        %v2326 = vunpack.c.l.b16 %v2260
        %v2327 = vunpack.c.l.b16 %v2261
        %v2328 = vunpack.c.l.b16 %v2262
        %v2329 = vunpack.c.l.b16 %v2263
        %v2330 = vunpack.c.l.b16 %v2264
        %v2331 = vunpack.c.l.b16 %v2265
        %v2332 = vunpack.c.l.b16 %v2266
        %v2333 = vunpack.c.l.b16 %v2267
        %v2334 = vunpack.c.l.b16 %v2268
        %v2335 = vunpack.c.l.b16 %v2269
        %v2336 = vunpack.c.l.b16 %v2270
        %v2337 = vunpack.c.l.b16 %v2271
        %v2338 = vunpack.c.l.b16 %v2272
        %v2339 = vunpack.c.l.b16 %v2273
        %v2340 = vunpack.c.l.b16 %v2274
        %v2341 = vunpack.c.l.b16 %v2275
        %v2342 = vunpack.c.l.b16 %v2276
        %v2343 = vunpack.c.l.b16 %v2277
        %v2344 = vunpack.c.l.b16 %v2278
        %v2345 = vpack.c.b16 %v2314, %v2313
        %v2346 = vpack.c.b16 %v2316, %v2315
        %v2347 = vpack.c.b16 %v2318, %v2317
        %v2348 = vpack.c.b16 %v2320, %v2319
        %v2349 = vpack.c.b16 %v2322, %v2321
        %v2350 = vpack.c.b16 %v2324, %v2323
        %v2351 = vpack.c.b16 %v2326, %v2325
        %v2352 = vpack.c.b16 %v2328, %v2327
        %v2353 = vpack.c.b16 %v2330, %v2329
        %v2354 = vpack.c.b16 %v2332, %v2331
        %v2355 = vpack.c.b16 %v2334, %v2333
        %v2356 = vpack.c.b16 %v2336, %v2335
        %v2357 = vpack.c.b16 %v2338, %v2337
        %v2358 = vpack.c.b16 %v2340, %v2339
        %v2359 = vpack.c.b16 %v2342, %v2341
        %v2360 = vpack.c.b16 %v2344, %v2343
        %v2363 = vunpack.c.l.b16 %v2279
        %v2364 = vunpack.c.l.b16 %v2280
        %v2365 = vpack.c.b16 %v2364, %v2363
        %v2368 = vsel %vm1018, %v2345, 0
        %v2371 = vsel %vm1018, %v2346, 0
        %v2374 = vsel %vm1018, %v2347, 0
        %v2377 = vsel %vm1018, %v2348, 0
        %v2380 = vsel %vm1018, %v2349, 0
        %v2383 = vsel %vm1018, %v2350, 0
        %v2386 = vsel %vm1018, %v2351, 0
        %v2389 = vsel %vm1018, %v2352, 0
        %v2392 = vsel %vm1018, %v2353, 0
        %v2395 = vsel %vm1018, %v2354, 0
        %v2398 = vsel %vm1018, %v2355, 0
        %v2401 = vsel %vm1018, %v2356, 0
        %v2404 = vsel %vm1018, %v2357, 0
        %v2407 = vsel %vm1018, %v2358, 0
        %v2410 = vsel %vm1018, %v2359, 0
        %v2413 = vsel %vm1018, %v2360, 0
        %2415 = vmatprep.subr.bf16.mxu0 0
        %2416 = vmatpush1.bf16.msra.mxu0 0
        %2417 = vmatprep.subr.bf16.mxu0 0
        %2418 = vmatpush1.bf16.msra.mxu0 0
        %2419 = vmatprep.subr.bf16.mxu0 0
        %2420 = vmatpush1.bf16.msra.mxu0 0
        %2421 = vmatprep.subr.bf16.mxu0 0
        %2422 = vmatpush1.bf16.msra.mxu0 0
        %2423 = vmatprep.subr.bf16.mxu0 0
        %2424 = vmatpush1.bf16.msra.mxu0 0
        %2425 = vmatprep.subr.bf16.mxu0 0
        %2426 = vmatpush1.bf16.msra.mxu0 0
        %2427 = vmatprep.subr.bf16.mxu0 0
        %2428 = vmatpush1.bf16.msra.mxu0 0
        %2429 = vmatprep.subr.bf16.mxu0 0
        %2430 = vmatpush1.bf16.msra.mxu0 %v2365
        %2431 = vmatprep.subr.bf16.mxu0 0
        %2432 = vmatpush2.bf16.msra.mxu0 0
        %2433 = vmatprep.subr.bf16.mxu0 0
        %2434 = vmatpush2.bf16.msra.mxu0 0
        %2435 = vmatprep.subr.bf16.mxu0 0
        %2436 = vmatpush2.bf16.msra.mxu0 0
        %2437 = vmatprep.subr.bf16.mxu0 0
        %2438 = vmatpush2.bf16.msra.mxu0 0
        %2439 = vmatprep.subr.bf16.mxu0 0
        %2440 = vmatpush2.bf16.msra.mxu0 0
        %2441 = vmatprep.subr.bf16.mxu0 0
        %2442 = vmatpush2.bf16.msra.mxu0 0
        %2443 = vmatprep.subr.bf16.mxu0 0
        %2444 = vmatpush2.bf16.msra.mxu0 0
        %2445 = vmatprep.subr.bf16.mxu0 0
        %2446 = vmatpush2.bf16.msra.mxu0 0
        %2447 = vmatprep.mubr.bf16.mxu0 0
        %2448 = vmatmul.mubr.bf16.gmra.mxu0 %v2368
        %v2449 = vpop.f32.mrf.mxu0
        %v2450 = vadd.f32 0.0, %v2449
        %v2451 = vpop.f32.mrf.mxu0
        %v2452 = vpop.f32.mrf.mxu0
        %v2453 = vadd.f32 0.0, %v2452
        %v2454 = vpop.f32.mrf.mxu0
        %2455 = vmatprep.mubr.bf16.mxu0 0
        %2456 = vmatmul.mubr.bf16.gmra.mxu0 %v2371
        %v2457 = vpop.f32.mrf.mxu0
        %v2458 = vadd.f32 0.0, %v2457
        %v2459 = vpop.f32.mrf.mxu0
        %v2460 = vpop.f32.mrf.mxu0
        %v2461 = vadd.f32 0.0, %v2460
        %v2462 = vpop.f32.mrf.mxu0
        %2463 = vmatprep.mubr.bf16.mxu0 0
        %2464 = vmatmul.mubr.bf16.gmra.mxu0 %v2374
        %v2465 = vpop.f32.mrf.mxu0
        %v2466 = vadd.f32 0.0, %v2465
        %v2467 = vpop.f32.mrf.mxu0
        %v2468 = vpop.f32.mrf.mxu0
        %v2469 = vadd.f32 0.0, %v2468
        %v2470 = vpop.f32.mrf.mxu0
        %2471 = vmatprep.mubr.bf16.mxu0 0
        %2472 = vmatmul.mubr.bf16.gmra.mxu0 %v2377
        %v2473 = vpop.f32.mrf.mxu0
        %v2474 = vadd.f32 0.0, %v2473
        %v2475 = vpop.f32.mrf.mxu0
        %v2476 = vpop.f32.mrf.mxu0
        %v2477 = vadd.f32 0.0, %v2476
        %v2478 = vpop.f32.mrf.mxu0
        %2479 = vmatprep.mubr.bf16.mxu0 0
        %2480 = vmatmul.mubr.bf16.gmra.mxu0 %v2380
        %v2481 = vpop.f32.mrf.mxu0
        %v2482 = vadd.f32 0.0, %v2481
        %v2483 = vpop.f32.mrf.mxu0
        %v2484 = vpop.f32.mrf.mxu0
        %v2485 = vadd.f32 0.0, %v2484
        %v2486 = vpop.f32.mrf.mxu0
        %2487 = vmatprep.mubr.bf16.mxu0 0
        %2488 = vmatmul.mubr.bf16.gmra.mxu0 %v2383
        %v2489 = vpop.f32.mrf.mxu0
        %v2490 = vadd.f32 0.0, %v2489
        %v2491 = vpop.f32.mrf.mxu0
        %v2492 = vpop.f32.mrf.mxu0
        %v2493 = vadd.f32 0.0, %v2492
        %v2494 = vpop.f32.mrf.mxu0
        %2495 = vmatprep.mubr.bf16.mxu0 0
        %2496 = vmatmul.mubr.bf16.gmra.mxu0 %v2386
        %v2497 = vpop.f32.mrf.mxu0
        %v2498 = vadd.f32 0.0, %v2497
        %v2499 = vpop.f32.mrf.mxu0
        %v2500 = vpop.f32.mrf.mxu0
        %v2501 = vadd.f32 0.0, %v2500
        %v2502 = vpop.f32.mrf.mxu0
        %2503 = vmatprep.mubr.bf16.mxu0 0
        %2504 = vmatmul.mubr.bf16.gmra.mxu0 %v2389
        %v2505 = vpop.f32.mrf.mxu0
        %v2506 = vadd.f32 0.0, %v2505
        %v2507 = vpop.f32.mrf.mxu0
        %v2508 = vpop.f32.mrf.mxu0
        %v2509 = vadd.f32 0.0, %v2508
        %v2510 = vpop.f32.mrf.mxu0
        %2511 = vmatprep.mubr.bf16.mxu0 0
        %2512 = vmatmul.mubr.bf16.gmra.mxu0 %v2392
        %v2513 = vpop.f32.mrf.mxu0
        %v2514 = vadd.f32 0.0, %v2513
        %v2515 = vpop.f32.mrf.mxu0
        %v2516 = vpop.f32.mrf.mxu0
        %v2517 = vadd.f32 0.0, %v2516
        %v2518 = vpop.f32.mrf.mxu0
        %2519 = vmatprep.mubr.bf16.mxu0 0
        %2520 = vmatmul.mubr.bf16.gmra.mxu0 %v2395
        %v2521 = vpop.f32.mrf.mxu0
        %v2522 = vadd.f32 0.0, %v2521
        %v2523 = vpop.f32.mrf.mxu0
        %v2524 = vpop.f32.mrf.mxu0
        %v2525 = vadd.f32 0.0, %v2524
        %v2526 = vpop.f32.mrf.mxu0
        %2527 = vmatprep.mubr.bf16.mxu0 0
        %2528 = vmatmul.mubr.bf16.gmra.mxu0 %v2398
        %v2529 = vpop.f32.mrf.mxu0
        %v2530 = vadd.f32 0.0, %v2529
        %v2531 = vpop.f32.mrf.mxu0
        %v2532 = vpop.f32.mrf.mxu0
        %v2533 = vadd.f32 0.0, %v2532
        %v2534 = vpop.f32.mrf.mxu0
        %2535 = vmatprep.mubr.bf16.mxu0 0
        %2536 = vmatmul.mubr.bf16.gmra.mxu0 %v2401
        %v2537 = vpop.f32.mrf.mxu0
        %v2538 = vadd.f32 0.0, %v2537
        %v2539 = vpop.f32.mrf.mxu0
        %v2540 = vpop.f32.mrf.mxu0
        %v2541 = vadd.f32 0.0, %v2540
        %v2542 = vpop.f32.mrf.mxu0
        %2543 = vmatprep.mubr.bf16.mxu0 0
        %2544 = vmatmul.mubr.bf16.gmra.mxu0 %v2404
        %v2545 = vpop.f32.mrf.mxu0
        %v2546 = vadd.f32 0.0, %v2545
        %v2547 = vpop.f32.mrf.mxu0
        %v2548 = vpop.f32.mrf.mxu0
        %v2549 = vadd.f32 0.0, %v2548
        %v2550 = vpop.f32.mrf.mxu0
        %2551 = vmatprep.mubr.bf16.mxu0 0
        %2552 = vmatmul.mubr.bf16.gmra.mxu0 %v2407
        %v2553 = vpop.f32.mrf.mxu0
        %v2554 = vadd.f32 0.0, %v2553
        %v2555 = vpop.f32.mrf.mxu0
        %v2556 = vpop.f32.mrf.mxu0
        %v2557 = vadd.f32 0.0, %v2556
        %v2558 = vpop.f32.mrf.mxu0
        %2559 = vmatprep.mubr.bf16.mxu0 0
        %2560 = vmatmul.mubr.bf16.gmra.mxu0 %v2410
        %v2561 = vpop.f32.mrf.mxu0
        %v2562 = vadd.f32 0.0, %v2561
        %v2563 = vpop.f32.mrf.mxu0
        %v2564 = vpop.f32.mrf.mxu0
        %v2565 = vadd.f32 0.0, %v2564
        %v2566 = vpop.f32.mrf.mxu0
        %2567 = vmatprep.mubr.bf16.mxu0 0
        %2568 = vmatmul.mubr.bf16.gmra.mxu0 %v2413
        %v2569 = vpop.f32.mrf.mxu0
        %v2570 = vadd.f32 0.0, %v2569
        %v2571 = vpop.f32.mrf.mxu0
        %v2572 = vpop.f32.mrf.mxu0
        %v2573 = vadd.f32 0.0, %v2572
        %v2574 = vpop.f32.mrf.mxu0
        %2575 = vdwg.mxu0
        %v2576 = vadd.f32 %v2215, %v2450
        %v2577 = vadd.f32 %v2216, %v2453
        %v2578 = vadd.f32 %v2217, %v2458
        %v2579 = vadd.f32 %v2218, %v2461
        %v2580 = vadd.f32 %v2219, %v2466
        %v2581 = vadd.f32 %v2220, %v2469
        %v2582 = vadd.f32 %v2221, %v2474
        %v2583 = vadd.f32 %v2222, %v2477
        %v2584 = vadd.f32 %v2223, %v2482
        %v2585 = vadd.f32 %v2224, %v2485
        %v2586 = vadd.f32 %v2225, %v2490
        %v2587 = vadd.f32 %v2226, %v2493
        %v2588 = vadd.f32 %v2227, %v2498
        %v2589 = vadd.f32 %v2228, %v2501
        %v2590 = vadd.f32 %v2229, %v2506
        %v2591 = vadd.f32 %v2230, %v2509
        %v2592 = vadd.f32 %v2231, %v2514
        %v2593 = vadd.f32 %v2232, %v2517
        %v2594 = vadd.f32 %v2233, %v2522
        %v2595 = vadd.f32 %v2234, %v2525
        %v2596 = vadd.f32 %v2235, %v2530
        %v2597 = vadd.f32 %v2236, %v2533
        %v2598 = vadd.f32 %v2237, %v2538
        %v2599 = vadd.f32 %v2238, %v2541
        %v2600 = vadd.f32 %v2239, %v2546
        %v2601 = vadd.f32 %v2240, %v2549
        %v2602 = vadd.f32 %v2241, %v2554
        %v2603 = vadd.f32 %v2242, %v2557
        %v2604 = vadd.f32 %v2243, %v2562
        %v2605 = vadd.f32 %v2244, %v2565
        %v2606 = vadd.f32 %v2245, %v2570
        %v2607 = vadd.f32 %v2246, %v2573
        %v2608 = vld [vmem:[%s897 + $0x8] sm:$0xf]
        %v2609 = vld [vmem:[%s897 + $0xc] sm:$0xf]
        %v2610 = vld [vmem:[%s897 + $0x10] sm:$0xf]
        %v2611 = vld [vmem:[%s897 + $0x14] sm:$0xf]
        %v2612 = vld [vmem:[%s897 + $0x18] sm:$0xf]
        %v2613 = vld [vmem:[%s897 + $0x1c] sm:$0xf]
        %v2614 = vld [vmem:[%s897 + $0x20] sm:$0xf]
        %v2615 = vld [vmem:[%s897 + $0x24] sm:$0xf]
        %v2616 = vld [vmem:[%s897 + $0x28] sm:$0xf]
        %v2617 = vld [vmem:[%s897 + $0x2c] sm:$0xf]
        %v2618 = vld [vmem:[%s897 + $0x30] sm:$0xf]
        %v2619 = vld [vmem:[%s897 + $0x34] sm:$0xf]
        %v2620 = vld [vmem:[%s897 + $0x38] sm:$0xf]
        %v2621 = vld [vmem:[%s897 + $0x3c] sm:$0xf]
        %v2622 = vld [vmem:[%s897 + $0x40] sm:$0xf]
        %v2623 = vld [vmem:[%s897 + $0x44] sm:$0xf]
        %v2624 = vld [vmem:[%s897 + $0x48] sm:$0xf]
        %v2625 = vld [vmem:[%s897 + $0x4c] sm:$0xf]
        %v2626 = vld [vmem:[%s897 + $0x50] sm:$0xf]
        %v2627 = vld [vmem:[%s897 + $0x54] sm:$0xf]
        %v2628 = vld [vmem:[%s897 + $0x58] sm:$0xf]
        %v2629 = vld [vmem:[%s897 + $0x5c] sm:$0xf]
        %v2630 = vld [vmem:[%s897 + $0x60] sm:$0xf]
        %v2631 = vld [vmem:[%s897 + $0x64] sm:$0xf]
        %v2632 = vld [vmem:[%s897 + $0x68] sm:$0xf]
        %v2633 = vld [vmem:[%s897 + $0x6c] sm:$0xf]
        %v2634 = vld [vmem:[%s897 + $0x70] sm:$0xf]
        %v2635 = vld [vmem:[%s897 + $0x74] sm:$0xf]
        %v2636 = vld [vmem:[%s897 + $0x78] sm:$0xf]
        %v2637 = vld [vmem:[%s897 + $0x7c] sm:$0xf]
        %v2638 = vld [vmem:[%s897 + $0x80] sm:$0xf]
        %v2639 = vld [vmem:[%s897 + $0x84] sm:$0xf]
        %v2640 = vld [vmem:[%s858 + $0x28] sm:$0xf]
        %v2641 = vld [vmem:[%s858 + $0x2c] sm:$0xf]
        %v2674 = vunpack.c.l.b16 %v2608
        %v2675 = vunpack.c.l.b16 %v2609
        %v2676 = vunpack.c.l.b16 %v2610
        %v2677 = vunpack.c.l.b16 %v2611
        %v2678 = vunpack.c.l.b16 %v2612
        %v2679 = vunpack.c.l.b16 %v2613
        %v2680 = vunpack.c.l.b16 %v2614
        %v2681 = vunpack.c.l.b16 %v2615
        %v2682 = vunpack.c.l.b16 %v2616
        %v2683 = vunpack.c.l.b16 %v2617
        %v2684 = vunpack.c.l.b16 %v2618
        %v2685 = vunpack.c.l.b16 %v2619
        %v2686 = vunpack.c.l.b16 %v2620
        %v2687 = vunpack.c.l.b16 %v2621
        %v2688 = vunpack.c.l.b16 %v2622
        %v2689 = vunpack.c.l.b16 %v2623
        %v2690 = vunpack.c.l.b16 %v2624
        %v2691 = vunpack.c.l.b16 %v2625
        %v2692 = vunpack.c.l.b16 %v2626
        %v2693 = vunpack.c.l.b16 %v2627
        %v2694 = vunpack.c.l.b16 %v2628
        %v2695 = vunpack.c.l.b16 %v2629
        %v2696 = vunpack.c.l.b16 %v2630
        %v2697 = vunpack.c.l.b16 %v2631
        %v2698 = vunpack.c.l.b16 %v2632
        %v2699 = vunpack.c.l.b16 %v2633
        %v2700 = vunpack.c.l.b16 %v2634
        %v2701 = vunpack.c.l.b16 %v2635
        %v2702 = vunpack.c.l.b16 %v2636
        %v2703 = vunpack.c.l.b16 %v2637
        %v2704 = vunpack.c.l.b16 %v2638
        %v2705 = vunpack.c.l.b16 %v2639
        %v2706 = vpack.c.b16 %v2675, %v2674
        %v2707 = vpack.c.b16 %v2677, %v2676
        %v2708 = vpack.c.b16 %v2679, %v2678
        %v2709 = vpack.c.b16 %v2681, %v2680
        %v2710 = vpack.c.b16 %v2683, %v2682
        %v2711 = vpack.c.b16 %v2685, %v2684
        %v2712 = vpack.c.b16 %v2687, %v2686
        %v2713 = vpack.c.b16 %v2689, %v2688
        %v2714 = vpack.c.b16 %v2691, %v2690
        %v2715 = vpack.c.b16 %v2693, %v2692
        %v2716 = vpack.c.b16 %v2695, %v2694
        %v2717 = vpack.c.b16 %v2697, %v2696
        %v2718 = vpack.c.b16 %v2699, %v2698
        %v2719 = vpack.c.b16 %v2701, %v2700
        %v2720 = vpack.c.b16 %v2703, %v2702
        %v2721 = vpack.c.b16 %v2705, %v2704
        %v2724 = vunpack.c.l.b16 %v2640
        %v2725 = vunpack.c.l.b16 %v2641
        %v2726 = vpack.c.b16 %v2725, %v2724
        %v2729 = vsel %vm1018, %v2706, 0
        %v2732 = vsel %vm1018, %v2707, 0
        %v2735 = vsel %vm1018, %v2708, 0
        %v2738 = vsel %vm1018, %v2709, 0
        %v2741 = vsel %vm1018, %v2710, 0
        %v2744 = vsel %vm1018, %v2711, 0
        %v2747 = vsel %vm1018, %v2712, 0
        %v2750 = vsel %vm1018, %v2713, 0
        %v2753 = vsel %vm1018, %v2714, 0
        %v2756 = vsel %vm1018, %v2715, 0
        %v2759 = vsel %vm1018, %v2716, 0
        %v2762 = vsel %vm1018, %v2717, 0
        %v2765 = vsel %vm1018, %v2718, 0
        %v2768 = vsel %vm1018, %v2719, 0
        %v2771 = vsel %vm1018, %v2720, 0
        %v2774 = vsel %vm1018, %v2721, 0
        %2776 = vmatprep.subr.bf16.mxu0 0
        %2777 = vmatpush1.bf16.msra.mxu0 0
        %2778 = vmatprep.subr.bf16.mxu0 0
        %2779 = vmatpush1.bf16.msra.mxu0 0
        %2780 = vmatprep.subr.bf16.mxu0 0
        %2781 = vmatpush1.bf16.msra.mxu0 0
        %2782 = vmatprep.subr.bf16.mxu0 0
        %2783 = vmatpush1.bf16.msra.mxu0 0
        %2784 = vmatprep.subr.bf16.mxu0 0
        %2785 = vmatpush1.bf16.msra.mxu0 0
        %2786 = vmatprep.subr.bf16.mxu0 0
        %2787 = vmatpush1.bf16.msra.mxu0 0
        %2788 = vmatprep.subr.bf16.mxu0 0
        %2789 = vmatpush1.bf16.msra.mxu0 0
        %2790 = vmatprep.subr.bf16.mxu0 0
        %2791 = vmatpush1.bf16.msra.mxu0 %v2726
        %2792 = vmatprep.subr.bf16.mxu0 0
        %2793 = vmatpush2.bf16.msra.mxu0 0
        %2794 = vmatprep.subr.bf16.mxu0 0
        %2795 = vmatpush2.bf16.msra.mxu0 0
        %2796 = vmatprep.subr.bf16.mxu0 0
        %2797 = vmatpush2.bf16.msra.mxu0 0
        %2798 = vmatprep.subr.bf16.mxu0 0
        %2799 = vmatpush2.bf16.msra.mxu0 0
        %2800 = vmatprep.subr.bf16.mxu0 0
        %2801 = vmatpush2.bf16.msra.mxu0 0
        %2802 = vmatprep.subr.bf16.mxu0 0
        %2803 = vmatpush2.bf16.msra.mxu0 0
        %2804 = vmatprep.subr.bf16.mxu0 0
        %2805 = vmatpush2.bf16.msra.mxu0 0
        %2806 = vmatprep.subr.bf16.mxu0 0
        %2807 = vmatpush2.bf16.msra.mxu0 0
        %2808 = vmatprep.mubr.bf16.mxu0 0
        %2809 = vmatmul.mubr.bf16.gmra.mxu0 %v2729
        %v2810 = vpop.f32.mrf.mxu0
        %v2811 = vadd.f32 0.0, %v2810
        %v2812 = vpop.f32.mrf.mxu0
        %v2813 = vpop.f32.mrf.mxu0
        %v2814 = vadd.f32 0.0, %v2813
        %v2815 = vpop.f32.mrf.mxu0
        %2816 = vmatprep.mubr.bf16.mxu0 0
        %2817 = vmatmul.mubr.bf16.gmra.mxu0 %v2732
        %v2818 = vpop.f32.mrf.mxu0
        %v2819 = vadd.f32 0.0, %v2818
        %v2820 = vpop.f32.mrf.mxu0
        %v2821 = vpop.f32.mrf.mxu0
        %v2822 = vadd.f32 0.0, %v2821
        %v2823 = vpop.f32.mrf.mxu0
        %2824 = vmatprep.mubr.bf16.mxu0 0
        %2825 = vmatmul.mubr.bf16.gmra.mxu0 %v2735
        %v2826 = vpop.f32.mrf.mxu0
        %v2827 = vadd.f32 0.0, %v2826
        %v2828 = vpop.f32.mrf.mxu0
        %v2829 = vpop.f32.mrf.mxu0
        %v2830 = vadd.f32 0.0, %v2829
        %v2831 = vpop.f32.mrf.mxu0
        %2832 = vmatprep.mubr.bf16.mxu0 0
        %2833 = vmatmul.mubr.bf16.gmra.mxu0 %v2738
        %v2834 = vpop.f32.mrf.mxu0
        %v2835 = vadd.f32 0.0, %v2834
        %v2836 = vpop.f32.mrf.mxu0
        %v2837 = vpop.f32.mrf.mxu0
        %v2838 = vadd.f32 0.0, %v2837
        %v2839 = vpop.f32.mrf.mxu0
        %2840 = vmatprep.mubr.bf16.mxu0 0
        %2841 = vmatmul.mubr.bf16.gmra.mxu0 %v2741
        %v2842 = vpop.f32.mrf.mxu0
        %v2843 = vadd.f32 0.0, %v2842
        %v2844 = vpop.f32.mrf.mxu0
        %v2845 = vpop.f32.mrf.mxu0
        %v2846 = vadd.f32 0.0, %v2845
        %v2847 = vpop.f32.mrf.mxu0
        %2848 = vmatprep.mubr.bf16.mxu0 0
        %2849 = vmatmul.mubr.bf16.gmra.mxu0 %v2744
        %v2850 = vpop.f32.mrf.mxu0
        %v2851 = vadd.f32 0.0, %v2850
        %v2852 = vpop.f32.mrf.mxu0
        %v2853 = vpop.f32.mrf.mxu0
        %v2854 = vadd.f32 0.0, %v2853
        %v2855 = vpop.f32.mrf.mxu0
        %2856 = vmatprep.mubr.bf16.mxu0 0
        %2857 = vmatmul.mubr.bf16.gmra.mxu0 %v2747
        %v2858 = vpop.f32.mrf.mxu0
        %v2859 = vadd.f32 0.0, %v2858
        %v2860 = vpop.f32.mrf.mxu0
        %v2861 = vpop.f32.mrf.mxu0
        %v2862 = vadd.f32 0.0, %v2861
        %v2863 = vpop.f32.mrf.mxu0
        %2864 = vmatprep.mubr.bf16.mxu0 0
        %2865 = vmatmul.mubr.bf16.gmra.mxu0 %v2750
        %v2866 = vpop.f32.mrf.mxu0
        %v2867 = vadd.f32 0.0, %v2866
        %v2868 = vpop.f32.mrf.mxu0
        %v2869 = vpop.f32.mrf.mxu0
        %v2870 = vadd.f32 0.0, %v2869
        %v2871 = vpop.f32.mrf.mxu0
        %2872 = vmatprep.mubr.bf16.mxu0 0
        %2873 = vmatmul.mubr.bf16.gmra.mxu0 %v2753
        %v2874 = vpop.f32.mrf.mxu0
        %v2875 = vadd.f32 0.0, %v2874
        %v2876 = vpop.f32.mrf.mxu0
        %v2877 = vpop.f32.mrf.mxu0
        %v2878 = vadd.f32 0.0, %v2877
        %v2879 = vpop.f32.mrf.mxu0
        %2880 = vmatprep.mubr.bf16.mxu0 0
        %2881 = vmatmul.mubr.bf16.gmra.mxu0 %v2756
        %v2882 = vpop.f32.mrf.mxu0
        %v2883 = vadd.f32 0.0, %v2882
        %v2884 = vpop.f32.mrf.mxu0
        %v2885 = vpop.f32.mrf.mxu0
        %v2886 = vadd.f32 0.0, %v2885
        %v2887 = vpop.f32.mrf.mxu0
        %2888 = vmatprep.mubr.bf16.mxu0 0
        %2889 = vmatmul.mubr.bf16.gmra.mxu0 %v2759
        %v2890 = vpop.f32.mrf.mxu0
        %v2891 = vadd.f32 0.0, %v2890
        %v2892 = vpop.f32.mrf.mxu0
        %v2893 = vpop.f32.mrf.mxu0
        %v2894 = vadd.f32 0.0, %v2893
        %v2895 = vpop.f32.mrf.mxu0
        %2896 = vmatprep.mubr.bf16.mxu0 0
        %2897 = vmatmul.mubr.bf16.gmra.mxu0 %v2762
        %v2898 = vpop.f32.mrf.mxu0
        %v2899 = vadd.f32 0.0, %v2898
        %v2900 = vpop.f32.mrf.mxu0
        %v2901 = vpop.f32.mrf.mxu0
        %v2902 = vadd.f32 0.0, %v2901
        %v2903 = vpop.f32.mrf.mxu0
        %2904 = vmatprep.mubr.bf16.mxu0 0
        %2905 = vmatmul.mubr.bf16.gmra.mxu0 %v2765
        %v2906 = vpop.f32.mrf.mxu0
        %v2907 = vadd.f32 0.0, %v2906
        %v2908 = vpop.f32.mrf.mxu0
        %v2909 = vpop.f32.mrf.mxu0
        %v2910 = vadd.f32 0.0, %v2909
        %v2911 = vpop.f32.mrf.mxu0
        %2912 = vmatprep.mubr.bf16.mxu0 0
        %2913 = vmatmul.mubr.bf16.gmra.mxu0 %v2768
        %v2914 = vpop.f32.mrf.mxu0
        %v2915 = vadd.f32 0.0, %v2914
        %v2916 = vpop.f32.mrf.mxu0
        %v2917 = vpop.f32.mrf.mxu0
        %v2918 = vadd.f32 0.0, %v2917
        %v2919 = vpop.f32.mrf.mxu0
        %2920 = vmatprep.mubr.bf16.mxu0 0
        %2921 = vmatmul.mubr.bf16.gmra.mxu0 %v2771
        %v2922 = vpop.f32.mrf.mxu0
        %v2923 = vadd.f32 0.0, %v2922
        %v2924 = vpop.f32.mrf.mxu0
        %v2925 = vpop.f32.mrf.mxu0
        %v2926 = vadd.f32 0.0, %v2925
        %v2927 = vpop.f32.mrf.mxu0
        %2928 = vmatprep.mubr.bf16.mxu0 0
        %2929 = vmatmul.mubr.bf16.gmra.mxu0 %v2774
        %v2930 = vpop.f32.mrf.mxu0
        %v2931 = vadd.f32 0.0, %v2930
        %v2932 = vpop.f32.mrf.mxu0
        %v2933 = vpop.f32.mrf.mxu0
        %v2934 = vadd.f32 0.0, %v2933
        %v2935 = vpop.f32.mrf.mxu0
        %2936 = vdwg.mxu0
        %v2937 = vadd.f32 %v2576, %v2811
        %v2938 = vadd.f32 %v2577, %v2814
        %v2939 = vadd.f32 %v2578, %v2819
        %v2940 = vadd.f32 %v2579, %v2822
        %v2941 = vadd.f32 %v2580, %v2827
        %v2942 = vadd.f32 %v2581, %v2830
        %v2943 = vadd.f32 %v2582, %v2835
        %v2944 = vadd.f32 %v2583, %v2838
        %v2945 = vadd.f32 %v2584, %v2843
        %v2946 = vadd.f32 %v2585, %v2846
        %v2947 = vadd.f32 %v2586, %v2851
        %v2948 = vadd.f32 %v2587, %v2854
        %v2949 = vadd.f32 %v2588, %v2859
        %v2950 = vadd.f32 %v2589, %v2862
        %v2951 = vadd.f32 %v2590, %v2867
        %v2952 = vadd.f32 %v2591, %v2870
        %v2953 = vadd.f32 %v2592, %v2875
        %v2954 = vadd.f32 %v2593, %v2878
        %v2955 = vadd.f32 %v2594, %v2883
        %v2956 = vadd.f32 %v2595, %v2886
        %v2957 = vadd.f32 %v2596, %v2891
        %v2958 = vadd.f32 %v2597, %v2894
        %v2959 = vadd.f32 %v2598, %v2899
        %v2960 = vadd.f32 %v2599, %v2902
        %v2961 = vadd.f32 %v2600, %v2907
        %v2962 = vadd.f32 %v2601, %v2910
        %v2963 = vadd.f32 %v2602, %v2915
        %v2964 = vadd.f32 %v2603, %v2918
        %v2965 = vadd.f32 %v2604, %v2923
        %v2966 = vadd.f32 %v2605, %v2926
        %v2967 = vadd.f32 %v2606, %v2931
        %v2968 = vadd.f32 %v2607, %v2934
        %v2969 = vld [vmem:[%s1523 + $0x8] sm:$0xf]
        %v2970 = vld [vmem:[%s1523 + $0xc] sm:$0xf]
        %v2971 = vld [vmem:[%s1523 + $0x10] sm:$0xf]
        %v2972 = vld [vmem:[%s1523 + $0x14] sm:$0xf]
        %v2973 = vld [vmem:[%s1523 + $0x18] sm:$0xf]
        %v2974 = vld [vmem:[%s1523 + $0x1c] sm:$0xf]
        %v2975 = vld [vmem:[%s1523 + $0x20] sm:$0xf]
        %v2976 = vld [vmem:[%s1523 + $0x24] sm:$0xf]
        %v2977 = vld [vmem:[%s1523 + $0x28] sm:$0xf]
        %v2978 = vld [vmem:[%s1523 + $0x2c] sm:$0xf]
        %v2979 = vld [vmem:[%s1523 + $0x30] sm:$0xf]
        %v2980 = vld [vmem:[%s1523 + $0x34] sm:$0xf]
        %v2981 = vld [vmem:[%s1523 + $0x38] sm:$0xf]
        %v2982 = vld [vmem:[%s1523 + $0x3c] sm:$0xf]
        %v2983 = vld [vmem:[%s1523 + $0x40] sm:$0xf]
        %v2984 = vld [vmem:[%s1523 + $0x44] sm:$0xf]
        %v2985 = vld [vmem:[%s1523 + $0x48] sm:$0xf]
        %v2986 = vld [vmem:[%s1523 + $0x4c] sm:$0xf]
        %v2987 = vld [vmem:[%s1523 + $0x50] sm:$0xf]
        %v2988 = vld [vmem:[%s1523 + $0x54] sm:$0xf]
        %v2989 = vld [vmem:[%s1523 + $0x58] sm:$0xf]
        %v2990 = vld [vmem:[%s1523 + $0x5c] sm:$0xf]
        %v2991 = vld [vmem:[%s1523 + $0x60] sm:$0xf]
        %v2992 = vld [vmem:[%s1523 + $0x64] sm:$0xf]
        %v2993 = vld [vmem:[%s1523 + $0x68] sm:$0xf]
        %v2994 = vld [vmem:[%s1523 + $0x6c] sm:$0xf]
        %v2995 = vld [vmem:[%s1523 + $0x70] sm:$0xf]
        %v2996 = vld [vmem:[%s1523 + $0x74] sm:$0xf]
        %v2997 = vld [vmem:[%s1523 + $0x78] sm:$0xf]
        %v2998 = vld [vmem:[%s1523 + $0x7c] sm:$0xf]
        %v2999 = vld [vmem:[%s1523 + $0x80] sm:$0xf]
        %v3000 = vld [vmem:[%s1523 + $0x84] sm:$0xf]
        %v3001 = vld [vmem:[%s858 + $0x30] sm:$0xf]
        %v3002 = vld [vmem:[%s858 + $0x34] sm:$0xf]
        %v3035 = vunpack.c.l.b16 %v2969
        %v3036 = vunpack.c.l.b16 %v2970
        %v3037 = vunpack.c.l.b16 %v2971
        %v3038 = vunpack.c.l.b16 %v2972
        %v3039 = vunpack.c.l.b16 %v2973
        %v3040 = vunpack.c.l.b16 %v2974
        %v3041 = vunpack.c.l.b16 %v2975
        %v3042 = vunpack.c.l.b16 %v2976
        %v3043 = vunpack.c.l.b16 %v2977
        %v3044 = vunpack.c.l.b16 %v2978
        %v3045 = vunpack.c.l.b16 %v2979
        %v3046 = vunpack.c.l.b16 %v2980
        %v3047 = vunpack.c.l.b16 %v2981
        %v3048 = vunpack.c.l.b16 %v2982
        %v3049 = vunpack.c.l.b16 %v2983
        %v3050 = vunpack.c.l.b16 %v2984
        %v3051 = vunpack.c.l.b16 %v2985
        %v3052 = vunpack.c.l.b16 %v2986
        %v3053 = vunpack.c.l.b16 %v2987
        %v3054 = vunpack.c.l.b16 %v2988
        %v3055 = vunpack.c.l.b16 %v2989
        %v3056 = vunpack.c.l.b16 %v2990
        %v3057 = vunpack.c.l.b16 %v2991
        %v3058 = vunpack.c.l.b16 %v2992
        %v3059 = vunpack.c.l.b16 %v2993
        %v3060 = vunpack.c.l.b16 %v2994
        %v3061 = vunpack.c.l.b16 %v2995
        %v3062 = vunpack.c.l.b16 %v2996
        %v3063 = vunpack.c.l.b16 %v2997
        %v3064 = vunpack.c.l.b16 %v2998
        %v3065 = vunpack.c.l.b16 %v2999
        %v3066 = vunpack.c.l.b16 %v3000
        %v3067 = vpack.c.b16 %v3036, %v3035
        %v3068 = vpack.c.b16 %v3038, %v3037
        %v3069 = vpack.c.b16 %v3040, %v3039
        %v3070 = vpack.c.b16 %v3042, %v3041
        %v3071 = vpack.c.b16 %v3044, %v3043
        %v3072 = vpack.c.b16 %v3046, %v3045
        %v3073 = vpack.c.b16 %v3048, %v3047
        %v3074 = vpack.c.b16 %v3050, %v3049
        %v3075 = vpack.c.b16 %v3052, %v3051
        %v3076 = vpack.c.b16 %v3054, %v3053
        %v3077 = vpack.c.b16 %v3056, %v3055
        %v3078 = vpack.c.b16 %v3058, %v3057
        %v3079 = vpack.c.b16 %v3060, %v3059
        %v3080 = vpack.c.b16 %v3062, %v3061
        %v3081 = vpack.c.b16 %v3064, %v3063
        %v3082 = vpack.c.b16 %v3066, %v3065
        %v3085 = vunpack.c.l.b16 %v3001
        %v3086 = vunpack.c.l.b16 %v3002
        %v3087 = vpack.c.b16 %v3086, %v3085
        %v3090 = vsel %vm1018, %v3067, 0
        %v3093 = vsel %vm1018, %v3068, 0
        %v3096 = vsel %vm1018, %v3069, 0
        %v3099 = vsel %vm1018, %v3070, 0
        %v3102 = vsel %vm1018, %v3071, 0
        %v3105 = vsel %vm1018, %v3072, 0
        %v3108 = vsel %vm1018, %v3073, 0
        %v3111 = vsel %vm1018, %v3074, 0
        %v3114 = vsel %vm1018, %v3075, 0
        %v3117 = vsel %vm1018, %v3076, 0
        %v3120 = vsel %vm1018, %v3077, 0
        %v3123 = vsel %vm1018, %v3078, 0
        %v3126 = vsel %vm1018, %v3079, 0
        %v3129 = vsel %vm1018, %v3080, 0
        %v3132 = vsel %vm1018, %v3081, 0
        %v3135 = vsel %vm1018, %v3082, 0
        %3137 = vmatprep.subr.bf16.mxu0 0
        %3138 = vmatpush1.bf16.msra.mxu0 0
        %3139 = vmatprep.subr.bf16.mxu0 0
        %3140 = vmatpush1.bf16.msra.mxu0 0
        %3141 = vmatprep.subr.bf16.mxu0 0
        %3142 = vmatpush1.bf16.msra.mxu0 0
        %3143 = vmatprep.subr.bf16.mxu0 0
        %3144 = vmatpush1.bf16.msra.mxu0 0
        %3145 = vmatprep.subr.bf16.mxu0 0
        %3146 = vmatpush1.bf16.msra.mxu0 0
        %3147 = vmatprep.subr.bf16.mxu0 0
        %3148 = vmatpush1.bf16.msra.mxu0 0
        %3149 = vmatprep.subr.bf16.mxu0 0
        %3150 = vmatpush1.bf16.msra.mxu0 0
        %3151 = vmatprep.subr.bf16.mxu0 0
        %3152 = vmatpush1.bf16.msra.mxu0 %v3087
        %3153 = vmatprep.subr.bf16.mxu0 0
        %3154 = vmatpush2.bf16.msra.mxu0 0
        %3155 = vmatprep.subr.bf16.mxu0 0
        %3156 = vmatpush2.bf16.msra.mxu0 0
        %3157 = vmatprep.subr.bf16.mxu0 0
        %3158 = vmatpush2.bf16.msra.mxu0 0
        %3159 = vmatprep.subr.bf16.mxu0 0
        %3160 = vmatpush2.bf16.msra.mxu0 0
        %3161 = vmatprep.subr.bf16.mxu0 0
        %3162 = vmatpush2.bf16.msra.mxu0 0
        %3163 = vmatprep.subr.bf16.mxu0 0
        %3164 = vmatpush2.bf16.msra.mxu0 0
        %3165 = vmatprep.subr.bf16.mxu0 0
        %3166 = vmatpush2.bf16.msra.mxu0 0
        %3167 = vmatprep.subr.bf16.mxu0 0
        %3168 = vmatpush2.bf16.msra.mxu0 0
        %3169 = vmatprep.mubr.bf16.mxu0 0
        %3170 = vmatmul.mubr.bf16.gmra.mxu0 %v3090
        %v3171 = vpop.f32.mrf.mxu0
        %v3172 = vadd.f32 0.0, %v3171
        %v3173 = vpop.f32.mrf.mxu0
        %v3174 = vpop.f32.mrf.mxu0
        %v3175 = vadd.f32 0.0, %v3174
        %v3176 = vpop.f32.mrf.mxu0
        %3177 = vmatprep.mubr.bf16.mxu0 0
        %3178 = vmatmul.mubr.bf16.gmra.mxu0 %v3093
        %v3179 = vpop.f32.mrf.mxu0
        %v3180 = vadd.f32 0.0, %v3179
        %v3181 = vpop.f32.mrf.mxu0
        %v3182 = vpop.f32.mrf.mxu0
        %v3183 = vadd.f32 0.0, %v3182
        %v3184 = vpop.f32.mrf.mxu0
        %3185 = vmatprep.mubr.bf16.mxu0 0
        %3186 = vmatmul.mubr.bf16.gmra.mxu0 %v3096
        %v3187 = vpop.f32.mrf.mxu0
        %v3188 = vadd.f32 0.0, %v3187
        %v3189 = vpop.f32.mrf.mxu0
        %v3190 = vpop.f32.mrf.mxu0
        %v3191 = vadd.f32 0.0, %v3190
        %v3192 = vpop.f32.mrf.mxu0
        %3193 = vmatprep.mubr.bf16.mxu0 0
        %3194 = vmatmul.mubr.bf16.gmra.mxu0 %v3099
        %v3195 = vpop.f32.mrf.mxu0
        %v3196 = vadd.f32 0.0, %v3195
        %v3197 = vpop.f32.mrf.mxu0
        %v3198 = vpop.f32.mrf.mxu0
        %v3199 = vadd.f32 0.0, %v3198
        %v3200 = vpop.f32.mrf.mxu0
        %3201 = vmatprep.mubr.bf16.mxu0 0
        %3202 = vmatmul.mubr.bf16.gmra.mxu0 %v3102
        %v3203 = vpop.f32.mrf.mxu0
        %v3204 = vadd.f32 0.0, %v3203
        %v3205 = vpop.f32.mrf.mxu0
        %v3206 = vpop.f32.mrf.mxu0
        %v3207 = vadd.f32 0.0, %v3206
        %v3208 = vpop.f32.mrf.mxu0
        %3209 = vmatprep.mubr.bf16.mxu0 0
        %3210 = vmatmul.mubr.bf16.gmra.mxu0 %v3105
        %v3211 = vpop.f32.mrf.mxu0
        %v3212 = vadd.f32 0.0, %v3211
        %v3213 = vpop.f32.mrf.mxu0
        %v3214 = vpop.f32.mrf.mxu0
        %v3215 = vadd.f32 0.0, %v3214
        %v3216 = vpop.f32.mrf.mxu0
        %3217 = vmatprep.mubr.bf16.mxu0 0
        %3218 = vmatmul.mubr.bf16.gmra.mxu0 %v3108
        %v3219 = vpop.f32.mrf.mxu0
        %v3220 = vadd.f32 0.0, %v3219
        %v3221 = vpop.f32.mrf.mxu0
        %v3222 = vpop.f32.mrf.mxu0
        %v3223 = vadd.f32 0.0, %v3222
        %v3224 = vpop.f32.mrf.mxu0
        %3225 = vmatprep.mubr.bf16.mxu0 0
        %3226 = vmatmul.mubr.bf16.gmra.mxu0 %v3111
        %v3227 = vpop.f32.mrf.mxu0
        %v3228 = vadd.f32 0.0, %v3227
        %v3229 = vpop.f32.mrf.mxu0
        %v3230 = vpop.f32.mrf.mxu0
        %v3231 = vadd.f32 0.0, %v3230
        %v3232 = vpop.f32.mrf.mxu0
        %3233 = vmatprep.mubr.bf16.mxu0 0
        %3234 = vmatmul.mubr.bf16.gmra.mxu0 %v3114
        %v3235 = vpop.f32.mrf.mxu0
        %v3236 = vadd.f32 0.0, %v3235
        %v3237 = vpop.f32.mrf.mxu0
        %v3238 = vpop.f32.mrf.mxu0
        %v3239 = vadd.f32 0.0, %v3238
        %v3240 = vpop.f32.mrf.mxu0
        %3241 = vmatprep.mubr.bf16.mxu0 0
        %3242 = vmatmul.mubr.bf16.gmra.mxu0 %v3117
        %v3243 = vpop.f32.mrf.mxu0
        %v3244 = vadd.f32 0.0, %v3243
        %v3245 = vpop.f32.mrf.mxu0
        %v3246 = vpop.f32.mrf.mxu0
        %v3247 = vadd.f32 0.0, %v3246
        %v3248 = vpop.f32.mrf.mxu0
        %3249 = vmatprep.mubr.bf16.mxu0 0
        %3250 = vmatmul.mubr.bf16.gmra.mxu0 %v3120
        %v3251 = vpop.f32.mrf.mxu0
        %v3252 = vadd.f32 0.0, %v3251
        %v3253 = vpop.f32.mrf.mxu0
        %v3254 = vpop.f32.mrf.mxu0
        %v3255 = vadd.f32 0.0, %v3254
        %v3256 = vpop.f32.mrf.mxu0
        %3257 = vmatprep.mubr.bf16.mxu0 0
        %3258 = vmatmul.mubr.bf16.gmra.mxu0 %v3123
        %v3259 = vpop.f32.mrf.mxu0
        %v3260 = vadd.f32 0.0, %v3259
        %v3261 = vpop.f32.mrf.mxu0
        %v3262 = vpop.f32.mrf.mxu0
        %v3263 = vadd.f32 0.0, %v3262
        %v3264 = vpop.f32.mrf.mxu0
        %3265 = vmatprep.mubr.bf16.mxu0 0
        %3266 = vmatmul.mubr.bf16.gmra.mxu0 %v3126
        %v3267 = vpop.f32.mrf.mxu0
        %v3268 = vadd.f32 0.0, %v3267
        %v3269 = vpop.f32.mrf.mxu0
        %v3270 = vpop.f32.mrf.mxu0
        %v3271 = vadd.f32 0.0, %v3270
        %v3272 = vpop.f32.mrf.mxu0
        %3273 = vmatprep.mubr.bf16.mxu0 0
        %3274 = vmatmul.mubr.bf16.gmra.mxu0 %v3129
        %v3275 = vpop.f32.mrf.mxu0
        %v3276 = vadd.f32 0.0, %v3275
        %v3277 = vpop.f32.mrf.mxu0
        %v3278 = vpop.f32.mrf.mxu0
        %v3279 = vadd.f32 0.0, %v3278
        %v3280 = vpop.f32.mrf.mxu0
        %3281 = vmatprep.mubr.bf16.mxu0 0
        %3282 = vmatmul.mubr.bf16.gmra.mxu0 %v3132
        %v3283 = vpop.f32.mrf.mxu0
        %v3284 = vadd.f32 0.0, %v3283
        %v3285 = vpop.f32.mrf.mxu0
        %v3286 = vpop.f32.mrf.mxu0
        %v3287 = vadd.f32 0.0, %v3286
        %v3288 = vpop.f32.mrf.mxu0
        %3289 = vmatprep.mubr.bf16.mxu0 0
        %3290 = vmatmul.mubr.bf16.gmra.mxu0 %v3135
        %v3291 = vpop.f32.mrf.mxu0
        %v3292 = vadd.f32 0.0, %v3291
        %v3293 = vpop.f32.mrf.mxu0
        %v3294 = vpop.f32.mrf.mxu0
        %v3295 = vadd.f32 0.0, %v3294
        %v3296 = vpop.f32.mrf.mxu0
        %3297 = vdwg.mxu0
        %v3298 = vadd.f32 %v2937, %v3172
        %v3299 = vadd.f32 %v2938, %v3175
        %v3300 = vadd.f32 %v2939, %v3180
        %v3301 = vadd.f32 %v2940, %v3183
        %v3302 = vadd.f32 %v2941, %v3188
        %v3303 = vadd.f32 %v2942, %v3191
        %v3304 = vadd.f32 %v2943, %v3196
        %v3305 = vadd.f32 %v2944, %v3199
        %v3306 = vadd.f32 %v2945, %v3204
        %v3307 = vadd.f32 %v2946, %v3207
        %v3308 = vadd.f32 %v2947, %v3212
        %v3309 = vadd.f32 %v2948, %v3215
        %v3310 = vadd.f32 %v2949, %v3220
        %v3311 = vadd.f32 %v2950, %v3223
        %v3312 = vadd.f32 %v2951, %v3228
        %v3313 = vadd.f32 %v2952, %v3231
        %v3314 = vadd.f32 %v2953, %v3236
        %v3315 = vadd.f32 %v2954, %v3239
        %v3316 = vadd.f32 %v2955, %v3244
        %v3317 = vadd.f32 %v2956, %v3247
        %v3318 = vadd.f32 %v2957, %v3252
        %v3319 = vadd.f32 %v2958, %v3255
        %v3320 = vadd.f32 %v2959, %v3260
        %v3321 = vadd.f32 %v2960, %v3263
        %v3322 = vadd.f32 %v2961, %v3268
        %v3323 = vadd.f32 %v2962, %v3271
        %v3324 = vadd.f32 %v2963, %v3276
        %v3325 = vadd.f32 %v2964, %v3279
        %v3326 = vadd.f32 %v2965, %v3284
        %v3327 = vadd.f32 %v2966, %v3287
        %v3328 = vadd.f32 %v2967, %v3292
        %v3329 = vadd.f32 %v2968, %v3295
        %v3330 = vld [vmem:[%s1885 + $0x8] sm:$0xf]
        %v3331 = vld [vmem:[%s1885 + $0xc] sm:$0xf]
        %v3332 = vld [vmem:[%s1885 + $0x10] sm:$0xf]
        %v3333 = vld [vmem:[%s1885 + $0x14] sm:$0xf]
        %v3334 = vld [vmem:[%s1885 + $0x18] sm:$0xf]
        %v3335 = vld [vmem:[%s1885 + $0x1c] sm:$0xf]
        %v3336 = vld [vmem:[%s1885 + $0x20] sm:$0xf]
        %v3337 = vld [vmem:[%s1885 + $0x24] sm:$0xf]
        %v3338 = vld [vmem:[%s1885 + $0x28] sm:$0xf]
        %v3339 = vld [vmem:[%s1885 + $0x2c] sm:$0xf]
        %v3340 = vld [vmem:[%s1885 + $0x30] sm:$0xf]
        %v3341 = vld [vmem:[%s1885 + $0x34] sm:$0xf]
        %v3342 = vld [vmem:[%s1885 + $0x38] sm:$0xf]
        %v3343 = vld [vmem:[%s1885 + $0x3c] sm:$0xf]
        %v3344 = vld [vmem:[%s1885 + $0x40] sm:$0xf]
        %v3345 = vld [vmem:[%s1885 + $0x44] sm:$0xf]
        %v3346 = vld [vmem:[%s1885 + $0x48] sm:$0xf]
        %v3347 = vld [vmem:[%s1885 + $0x4c] sm:$0xf]
        %v3348 = vld [vmem:[%s1885 + $0x50] sm:$0xf]
        %v3349 = vld [vmem:[%s1885 + $0x54] sm:$0xf]
        %v3350 = vld [vmem:[%s1885 + $0x58] sm:$0xf]
        %v3351 = vld [vmem:[%s1885 + $0x5c] sm:$0xf]
        %v3352 = vld [vmem:[%s1885 + $0x60] sm:$0xf]
        %v3353 = vld [vmem:[%s1885 + $0x64] sm:$0xf]
        %v3354 = vld [vmem:[%s1885 + $0x68] sm:$0xf]
        %v3355 = vld [vmem:[%s1885 + $0x6c] sm:$0xf]
        %v3356 = vld [vmem:[%s1885 + $0x70] sm:$0xf]
        %v3357 = vld [vmem:[%s1885 + $0x74] sm:$0xf]
        %v3358 = vld [vmem:[%s1885 + $0x78] sm:$0xf]
        %v3359 = vld [vmem:[%s1885 + $0x7c] sm:$0xf]
        %v3360 = vld [vmem:[%s1885 + $0x80] sm:$0xf]
        %v3361 = vld [vmem:[%s1885 + $0x84] sm:$0xf]
        %v3362 = vld [vmem:[%s858 + $0x38] sm:$0xf]
        %v3363 = vld [vmem:[%s858 + $0x3c] sm:$0xf]
        %v3396 = vunpack.c.l.b16 %v3330
        %v3397 = vunpack.c.l.b16 %v3331
        %v3398 = vunpack.c.l.b16 %v3332
        %v3399 = vunpack.c.l.b16 %v3333
        %v3400 = vunpack.c.l.b16 %v3334
        %v3401 = vunpack.c.l.b16 %v3335
        %v3402 = vunpack.c.l.b16 %v3336
        %v3403 = vunpack.c.l.b16 %v3337
        %v3404 = vunpack.c.l.b16 %v3338
        %v3405 = vunpack.c.l.b16 %v3339
        %v3406 = vunpack.c.l.b16 %v3340
        %v3407 = vunpack.c.l.b16 %v3341
        %v3408 = vunpack.c.l.b16 %v3342
        %v3409 = vunpack.c.l.b16 %v3343
        %v3410 = vunpack.c.l.b16 %v3344
        %v3411 = vunpack.c.l.b16 %v3345
        %v3412 = vunpack.c.l.b16 %v3346
        %v3413 = vunpack.c.l.b16 %v3347
        %v3414 = vunpack.c.l.b16 %v3348
        %v3415 = vunpack.c.l.b16 %v3349
        %v3416 = vunpack.c.l.b16 %v3350
        %v3417 = vunpack.c.l.b16 %v3351
        %v3418 = vunpack.c.l.b16 %v3352
        %v3419 = vunpack.c.l.b16 %v3353
        %v3420 = vunpack.c.l.b16 %v3354
        %v3421 = vunpack.c.l.b16 %v3355
        %v3422 = vunpack.c.l.b16 %v3356
        %v3423 = vunpack.c.l.b16 %v3357
        %v3424 = vunpack.c.l.b16 %v3358
        %v3425 = vunpack.c.l.b16 %v3359
        %v3426 = vunpack.c.l.b16 %v3360
        %v3427 = vunpack.c.l.b16 %v3361
        %v3428 = vpack.c.b16 %v3397, %v3396
        %v3429 = vpack.c.b16 %v3399, %v3398
        %v3430 = vpack.c.b16 %v3401, %v3400
        %v3431 = vpack.c.b16 %v3403, %v3402
        %v3432 = vpack.c.b16 %v3405, %v3404
        %v3433 = vpack.c.b16 %v3407, %v3406
        %v3434 = vpack.c.b16 %v3409, %v3408
        %v3435 = vpack.c.b16 %v3411, %v3410
        %v3436 = vpack.c.b16 %v3413, %v3412
        %v3437 = vpack.c.b16 %v3415, %v3414
        %v3438 = vpack.c.b16 %v3417, %v3416
        %v3439 = vpack.c.b16 %v3419, %v3418
        %v3440 = vpack.c.b16 %v3421, %v3420
        %v3441 = vpack.c.b16 %v3423, %v3422
        %v3442 = vpack.c.b16 %v3425, %v3424
        %v3443 = vpack.c.b16 %v3427, %v3426
        %v3446 = vunpack.c.l.b16 %v3362
        %v3447 = vunpack.c.l.b16 %v3363
        %v3448 = vpack.c.b16 %v3447, %v3446
        %v3451 = vsel %vm1018, %v3428, 0
        %v3454 = vsel %vm1018, %v3429, 0
        %v3457 = vsel %vm1018, %v3430, 0
        %v3460 = vsel %vm1018, %v3431, 0
        %v3463 = vsel %vm1018, %v3432, 0
        %v3466 = vsel %vm1018, %v3433, 0
        %v3469 = vsel %vm1018, %v3434, 0
        %v3472 = vsel %vm1018, %v3435, 0
        %v3475 = vsel %vm1018, %v3436, 0
        %v3478 = vsel %vm1018, %v3437, 0
        %v3481 = vsel %vm1018, %v3438, 0
        %v3484 = vsel %vm1018, %v3439, 0
        %v3487 = vsel %vm1018, %v3440, 0
        %v3490 = vsel %vm1018, %v3441, 0
        %v3493 = vsel %vm1018, %v3442, 0
        %v3496 = vsel %vm1018, %v3443, 0
        %3498 = vmatprep.subr.bf16.mxu0 0
        %3499 = vmatpush1.bf16.msra.mxu0 0
        %3500 = vmatprep.subr.bf16.mxu0 0
        %3501 = vmatpush1.bf16.msra.mxu0 0
        %3502 = vmatprep.subr.bf16.mxu0 0
        %3503 = vmatpush1.bf16.msra.mxu0 0
        %3504 = vmatprep.subr.bf16.mxu0 0
        %3505 = vmatpush1.bf16.msra.mxu0 0
        %3506 = vmatprep.subr.bf16.mxu0 0
        %3507 = vmatpush1.bf16.msra.mxu0 0
        %3508 = vmatprep.subr.bf16.mxu0 0
        %3509 = vmatpush1.bf16.msra.mxu0 0
        %3510 = vmatprep.subr.bf16.mxu0 0
        %3511 = vmatpush1.bf16.msra.mxu0 0
        %3512 = vmatprep.subr.bf16.mxu0 0
        %3513 = vmatpush1.bf16.msra.mxu0 %v3448
        %3514 = vmatprep.subr.bf16.mxu0 0
        %3515 = vmatpush2.bf16.msra.mxu0 0
        %3516 = vmatprep.subr.bf16.mxu0 0
        %3517 = vmatpush2.bf16.msra.mxu0 0
        %3518 = vmatprep.subr.bf16.mxu0 0
        %3519 = vmatpush2.bf16.msra.mxu0 0
        %3520 = vmatprep.subr.bf16.mxu0 0
        %3521 = vmatpush2.bf16.msra.mxu0 0
        %3522 = vmatprep.subr.bf16.mxu0 0
        %3523 = vmatpush2.bf16.msra.mxu0 0
        %3524 = vmatprep.subr.bf16.mxu0 0
        %3525 = vmatpush2.bf16.msra.mxu0 0
        %3526 = vmatprep.subr.bf16.mxu0 0
        %3527 = vmatpush2.bf16.msra.mxu0 0
        %3528 = vmatprep.subr.bf16.mxu0 0
        %3529 = vmatpush2.bf16.msra.mxu0 0
        %3530 = vmatprep.mubr.bf16.mxu0 0
        %3531 = vmatmul.mubr.bf16.gmra.mxu0 %v3451
        %v3532 = vpop.f32.mrf.mxu0
        %v3533 = vadd.f32 0.0, %v3532
        %v3534 = vpop.f32.mrf.mxu0
        %v3535 = vpop.f32.mrf.mxu0
        %v3536 = vadd.f32 0.0, %v3535
        %v3537 = vpop.f32.mrf.mxu0
        %3538 = vmatprep.mubr.bf16.mxu0 0
        %3539 = vmatmul.mubr.bf16.gmra.mxu0 %v3454
        %v3540 = vpop.f32.mrf.mxu0
        %v3541 = vadd.f32 0.0, %v3540
        %v3542 = vpop.f32.mrf.mxu0
        %v3543 = vpop.f32.mrf.mxu0
        %v3544 = vadd.f32 0.0, %v3543
        %v3545 = vpop.f32.mrf.mxu0
        %3546 = vmatprep.mubr.bf16.mxu0 0
        %3547 = vmatmul.mubr.bf16.gmra.mxu0 %v3457
        %v3548 = vpop.f32.mrf.mxu0
        %v3549 = vadd.f32 0.0, %v3548
        %v3550 = vpop.f32.mrf.mxu0
        %v3551 = vpop.f32.mrf.mxu0
        %v3552 = vadd.f32 0.0, %v3551
        %v3553 = vpop.f32.mrf.mxu0
        %3554 = vmatprep.mubr.bf16.mxu0 0
        %3555 = vmatmul.mubr.bf16.gmra.mxu0 %v3460
        %v3556 = vpop.f32.mrf.mxu0
        %v3557 = vadd.f32 0.0, %v3556
        %v3558 = vpop.f32.mrf.mxu0
        %v3559 = vpop.f32.mrf.mxu0
        %v3560 = vadd.f32 0.0, %v3559
        %v3561 = vpop.f32.mrf.mxu0
        %3562 = vmatprep.mubr.bf16.mxu0 0
        %3563 = vmatmul.mubr.bf16.gmra.mxu0 %v3463
        %v3564 = vpop.f32.mrf.mxu0
        %v3565 = vadd.f32 0.0, %v3564
        %v3566 = vpop.f32.mrf.mxu0
        %v3567 = vpop.f32.mrf.mxu0
        %v3568 = vadd.f32 0.0, %v3567
        %v3569 = vpop.f32.mrf.mxu0
        %3570 = vmatprep.mubr.bf16.mxu0 0
        %3571 = vmatmul.mubr.bf16.gmra.mxu0 %v3466
        %v3572 = vpop.f32.mrf.mxu0
        %v3573 = vadd.f32 0.0, %v3572
        %v3574 = vpop.f32.mrf.mxu0
        %v3575 = vpop.f32.mrf.mxu0
        %v3576 = vadd.f32 0.0, %v3575
        %v3577 = vpop.f32.mrf.mxu0
        %3578 = vmatprep.mubr.bf16.mxu0 0
        %3579 = vmatmul.mubr.bf16.gmra.mxu0 %v3469
        %v3580 = vpop.f32.mrf.mxu0
        %v3581 = vadd.f32 0.0, %v3580
        %v3582 = vpop.f32.mrf.mxu0
        %v3583 = vpop.f32.mrf.mxu0
        %v3584 = vadd.f32 0.0, %v3583
        %v3585 = vpop.f32.mrf.mxu0
        %3586 = vmatprep.mubr.bf16.mxu0 0
        %3587 = vmatmul.mubr.bf16.gmra.mxu0 %v3472
        %v3588 = vpop.f32.mrf.mxu0
        %v3589 = vadd.f32 0.0, %v3588
        %v3590 = vpop.f32.mrf.mxu0
        %v3591 = vpop.f32.mrf.mxu0
        %v3592 = vadd.f32 0.0, %v3591
        %v3593 = vpop.f32.mrf.mxu0
        %3594 = vmatprep.mubr.bf16.mxu0 0
        %3595 = vmatmul.mubr.bf16.gmra.mxu0 %v3475
        %v3596 = vpop.f32.mrf.mxu0
        %v3597 = vadd.f32 0.0, %v3596
        %v3598 = vpop.f32.mrf.mxu0
        %v3599 = vpop.f32.mrf.mxu0
        %v3600 = vadd.f32 0.0, %v3599
        %v3601 = vpop.f32.mrf.mxu0
        %3602 = vmatprep.mubr.bf16.mxu0 0
        %3603 = vmatmul.mubr.bf16.gmra.mxu0 %v3478
        %v3604 = vpop.f32.mrf.mxu0
        %v3605 = vadd.f32 0.0, %v3604
        %v3606 = vpop.f32.mrf.mxu0
        %v3607 = vpop.f32.mrf.mxu0
        %v3608 = vadd.f32 0.0, %v3607
        %v3609 = vpop.f32.mrf.mxu0
        %3610 = vmatprep.mubr.bf16.mxu0 0
        %3611 = vmatmul.mubr.bf16.gmra.mxu0 %v3481
        %v3612 = vpop.f32.mrf.mxu0
        %v3613 = vadd.f32 0.0, %v3612
        %v3614 = vpop.f32.mrf.mxu0
        %v3615 = vpop.f32.mrf.mxu0
        %v3616 = vadd.f32 0.0, %v3615
        %v3617 = vpop.f32.mrf.mxu0
        %3618 = vmatprep.mubr.bf16.mxu0 0
        %3619 = vmatmul.mubr.bf16.gmra.mxu0 %v3484
        %v3620 = vpop.f32.mrf.mxu0
        %v3621 = vadd.f32 0.0, %v3620
        %v3622 = vpop.f32.mrf.mxu0
        %v3623 = vpop.f32.mrf.mxu0
        %v3624 = vadd.f32 0.0, %v3623
        %v3625 = vpop.f32.mrf.mxu0
        %3626 = vmatprep.mubr.bf16.mxu0 0
        %3627 = vmatmul.mubr.bf16.gmra.mxu0 %v3487
        %v3628 = vpop.f32.mrf.mxu0
        %v3629 = vadd.f32 0.0, %v3628
        %v3630 = vpop.f32.mrf.mxu0
        %v3631 = vpop.f32.mrf.mxu0
        %v3632 = vadd.f32 0.0, %v3631
        %v3633 = vpop.f32.mrf.mxu0
        %3634 = vmatprep.mubr.bf16.mxu0 0
        %3635 = vmatmul.mubr.bf16.gmra.mxu0 %v3490
        %v3636 = vpop.f32.mrf.mxu0
        %v3637 = vadd.f32 0.0, %v3636
        %v3638 = vpop.f32.mrf.mxu0
        %v3639 = vpop.f32.mrf.mxu0
        %v3640 = vadd.f32 0.0, %v3639
        %v3641 = vpop.f32.mrf.mxu0
        %3642 = vmatprep.mubr.bf16.mxu0 0
        %3643 = vmatmul.mubr.bf16.gmra.mxu0 %v3493
        %v3644 = vpop.f32.mrf.mxu0
        %v3645 = vadd.f32 0.0, %v3644
        %v3646 = vpop.f32.mrf.mxu0
        %v3647 = vpop.f32.mrf.mxu0
        %v3648 = vadd.f32 0.0, %v3647
        %v3649 = vpop.f32.mrf.mxu0
        %3650 = vmatprep.mubr.bf16.mxu0 0
        %3651 = vmatmul.mubr.bf16.gmra.mxu0 %v3496
        %v3652 = vpop.f32.mrf.mxu0
        %v3653 = vadd.f32 0.0, %v3652
        %v3654 = vpop.f32.mrf.mxu0
        %v3655 = vpop.f32.mrf.mxu0
        %v3656 = vadd.f32 0.0, %v3655
        %v3657 = vpop.f32.mrf.mxu0
        %3658 = vdwg.mxu0
        %v3659 = vadd.f32 %v3298, %v3533
        %v3660 = vadd.f32 %v3299, %v3536
        %v3661 = vadd.f32 %v3300, %v3541
        %v3662 = vadd.f32 %v3301, %v3544
        %v3663 = vadd.f32 %v3302, %v3549
        %v3664 = vadd.f32 %v3303, %v3552
        %v3665 = vadd.f32 %v3304, %v3557
        %v3666 = vadd.f32 %v3305, %v3560
        %v3667 = vadd.f32 %v3306, %v3565
        %v3668 = vadd.f32 %v3307, %v3568
        %v3669 = vadd.f32 %v3308, %v3573
        %v3670 = vadd.f32 %v3309, %v3576
        %v3671 = vadd.f32 %v3310, %v3581
        %v3672 = vadd.f32 %v3311, %v3584
        %v3673 = vadd.f32 %v3312, %v3589
        %v3674 = vadd.f32 %v3313, %v3592
        %v3675 = vadd.f32 %v3314, %v3597
        %v3676 = vadd.f32 %v3315, %v3600
        %v3677 = vadd.f32 %v3316, %v3605
        %v3678 = vadd.f32 %v3317, %v3608
        %v3679 = vadd.f32 %v3318, %v3613
        %v3680 = vadd.f32 %v3319, %v3616
        %v3681 = vadd.f32 %v3320, %v3621
        %v3682 = vadd.f32 %v3321, %v3624
        %v3683 = vadd.f32 %v3322, %v3629
        %v3684 = vadd.f32 %v3323, %v3632
        %v3685 = vadd.f32 %v3324, %v3637
        %v3686 = vadd.f32 %v3325, %v3640
        %v3687 = vadd.f32 %v3326, %v3645
        %v3688 = vadd.f32 %v3327, %v3648
        %v3689 = vadd.f32 %v3328, %v3653
        %v3690 = vadd.f32 %v3329, %v3656
        %v3691 = vld [vmem:[%s827 + $0x10] sm:$0xf]
        %v3692 = vld [vmem:[%s827 + $0x14] sm:$0xf]
        %v3693 = vld [vmem:[%s827 + $0x18] sm:$0xf]
        %v3694 = vld [vmem:[%s827 + $0x1c] sm:$0xf]
        %v3695 = vld [vmem:[%s827 + $0x20] sm:$0xf]
        %v3696 = vld [vmem:[%s827 + $0x24] sm:$0xf]
        %v3697 = vld [vmem:[%s827 + $0x28] sm:$0xf]
        %v3698 = vld [vmem:[%s827 + $0x2c] sm:$0xf]
        %v3699 = vld [vmem:[%s827 + $0x30] sm:$0xf]
        %v3700 = vld [vmem:[%s827 + $0x34] sm:$0xf]
        %v3701 = vld [vmem:[%s827 + $0x38] sm:$0xf]
        %v3702 = vld [vmem:[%s827 + $0x3c] sm:$0xf]
        %v3703 = vld [vmem:[%s827 + $0x40] sm:$0xf]
        %v3704 = vld [vmem:[%s827 + $0x44] sm:$0xf]
        %v3705 = vld [vmem:[%s827 + $0x48] sm:$0xf]
        %v3706 = vld [vmem:[%s827 + $0x4c] sm:$0xf]
        %v3707 = vld [vmem:[%s827 + $0x50] sm:$0xf]
        %v3708 = vld [vmem:[%s827 + $0x54] sm:$0xf]
        %v3709 = vld [vmem:[%s827 + $0x58] sm:$0xf]
        %v3710 = vld [vmem:[%s827 + $0x5c] sm:$0xf]
        %v3711 = vld [vmem:[%s827 + $0x60] sm:$0xf]
        %v3712 = vld [vmem:[%s827 + $0x64] sm:$0xf]
        %v3713 = vld [vmem:[%s827 + $0x68] sm:$0xf]
        %v3714 = vld [vmem:[%s827 + $0x6c] sm:$0xf]
        %v3715 = vld [vmem:[%s827 + $0x70] sm:$0xf]
        %v3716 = vld [vmem:[%s827 + $0x74] sm:$0xf]
        %v3717 = vld [vmem:[%s827 + $0x78] sm:$0xf]
        %v3718 = vld [vmem:[%s827 + $0x7c] sm:$0xf]
        %v3719 = vld [vmem:[%s827 + $0x80] sm:$0xf]
        %v3720 = vld [vmem:[%s827 + $0x84] sm:$0xf]
        %v3721 = vld [vmem:[%s827 + $0x88] sm:$0xf]
        %v3722 = vld [vmem:[%s827 + $0x8c] sm:$0xf]
        %v3723 = vld [vmem:[%s858 + $0x40] sm:$0xf]
        %v3724 = vld [vmem:[%s858 + $0x44] sm:$0xf]
        %v3757 = vunpack.c.l.b16 %v3691
        %v3758 = vunpack.c.l.b16 %v3692
        %v3759 = vunpack.c.l.b16 %v3693
        %v3760 = vunpack.c.l.b16 %v3694
        %v3761 = vunpack.c.l.b16 %v3695
        %v3762 = vunpack.c.l.b16 %v3696
        %v3763 = vunpack.c.l.b16 %v3697
        %v3764 = vunpack.c.l.b16 %v3698
        %v3765 = vunpack.c.l.b16 %v3699
        %v3766 = vunpack.c.l.b16 %v3700
        %v3767 = vunpack.c.l.b16 %v3701
        %v3768 = vunpack.c.l.b16 %v3702
        %v3769 = vunpack.c.l.b16 %v3703
        %v3770 = vunpack.c.l.b16 %v3704
        %v3771 = vunpack.c.l.b16 %v3705
        %v3772 = vunpack.c.l.b16 %v3706
        %v3773 = vunpack.c.l.b16 %v3707
        %v3774 = vunpack.c.l.b16 %v3708
        %v3775 = vunpack.c.l.b16 %v3709
        %v3776 = vunpack.c.l.b16 %v3710
        %v3777 = vunpack.c.l.b16 %v3711
        %v3778 = vunpack.c.l.b16 %v3712
        %v3779 = vunpack.c.l.b16 %v3713
        %v3780 = vunpack.c.l.b16 %v3714
        %v3781 = vunpack.c.l.b16 %v3715
        %v3782 = vunpack.c.l.b16 %v3716
        %v3783 = vunpack.c.l.b16 %v3717
        %v3784 = vunpack.c.l.b16 %v3718
        %v3785 = vunpack.c.l.b16 %v3719
        %v3786 = vunpack.c.l.b16 %v3720
        %v3787 = vunpack.c.l.b16 %v3721
        %v3788 = vunpack.c.l.b16 %v3722
        %v3789 = vpack.c.b16 %v3758, %v3757
        %v3790 = vpack.c.b16 %v3760, %v3759
        %v3791 = vpack.c.b16 %v3762, %v3761
        %v3792 = vpack.c.b16 %v3764, %v3763
        %v3793 = vpack.c.b16 %v3766, %v3765
        %v3794 = vpack.c.b16 %v3768, %v3767
        %v3795 = vpack.c.b16 %v3770, %v3769
        %v3796 = vpack.c.b16 %v3772, %v3771
        %v3797 = vpack.c.b16 %v3774, %v3773
        %v3798 = vpack.c.b16 %v3776, %v3775
        %v3799 = vpack.c.b16 %v3778, %v3777
        %v3800 = vpack.c.b16 %v3780, %v3779
        %v3801 = vpack.c.b16 %v3782, %v3781
        %v3802 = vpack.c.b16 %v3784, %v3783
        %v3803 = vpack.c.b16 %v3786, %v3785
        %v3804 = vpack.c.b16 %v3788, %v3787
        %v3807 = vunpack.c.l.b16 %v3723
        %v3808 = vunpack.c.l.b16 %v3724
        %v3809 = vpack.c.b16 %v3808, %v3807
        %v3812 = vsel %vm1018, %v3789, 0
        %v3815 = vsel %vm1018, %v3790, 0
        %v3818 = vsel %vm1018, %v3791, 0
        %v3821 = vsel %vm1018, %v3792, 0
        %v3824 = vsel %vm1018, %v3793, 0
        %v3827 = vsel %vm1018, %v3794, 0
        %v3830 = vsel %vm1018, %v3795, 0
        %v3833 = vsel %vm1018, %v3796, 0
        %v3836 = vsel %vm1018, %v3797, 0
        %v3839 = vsel %vm1018, %v3798, 0
        %v3842 = vsel %vm1018, %v3799, 0
        %v3845 = vsel %vm1018, %v3800, 0
        %v3848 = vsel %vm1018, %v3801, 0
        %v3851 = vsel %vm1018, %v3802, 0
        %v3854 = vsel %vm1018, %v3803, 0
        %v3857 = vsel %vm1018, %v3804, 0
        %3859 = vmatprep.subr.bf16.mxu0 0
        %3860 = vmatpush1.bf16.msra.mxu0 0
        %3861 = vmatprep.subr.bf16.mxu0 0
        %3862 = vmatpush1.bf16.msra.mxu0 0
        %3863 = vmatprep.subr.bf16.mxu0 0
        %3864 = vmatpush1.bf16.msra.mxu0 0
        %3865 = vmatprep.subr.bf16.mxu0 0
        %3866 = vmatpush1.bf16.msra.mxu0 0
        %3867 = vmatprep.subr.bf16.mxu0 0
        %3868 = vmatpush1.bf16.msra.mxu0 0
        %3869 = vmatprep.subr.bf16.mxu0 0
        %3870 = vmatpush1.bf16.msra.mxu0 0
        %3871 = vmatprep.subr.bf16.mxu0 0
        %3872 = vmatpush1.bf16.msra.mxu0 0
        %3873 = vmatprep.subr.bf16.mxu0 0
        %3874 = vmatpush1.bf16.msra.mxu0 %v3809
        %3875 = vmatprep.subr.bf16.mxu0 0
        %3876 = vmatpush2.bf16.msra.mxu0 0
        %3877 = vmatprep.subr.bf16.mxu0 0
        %3878 = vmatpush2.bf16.msra.mxu0 0
        %3879 = vmatprep.subr.bf16.mxu0 0
        %3880 = vmatpush2.bf16.msra.mxu0 0
        %3881 = vmatprep.subr.bf16.mxu0 0
        %3882 = vmatpush2.bf16.msra.mxu0 0
        %3883 = vmatprep.subr.bf16.mxu0 0
        %3884 = vmatpush2.bf16.msra.mxu0 0
        %3885 = vmatprep.subr.bf16.mxu0 0
        %3886 = vmatpush2.bf16.msra.mxu0 0
        %3887 = vmatprep.subr.bf16.mxu0 0
        %3888 = vmatpush2.bf16.msra.mxu0 0
        %3889 = vmatprep.subr.bf16.mxu0 0
        %3890 = vmatpush2.bf16.msra.mxu0 0
        %3891 = vmatprep.mubr.bf16.mxu0 0
        %3892 = vmatmul.mubr.bf16.gmra.mxu0 %v3812
        %v3893 = vpop.f32.mrf.mxu0
        %v3894 = vadd.f32 0.0, %v3893
        %v3895 = vpop.f32.mrf.mxu0
        %v3896 = vpop.f32.mrf.mxu0
        %v3897 = vadd.f32 0.0, %v3896
        %v3898 = vpop.f32.mrf.mxu0
        %3899 = vmatprep.mubr.bf16.mxu0 0
        %3900 = vmatmul.mubr.bf16.gmra.mxu0 %v3815
        %v3901 = vpop.f32.mrf.mxu0
        %v3902 = vadd.f32 0.0, %v3901
        %v3903 = vpop.f32.mrf.mxu0
        %v3904 = vpop.f32.mrf.mxu0
        %v3905 = vadd.f32 0.0, %v3904
        %v3906 = vpop.f32.mrf.mxu0
        %3907 = vmatprep.mubr.bf16.mxu0 0
        %3908 = vmatmul.mubr.bf16.gmra.mxu0 %v3818
        %v3909 = vpop.f32.mrf.mxu0
        %v3910 = vadd.f32 0.0, %v3909
        %v3911 = vpop.f32.mrf.mxu0
        %v3912 = vpop.f32.mrf.mxu0
        %v3913 = vadd.f32 0.0, %v3912
        %v3914 = vpop.f32.mrf.mxu0
        %3915 = vmatprep.mubr.bf16.mxu0 0
        %3916 = vmatmul.mubr.bf16.gmra.mxu0 %v3821
        %v3917 = vpop.f32.mrf.mxu0
        %v3918 = vadd.f32 0.0, %v3917
        %v3919 = vpop.f32.mrf.mxu0
        %v3920 = vpop.f32.mrf.mxu0
        %v3921 = vadd.f32 0.0, %v3920
        %v3922 = vpop.f32.mrf.mxu0
        %3923 = vmatprep.mubr.bf16.mxu0 0
        %3924 = vmatmul.mubr.bf16.gmra.mxu0 %v3824
        %v3925 = vpop.f32.mrf.mxu0
        %v3926 = vadd.f32 0.0, %v3925
        %v3927 = vpop.f32.mrf.mxu0
        %v3928 = vpop.f32.mrf.mxu0
        %v3929 = vadd.f32 0.0, %v3928
        %v3930 = vpop.f32.mrf.mxu0
        %3931 = vmatprep.mubr.bf16.mxu0 0
        %3932 = vmatmul.mubr.bf16.gmra.mxu0 %v3827
        %v3933 = vpop.f32.mrf.mxu0
        %v3934 = vadd.f32 0.0, %v3933
        %v3935 = vpop.f32.mrf.mxu0
        %v3936 = vpop.f32.mrf.mxu0
        %v3937 = vadd.f32 0.0, %v3936
        %v3938 = vpop.f32.mrf.mxu0
        %3939 = vmatprep.mubr.bf16.mxu0 0
        %3940 = vmatmul.mubr.bf16.gmra.mxu0 %v3830
        %v3941 = vpop.f32.mrf.mxu0
        %v3942 = vadd.f32 0.0, %v3941
        %v3943 = vpop.f32.mrf.mxu0
        %v3944 = vpop.f32.mrf.mxu0
        %v3945 = vadd.f32 0.0, %v3944
        %v3946 = vpop.f32.mrf.mxu0
        %3947 = vmatprep.mubr.bf16.mxu0 0
        %3948 = vmatmul.mubr.bf16.gmra.mxu0 %v3833
        %v3949 = vpop.f32.mrf.mxu0
        %v3950 = vadd.f32 0.0, %v3949
        %v3951 = vpop.f32.mrf.mxu0
        %v3952 = vpop.f32.mrf.mxu0
        %v3953 = vadd.f32 0.0, %v3952
        %v3954 = vpop.f32.mrf.mxu0
        %3955 = vmatprep.mubr.bf16.mxu0 0
        %3956 = vmatmul.mubr.bf16.gmra.mxu0 %v3836
        %v3957 = vpop.f32.mrf.mxu0
        %v3958 = vadd.f32 0.0, %v3957
        %v3959 = vpop.f32.mrf.mxu0
        %v3960 = vpop.f32.mrf.mxu0
        %v3961 = vadd.f32 0.0, %v3960
        %v3962 = vpop.f32.mrf.mxu0
        %3963 = vmatprep.mubr.bf16.mxu0 0
        %3964 = vmatmul.mubr.bf16.gmra.mxu0 %v3839
        %v3965 = vpop.f32.mrf.mxu0
        %v3966 = vadd.f32 0.0, %v3965
        %v3967 = vpop.f32.mrf.mxu0
        %v3968 = vpop.f32.mrf.mxu0
        %v3969 = vadd.f32 0.0, %v3968
        %v3970 = vpop.f32.mrf.mxu0
        %3971 = vmatprep.mubr.bf16.mxu0 0
        %3972 = vmatmul.mubr.bf16.gmra.mxu0 %v3842
        %v3973 = vpop.f32.mrf.mxu0
        %v3974 = vadd.f32 0.0, %v3973
        %v3975 = vpop.f32.mrf.mxu0
        %v3976 = vpop.f32.mrf.mxu0
        %v3977 = vadd.f32 0.0, %v3976
        %v3978 = vpop.f32.mrf.mxu0
        %3979 = vmatprep.mubr.bf16.mxu0 0
        %3980 = vmatmul.mubr.bf16.gmra.mxu0 %v3845
        %v3981 = vpop.f32.mrf.mxu0
        %v3982 = vadd.f32 0.0, %v3981
        %v3983 = vpop.f32.mrf.mxu0
        %v3984 = vpop.f32.mrf.mxu0
        %v3985 = vadd.f32 0.0, %v3984
        %v3986 = vpop.f32.mrf.mxu0
        %3987 = vmatprep.mubr.bf16.mxu0 0
        %3988 = vmatmul.mubr.bf16.gmra.mxu0 %v3848
        %v3989 = vpop.f32.mrf.mxu0
        %v3990 = vadd.f32 0.0, %v3989
        %v3991 = vpop.f32.mrf.mxu0
        %v3992 = vpop.f32.mrf.mxu0
        %v3993 = vadd.f32 0.0, %v3992
        %v3994 = vpop.f32.mrf.mxu0
        %3995 = vmatprep.mubr.bf16.mxu0 0
        %3996 = vmatmul.mubr.bf16.gmra.mxu0 %v3851
        %v3997 = vpop.f32.mrf.mxu0
        %v3998 = vadd.f32 0.0, %v3997
        %v3999 = vpop.f32.mrf.mxu0
        %v4000 = vpop.f32.mrf.mxu0
        %v4001 = vadd.f32 0.0, %v4000
        %v4002 = vpop.f32.mrf.mxu0
        %4003 = vmatprep.mubr.bf16.mxu0 0
        %4004 = vmatmul.mubr.bf16.gmra.mxu0 %v3854
        %v4005 = vpop.f32.mrf.mxu0
        %v4006 = vadd.f32 0.0, %v4005
        %v4007 = vpop.f32.mrf.mxu0
        %v4008 = vpop.f32.mrf.mxu0
        %v4009 = vadd.f32 0.0, %v4008
        %v4010 = vpop.f32.mrf.mxu0
        %4011 = vmatprep.mubr.bf16.mxu0 0
        %4012 = vmatmul.mubr.bf16.gmra.mxu0 %v3857
        %v4013 = vpop.f32.mrf.mxu0
        %v4014 = vadd.f32 0.0, %v4013
        %v4015 = vpop.f32.mrf.mxu0
        %v4016 = vpop.f32.mrf.mxu0
        %v4017 = vadd.f32 0.0, %v4016
        %v4018 = vpop.f32.mrf.mxu0
        %4019 = vdwg.mxu0
        %v4020 = vadd.f32 %v3659, %v3894
        %v4021 = vadd.f32 %v3660, %v3897
        %v4022 = vadd.f32 %v3661, %v3902
        %v4023 = vadd.f32 %v3662, %v3905
        %v4024 = vadd.f32 %v3663, %v3910
        %v4025 = vadd.f32 %v3664, %v3913
        %v4026 = vadd.f32 %v3665, %v3918
        %v4027 = vadd.f32 %v3666, %v3921
        %v4028 = vadd.f32 %v3667, %v3926
        %v4029 = vadd.f32 %v3668, %v3929
        %v4030 = vadd.f32 %v3669, %v3934
        %v4031 = vadd.f32 %v3670, %v3937
        %v4032 = vadd.f32 %v3671, %v3942
        %v4033 = vadd.f32 %v3672, %v3945
        %v4034 = vadd.f32 %v3673, %v3950
        %v4035 = vadd.f32 %v3674, %v3953
        %v4036 = vadd.f32 %v3675, %v3958
        %v4037 = vadd.f32 %v3676, %v3961
        %v4038 = vadd.f32 %v3677, %v3966
        %v4039 = vadd.f32 %v3678, %v3969
        %v4040 = vadd.f32 %v3679, %v3974
        %v4041 = vadd.f32 %v3680, %v3977
        %v4042 = vadd.f32 %v3681, %v3982
        %v4043 = vadd.f32 %v3682, %v3985
        %v4044 = vadd.f32 %v3683, %v3990
        %v4045 = vadd.f32 %v3684, %v3993
        %v4046 = vadd.f32 %v3685, %v3998
        %v4047 = vadd.f32 %v3686, %v4001
        %v4048 = vadd.f32 %v3687, %v4006
        %v4049 = vadd.f32 %v3688, %v4009
        %v4050 = vadd.f32 %v3689, %v4014
        %v4051 = vadd.f32 %v3690, %v4017
        %v4052 = vld [vmem:[%s897 + $0x10] sm:$0xf]
        %v4053 = vld [vmem:[%s897 + $0x14] sm:$0xf]
        %v4054 = vld [vmem:[%s897 + $0x18] sm:$0xf]
        %v4055 = vld [vmem:[%s897 + $0x1c] sm:$0xf]
        %v4056 = vld [vmem:[%s897 + $0x20] sm:$0xf]
        %v4057 = vld [vmem:[%s897 + $0x24] sm:$0xf]
        %v4058 = vld [vmem:[%s897 + $0x28] sm:$0xf]
        %v4059 = vld [vmem:[%s897 + $0x2c] sm:$0xf]
        %v4060 = vld [vmem:[%s897 + $0x30] sm:$0xf]
        %v4061 = vld [vmem:[%s897 + $0x34] sm:$0xf]
        %v4062 = vld [vmem:[%s897 + $0x38] sm:$0xf]
        %v4063 = vld [vmem:[%s897 + $0x3c] sm:$0xf]
        %v4064 = vld [vmem:[%s897 + $0x40] sm:$0xf]
        %v4065 = vld [vmem:[%s897 + $0x44] sm:$0xf]
        %v4066 = vld [vmem:[%s897 + $0x48] sm:$0xf]
        %v4067 = vld [vmem:[%s897 + $0x4c] sm:$0xf]
        %v4068 = vld [vmem:[%s897 + $0x50] sm:$0xf]
        %v4069 = vld [vmem:[%s897 + $0x54] sm:$0xf]
        %v4070 = vld [vmem:[%s897 + $0x58] sm:$0xf]
        %v4071 = vld [vmem:[%s897 + $0x5c] sm:$0xf]
        %v4072 = vld [vmem:[%s897 + $0x60] sm:$0xf]
        %v4073 = vld [vmem:[%s897 + $0x64] sm:$0xf]
        %v4074 = vld [vmem:[%s897 + $0x68] sm:$0xf]
        %v4075 = vld [vmem:[%s897 + $0x6c] sm:$0xf]
        %v4076 = vld [vmem:[%s897 + $0x70] sm:$0xf]
        %v4077 = vld [vmem:[%s897 + $0x74] sm:$0xf]
        %v4078 = vld [vmem:[%s897 + $0x78] sm:$0xf]
        %v4079 = vld [vmem:[%s897 + $0x7c] sm:$0xf]
        %v4080 = vld [vmem:[%s897 + $0x80] sm:$0xf]
        %v4081 = vld [vmem:[%s897 + $0x84] sm:$0xf]
        %v4082 = vld [vmem:[%s897 + $0x88] sm:$0xf]
        %v4083 = vld [vmem:[%s897 + $0x8c] sm:$0xf]
        %v4084 = vld [vmem:[%s858 + $0x48] sm:$0xf]
        %v4085 = vld [vmem:[%s858 + $0x4c] sm:$0xf]
        %v4118 = vunpack.c.l.b16 %v4052
        %v4119 = vunpack.c.l.b16 %v4053
        %v4120 = vunpack.c.l.b16 %v4054
        %v4121 = vunpack.c.l.b16 %v4055
        %v4122 = vunpack.c.l.b16 %v4056
        %v4123 = vunpack.c.l.b16 %v4057
        %v4124 = vunpack.c.l.b16 %v4058
        %v4125 = vunpack.c.l.b16 %v4059
        %v4126 = vunpack.c.l.b16 %v4060
        %v4127 = vunpack.c.l.b16 %v4061
        %v4128 = vunpack.c.l.b16 %v4062
        %v4129 = vunpack.c.l.b16 %v4063
        %v4130 = vunpack.c.l.b16 %v4064
        %v4131 = vunpack.c.l.b16 %v4065
        %v4132 = vunpack.c.l.b16 %v4066
        %v4133 = vunpack.c.l.b16 %v4067
        %v4134 = vunpack.c.l.b16 %v4068
        %v4135 = vunpack.c.l.b16 %v4069
        %v4136 = vunpack.c.l.b16 %v4070
        %v4137 = vunpack.c.l.b16 %v4071
        %v4138 = vunpack.c.l.b16 %v4072
        %v4139 = vunpack.c.l.b16 %v4073
        %v4140 = vunpack.c.l.b16 %v4074
        %v4141 = vunpack.c.l.b16 %v4075
        %v4142 = vunpack.c.l.b16 %v4076
        %v4143 = vunpack.c.l.b16 %v4077
        %v4144 = vunpack.c.l.b16 %v4078
        %v4145 = vunpack.c.l.b16 %v4079
        %v4146 = vunpack.c.l.b16 %v4080
        %v4147 = vunpack.c.l.b16 %v4081
        %v4148 = vunpack.c.l.b16 %v4082
        %v4149 = vunpack.c.l.b16 %v4083
        %v4150 = vpack.c.b16 %v4119, %v4118
        %v4151 = vpack.c.b16 %v4121, %v4120
        %v4152 = vpack.c.b16 %v4123, %v4122
        %v4153 = vpack.c.b16 %v4125, %v4124
        %v4154 = vpack.c.b16 %v4127, %v4126
        %v4155 = vpack.c.b16 %v4129, %v4128
        %v4156 = vpack.c.b16 %v4131, %v4130
        %v4157 = vpack.c.b16 %v4133, %v4132
        %v4158 = vpack.c.b16 %v4135, %v4134
        %v4159 = vpack.c.b16 %v4137, %v4136
        %v4160 = vpack.c.b16 %v4139, %v4138
        %v4161 = vpack.c.b16 %v4141, %v4140
        %v4162 = vpack.c.b16 %v4143, %v4142
        %v4163 = vpack.c.b16 %v4145, %v4144
        %v4164 = vpack.c.b16 %v4147, %v4146
        %v4165 = vpack.c.b16 %v4149, %v4148
        %v4168 = vunpack.c.l.b16 %v4084
        %v4169 = vunpack.c.l.b16 %v4085
        %v4170 = vpack.c.b16 %v4169, %v4168
        %v4173 = vsel %vm1018, %v4150, 0
        %v4176 = vsel %vm1018, %v4151, 0
        %v4179 = vsel %vm1018, %v4152, 0
        %v4182 = vsel %vm1018, %v4153, 0
        %v4185 = vsel %vm1018, %v4154, 0
        %v4188 = vsel %vm1018, %v4155, 0
        %v4191 = vsel %vm1018, %v4156, 0
        %v4194 = vsel %vm1018, %v4157, 0
        %v4197 = vsel %vm1018, %v4158, 0
        %v4200 = vsel %vm1018, %v4159, 0
        %v4203 = vsel %vm1018, %v4160, 0
        %v4206 = vsel %vm1018, %v4161, 0
        %v4209 = vsel %vm1018, %v4162, 0
        %v4212 = vsel %vm1018, %v4163, 0
        %v4215 = vsel %vm1018, %v4164, 0
        %v4218 = vsel %vm1018, %v4165, 0
        %4220 = vmatprep.subr.bf16.mxu0 0
        %4221 = vmatpush1.bf16.msra.mxu0 0
        %4222 = vmatprep.subr.bf16.mxu0 0
        %4223 = vmatpush1.bf16.msra.mxu0 0
        %4224 = vmatprep.subr.bf16.mxu0 0
        %4225 = vmatpush1.bf16.msra.mxu0 0
        %4226 = vmatprep.subr.bf16.mxu0 0
        %4227 = vmatpush1.bf16.msra.mxu0 0
        %4228 = vmatprep.subr.bf16.mxu0 0
        %4229 = vmatpush1.bf16.msra.mxu0 0
        %4230 = vmatprep.subr.bf16.mxu0 0
        %4231 = vmatpush1.bf16.msra.mxu0 0
        %4232 = vmatprep.subr.bf16.mxu0 0
        %4233 = vmatpush1.bf16.msra.mxu0 0
        %4234 = vmatprep.subr.bf16.mxu0 0
        %4235 = vmatpush1.bf16.msra.mxu0 %v4170
        %4236 = vmatprep.subr.bf16.mxu0 0
        %4237 = vmatpush2.bf16.msra.mxu0 0
        %4238 = vmatprep.subr.bf16.mxu0 0
        %4239 = vmatpush2.bf16.msra.mxu0 0
        %4240 = vmatprep.subr.bf16.mxu0 0
        %4241 = vmatpush2.bf16.msra.mxu0 0
        %4242 = vmatprep.subr.bf16.mxu0 0
        %4243 = vmatpush2.bf16.msra.mxu0 0
        %4244 = vmatprep.subr.bf16.mxu0 0
        %4245 = vmatpush2.bf16.msra.mxu0 0
        %4246 = vmatprep.subr.bf16.mxu0 0
        %4247 = vmatpush2.bf16.msra.mxu0 0
        %4248 = vmatprep.subr.bf16.mxu0 0
        %4249 = vmatpush2.bf16.msra.mxu0 0
        %4250 = vmatprep.subr.bf16.mxu0 0
        %4251 = vmatpush2.bf16.msra.mxu0 0
        %4252 = vmatprep.mubr.bf16.mxu0 0
        %4253 = vmatmul.mubr.bf16.gmra.mxu0 %v4173
        %v4254 = vpop.f32.mrf.mxu0
        %v4255 = vadd.f32 0.0, %v4254
        %v4256 = vpop.f32.mrf.mxu0
        %v4257 = vpop.f32.mrf.mxu0
        %v4258 = vadd.f32 0.0, %v4257
        %v4259 = vpop.f32.mrf.mxu0
        %4260 = vmatprep.mubr.bf16.mxu0 0
        %4261 = vmatmul.mubr.bf16.gmra.mxu0 %v4176
        %v4262 = vpop.f32.mrf.mxu0
        %v4263 = vadd.f32 0.0, %v4262
        %v4264 = vpop.f32.mrf.mxu0
        %v4265 = vpop.f32.mrf.mxu0
        %v4266 = vadd.f32 0.0, %v4265
        %v4267 = vpop.f32.mrf.mxu0
        %4268 = vmatprep.mubr.bf16.mxu0 0
        %4269 = vmatmul.mubr.bf16.gmra.mxu0 %v4179
        %v4270 = vpop.f32.mrf.mxu0
        %v4271 = vadd.f32 0.0, %v4270
        %v4272 = vpop.f32.mrf.mxu0
        %v4273 = vpop.f32.mrf.mxu0
        %v4274 = vadd.f32 0.0, %v4273
        %v4275 = vpop.f32.mrf.mxu0
        %4276 = vmatprep.mubr.bf16.mxu0 0
        %4277 = vmatmul.mubr.bf16.gmra.mxu0 %v4182
        %v4278 = vpop.f32.mrf.mxu0
        %v4279 = vadd.f32 0.0, %v4278
        %v4280 = vpop.f32.mrf.mxu0
        %v4281 = vpop.f32.mrf.mxu0
        %v4282 = vadd.f32 0.0, %v4281
        %v4283 = vpop.f32.mrf.mxu0
        %4284 = vmatprep.mubr.bf16.mxu0 0
        %4285 = vmatmul.mubr.bf16.gmra.mxu0 %v4185
        %v4286 = vpop.f32.mrf.mxu0
        %v4287 = vadd.f32 0.0, %v4286
        %v4288 = vpop.f32.mrf.mxu0
        %v4289 = vpop.f32.mrf.mxu0
        %v4290 = vadd.f32 0.0, %v4289
        %v4291 = vpop.f32.mrf.mxu0
        %4292 = vmatprep.mubr.bf16.mxu0 0
        %4293 = vmatmul.mubr.bf16.gmra.mxu0 %v4188
        %v4294 = vpop.f32.mrf.mxu0
        %v4295 = vadd.f32 0.0, %v4294
        %v4296 = vpop.f32.mrf.mxu0
        %v4297 = vpop.f32.mrf.mxu0
        %v4298 = vadd.f32 0.0, %v4297
        %v4299 = vpop.f32.mrf.mxu0
        %4300 = vmatprep.mubr.bf16.mxu0 0
        %4301 = vmatmul.mubr.bf16.gmra.mxu0 %v4191
        %v4302 = vpop.f32.mrf.mxu0
        %v4303 = vadd.f32 0.0, %v4302
        %v4304 = vpop.f32.mrf.mxu0
        %v4305 = vpop.f32.mrf.mxu0
        %v4306 = vadd.f32 0.0, %v4305
        %v4307 = vpop.f32.mrf.mxu0
        %4308 = vmatprep.mubr.bf16.mxu0 0
        %4309 = vmatmul.mubr.bf16.gmra.mxu0 %v4194
        %v4310 = vpop.f32.mrf.mxu0
        %v4311 = vadd.f32 0.0, %v4310
        %v4312 = vpop.f32.mrf.mxu0
        %v4313 = vpop.f32.mrf.mxu0
        %v4314 = vadd.f32 0.0, %v4313
        %v4315 = vpop.f32.mrf.mxu0
        %4316 = vmatprep.mubr.bf16.mxu0 0
        %4317 = vmatmul.mubr.bf16.gmra.mxu0 %v4197
        %v4318 = vpop.f32.mrf.mxu0
        %v4319 = vadd.f32 0.0, %v4318
        %v4320 = vpop.f32.mrf.mxu0
        %v4321 = vpop.f32.mrf.mxu0
        %v4322 = vadd.f32 0.0, %v4321
        %v4323 = vpop.f32.mrf.mxu0
        %4324 = vmatprep.mubr.bf16.mxu0 0
        %4325 = vmatmul.mubr.bf16.gmra.mxu0 %v4200
        %v4326 = vpop.f32.mrf.mxu0
        %v4327 = vadd.f32 0.0, %v4326
        %v4328 = vpop.f32.mrf.mxu0
        %v4329 = vpop.f32.mrf.mxu0
        %v4330 = vadd.f32 0.0, %v4329
        %v4331 = vpop.f32.mrf.mxu0
        %4332 = vmatprep.mubr.bf16.mxu0 0
        %4333 = vmatmul.mubr.bf16.gmra.mxu0 %v4203
        %v4334 = vpop.f32.mrf.mxu0
        %v4335 = vadd.f32 0.0, %v4334
        %v4336 = vpop.f32.mrf.mxu0
        %v4337 = vpop.f32.mrf.mxu0
        %v4338 = vadd.f32 0.0, %v4337
        %v4339 = vpop.f32.mrf.mxu0
        %4340 = vmatprep.mubr.bf16.mxu0 0
        %4341 = vmatmul.mubr.bf16.gmra.mxu0 %v4206
        %v4342 = vpop.f32.mrf.mxu0
        %v4343 = vadd.f32 0.0, %v4342
        %v4344 = vpop.f32.mrf.mxu0
        %v4345 = vpop.f32.mrf.mxu0
        %v4346 = vadd.f32 0.0, %v4345
        %v4347 = vpop.f32.mrf.mxu0
        %4348 = vmatprep.mubr.bf16.mxu0 0
        %4349 = vmatmul.mubr.bf16.gmra.mxu0 %v4209
        %v4350 = vpop.f32.mrf.mxu0
        %v4351 = vadd.f32 0.0, %v4350
        %v4352 = vpop.f32.mrf.mxu0
        %v4353 = vpop.f32.mrf.mxu0
        %v4354 = vadd.f32 0.0, %v4353
        %v4355 = vpop.f32.mrf.mxu0
        %4356 = vmatprep.mubr.bf16.mxu0 0
        %4357 = vmatmul.mubr.bf16.gmra.mxu0 %v4212
        %v4358 = vpop.f32.mrf.mxu0
        %v4359 = vadd.f32 0.0, %v4358
        %v4360 = vpop.f32.mrf.mxu0
        %v4361 = vpop.f32.mrf.mxu0
        %v4362 = vadd.f32 0.0, %v4361
        %v4363 = vpop.f32.mrf.mxu0
        %4364 = vmatprep.mubr.bf16.mxu0 0
        %4365 = vmatmul.mubr.bf16.gmra.mxu0 %v4215
        %v4366 = vpop.f32.mrf.mxu0
        %v4367 = vadd.f32 0.0, %v4366
        %v4368 = vpop.f32.mrf.mxu0
        %v4369 = vpop.f32.mrf.mxu0
        %v4370 = vadd.f32 0.0, %v4369
        %v4371 = vpop.f32.mrf.mxu0
        %4372 = vmatprep.mubr.bf16.mxu0 0
        %4373 = vmatmul.mubr.bf16.gmra.mxu0 %v4218
        %v4374 = vpop.f32.mrf.mxu0
        %v4375 = vadd.f32 0.0, %v4374
        %v4376 = vpop.f32.mrf.mxu0
        %v4377 = vpop.f32.mrf.mxu0
        %v4378 = vadd.f32 0.0, %v4377
        %v4379 = vpop.f32.mrf.mxu0
        %4380 = vdwg.mxu0
        %v4381 = vadd.f32 %v4020, %v4255
        %v4382 = vadd.f32 %v4021, %v4258
        %v4383 = vadd.f32 %v4022, %v4263
        %v4384 = vadd.f32 %v4023, %v4266
        %v4385 = vadd.f32 %v4024, %v4271
        %v4386 = vadd.f32 %v4025, %v4274
        %v4387 = vadd.f32 %v4026, %v4279
        %v4388 = vadd.f32 %v4027, %v4282
        %v4389 = vadd.f32 %v4028, %v4287
        %v4390 = vadd.f32 %v4029, %v4290
        %v4391 = vadd.f32 %v4030, %v4295
        %v4392 = vadd.f32 %v4031, %v4298
        %v4393 = vadd.f32 %v4032, %v4303
        %v4394 = vadd.f32 %v4033, %v4306
        %v4395 = vadd.f32 %v4034, %v4311
        %v4396 = vadd.f32 %v4035, %v4314
        %v4397 = vadd.f32 %v4036, %v4319
        %v4398 = vadd.f32 %v4037, %v4322
        %v4399 = vadd.f32 %v4038, %v4327
        %v4400 = vadd.f32 %v4039, %v4330
        %v4401 = vadd.f32 %v4040, %v4335
        %v4402 = vadd.f32 %v4041, %v4338
        %v4403 = vadd.f32 %v4042, %v4343
        %v4404 = vadd.f32 %v4043, %v4346
        %v4405 = vadd.f32 %v4044, %v4351
        %v4406 = vadd.f32 %v4045, %v4354
        %v4407 = vadd.f32 %v4046, %v4359
        %v4408 = vadd.f32 %v4047, %v4362
        %v4409 = vadd.f32 %v4048, %v4367
        %v4410 = vadd.f32 %v4049, %v4370
        %v4411 = vadd.f32 %v4050, %v4375
        %v4412 = vadd.f32 %v4051, %v4378
        %v4413 = vld [vmem:[%s1523 + $0x10] sm:$0xf]
        %v4414 = vld [vmem:[%s1523 + $0x14] sm:$0xf]
        %v4415 = vld [vmem:[%s1523 + $0x18] sm:$0xf]
        %v4416 = vld [vmem:[%s1523 + $0x1c] sm:$0xf]
        %v4417 = vld [vmem:[%s1523 + $0x20] sm:$0xf]
        %v4418 = vld [vmem:[%s1523 + $0x24] sm:$0xf]
        %v4419 = vld [vmem:[%s1523 + $0x28] sm:$0xf]
        %v4420 = vld [vmem:[%s1523 + $0x2c] sm:$0xf]
        %v4421 = vld [vmem:[%s1523 + $0x30] sm:$0xf]
        %v4422 = vld [vmem:[%s1523 + $0x34] sm:$0xf]
        %v4423 = vld [vmem:[%s1523 + $0x38] sm:$0xf]
        %v4424 = vld [vmem:[%s1523 + $0x3c] sm:$0xf]
        %v4425 = vld [vmem:[%s1523 + $0x40] sm:$0xf]
        %v4426 = vld [vmem:[%s1523 + $0x44] sm:$0xf]
        %v4427 = vld [vmem:[%s1523 + $0x48] sm:$0xf]
        %v4428 = vld [vmem:[%s1523 + $0x4c] sm:$0xf]
        %v4429 = vld [vmem:[%s1523 + $0x50] sm:$0xf]
        %v4430 = vld [vmem:[%s1523 + $0x54] sm:$0xf]
        %v4431 = vld [vmem:[%s1523 + $0x58] sm:$0xf]
        %v4432 = vld [vmem:[%s1523 + $0x5c] sm:$0xf]
        %v4433 = vld [vmem:[%s1523 + $0x60] sm:$0xf]
        %v4434 = vld [vmem:[%s1523 + $0x64] sm:$0xf]
        %v4435 = vld [vmem:[%s1523 + $0x68] sm:$0xf]
        %v4436 = vld [vmem:[%s1523 + $0x6c] sm:$0xf]
        %v4437 = vld [vmem:[%s1523 + $0x70] sm:$0xf]
        %v4438 = vld [vmem:[%s1523 + $0x74] sm:$0xf]
        %v4439 = vld [vmem:[%s1523 + $0x78] sm:$0xf]
        %v4440 = vld [vmem:[%s1523 + $0x7c] sm:$0xf]
        %v4441 = vld [vmem:[%s1523 + $0x80] sm:$0xf]
        %v4442 = vld [vmem:[%s1523 + $0x84] sm:$0xf]
        %v4443 = vld [vmem:[%s1523 + $0x88] sm:$0xf]
        %v4444 = vld [vmem:[%s1523 + $0x8c] sm:$0xf]
        %v4445 = vld [vmem:[%s858 + $0x50] sm:$0xf]
        %v4446 = vld [vmem:[%s858 + $0x54] sm:$0xf]
        %v4479 = vunpack.c.l.b16 %v4413
        %v4480 = vunpack.c.l.b16 %v4414
        %v4481 = vunpack.c.l.b16 %v4415
        %v4482 = vunpack.c.l.b16 %v4416
        %v4483 = vunpack.c.l.b16 %v4417
        %v4484 = vunpack.c.l.b16 %v4418
        %v4485 = vunpack.c.l.b16 %v4419
        %v4486 = vunpack.c.l.b16 %v4420
        %v4487 = vunpack.c.l.b16 %v4421
        %v4488 = vunpack.c.l.b16 %v4422
        %v4489 = vunpack.c.l.b16 %v4423
        %v4490 = vunpack.c.l.b16 %v4424
        %v4491 = vunpack.c.l.b16 %v4425
        %v4492 = vunpack.c.l.b16 %v4426
        %v4493 = vunpack.c.l.b16 %v4427
        %v4494 = vunpack.c.l.b16 %v4428
        %v4495 = vunpack.c.l.b16 %v4429
        %v4496 = vunpack.c.l.b16 %v4430
        %v4497 = vunpack.c.l.b16 %v4431
        %v4498 = vunpack.c.l.b16 %v4432
        %v4499 = vunpack.c.l.b16 %v4433
        %v4500 = vunpack.c.l.b16 %v4434
        %v4501 = vunpack.c.l.b16 %v4435
        %v4502 = vunpack.c.l.b16 %v4436
        %v4503 = vunpack.c.l.b16 %v4437
        %v4504 = vunpack.c.l.b16 %v4438
        %v4505 = vunpack.c.l.b16 %v4439
        %v4506 = vunpack.c.l.b16 %v4440
        %v4507 = vunpack.c.l.b16 %v4441
        %v4508 = vunpack.c.l.b16 %v4442
        %v4509 = vunpack.c.l.b16 %v4443
        %v4510 = vunpack.c.l.b16 %v4444
        %v4511 = vpack.c.b16 %v4480, %v4479
        %v4512 = vpack.c.b16 %v4482, %v4481
        %v4513 = vpack.c.b16 %v4484, %v4483
        %v4514 = vpack.c.b16 %v4486, %v4485
        %v4515 = vpack.c.b16 %v4488, %v4487
        %v4516 = vpack.c.b16 %v4490, %v4489
        %v4517 = vpack.c.b16 %v4492, %v4491
        %v4518 = vpack.c.b16 %v4494, %v4493
        %v4519 = vpack.c.b16 %v4496, %v4495
        %v4520 = vpack.c.b16 %v4498, %v4497
        %v4521 = vpack.c.b16 %v4500, %v4499
        %v4522 = vpack.c.b16 %v4502, %v4501
        %v4523 = vpack.c.b16 %v4504, %v4503
        %v4524 = vpack.c.b16 %v4506, %v4505
        %v4525 = vpack.c.b16 %v4508, %v4507
        %v4526 = vpack.c.b16 %v4510, %v4509
        %v4529 = vunpack.c.l.b16 %v4445
        %v4530 = vunpack.c.l.b16 %v4446
        %v4531 = vpack.c.b16 %v4530, %v4529
        %v4534 = vsel %vm1018, %v4511, 0
        %v4537 = vsel %vm1018, %v4512, 0
        %v4540 = vsel %vm1018, %v4513, 0
        %v4543 = vsel %vm1018, %v4514, 0
        %v4546 = vsel %vm1018, %v4515, 0
        %v4549 = vsel %vm1018, %v4516, 0
        %v4552 = vsel %vm1018, %v4517, 0
        %v4555 = vsel %vm1018, %v4518, 0
        %v4558 = vsel %vm1018, %v4519, 0
        %v4561 = vsel %vm1018, %v4520, 0
        %v4564 = vsel %vm1018, %v4521, 0
        %v4567 = vsel %vm1018, %v4522, 0
        %v4570 = vsel %vm1018, %v4523, 0
        %v4573 = vsel %vm1018, %v4524, 0
        %v4576 = vsel %vm1018, %v4525, 0
        %v4579 = vsel %vm1018, %v4526, 0
        %4581 = vmatprep.subr.bf16.mxu0 0
        %4582 = vmatpush1.bf16.msra.mxu0 0
        %4583 = vmatprep.subr.bf16.mxu0 0
        %4584 = vmatpush1.bf16.msra.mxu0 0
        %4585 = vmatprep.subr.bf16.mxu0 0
        %4586 = vmatpush1.bf16.msra.mxu0 0
        %4587 = vmatprep.subr.bf16.mxu0 0
        %4588 = vmatpush1.bf16.msra.mxu0 0
        %4589 = vmatprep.subr.bf16.mxu0 0
        %4590 = vmatpush1.bf16.msra.mxu0 0
        %4591 = vmatprep.subr.bf16.mxu0 0
        %4592 = vmatpush1.bf16.msra.mxu0 0
        %4593 = vmatprep.subr.bf16.mxu0 0
        %4594 = vmatpush1.bf16.msra.mxu0 0
        %4595 = vmatprep.subr.bf16.mxu0 0
        %4596 = vmatpush1.bf16.msra.mxu0 %v4531
        %4597 = vmatprep.subr.bf16.mxu0 0
        %4598 = vmatpush2.bf16.msra.mxu0 0
        %4599 = vmatprep.subr.bf16.mxu0 0
        %4600 = vmatpush2.bf16.msra.mxu0 0
        %4601 = vmatprep.subr.bf16.mxu0 0
        %4602 = vmatpush2.bf16.msra.mxu0 0
        %4603 = vmatprep.subr.bf16.mxu0 0
        %4604 = vmatpush2.bf16.msra.mxu0 0
        %4605 = vmatprep.subr.bf16.mxu0 0
        %4606 = vmatpush2.bf16.msra.mxu0 0
        %4607 = vmatprep.subr.bf16.mxu0 0
        %4608 = vmatpush2.bf16.msra.mxu0 0
        %4609 = vmatprep.subr.bf16.mxu0 0
        %4610 = vmatpush2.bf16.msra.mxu0 0
        %4611 = vmatprep.subr.bf16.mxu0 0
        %4612 = vmatpush2.bf16.msra.mxu0 0
        %4613 = vmatprep.mubr.bf16.mxu0 0
        %4614 = vmatmul.mubr.bf16.gmra.mxu0 %v4534
        %v4615 = vpop.f32.mrf.mxu0
        %v4616 = vadd.f32 0.0, %v4615
        %v4617 = vpop.f32.mrf.mxu0
        %v4618 = vpop.f32.mrf.mxu0
        %v4619 = vadd.f32 0.0, %v4618
        %v4620 = vpop.f32.mrf.mxu0
        %4621 = vmatprep.mubr.bf16.mxu0 0
        %4622 = vmatmul.mubr.bf16.gmra.mxu0 %v4537
        %v4623 = vpop.f32.mrf.mxu0
        %v4624 = vadd.f32 0.0, %v4623
        %v4625 = vpop.f32.mrf.mxu0
        %v4626 = vpop.f32.mrf.mxu0
        %v4627 = vadd.f32 0.0, %v4626
        %v4628 = vpop.f32.mrf.mxu0
        %4629 = vmatprep.mubr.bf16.mxu0 0
        %4630 = vmatmul.mubr.bf16.gmra.mxu0 %v4540
        %v4631 = vpop.f32.mrf.mxu0
        %v4632 = vadd.f32 0.0, %v4631
        %v4633 = vpop.f32.mrf.mxu0
        %v4634 = vpop.f32.mrf.mxu0
        %v4635 = vadd.f32 0.0, %v4634
        %v4636 = vpop.f32.mrf.mxu0
        %4637 = vmatprep.mubr.bf16.mxu0 0
        %4638 = vmatmul.mubr.bf16.gmra.mxu0 %v4543
        %v4639 = vpop.f32.mrf.mxu0
        %v4640 = vadd.f32 0.0, %v4639
        %v4641 = vpop.f32.mrf.mxu0
        %v4642 = vpop.f32.mrf.mxu0
        %v4643 = vadd.f32 0.0, %v4642
        %v4644 = vpop.f32.mrf.mxu0
        %4645 = vmatprep.mubr.bf16.mxu0 0
        %4646 = vmatmul.mubr.bf16.gmra.mxu0 %v4546
        %v4647 = vpop.f32.mrf.mxu0
        %v4648 = vadd.f32 0.0, %v4647
        %v4649 = vpop.f32.mrf.mxu0
        %v4650 = vpop.f32.mrf.mxu0
        %v4651 = vadd.f32 0.0, %v4650
        %v4652 = vpop.f32.mrf.mxu0
        %4653 = vmatprep.mubr.bf16.mxu0 0
        %4654 = vmatmul.mubr.bf16.gmra.mxu0 %v4549
        %v4655 = vpop.f32.mrf.mxu0
        %v4656 = vadd.f32 0.0, %v4655
        %v4657 = vpop.f32.mrf.mxu0
        %v4658 = vpop.f32.mrf.mxu0
        %v4659 = vadd.f32 0.0, %v4658
        %v4660 = vpop.f32.mrf.mxu0
        %4661 = vmatprep.mubr.bf16.mxu0 0
        %4662 = vmatmul.mubr.bf16.gmra.mxu0 %v4552
        %v4663 = vpop.f32.mrf.mxu0
        %v4664 = vadd.f32 0.0, %v4663
        %v4665 = vpop.f32.mrf.mxu0
        %v4666 = vpop.f32.mrf.mxu0
        %v4667 = vadd.f32 0.0, %v4666
        %v4668 = vpop.f32.mrf.mxu0
        %4669 = vmatprep.mubr.bf16.mxu0 0
        %4670 = vmatmul.mubr.bf16.gmra.mxu0 %v4555
        %v4671 = vpop.f32.mrf.mxu0
        %v4672 = vadd.f32 0.0, %v4671
        %v4673 = vpop.f32.mrf.mxu0
        %v4674 = vpop.f32.mrf.mxu0
        %v4675 = vadd.f32 0.0, %v4674
        %v4676 = vpop.f32.mrf.mxu0
        %4677 = vmatprep.mubr.bf16.mxu0 0
        %4678 = vmatmul.mubr.bf16.gmra.mxu0 %v4558
        %v4679 = vpop.f32.mrf.mxu0
        %v4680 = vadd.f32 0.0, %v4679
        %v4681 = vpop.f32.mrf.mxu0
        %v4682 = vpop.f32.mrf.mxu0
        %v4683 = vadd.f32 0.0, %v4682
        %v4684 = vpop.f32.mrf.mxu0
        %4685 = vmatprep.mubr.bf16.mxu0 0
        %4686 = vmatmul.mubr.bf16.gmra.mxu0 %v4561
        %v4687 = vpop.f32.mrf.mxu0
        %v4688 = vadd.f32 0.0, %v4687
        %v4689 = vpop.f32.mrf.mxu0
        %v4690 = vpop.f32.mrf.mxu0
        %v4691 = vadd.f32 0.0, %v4690
        %v4692 = vpop.f32.mrf.mxu0
        %4693 = vmatprep.mubr.bf16.mxu0 0
        %4694 = vmatmul.mubr.bf16.gmra.mxu0 %v4564
        %v4695 = vpop.f32.mrf.mxu0
        %v4696 = vadd.f32 0.0, %v4695
        %v4697 = vpop.f32.mrf.mxu0
        %v4698 = vpop.f32.mrf.mxu0
        %v4699 = vadd.f32 0.0, %v4698
        %v4700 = vpop.f32.mrf.mxu0
        %4701 = vmatprep.mubr.bf16.mxu0 0
        %4702 = vmatmul.mubr.bf16.gmra.mxu0 %v4567
        %v4703 = vpop.f32.mrf.mxu0
        %v4704 = vadd.f32 0.0, %v4703
        %v4705 = vpop.f32.mrf.mxu0
        %v4706 = vpop.f32.mrf.mxu0
        %v4707 = vadd.f32 0.0, %v4706
        %v4708 = vpop.f32.mrf.mxu0
        %4709 = vmatprep.mubr.bf16.mxu0 0
        %4710 = vmatmul.mubr.bf16.gmra.mxu0 %v4570
        %v4711 = vpop.f32.mrf.mxu0
        %v4712 = vadd.f32 0.0, %v4711
        %v4713 = vpop.f32.mrf.mxu0
        %v4714 = vpop.f32.mrf.mxu0
        %v4715 = vadd.f32 0.0, %v4714
        %v4716 = vpop.f32.mrf.mxu0
        %4717 = vmatprep.mubr.bf16.mxu0 0
        %4718 = vmatmul.mubr.bf16.gmra.mxu0 %v4573
        %v4719 = vpop.f32.mrf.mxu0
        %v4720 = vadd.f32 0.0, %v4719
        %v4721 = vpop.f32.mrf.mxu0
        %v4722 = vpop.f32.mrf.mxu0
        %v4723 = vadd.f32 0.0, %v4722
        %v4724 = vpop.f32.mrf.mxu0
        %4725 = vmatprep.mubr.bf16.mxu0 0
        %4726 = vmatmul.mubr.bf16.gmra.mxu0 %v4576
        %v4727 = vpop.f32.mrf.mxu0
        %v4728 = vadd.f32 0.0, %v4727
        %v4729 = vpop.f32.mrf.mxu0
        %v4730 = vpop.f32.mrf.mxu0
        %v4731 = vadd.f32 0.0, %v4730
        %v4732 = vpop.f32.mrf.mxu0
        %4733 = vmatprep.mubr.bf16.mxu0 0
        %4734 = vmatmul.mubr.bf16.gmra.mxu0 %v4579
        %v4735 = vpop.f32.mrf.mxu0
        %v4736 = vadd.f32 0.0, %v4735
        %v4737 = vpop.f32.mrf.mxu0
        %v4738 = vpop.f32.mrf.mxu0
        %v4739 = vadd.f32 0.0, %v4738
        %v4740 = vpop.f32.mrf.mxu0
        %4741 = vdwg.mxu0
        %v4742 = vadd.f32 %v4381, %v4616
        %v4743 = vadd.f32 %v4382, %v4619
        %v4744 = vadd.f32 %v4383, %v4624
        %v4745 = vadd.f32 %v4384, %v4627
        %v4746 = vadd.f32 %v4385, %v4632
        %v4747 = vadd.f32 %v4386, %v4635
        %v4748 = vadd.f32 %v4387, %v4640
        %v4749 = vadd.f32 %v4388, %v4643
        %v4750 = vadd.f32 %v4389, %v4648
        %v4751 = vadd.f32 %v4390, %v4651
        %v4752 = vadd.f32 %v4391, %v4656
        %v4753 = vadd.f32 %v4392, %v4659
        %v4754 = vadd.f32 %v4393, %v4664
        %v4755 = vadd.f32 %v4394, %v4667
        %v4756 = vadd.f32 %v4395, %v4672
        %v4757 = vadd.f32 %v4396, %v4675
        %v4758 = vadd.f32 %v4397, %v4680
        %v4759 = vadd.f32 %v4398, %v4683
        %v4760 = vadd.f32 %v4399, %v4688
        %v4761 = vadd.f32 %v4400, %v4691
        %v4762 = vadd.f32 %v4401, %v4696
        %v4763 = vadd.f32 %v4402, %v4699
        %v4764 = vadd.f32 %v4403, %v4704
        %v4765 = vadd.f32 %v4404, %v4707
        %v4766 = vadd.f32 %v4405, %v4712
        %v4767 = vadd.f32 %v4406, %v4715
        %v4768 = vadd.f32 %v4407, %v4720
        %v4769 = vadd.f32 %v4408, %v4723
        %v4770 = vadd.f32 %v4409, %v4728
        %v4771 = vadd.f32 %v4410, %v4731
        %v4772 = vadd.f32 %v4411, %v4736
        %v4773 = vadd.f32 %v4412, %v4739
        %v4774 = vld [vmem:[%s1885 + $0x10] sm:$0xf]
        %v4775 = vld [vmem:[%s1885 + $0x14] sm:$0xf]
        %v4776 = vld [vmem:[%s1885 + $0x18] sm:$0xf]
        %v4777 = vld [vmem:[%s1885 + $0x1c] sm:$0xf]
        %v4778 = vld [vmem:[%s1885 + $0x20] sm:$0xf]
        %v4779 = vld [vmem:[%s1885 + $0x24] sm:$0xf]
        %v4780 = vld [vmem:[%s1885 + $0x28] sm:$0xf]
        %v4781 = vld [vmem:[%s1885 + $0x2c] sm:$0xf]
        %v4782 = vld [vmem:[%s1885 + $0x30] sm:$0xf]
        %v4783 = vld [vmem:[%s1885 + $0x34] sm:$0xf]
        %v4784 = vld [vmem:[%s1885 + $0x38] sm:$0xf]
        %v4785 = vld [vmem:[%s1885 + $0x3c] sm:$0xf]
        %v4786 = vld [vmem:[%s1885 + $0x40] sm:$0xf]
        %v4787 = vld [vmem:[%s1885 + $0x44] sm:$0xf]
        %v4788 = vld [vmem:[%s1885 + $0x48] sm:$0xf]
        %v4789 = vld [vmem:[%s1885 + $0x4c] sm:$0xf]
        %v4790 = vld [vmem:[%s1885 + $0x50] sm:$0xf]
        %v4791 = vld [vmem:[%s1885 + $0x54] sm:$0xf]
        %v4792 = vld [vmem:[%s1885 + $0x58] sm:$0xf]
        %v4793 = vld [vmem:[%s1885 + $0x5c] sm:$0xf]
        %v4794 = vld [vmem:[%s1885 + $0x60] sm:$0xf]
        %v4795 = vld [vmem:[%s1885 + $0x64] sm:$0xf]
        %v4796 = vld [vmem:[%s1885 + $0x68] sm:$0xf]
        %v4797 = vld [vmem:[%s1885 + $0x6c] sm:$0xf]
        %v4798 = vld [vmem:[%s1885 + $0x70] sm:$0xf]
        %v4799 = vld [vmem:[%s1885 + $0x74] sm:$0xf]
        %v4800 = vld [vmem:[%s1885 + $0x78] sm:$0xf]
        %v4801 = vld [vmem:[%s1885 + $0x7c] sm:$0xf]
        %v4802 = vld [vmem:[%s1885 + $0x80] sm:$0xf]
        %v4803 = vld [vmem:[%s1885 + $0x84] sm:$0xf]
        %v4804 = vld [vmem:[%s1885 + $0x88] sm:$0xf]
        %v4805 = vld [vmem:[%s1885 + $0x8c] sm:$0xf]
        %v4806 = vld [vmem:[%s858 + $0x58] sm:$0xf]
        %v4807 = vld [vmem:[%s858 + $0x5c] sm:$0xf]
        %v4840 = vunpack.c.l.b16 %v4774
        %v4841 = vunpack.c.l.b16 %v4775
        %v4842 = vunpack.c.l.b16 %v4776
        %v4843 = vunpack.c.l.b16 %v4777
        %v4844 = vunpack.c.l.b16 %v4778
        %v4845 = vunpack.c.l.b16 %v4779
        %v4846 = vunpack.c.l.b16 %v4780
        %v4847 = vunpack.c.l.b16 %v4781
        %v4848 = vunpack.c.l.b16 %v4782
        %v4849 = vunpack.c.l.b16 %v4783
        %v4850 = vunpack.c.l.b16 %v4784
        %v4851 = vunpack.c.l.b16 %v4785
        %v4852 = vunpack.c.l.b16 %v4786
        %v4853 = vunpack.c.l.b16 %v4787
        %v4854 = vunpack.c.l.b16 %v4788
        %v4855 = vunpack.c.l.b16 %v4789
        %v4856 = vunpack.c.l.b16 %v4790
        %v4857 = vunpack.c.l.b16 %v4791
        %v4858 = vunpack.c.l.b16 %v4792
        %v4859 = vunpack.c.l.b16 %v4793
        %v4860 = vunpack.c.l.b16 %v4794
        %v4861 = vunpack.c.l.b16 %v4795
        %v4862 = vunpack.c.l.b16 %v4796
        %v4863 = vunpack.c.l.b16 %v4797
        %v4864 = vunpack.c.l.b16 %v4798
        %v4865 = vunpack.c.l.b16 %v4799
        %v4866 = vunpack.c.l.b16 %v4800
        %v4867 = vunpack.c.l.b16 %v4801
        %v4868 = vunpack.c.l.b16 %v4802
        %v4869 = vunpack.c.l.b16 %v4803
        %v4870 = vunpack.c.l.b16 %v4804
        %v4871 = vunpack.c.l.b16 %v4805
        %v4872 = vpack.c.b16 %v4841, %v4840
        %v4873 = vpack.c.b16 %v4843, %v4842
        %v4874 = vpack.c.b16 %v4845, %v4844
        %v4875 = vpack.c.b16 %v4847, %v4846
        %v4876 = vpack.c.b16 %v4849, %v4848
        %v4877 = vpack.c.b16 %v4851, %v4850
        %v4878 = vpack.c.b16 %v4853, %v4852
        %v4879 = vpack.c.b16 %v4855, %v4854
        %v4880 = vpack.c.b16 %v4857, %v4856
        %v4881 = vpack.c.b16 %v4859, %v4858
        %v4882 = vpack.c.b16 %v4861, %v4860
        %v4883 = vpack.c.b16 %v4863, %v4862
        %v4884 = vpack.c.b16 %v4865, %v4864
        %v4885 = vpack.c.b16 %v4867, %v4866
        %v4886 = vpack.c.b16 %v4869, %v4868
        %v4887 = vpack.c.b16 %v4871, %v4870
        %v4890 = vunpack.c.l.b16 %v4806
        %v4891 = vunpack.c.l.b16 %v4807
        %v4892 = vpack.c.b16 %v4891, %v4890
        %v4895 = vsel %vm1018, %v4872, 0
        %v4898 = vsel %vm1018, %v4873, 0
        %v4901 = vsel %vm1018, %v4874, 0
        %v4904 = vsel %vm1018, %v4875, 0
        %v4907 = vsel %vm1018, %v4876, 0
        %v4910 = vsel %vm1018, %v4877, 0
        %v4913 = vsel %vm1018, %v4878, 0
        %v4916 = vsel %vm1018, %v4879, 0
        %v4919 = vsel %vm1018, %v4880, 0
        %v4922 = vsel %vm1018, %v4881, 0
        %v4925 = vsel %vm1018, %v4882, 0
        %v4928 = vsel %vm1018, %v4883, 0
        %v4931 = vsel %vm1018, %v4884, 0
        %v4934 = vsel %vm1018, %v4885, 0
        %v4937 = vsel %vm1018, %v4886, 0
        %v4940 = vsel %vm1018, %v4887, 0
        %4942 = vmatprep.subr.bf16.mxu0 0
        %4943 = vmatpush1.bf16.msra.mxu0 0
        %4944 = vmatprep.subr.bf16.mxu0 0
        %4945 = vmatpush1.bf16.msra.mxu0 0
        %4946 = vmatprep.subr.bf16.mxu0 0
        %4947 = vmatpush1.bf16.msra.mxu0 0
        %4948 = vmatprep.subr.bf16.mxu0 0
        %4949 = vmatpush1.bf16.msra.mxu0 0
        %4950 = vmatprep.subr.bf16.mxu0 0
        %4951 = vmatpush1.bf16.msra.mxu0 0
        %4952 = vmatprep.subr.bf16.mxu0 0
        %4953 = vmatpush1.bf16.msra.mxu0 0
        %4954 = vmatprep.subr.bf16.mxu0 0
        %4955 = vmatpush1.bf16.msra.mxu0 0
        %4956 = vmatprep.subr.bf16.mxu0 0
        %4957 = vmatpush1.bf16.msra.mxu0 %v4892
        %4958 = vmatprep.subr.bf16.mxu0 0
        %4959 = vmatpush2.bf16.msra.mxu0 0
        %4960 = vmatprep.subr.bf16.mxu0 0
        %4961 = vmatpush2.bf16.msra.mxu0 0
        %4962 = vmatprep.subr.bf16.mxu0 0
        %4963 = vmatpush2.bf16.msra.mxu0 0
        %4964 = vmatprep.subr.bf16.mxu0 0
        %4965 = vmatpush2.bf16.msra.mxu0 0
        %4966 = vmatprep.subr.bf16.mxu0 0
        %4967 = vmatpush2.bf16.msra.mxu0 0
        %4968 = vmatprep.subr.bf16.mxu0 0
        %4969 = vmatpush2.bf16.msra.mxu0 0
        %4970 = vmatprep.subr.bf16.mxu0 0
        %4971 = vmatpush2.bf16.msra.mxu0 0
        %4972 = vmatprep.subr.bf16.mxu0 0
        %4973 = vmatpush2.bf16.msra.mxu0 0
        %4974 = vmatprep.mubr.bf16.mxu0 0
        %4975 = vmatmul.mubr.bf16.gmra.mxu0 %v4895
        %v4976 = vpop.f32.mrf.mxu0
        %v4977 = vadd.f32 0.0, %v4976
        %v4978 = vpop.f32.mrf.mxu0
        %v4979 = vpop.f32.mrf.mxu0
        %v4980 = vadd.f32 0.0, %v4979
        %v4981 = vpop.f32.mrf.mxu0
        %4982 = vmatprep.mubr.bf16.mxu0 0
        %4983 = vmatmul.mubr.bf16.gmra.mxu0 %v4898
        %v4984 = vpop.f32.mrf.mxu0
        %v4985 = vadd.f32 0.0, %v4984
        %v4986 = vpop.f32.mrf.mxu0
        %v4987 = vpop.f32.mrf.mxu0
        %v4988 = vadd.f32 0.0, %v4987
        %v4989 = vpop.f32.mrf.mxu0
        %4990 = vmatprep.mubr.bf16.mxu0 0
        %4991 = vmatmul.mubr.bf16.gmra.mxu0 %v4901
        %v4992 = vpop.f32.mrf.mxu0
        %v4993 = vadd.f32 0.0, %v4992
        %v4994 = vpop.f32.mrf.mxu0
        %v4995 = vpop.f32.mrf.mxu0
        %v4996 = vadd.f32 0.0, %v4995
        %v4997 = vpop.f32.mrf.mxu0
        %4998 = vmatprep.mubr.bf16.mxu0 0
        %4999 = vmatmul.mubr.bf16.gmra.mxu0 %v4904
        %v5000 = vpop.f32.mrf.mxu0
        %v5001 = vadd.f32 0.0, %v5000
        %v5002 = vpop.f32.mrf.mxu0
        %v5003 = vpop.f32.mrf.mxu0
        %v5004 = vadd.f32 0.0, %v5003
        %v5005 = vpop.f32.mrf.mxu0
        %5006 = vmatprep.mubr.bf16.mxu0 0
        %5007 = vmatmul.mubr.bf16.gmra.mxu0 %v4907
        %v5008 = vpop.f32.mrf.mxu0
        %v5009 = vadd.f32 0.0, %v5008
        %v5010 = vpop.f32.mrf.mxu0
        %v5011 = vpop.f32.mrf.mxu0
        %v5012 = vadd.f32 0.0, %v5011
        %v5013 = vpop.f32.mrf.mxu0
        %5014 = vmatprep.mubr.bf16.mxu0 0
        %5015 = vmatmul.mubr.bf16.gmra.mxu0 %v4910
        %v5016 = vpop.f32.mrf.mxu0
        %v5017 = vadd.f32 0.0, %v5016
        %v5018 = vpop.f32.mrf.mxu0
        %v5019 = vpop.f32.mrf.mxu0
        %v5020 = vadd.f32 0.0, %v5019
        %v5021 = vpop.f32.mrf.mxu0
        %5022 = vmatprep.mubr.bf16.mxu0 0
        %5023 = vmatmul.mubr.bf16.gmra.mxu0 %v4913
        %v5024 = vpop.f32.mrf.mxu0
        %v5025 = vadd.f32 0.0, %v5024
        %v5026 = vpop.f32.mrf.mxu0
        %v5027 = vpop.f32.mrf.mxu0
        %v5028 = vadd.f32 0.0, %v5027
        %v5029 = vpop.f32.mrf.mxu0
        %5030 = vmatprep.mubr.bf16.mxu0 0
        %5031 = vmatmul.mubr.bf16.gmra.mxu0 %v4916
        %v5032 = vpop.f32.mrf.mxu0
        %v5033 = vadd.f32 0.0, %v5032
        %v5034 = vpop.f32.mrf.mxu0
        %v5035 = vpop.f32.mrf.mxu0
        %v5036 = vadd.f32 0.0, %v5035
        %v5037 = vpop.f32.mrf.mxu0
        %5038 = vmatprep.mubr.bf16.mxu0 0
        %5039 = vmatmul.mubr.bf16.gmra.mxu0 %v4919
        %v5040 = vpop.f32.mrf.mxu0
        %v5041 = vadd.f32 0.0, %v5040
        %v5042 = vpop.f32.mrf.mxu0
        %v5043 = vpop.f32.mrf.mxu0
        %v5044 = vadd.f32 0.0, %v5043
        %v5045 = vpop.f32.mrf.mxu0
        %5046 = vmatprep.mubr.bf16.mxu0 0
        %5047 = vmatmul.mubr.bf16.gmra.mxu0 %v4922
        %v5048 = vpop.f32.mrf.mxu0
        %v5049 = vadd.f32 0.0, %v5048
        %v5050 = vpop.f32.mrf.mxu0
        %v5051 = vpop.f32.mrf.mxu0
        %v5052 = vadd.f32 0.0, %v5051
        %v5053 = vpop.f32.mrf.mxu0
        %5054 = vmatprep.mubr.bf16.mxu0 0
        %5055 = vmatmul.mubr.bf16.gmra.mxu0 %v4925
        %v5056 = vpop.f32.mrf.mxu0
        %v5057 = vadd.f32 0.0, %v5056
        %v5058 = vpop.f32.mrf.mxu0
        %v5059 = vpop.f32.mrf.mxu0
        %v5060 = vadd.f32 0.0, %v5059
        %v5061 = vpop.f32.mrf.mxu0
        %5062 = vmatprep.mubr.bf16.mxu0 0
        %5063 = vmatmul.mubr.bf16.gmra.mxu0 %v4928
        %v5064 = vpop.f32.mrf.mxu0
        %v5065 = vadd.f32 0.0, %v5064
        %v5066 = vpop.f32.mrf.mxu0
        %v5067 = vpop.f32.mrf.mxu0
        %v5068 = vadd.f32 0.0, %v5067
        %v5069 = vpop.f32.mrf.mxu0
        %5070 = vmatprep.mubr.bf16.mxu0 0
        %5071 = vmatmul.mubr.bf16.gmra.mxu0 %v4931
        %v5072 = vpop.f32.mrf.mxu0
        %v5073 = vadd.f32 0.0, %v5072
        %v5074 = vpop.f32.mrf.mxu0
        %v5075 = vpop.f32.mrf.mxu0
        %v5076 = vadd.f32 0.0, %v5075
        %v5077 = vpop.f32.mrf.mxu0
        %5078 = vmatprep.mubr.bf16.mxu0 0
        %5079 = vmatmul.mubr.bf16.gmra.mxu0 %v4934
        %v5080 = vpop.f32.mrf.mxu0
        %v5081 = vadd.f32 0.0, %v5080
        %v5082 = vpop.f32.mrf.mxu0
        %v5083 = vpop.f32.mrf.mxu0
        %v5084 = vadd.f32 0.0, %v5083
        %v5085 = vpop.f32.mrf.mxu0
        %5086 = vmatprep.mubr.bf16.mxu0 0
        %5087 = vmatmul.mubr.bf16.gmra.mxu0 %v4937
        %v5088 = vpop.f32.mrf.mxu0
        %v5089 = vadd.f32 0.0, %v5088
        %v5090 = vpop.f32.mrf.mxu0
        %v5091 = vpop.f32.mrf.mxu0
        %v5092 = vadd.f32 0.0, %v5091
        %v5093 = vpop.f32.mrf.mxu0
        %5094 = vmatprep.mubr.bf16.mxu0 0
        %5095 = vmatmul.mubr.bf16.gmra.mxu0 %v4940
        %v5096 = vpop.f32.mrf.mxu0
        %v5097 = vadd.f32 0.0, %v5096
        %v5098 = vpop.f32.mrf.mxu0
        %v5099 = vpop.f32.mrf.mxu0
        %v5100 = vadd.f32 0.0, %v5099
        %v5101 = vpop.f32.mrf.mxu0
        %5102 = vdwg.mxu0
        %v5103 = vadd.f32 %v4742, %v4977
        %v5104 = vadd.f32 %v4743, %v4980
        %v5105 = vadd.f32 %v4744, %v4985
        %v5106 = vadd.f32 %v4745, %v4988
        %v5107 = vadd.f32 %v4746, %v4993
        %v5108 = vadd.f32 %v4747, %v4996
        %v5109 = vadd.f32 %v4748, %v5001
        %v5110 = vadd.f32 %v4749, %v5004
        %v5111 = vadd.f32 %v4750, %v5009
        %v5112 = vadd.f32 %v4751, %v5012
        %v5113 = vadd.f32 %v4752, %v5017
        %v5114 = vadd.f32 %v4753, %v5020
        %v5115 = vadd.f32 %v4754, %v5025
        %v5116 = vadd.f32 %v4755, %v5028
        %v5117 = vadd.f32 %v4756, %v5033
        %v5118 = vadd.f32 %v4757, %v5036
        %v5119 = vadd.f32 %v4758, %v5041
        %v5120 = vadd.f32 %v4759, %v5044
        %v5121 = vadd.f32 %v4760, %v5049
        %v5122 = vadd.f32 %v4761, %v5052
        %v5123 = vadd.f32 %v4762, %v5057
        %v5124 = vadd.f32 %v4763, %v5060
        %v5125 = vadd.f32 %v4764, %v5065
        %v5126 = vadd.f32 %v4765, %v5068
        %v5127 = vadd.f32 %v4766, %v5073
        %v5128 = vadd.f32 %v4767, %v5076
        %v5129 = vadd.f32 %v4768, %v5081
        %v5130 = vadd.f32 %v4769, %v5084
        %v5131 = vadd.f32 %v4770, %v5089
        %v5132 = vadd.f32 %v4771, %v5092
        %v5133 = vadd.f32 %v4772, %v5097
        %v5134 = vadd.f32 %v4773, %v5100
        %v5135 = vld [vmem:[%s827 + $0x18] sm:$0xf]
        %v5136 = vld [vmem:[%s827 + $0x1c] sm:$0xf]
        %v5137 = vld [vmem:[%s827 + $0x20] sm:$0xf]
        %v5138 = vld [vmem:[%s827 + $0x24] sm:$0xf]
        %v5139 = vld [vmem:[%s827 + $0x28] sm:$0xf]
        %v5140 = vld [vmem:[%s827 + $0x2c] sm:$0xf]
        %v5141 = vld [vmem:[%s827 + $0x30] sm:$0xf]
        %v5142 = vld [vmem:[%s827 + $0x34] sm:$0xf]
        %v5143 = vld [vmem:[%s827 + $0x38] sm:$0xf]
        %v5144 = vld [vmem:[%s827 + $0x3c] sm:$0xf]
        %v5145 = vld [vmem:[%s827 + $0x40] sm:$0xf]
        %v5146 = vld [vmem:[%s827 + $0x44] sm:$0xf]
        %v5147 = vld [vmem:[%s827 + $0x48] sm:$0xf]
        %v5148 = vld [vmem:[%s827 + $0x4c] sm:$0xf]
        %v5149 = vld [vmem:[%s827 + $0x50] sm:$0xf]
        %v5150 = vld [vmem:[%s827 + $0x54] sm:$0xf]
        %v5151 = vld [vmem:[%s827 + $0x58] sm:$0xf]
        %v5152 = vld [vmem:[%s827 + $0x5c] sm:$0xf]
        %v5153 = vld [vmem:[%s827 + $0x60] sm:$0xf]
        %v5154 = vld [vmem:[%s827 + $0x64] sm:$0xf]
        %v5155 = vld [vmem:[%s827 + $0x68] sm:$0xf]
        %v5156 = vld [vmem:[%s827 + $0x6c] sm:$0xf]
        %v5157 = vld [vmem:[%s827 + $0x70] sm:$0xf]
        %v5158 = vld [vmem:[%s827 + $0x74] sm:$0xf]
        %v5159 = vld [vmem:[%s827 + $0x78] sm:$0xf]
        %v5160 = vld [vmem:[%s827 + $0x7c] sm:$0xf]
        %v5161 = vld [vmem:[%s827 + $0x80] sm:$0xf]
        %v5162 = vld [vmem:[%s827 + $0x84] sm:$0xf]
        %v5163 = vld [vmem:[%s827 + $0x88] sm:$0xf]
        %v5164 = vld [vmem:[%s827 + $0x8c] sm:$0xf]
        %v5165 = vld [vmem:[%s827 + $0x90] sm:$0xf]
        %v5166 = vld [vmem:[%s827 + $0x94] sm:$0xf]
        %v5167 = vld [vmem:[%s858 + $0x60] sm:$0xf]
        %v5168 = vld [vmem:[%s858 + $0x64] sm:$0xf]
        %v5201 = vunpack.c.l.b16 %v5135
        %v5202 = vunpack.c.l.b16 %v5136
        %v5203 = vunpack.c.l.b16 %v5137
        %v5204 = vunpack.c.l.b16 %v5138
        %v5205 = vunpack.c.l.b16 %v5139
        %v5206 = vunpack.c.l.b16 %v5140
        %v5207 = vunpack.c.l.b16 %v5141
        %v5208 = vunpack.c.l.b16 %v5142
        %v5209 = vunpack.c.l.b16 %v5143
        %v5210 = vunpack.c.l.b16 %v5144
        %v5211 = vunpack.c.l.b16 %v5145
        %v5212 = vunpack.c.l.b16 %v5146
        %v5213 = vunpack.c.l.b16 %v5147
        %v5214 = vunpack.c.l.b16 %v5148
        %v5215 = vunpack.c.l.b16 %v5149
        %v5216 = vunpack.c.l.b16 %v5150
        %v5217 = vunpack.c.l.b16 %v5151
        %v5218 = vunpack.c.l.b16 %v5152
        %v5219 = vunpack.c.l.b16 %v5153
        %v5220 = vunpack.c.l.b16 %v5154
        %v5221 = vunpack.c.l.b16 %v5155
        %v5222 = vunpack.c.l.b16 %v5156
        %v5223 = vunpack.c.l.b16 %v5157
        %v5224 = vunpack.c.l.b16 %v5158
        %v5225 = vunpack.c.l.b16 %v5159
        %v5226 = vunpack.c.l.b16 %v5160
        %v5227 = vunpack.c.l.b16 %v5161
        %v5228 = vunpack.c.l.b16 %v5162
        %v5229 = vunpack.c.l.b16 %v5163
        %v5230 = vunpack.c.l.b16 %v5164
        %v5231 = vunpack.c.l.b16 %v5165
        %v5232 = vunpack.c.l.b16 %v5166
        %v5233 = vpack.c.b16 %v5202, %v5201
        %v5234 = vpack.c.b16 %v5204, %v5203
        %v5235 = vpack.c.b16 %v5206, %v5205
        %v5236 = vpack.c.b16 %v5208, %v5207
        %v5237 = vpack.c.b16 %v5210, %v5209
        %v5238 = vpack.c.b16 %v5212, %v5211
        %v5239 = vpack.c.b16 %v5214, %v5213
        %v5240 = vpack.c.b16 %v5216, %v5215
        %v5241 = vpack.c.b16 %v5218, %v5217
        %v5242 = vpack.c.b16 %v5220, %v5219
        %v5243 = vpack.c.b16 %v5222, %v5221
        %v5244 = vpack.c.b16 %v5224, %v5223
        %v5245 = vpack.c.b16 %v5226, %v5225
        %v5246 = vpack.c.b16 %v5228, %v5227
        %v5247 = vpack.c.b16 %v5230, %v5229
        %v5248 = vpack.c.b16 %v5232, %v5231
        %v5251 = vunpack.c.l.b16 %v5167
        %v5252 = vunpack.c.l.b16 %v5168
        %v5253 = vpack.c.b16 %v5252, %v5251
        %v5256 = vsel %vm1018, %v5233, 0
        %v5259 = vsel %vm1018, %v5234, 0
        %v5262 = vsel %vm1018, %v5235, 0
        %v5265 = vsel %vm1018, %v5236, 0
        %v5268 = vsel %vm1018, %v5237, 0
        %v5271 = vsel %vm1018, %v5238, 0
        %v5274 = vsel %vm1018, %v5239, 0
        %v5277 = vsel %vm1018, %v5240, 0
        %v5280 = vsel %vm1018, %v5241, 0
        %v5283 = vsel %vm1018, %v5242, 0
        %v5286 = vsel %vm1018, %v5243, 0
        %v5289 = vsel %vm1018, %v5244, 0
        %v5292 = vsel %vm1018, %v5245, 0
        %v5295 = vsel %vm1018, %v5246, 0
        %v5298 = vsel %vm1018, %v5247, 0
        %v5301 = vsel %vm1018, %v5248, 0
        %5303 = vmatprep.subr.bf16.mxu0 0
        %5304 = vmatpush1.bf16.msra.mxu0 0
        %5305 = vmatprep.subr.bf16.mxu0 0
        %5306 = vmatpush1.bf16.msra.mxu0 0
        %5307 = vmatprep.subr.bf16.mxu0 0
        %5308 = vmatpush1.bf16.msra.mxu0 0
        %5309 = vmatprep.subr.bf16.mxu0 0
        %5310 = vmatpush1.bf16.msra.mxu0 0
        %5311 = vmatprep.subr.bf16.mxu0 0
        %5312 = vmatpush1.bf16.msra.mxu0 0
        %5313 = vmatprep.subr.bf16.mxu0 0
        %5314 = vmatpush1.bf16.msra.mxu0 0
        %5315 = vmatprep.subr.bf16.mxu0 0
        %5316 = vmatpush1.bf16.msra.mxu0 0
        %5317 = vmatprep.subr.bf16.mxu0 0
        %5318 = vmatpush1.bf16.msra.mxu0 %v5253
        %5319 = vmatprep.subr.bf16.mxu0 0
        %5320 = vmatpush2.bf16.msra.mxu0 0
        %5321 = vmatprep.subr.bf16.mxu0 0
        %5322 = vmatpush2.bf16.msra.mxu0 0
        %5323 = vmatprep.subr.bf16.mxu0 0
        %5324 = vmatpush2.bf16.msra.mxu0 0
        %5325 = vmatprep.subr.bf16.mxu0 0
        %5326 = vmatpush2.bf16.msra.mxu0 0
        %5327 = vmatprep.subr.bf16.mxu0 0
        %5328 = vmatpush2.bf16.msra.mxu0 0
        %5329 = vmatprep.subr.bf16.mxu0 0
        %5330 = vmatpush2.bf16.msra.mxu0 0
        %5331 = vmatprep.subr.bf16.mxu0 0
        %5332 = vmatpush2.bf16.msra.mxu0 0
        %5333 = vmatprep.subr.bf16.mxu0 0
        %5334 = vmatpush2.bf16.msra.mxu0 0
        %5335 = vmatprep.mubr.bf16.mxu0 0
        %5336 = vmatmul.mubr.bf16.gmra.mxu0 %v5256
        %v5337 = vpop.f32.mrf.mxu0
        %v5338 = vadd.f32 0.0, %v5337
        %v5339 = vpop.f32.mrf.mxu0
        %v5340 = vpop.f32.mrf.mxu0
        %v5341 = vadd.f32 0.0, %v5340
        %v5342 = vpop.f32.mrf.mxu0
        %5343 = vmatprep.mubr.bf16.mxu0 0
        %5344 = vmatmul.mubr.bf16.gmra.mxu0 %v5259
        %v5345 = vpop.f32.mrf.mxu0
        %v5346 = vadd.f32 0.0, %v5345
        %v5347 = vpop.f32.mrf.mxu0
        %v5348 = vpop.f32.mrf.mxu0
        %v5349 = vadd.f32 0.0, %v5348
        %v5350 = vpop.f32.mrf.mxu0
        %5351 = vmatprep.mubr.bf16.mxu0 0
        %5352 = vmatmul.mubr.bf16.gmra.mxu0 %v5262
        %v5353 = vpop.f32.mrf.mxu0
        %v5354 = vadd.f32 0.0, %v5353
        %v5355 = vpop.f32.mrf.mxu0
        %v5356 = vpop.f32.mrf.mxu0
        %v5357 = vadd.f32 0.0, %v5356
        %v5358 = vpop.f32.mrf.mxu0
        %5359 = vmatprep.mubr.bf16.mxu0 0
        %5360 = vmatmul.mubr.bf16.gmra.mxu0 %v5265
        %v5361 = vpop.f32.mrf.mxu0
        %v5362 = vadd.f32 0.0, %v5361
        %v5363 = vpop.f32.mrf.mxu0
        %v5364 = vpop.f32.mrf.mxu0
        %v5365 = vadd.f32 0.0, %v5364
        %v5366 = vpop.f32.mrf.mxu0
        %5367 = vmatprep.mubr.bf16.mxu0 0
        %5368 = vmatmul.mubr.bf16.gmra.mxu0 %v5268
        %v5369 = vpop.f32.mrf.mxu0
        %v5370 = vadd.f32 0.0, %v5369
        %v5371 = vpop.f32.mrf.mxu0
        %v5372 = vpop.f32.mrf.mxu0
        %v5373 = vadd.f32 0.0, %v5372
        %v5374 = vpop.f32.mrf.mxu0
        %5375 = vmatprep.mubr.bf16.mxu0 0
        %5376 = vmatmul.mubr.bf16.gmra.mxu0 %v5271
        %v5377 = vpop.f32.mrf.mxu0
        %v5378 = vadd.f32 0.0, %v5377
        %v5379 = vpop.f32.mrf.mxu0
        %v5380 = vpop.f32.mrf.mxu0
        %v5381 = vadd.f32 0.0, %v5380
        %v5382 = vpop.f32.mrf.mxu0
        %5383 = vmatprep.mubr.bf16.mxu0 0
        %5384 = vmatmul.mubr.bf16.gmra.mxu0 %v5274
        %v5385 = vpop.f32.mrf.mxu0
        %v5386 = vadd.f32 0.0, %v5385
        %v5387 = vpop.f32.mrf.mxu0
        %v5388 = vpop.f32.mrf.mxu0
        %v5389 = vadd.f32 0.0, %v5388
        %v5390 = vpop.f32.mrf.mxu0
        %5391 = vmatprep.mubr.bf16.mxu0 0
        %5392 = vmatmul.mubr.bf16.gmra.mxu0 %v5277
        %v5393 = vpop.f32.mrf.mxu0
        %v5394 = vadd.f32 0.0, %v5393
        %v5395 = vpop.f32.mrf.mxu0
        %v5396 = vpop.f32.mrf.mxu0
        %v5397 = vadd.f32 0.0, %v5396
        %v5398 = vpop.f32.mrf.mxu0
        %5399 = vmatprep.mubr.bf16.mxu0 0
        %5400 = vmatmul.mubr.bf16.gmra.mxu0 %v5280
        %v5401 = vpop.f32.mrf.mxu0
        %v5402 = vadd.f32 0.0, %v5401
        %v5403 = vpop.f32.mrf.mxu0
        %v5404 = vpop.f32.mrf.mxu0
        %v5405 = vadd.f32 0.0, %v5404
        %v5406 = vpop.f32.mrf.mxu0
        %5407 = vmatprep.mubr.bf16.mxu0 0
        %5408 = vmatmul.mubr.bf16.gmra.mxu0 %v5283
        %v5409 = vpop.f32.mrf.mxu0
        %v5410 = vadd.f32 0.0, %v5409
        %v5411 = vpop.f32.mrf.mxu0
        %v5412 = vpop.f32.mrf.mxu0
        %v5413 = vadd.f32 0.0, %v5412
        %v5414 = vpop.f32.mrf.mxu0
        %5415 = vmatprep.mubr.bf16.mxu0 0
        %5416 = vmatmul.mubr.bf16.gmra.mxu0 %v5286
        %v5417 = vpop.f32.mrf.mxu0
        %v5418 = vadd.f32 0.0, %v5417
        %v5419 = vpop.f32.mrf.mxu0
        %v5420 = vpop.f32.mrf.mxu0
        %v5421 = vadd.f32 0.0, %v5420
        %v5422 = vpop.f32.mrf.mxu0
        %5423 = vmatprep.mubr.bf16.mxu0 0
        %5424 = vmatmul.mubr.bf16.gmra.mxu0 %v5289
        %v5425 = vpop.f32.mrf.mxu0
        %v5426 = vadd.f32 0.0, %v5425
        %v5427 = vpop.f32.mrf.mxu0
        %v5428 = vpop.f32.mrf.mxu0
        %v5429 = vadd.f32 0.0, %v5428
        %v5430 = vpop.f32.mrf.mxu0
        %5431 = vmatprep.mubr.bf16.mxu0 0
        %5432 = vmatmul.mubr.bf16.gmra.mxu0 %v5292
        %v5433 = vpop.f32.mrf.mxu0
        %v5434 = vadd.f32 0.0, %v5433
        %v5435 = vpop.f32.mrf.mxu0
        %v5436 = vpop.f32.mrf.mxu0
        %v5437 = vadd.f32 0.0, %v5436
        %v5438 = vpop.f32.mrf.mxu0
        %5439 = vmatprep.mubr.bf16.mxu0 0
        %5440 = vmatmul.mubr.bf16.gmra.mxu0 %v5295
        %v5441 = vpop.f32.mrf.mxu0
        %v5442 = vadd.f32 0.0, %v5441
        %v5443 = vpop.f32.mrf.mxu0
        %v5444 = vpop.f32.mrf.mxu0
        %v5445 = vadd.f32 0.0, %v5444
        %v5446 = vpop.f32.mrf.mxu0
        %5447 = vmatprep.mubr.bf16.mxu0 0
        %5448 = vmatmul.mubr.bf16.gmra.mxu0 %v5298
        %v5449 = vpop.f32.mrf.mxu0
        %v5450 = vadd.f32 0.0, %v5449
        %v5451 = vpop.f32.mrf.mxu0
        %v5452 = vpop.f32.mrf.mxu0
        %v5453 = vadd.f32 0.0, %v5452
        %v5454 = vpop.f32.mrf.mxu0
        %5455 = vmatprep.mubr.bf16.mxu0 0
        %5456 = vmatmul.mubr.bf16.gmra.mxu0 %v5301
        %v5457 = vpop.f32.mrf.mxu0
        %v5458 = vadd.f32 0.0, %v5457
        %v5459 = vpop.f32.mrf.mxu0
        %v5460 = vpop.f32.mrf.mxu0
        %v5461 = vadd.f32 0.0, %v5460
        %v5462 = vpop.f32.mrf.mxu0
        %5463 = vdwg.mxu0
        %v5464 = vadd.f32 %v5103, %v5338
        %v5465 = vadd.f32 %v5104, %v5341
        %v5466 = vadd.f32 %v5105, %v5346
        %v5467 = vadd.f32 %v5106, %v5349
        %v5468 = vadd.f32 %v5107, %v5354
        %v5469 = vadd.f32 %v5108, %v5357
        %v5470 = vadd.f32 %v5109, %v5362
        %v5471 = vadd.f32 %v5110, %v5365
        %v5472 = vadd.f32 %v5111, %v5370
        %v5473 = vadd.f32 %v5112, %v5373
        %v5474 = vadd.f32 %v5113, %v5378
        %v5475 = vadd.f32 %v5114, %v5381
        %v5476 = vadd.f32 %v5115, %v5386
        %v5477 = vadd.f32 %v5116, %v5389
        %v5478 = vadd.f32 %v5117, %v5394
        %v5479 = vadd.f32 %v5118, %v5397
        %v5480 = vadd.f32 %v5119, %v5402
        %v5481 = vadd.f32 %v5120, %v5405
        %v5482 = vadd.f32 %v5121, %v5410
        %v5483 = vadd.f32 %v5122, %v5413
        %v5484 = vadd.f32 %v5123, %v5418
        %v5485 = vadd.f32 %v5124, %v5421
        %v5486 = vadd.f32 %v5125, %v5426
        %v5487 = vadd.f32 %v5126, %v5429
        %v5488 = vadd.f32 %v5127, %v5434
        %v5489 = vadd.f32 %v5128, %v5437
        %v5490 = vadd.f32 %v5129, %v5442
        %v5491 = vadd.f32 %v5130, %v5445
        %v5492 = vadd.f32 %v5131, %v5450
        %v5493 = vadd.f32 %v5132, %v5453
        %v5494 = vadd.f32 %v5133, %v5458
        %v5495 = vadd.f32 %v5134, %v5461
        %v5496 = vld [vmem:[%s897 + $0x18] sm:$0xf]
        %v5497 = vld [vmem:[%s897 + $0x1c] sm:$0xf]
        %v5498 = vld [vmem:[%s897 + $0x20] sm:$0xf]
        %v5499 = vld [vmem:[%s897 + $0x24] sm:$0xf]
        %v5500 = vld [vmem:[%s897 + $0x28] sm:$0xf]
        %v5501 = vld [vmem:[%s897 + $0x2c] sm:$0xf]
        %v5502 = vld [vmem:[%s897 + $0x30] sm:$0xf]
        %v5503 = vld [vmem:[%s897 + $0x34] sm:$0xf]
        %v5504 = vld [vmem:[%s897 + $0x38] sm:$0xf]
        %v5505 = vld [vmem:[%s897 + $0x3c] sm:$0xf]
        %v5506 = vld [vmem:[%s897 + $0x40] sm:$0xf]
        %v5507 = vld [vmem:[%s897 + $0x44] sm:$0xf]
        %v5508 = vld [vmem:[%s897 + $0x48] sm:$0xf]
        %v5509 = vld [vmem:[%s897 + $0x4c] sm:$0xf]
        %v5510 = vld [vmem:[%s897 + $0x50] sm:$0xf]
        %v5511 = vld [vmem:[%s897 + $0x54] sm:$0xf]
        %v5512 = vld [vmem:[%s897 + $0x58] sm:$0xf]
        %v5513 = vld [vmem:[%s897 + $0x5c] sm:$0xf]
        %v5514 = vld [vmem:[%s897 + $0x60] sm:$0xf]
        %v5515 = vld [vmem:[%s897 + $0x64] sm:$0xf]
        %v5516 = vld [vmem:[%s897 + $0x68] sm:$0xf]
        %v5517 = vld [vmem:[%s897 + $0x6c] sm:$0xf]
        %v5518 = vld [vmem:[%s897 + $0x70] sm:$0xf]
        %v5519 = vld [vmem:[%s897 + $0x74] sm:$0xf]
        %v5520 = vld [vmem:[%s897 + $0x78] sm:$0xf]
        %v5521 = vld [vmem:[%s897 + $0x7c] sm:$0xf]
        %v5522 = vld [vmem:[%s897 + $0x80] sm:$0xf]
        %v5523 = vld [vmem:[%s897 + $0x84] sm:$0xf]
        %v5524 = vld [vmem:[%s897 + $0x88] sm:$0xf]
        %v5525 = vld [vmem:[%s897 + $0x8c] sm:$0xf]
        %v5526 = vld [vmem:[%s897 + $0x90] sm:$0xf]
        %v5527 = vld [vmem:[%s897 + $0x94] sm:$0xf]
        %v5528 = vld [vmem:[%s858 + $0x68] sm:$0xf]
        %v5529 = vld [vmem:[%s858 + $0x6c] sm:$0xf]
        %v5562 = vunpack.c.l.b16 %v5496
        %v5563 = vunpack.c.l.b16 %v5497
        %v5564 = vunpack.c.l.b16 %v5498
        %v5565 = vunpack.c.l.b16 %v5499
        %v5566 = vunpack.c.l.b16 %v5500
        %v5567 = vunpack.c.l.b16 %v5501
        %v5568 = vunpack.c.l.b16 %v5502
        %v5569 = vunpack.c.l.b16 %v5503
        %v5570 = vunpack.c.l.b16 %v5504
        %v5571 = vunpack.c.l.b16 %v5505
        %v5572 = vunpack.c.l.b16 %v5506
        %v5573 = vunpack.c.l.b16 %v5507
        %v5574 = vunpack.c.l.b16 %v5508
        %v5575 = vunpack.c.l.b16 %v5509
        %v5576 = vunpack.c.l.b16 %v5510
        %v5577 = vunpack.c.l.b16 %v5511
        %v5578 = vunpack.c.l.b16 %v5512
        %v5579 = vunpack.c.l.b16 %v5513
        %v5580 = vunpack.c.l.b16 %v5514
        %v5581 = vunpack.c.l.b16 %v5515
        %v5582 = vunpack.c.l.b16 %v5516
        %v5583 = vunpack.c.l.b16 %v5517
        %v5584 = vunpack.c.l.b16 %v5518
        %v5585 = vunpack.c.l.b16 %v5519
        %v5586 = vunpack.c.l.b16 %v5520
        %v5587 = vunpack.c.l.b16 %v5521
        %v5588 = vunpack.c.l.b16 %v5522
        %v5589 = vunpack.c.l.b16 %v5523
        %v5590 = vunpack.c.l.b16 %v5524
        %v5591 = vunpack.c.l.b16 %v5525
        %v5592 = vunpack.c.l.b16 %v5526
        %v5593 = vunpack.c.l.b16 %v5527
        %v5594 = vpack.c.b16 %v5563, %v5562
        %v5595 = vpack.c.b16 %v5565, %v5564
        %v5596 = vpack.c.b16 %v5567, %v5566
        %v5597 = vpack.c.b16 %v5569, %v5568
        %v5598 = vpack.c.b16 %v5571, %v5570
        %v5599 = vpack.c.b16 %v5573, %v5572
        %v5600 = vpack.c.b16 %v5575, %v5574
        %v5601 = vpack.c.b16 %v5577, %v5576
        %v5602 = vpack.c.b16 %v5579, %v5578
        %v5603 = vpack.c.b16 %v5581, %v5580
        %v5604 = vpack.c.b16 %v5583, %v5582
        %v5605 = vpack.c.b16 %v5585, %v5584
        %v5606 = vpack.c.b16 %v5587, %v5586
        %v5607 = vpack.c.b16 %v5589, %v5588
        %v5608 = vpack.c.b16 %v5591, %v5590
        %v5609 = vpack.c.b16 %v5593, %v5592
        %v5612 = vunpack.c.l.b16 %v5528
        %v5613 = vunpack.c.l.b16 %v5529
        %v5614 = vpack.c.b16 %v5613, %v5612
        %v5617 = vsel %vm1018, %v5594, 0
        %v5620 = vsel %vm1018, %v5595, 0
        %v5623 = vsel %vm1018, %v5596, 0
        %v5626 = vsel %vm1018, %v5597, 0
        %v5629 = vsel %vm1018, %v5598, 0
        %v5632 = vsel %vm1018, %v5599, 0
        %v5635 = vsel %vm1018, %v5600, 0
        %v5638 = vsel %vm1018, %v5601, 0
        %v5641 = vsel %vm1018, %v5602, 0
        %v5644 = vsel %vm1018, %v5603, 0
        %v5647 = vsel %vm1018, %v5604, 0
        %v5650 = vsel %vm1018, %v5605, 0
        %v5653 = vsel %vm1018, %v5606, 0
        %v5656 = vsel %vm1018, %v5607, 0
        %v5659 = vsel %vm1018, %v5608, 0
        %v5662 = vsel %vm1018, %v5609, 0
        %5664 = vmatprep.subr.bf16.mxu0 0
        %5665 = vmatpush1.bf16.msra.mxu0 0
        %5666 = vmatprep.subr.bf16.mxu0 0
        %5667 = vmatpush1.bf16.msra.mxu0 0
        %5668 = vmatprep.subr.bf16.mxu0 0
        %5669 = vmatpush1.bf16.msra.mxu0 0
        %5670 = vmatprep.subr.bf16.mxu0 0
        %5671 = vmatpush1.bf16.msra.mxu0 0
        %5672 = vmatprep.subr.bf16.mxu0 0
        %5673 = vmatpush1.bf16.msra.mxu0 0
        %5674 = vmatprep.subr.bf16.mxu0 0
        %5675 = vmatpush1.bf16.msra.mxu0 0
        %5676 = vmatprep.subr.bf16.mxu0 0
        %5677 = vmatpush1.bf16.msra.mxu0 0
        %5678 = vmatprep.subr.bf16.mxu0 0
        %5679 = vmatpush1.bf16.msra.mxu0 %v5614
        %5680 = vmatprep.subr.bf16.mxu0 0
        %5681 = vmatpush2.bf16.msra.mxu0 0
        %5682 = vmatprep.subr.bf16.mxu0 0
        %5683 = vmatpush2.bf16.msra.mxu0 0
        %5684 = vmatprep.subr.bf16.mxu0 0
        %5685 = vmatpush2.bf16.msra.mxu0 0
        %5686 = vmatprep.subr.bf16.mxu0 0
        %5687 = vmatpush2.bf16.msra.mxu0 0
        %5688 = vmatprep.subr.bf16.mxu0 0
        %5689 = vmatpush2.bf16.msra.mxu0 0
        %5690 = vmatprep.subr.bf16.mxu0 0
        %5691 = vmatpush2.bf16.msra.mxu0 0
        %5692 = vmatprep.subr.bf16.mxu0 0
        %5693 = vmatpush2.bf16.msra.mxu0 0
        %5694 = vmatprep.subr.bf16.mxu0 0
        %5695 = vmatpush2.bf16.msra.mxu0 0
        %5696 = vmatprep.mubr.bf16.mxu0 0
        %5697 = vmatmul.mubr.bf16.gmra.mxu0 %v5617
        %v5698 = vpop.f32.mrf.mxu0
        %v5699 = vadd.f32 0.0, %v5698
        %v5700 = vpop.f32.mrf.mxu0
        %v5701 = vpop.f32.mrf.mxu0
        %v5702 = vadd.f32 0.0, %v5701
        %v5703 = vpop.f32.mrf.mxu0
        %5704 = vmatprep.mubr.bf16.mxu0 0
        %5705 = vmatmul.mubr.bf16.gmra.mxu0 %v5620
        %v5706 = vpop.f32.mrf.mxu0
        %v5707 = vadd.f32 0.0, %v5706
        %v5708 = vpop.f32.mrf.mxu0
        %v5709 = vpop.f32.mrf.mxu0
        %v5710 = vadd.f32 0.0, %v5709
        %v5711 = vpop.f32.mrf.mxu0
        %5712 = vmatprep.mubr.bf16.mxu0 0
        %5713 = vmatmul.mubr.bf16.gmra.mxu0 %v5623
        %v5714 = vpop.f32.mrf.mxu0
        %v5715 = vadd.f32 0.0, %v5714
        %v5716 = vpop.f32.mrf.mxu0
        %v5717 = vpop.f32.mrf.mxu0
        %v5718 = vadd.f32 0.0, %v5717
        %v5719 = vpop.f32.mrf.mxu0
        %5720 = vmatprep.mubr.bf16.mxu0 0
        %5721 = vmatmul.mubr.bf16.gmra.mxu0 %v5626
        %v5722 = vpop.f32.mrf.mxu0
        %v5723 = vadd.f32 0.0, %v5722
        %v5724 = vpop.f32.mrf.mxu0
        %v5725 = vpop.f32.mrf.mxu0
        %v5726 = vadd.f32 0.0, %v5725
        %v5727 = vpop.f32.mrf.mxu0
        %5728 = vmatprep.mubr.bf16.mxu0 0
        %5729 = vmatmul.mubr.bf16.gmra.mxu0 %v5629
        %v5730 = vpop.f32.mrf.mxu0
        %v5731 = vadd.f32 0.0, %v5730
        %v5732 = vpop.f32.mrf.mxu0
        %v5733 = vpop.f32.mrf.mxu0
        %v5734 = vadd.f32 0.0, %v5733
        %v5735 = vpop.f32.mrf.mxu0
        %5736 = vmatprep.mubr.bf16.mxu0 0
        %5737 = vmatmul.mubr.bf16.gmra.mxu0 %v5632
        %v5738 = vpop.f32.mrf.mxu0
        %v5739 = vadd.f32 0.0, %v5738
        %v5740 = vpop.f32.mrf.mxu0
        %v5741 = vpop.f32.mrf.mxu0
        %v5742 = vadd.f32 0.0, %v5741
        %v5743 = vpop.f32.mrf.mxu0
        %5744 = vmatprep.mubr.bf16.mxu0 0
        %5745 = vmatmul.mubr.bf16.gmra.mxu0 %v5635
        %v5746 = vpop.f32.mrf.mxu0
        %v5747 = vadd.f32 0.0, %v5746
        %v5748 = vpop.f32.mrf.mxu0
        %v5749 = vpop.f32.mrf.mxu0
        %v5750 = vadd.f32 0.0, %v5749
        %v5751 = vpop.f32.mrf.mxu0
        %5752 = vmatprep.mubr.bf16.mxu0 0
        %5753 = vmatmul.mubr.bf16.gmra.mxu0 %v5638
        %v5754 = vpop.f32.mrf.mxu0
        %v5755 = vadd.f32 0.0, %v5754
        %v5756 = vpop.f32.mrf.mxu0
        %v5757 = vpop.f32.mrf.mxu0
        %v5758 = vadd.f32 0.0, %v5757
        %v5759 = vpop.f32.mrf.mxu0
        %5760 = vmatprep.mubr.bf16.mxu0 0
        %5761 = vmatmul.mubr.bf16.gmra.mxu0 %v5641
        %v5762 = vpop.f32.mrf.mxu0
        %v5763 = vadd.f32 0.0, %v5762
        %v5764 = vpop.f32.mrf.mxu0
        %v5765 = vpop.f32.mrf.mxu0
        %v5766 = vadd.f32 0.0, %v5765
        %v5767 = vpop.f32.mrf.mxu0
        %5768 = vmatprep.mubr.bf16.mxu0 0
        %5769 = vmatmul.mubr.bf16.gmra.mxu0 %v5644
        %v5770 = vpop.f32.mrf.mxu0
        %v5771 = vadd.f32 0.0, %v5770
        %v5772 = vpop.f32.mrf.mxu0
        %v5773 = vpop.f32.mrf.mxu0
        %v5774 = vadd.f32 0.0, %v5773
        %v5775 = vpop.f32.mrf.mxu0
        %5776 = vmatprep.mubr.bf16.mxu0 0
        %5777 = vmatmul.mubr.bf16.gmra.mxu0 %v5647
        %v5778 = vpop.f32.mrf.mxu0
        %v5779 = vadd.f32 0.0, %v5778
        %v5780 = vpop.f32.mrf.mxu0
        %v5781 = vpop.f32.mrf.mxu0
        %v5782 = vadd.f32 0.0, %v5781
        %v5783 = vpop.f32.mrf.mxu0
        %5784 = vmatprep.mubr.bf16.mxu0 0
        %5785 = vmatmul.mubr.bf16.gmra.mxu0 %v5650
        %v5786 = vpop.f32.mrf.mxu0
        %v5787 = vadd.f32 0.0, %v5786
        %v5788 = vpop.f32.mrf.mxu0
        %v5789 = vpop.f32.mrf.mxu0
        %v5790 = vadd.f32 0.0, %v5789
        %v5791 = vpop.f32.mrf.mxu0
        %5792 = vmatprep.mubr.bf16.mxu0 0
        %5793 = vmatmul.mubr.bf16.gmra.mxu0 %v5653
        %v5794 = vpop.f32.mrf.mxu0
        %v5795 = vadd.f32 0.0, %v5794
        %v5796 = vpop.f32.mrf.mxu0
        %v5797 = vpop.f32.mrf.mxu0
        %v5798 = vadd.f32 0.0, %v5797
        %v5799 = vpop.f32.mrf.mxu0
        %5800 = vmatprep.mubr.bf16.mxu0 0
        %5801 = vmatmul.mubr.bf16.gmra.mxu0 %v5656
        %v5802 = vpop.f32.mrf.mxu0
        %v5803 = vadd.f32 0.0, %v5802
        %v5804 = vpop.f32.mrf.mxu0
        %v5805 = vpop.f32.mrf.mxu0
        %v5806 = vadd.f32 0.0, %v5805
        %v5807 = vpop.f32.mrf.mxu0
        %5808 = vmatprep.mubr.bf16.mxu0 0
        %5809 = vmatmul.mubr.bf16.gmra.mxu0 %v5659
        %v5810 = vpop.f32.mrf.mxu0
        %v5811 = vadd.f32 0.0, %v5810
        %v5812 = vpop.f32.mrf.mxu0
        %v5813 = vpop.f32.mrf.mxu0
        %v5814 = vadd.f32 0.0, %v5813
        %v5815 = vpop.f32.mrf.mxu0
        %5816 = vmatprep.mubr.bf16.mxu0 0
        %5817 = vmatmul.mubr.bf16.gmra.mxu0 %v5662
        %v5818 = vpop.f32.mrf.mxu0
        %v5819 = vadd.f32 0.0, %v5818
        %v5820 = vpop.f32.mrf.mxu0
        %v5821 = vpop.f32.mrf.mxu0
        %v5822 = vadd.f32 0.0, %v5821
        %v5823 = vpop.f32.mrf.mxu0
        %5824 = vdwg.mxu0
        %v5825 = vadd.f32 %v5464, %v5699
        %v5826 = vadd.f32 %v5465, %v5702
        %v5827 = vadd.f32 %v5466, %v5707
        %v5828 = vadd.f32 %v5467, %v5710
        %v5829 = vadd.f32 %v5468, %v5715
        %v5830 = vadd.f32 %v5469, %v5718
        %v5831 = vadd.f32 %v5470, %v5723
        %v5832 = vadd.f32 %v5471, %v5726
        %v5833 = vadd.f32 %v5472, %v5731
        %v5834 = vadd.f32 %v5473, %v5734
        %v5835 = vadd.f32 %v5474, %v5739
        %v5836 = vadd.f32 %v5475, %v5742
        %v5837 = vadd.f32 %v5476, %v5747
        %v5838 = vadd.f32 %v5477, %v5750
        %v5839 = vadd.f32 %v5478, %v5755
        %v5840 = vadd.f32 %v5479, %v5758
        %v5841 = vadd.f32 %v5480, %v5763
        %v5842 = vadd.f32 %v5481, %v5766
        %v5843 = vadd.f32 %v5482, %v5771
        %v5844 = vadd.f32 %v5483, %v5774
        %v5845 = vadd.f32 %v5484, %v5779
        %v5846 = vadd.f32 %v5485, %v5782
        %v5847 = vadd.f32 %v5486, %v5787
        %v5848 = vadd.f32 %v5487, %v5790
        %v5849 = vadd.f32 %v5488, %v5795
        %v5850 = vadd.f32 %v5489, %v5798
        %v5851 = vadd.f32 %v5490, %v5803
        %v5852 = vadd.f32 %v5491, %v5806
        %v5853 = vadd.f32 %v5492, %v5811
        %v5854 = vadd.f32 %v5493, %v5814
        %v5855 = vadd.f32 %v5494, %v5819
        %v5856 = vadd.f32 %v5495, %v5822
        %v5857 = vld [vmem:[%s1523 + $0x18] sm:$0xf]
        %v5858 = vld [vmem:[%s1523 + $0x1c] sm:$0xf]
        %v5859 = vld [vmem:[%s1523 + $0x20] sm:$0xf]
        %v5860 = vld [vmem:[%s1523 + $0x24] sm:$0xf]
        %v5861 = vld [vmem:[%s1523 + $0x28] sm:$0xf]
        %v5862 = vld [vmem:[%s1523 + $0x2c] sm:$0xf]
        %v5863 = vld [vmem:[%s1523 + $0x30] sm:$0xf]
        %v5864 = vld [vmem:[%s1523 + $0x34] sm:$0xf]
        %v5865 = vld [vmem:[%s1523 + $0x38] sm:$0xf]
        %v5866 = vld [vmem:[%s1523 + $0x3c] sm:$0xf]
        %v5867 = vld [vmem:[%s1523 + $0x40] sm:$0xf]
        %v5868 = vld [vmem:[%s1523 + $0x44] sm:$0xf]
        %v5869 = vld [vmem:[%s1523 + $0x48] sm:$0xf]
        %v5870 = vld [vmem:[%s1523 + $0x4c] sm:$0xf]
        %v5871 = vld [vmem:[%s1523 + $0x50] sm:$0xf]
        %v5872 = vld [vmem:[%s1523 + $0x54] sm:$0xf]
        %v5873 = vld [vmem:[%s1523 + $0x58] sm:$0xf]
        %v5874 = vld [vmem:[%s1523 + $0x5c] sm:$0xf]
        %v5875 = vld [vmem:[%s1523 + $0x60] sm:$0xf]
        %v5876 = vld [vmem:[%s1523 + $0x64] sm:$0xf]
        %v5877 = vld [vmem:[%s1523 + $0x68] sm:$0xf]
        %v5878 = vld [vmem:[%s1523 + $0x6c] sm:$0xf]
        %v5879 = vld [vmem:[%s1523 + $0x70] sm:$0xf]
        %v5880 = vld [vmem:[%s1523 + $0x74] sm:$0xf]
        %v5881 = vld [vmem:[%s1523 + $0x78] sm:$0xf]
        %v5882 = vld [vmem:[%s1523 + $0x7c] sm:$0xf]
        %v5883 = vld [vmem:[%s1523 + $0x80] sm:$0xf]
        %v5884 = vld [vmem:[%s1523 + $0x84] sm:$0xf]
        %v5885 = vld [vmem:[%s1523 + $0x88] sm:$0xf]
        %v5886 = vld [vmem:[%s1523 + $0x8c] sm:$0xf]
        %v5887 = vld [vmem:[%s1523 + $0x90] sm:$0xf]
        %v5888 = vld [vmem:[%s1523 + $0x94] sm:$0xf]
        %v5889 = vld [vmem:[%s858 + $0x70] sm:$0xf]
        %v5890 = vld [vmem:[%s858 + $0x74] sm:$0xf]
        %v5923 = vunpack.c.l.b16 %v5857
        %v5924 = vunpack.c.l.b16 %v5858
        %v5925 = vunpack.c.l.b16 %v5859
        %v5926 = vunpack.c.l.b16 %v5860
        %v5927 = vunpack.c.l.b16 %v5861
        %v5928 = vunpack.c.l.b16 %v5862
        %v5929 = vunpack.c.l.b16 %v5863
        %v5930 = vunpack.c.l.b16 %v5864
        %v5931 = vunpack.c.l.b16 %v5865
        %v5932 = vunpack.c.l.b16 %v5866
        %v5933 = vunpack.c.l.b16 %v5867
        %v5934 = vunpack.c.l.b16 %v5868
        %v5935 = vunpack.c.l.b16 %v5869
        %v5936 = vunpack.c.l.b16 %v5870
        %v5937 = vunpack.c.l.b16 %v5871
        %v5938 = vunpack.c.l.b16 %v5872
        %v5939 = vunpack.c.l.b16 %v5873
        %v5940 = vunpack.c.l.b16 %v5874
        %v5941 = vunpack.c.l.b16 %v5875
        %v5942 = vunpack.c.l.b16 %v5876
        %v5943 = vunpack.c.l.b16 %v5877
        %v5944 = vunpack.c.l.b16 %v5878
        %v5945 = vunpack.c.l.b16 %v5879
        %v5946 = vunpack.c.l.b16 %v5880
        %v5947 = vunpack.c.l.b16 %v5881
        %v5948 = vunpack.c.l.b16 %v5882
        %v5949 = vunpack.c.l.b16 %v5883
        %v5950 = vunpack.c.l.b16 %v5884
        %v5951 = vunpack.c.l.b16 %v5885
        %v5952 = vunpack.c.l.b16 %v5886
        %v5953 = vunpack.c.l.b16 %v5887
        %v5954 = vunpack.c.l.b16 %v5888
        %v5955 = vpack.c.b16 %v5924, %v5923
        %v5956 = vpack.c.b16 %v5926, %v5925
        %v5957 = vpack.c.b16 %v5928, %v5927
        %v5958 = vpack.c.b16 %v5930, %v5929
        %v5959 = vpack.c.b16 %v5932, %v5931
        %v5960 = vpack.c.b16 %v5934, %v5933
        %v5961 = vpack.c.b16 %v5936, %v5935
        %v5962 = vpack.c.b16 %v5938, %v5937
        %v5963 = vpack.c.b16 %v5940, %v5939
        %v5964 = vpack.c.b16 %v5942, %v5941
        %v5965 = vpack.c.b16 %v5944, %v5943
        %v5966 = vpack.c.b16 %v5946, %v5945
        %v5967 = vpack.c.b16 %v5948, %v5947
        %v5968 = vpack.c.b16 %v5950, %v5949
        %v5969 = vpack.c.b16 %v5952, %v5951
        %v5970 = vpack.c.b16 %v5954, %v5953
        %v5973 = vunpack.c.l.b16 %v5889
        %v5974 = vunpack.c.l.b16 %v5890
        %v5975 = vpack.c.b16 %v5974, %v5973
        %v5978 = vsel %vm1018, %v5955, 0
        %v5981 = vsel %vm1018, %v5956, 0
        %v5984 = vsel %vm1018, %v5957, 0
        %v5987 = vsel %vm1018, %v5958, 0
        %v5990 = vsel %vm1018, %v5959, 0
        %v5993 = vsel %vm1018, %v5960, 0
        %v5996 = vsel %vm1018, %v5961, 0
        %v5999 = vsel %vm1018, %v5962, 0
        %v6002 = vsel %vm1018, %v5963, 0
        %v6005 = vsel %vm1018, %v5964, 0
        %v6008 = vsel %vm1018, %v5965, 0
        %v6011 = vsel %vm1018, %v5966, 0
        %v6014 = vsel %vm1018, %v5967, 0
        %v6017 = vsel %vm1018, %v5968, 0
        %v6020 = vsel %vm1018, %v5969, 0
        %v6023 = vsel %vm1018, %v5970, 0
        %6025 = vmatprep.subr.bf16.mxu0 0
        %6026 = vmatpush1.bf16.msra.mxu0 0
        %6027 = vmatprep.subr.bf16.mxu0 0
        %6028 = vmatpush1.bf16.msra.mxu0 0
        %6029 = vmatprep.subr.bf16.mxu0 0
        %6030 = vmatpush1.bf16.msra.mxu0 0
        %6031 = vmatprep.subr.bf16.mxu0 0
        %6032 = vmatpush1.bf16.msra.mxu0 0
        %6033 = vmatprep.subr.bf16.mxu0 0
        %6034 = vmatpush1.bf16.msra.mxu0 0
        %6035 = vmatprep.subr.bf16.mxu0 0
        %6036 = vmatpush1.bf16.msra.mxu0 0
        %6037 = vmatprep.subr.bf16.mxu0 0
        %6038 = vmatpush1.bf16.msra.mxu0 0
        %6039 = vmatprep.subr.bf16.mxu0 0
        %6040 = vmatpush1.bf16.msra.mxu0 %v5975
        %6041 = vmatprep.subr.bf16.mxu0 0
        %6042 = vmatpush2.bf16.msra.mxu0 0
        %6043 = vmatprep.subr.bf16.mxu0 0
        %6044 = vmatpush2.bf16.msra.mxu0 0
        %6045 = vmatprep.subr.bf16.mxu0 0
        %6046 = vmatpush2.bf16.msra.mxu0 0
        %6047 = vmatprep.subr.bf16.mxu0 0
        %6048 = vmatpush2.bf16.msra.mxu0 0
        %6049 = vmatprep.subr.bf16.mxu0 0
        %6050 = vmatpush2.bf16.msra.mxu0 0
        %6051 = vmatprep.subr.bf16.mxu0 0
        %6052 = vmatpush2.bf16.msra.mxu0 0
        %6053 = vmatprep.subr.bf16.mxu0 0
        %6054 = vmatpush2.bf16.msra.mxu0 0
        %6055 = vmatprep.subr.bf16.mxu0 0
        %6056 = vmatpush2.bf16.msra.mxu0 0
        %6057 = vmatprep.mubr.bf16.mxu0 0
        %6058 = vmatmul.mubr.bf16.gmra.mxu0 %v5978
        %v6059 = vpop.f32.mrf.mxu0
        %v6060 = vadd.f32 0.0, %v6059
        %v6061 = vpop.f32.mrf.mxu0
        %v6062 = vpop.f32.mrf.mxu0
        %v6063 = vadd.f32 0.0, %v6062
        %v6064 = vpop.f32.mrf.mxu0
        %6065 = vmatprep.mubr.bf16.mxu0 0
        %6066 = vmatmul.mubr.bf16.gmra.mxu0 %v5981
        %v6067 = vpop.f32.mrf.mxu0
        %v6068 = vadd.f32 0.0, %v6067
        %v6069 = vpop.f32.mrf.mxu0
        %v6070 = vpop.f32.mrf.mxu0
        %v6071 = vadd.f32 0.0, %v6070
        %v6072 = vpop.f32.mrf.mxu0
        %6073 = vmatprep.mubr.bf16.mxu0 0
        %6074 = vmatmul.mubr.bf16.gmra.mxu0 %v5984
        %v6075 = vpop.f32.mrf.mxu0
        %v6076 = vadd.f32 0.0, %v6075
        %v6077 = vpop.f32.mrf.mxu0
        %v6078 = vpop.f32.mrf.mxu0
        %v6079 = vadd.f32 0.0, %v6078
        %v6080 = vpop.f32.mrf.mxu0
        %6081 = vmatprep.mubr.bf16.mxu0 0
        %6082 = vmatmul.mubr.bf16.gmra.mxu0 %v5987
        %v6083 = vpop.f32.mrf.mxu0
        %v6084 = vadd.f32 0.0, %v6083
        %v6085 = vpop.f32.mrf.mxu0
        %v6086 = vpop.f32.mrf.mxu0
        %v6087 = vadd.f32 0.0, %v6086
        %v6088 = vpop.f32.mrf.mxu0
        %6089 = vmatprep.mubr.bf16.mxu0 0
        %6090 = vmatmul.mubr.bf16.gmra.mxu0 %v5990
        %v6091 = vpop.f32.mrf.mxu0
        %v6092 = vadd.f32 0.0, %v6091
        %v6093 = vpop.f32.mrf.mxu0
        %v6094 = vpop.f32.mrf.mxu0
        %v6095 = vadd.f32 0.0, %v6094
        %v6096 = vpop.f32.mrf.mxu0
        %6097 = vmatprep.mubr.bf16.mxu0 0
        %6098 = vmatmul.mubr.bf16.gmra.mxu0 %v5993
        %v6099 = vpop.f32.mrf.mxu0
        %v6100 = vadd.f32 0.0, %v6099
        %v6101 = vpop.f32.mrf.mxu0
        %v6102 = vpop.f32.mrf.mxu0
        %v6103 = vadd.f32 0.0, %v6102
        %v6104 = vpop.f32.mrf.mxu0
        %6105 = vmatprep.mubr.bf16.mxu0 0
        %6106 = vmatmul.mubr.bf16.gmra.mxu0 %v5996
        %v6107 = vpop.f32.mrf.mxu0
        %v6108 = vadd.f32 0.0, %v6107
        %v6109 = vpop.f32.mrf.mxu0
        %v6110 = vpop.f32.mrf.mxu0
        %v6111 = vadd.f32 0.0, %v6110
        %v6112 = vpop.f32.mrf.mxu0
        %6113 = vmatprep.mubr.bf16.mxu0 0
        %6114 = vmatmul.mubr.bf16.gmra.mxu0 %v5999
        %v6115 = vpop.f32.mrf.mxu0
        %v6116 = vadd.f32 0.0, %v6115
        %v6117 = vpop.f32.mrf.mxu0
        %v6118 = vpop.f32.mrf.mxu0
        %v6119 = vadd.f32 0.0, %v6118
        %v6120 = vpop.f32.mrf.mxu0
        %6121 = vmatprep.mubr.bf16.mxu0 0
        %6122 = vmatmul.mubr.bf16.gmra.mxu0 %v6002
        %v6123 = vpop.f32.mrf.mxu0
        %v6124 = vadd.f32 0.0, %v6123
        %v6125 = vpop.f32.mrf.mxu0
        %v6126 = vpop.f32.mrf.mxu0
        %v6127 = vadd.f32 0.0, %v6126
        %v6128 = vpop.f32.mrf.mxu0
        %6129 = vmatprep.mubr.bf16.mxu0 0
        %6130 = vmatmul.mubr.bf16.gmra.mxu0 %v6005
        %v6131 = vpop.f32.mrf.mxu0
        %v6132 = vadd.f32 0.0, %v6131
        %v6133 = vpop.f32.mrf.mxu0
        %v6134 = vpop.f32.mrf.mxu0
        %v6135 = vadd.f32 0.0, %v6134
        %v6136 = vpop.f32.mrf.mxu0
        %6137 = vmatprep.mubr.bf16.mxu0 0
        %6138 = vmatmul.mubr.bf16.gmra.mxu0 %v6008
        %v6139 = vpop.f32.mrf.mxu0
        %v6140 = vadd.f32 0.0, %v6139
        %v6141 = vpop.f32.mrf.mxu0
        %v6142 = vpop.f32.mrf.mxu0
        %v6143 = vadd.f32 0.0, %v6142
        %v6144 = vpop.f32.mrf.mxu0
        %6145 = vmatprep.mubr.bf16.mxu0 0
        %6146 = vmatmul.mubr.bf16.gmra.mxu0 %v6011
        %v6147 = vpop.f32.mrf.mxu0
        %v6148 = vadd.f32 0.0, %v6147
        %v6149 = vpop.f32.mrf.mxu0
        %v6150 = vpop.f32.mrf.mxu0
        %v6151 = vadd.f32 0.0, %v6150
        %v6152 = vpop.f32.mrf.mxu0
        %6153 = vmatprep.mubr.bf16.mxu0 0
        %6154 = vmatmul.mubr.bf16.gmra.mxu0 %v6014
        %v6155 = vpop.f32.mrf.mxu0
        %v6156 = vadd.f32 0.0, %v6155
        %v6157 = vpop.f32.mrf.mxu0
        %v6158 = vpop.f32.mrf.mxu0
        %v6159 = vadd.f32 0.0, %v6158
        %v6160 = vpop.f32.mrf.mxu0
        %6161 = vmatprep.mubr.bf16.mxu0 0
        %6162 = vmatmul.mubr.bf16.gmra.mxu0 %v6017
        %v6163 = vpop.f32.mrf.mxu0
        %v6164 = vadd.f32 0.0, %v6163
        %v6165 = vpop.f32.mrf.mxu0
        %v6166 = vpop.f32.mrf.mxu0
        %v6167 = vadd.f32 0.0, %v6166
        %v6168 = vpop.f32.mrf.mxu0
        %6169 = vmatprep.mubr.bf16.mxu0 0
        %6170 = vmatmul.mubr.bf16.gmra.mxu0 %v6020
        %v6171 = vpop.f32.mrf.mxu0
        %v6172 = vadd.f32 0.0, %v6171
        %v6173 = vpop.f32.mrf.mxu0
        %v6174 = vpop.f32.mrf.mxu0
        %v6175 = vadd.f32 0.0, %v6174
        %v6176 = vpop.f32.mrf.mxu0
        %6177 = vmatprep.mubr.bf16.mxu0 0
        %6178 = vmatmul.mubr.bf16.gmra.mxu0 %v6023
        %v6179 = vpop.f32.mrf.mxu0
        %v6180 = vadd.f32 0.0, %v6179
        %v6181 = vpop.f32.mrf.mxu0
        %v6182 = vpop.f32.mrf.mxu0
        %v6183 = vadd.f32 0.0, %v6182
        %v6184 = vpop.f32.mrf.mxu0
        %6185 = vdwg.mxu0
        %v6186 = vadd.f32 %v5825, %v6060
        %v6187 = vadd.f32 %v5826, %v6063
        %v6188 = vadd.f32 %v5827, %v6068
        %v6189 = vadd.f32 %v5828, %v6071
        %v6190 = vadd.f32 %v5829, %v6076
        %v6191 = vadd.f32 %v5830, %v6079
        %v6192 = vadd.f32 %v5831, %v6084
        %v6193 = vadd.f32 %v5832, %v6087
        %v6194 = vadd.f32 %v5833, %v6092
        %v6195 = vadd.f32 %v5834, %v6095
        %v6196 = vadd.f32 %v5835, %v6100
        %v6197 = vadd.f32 %v5836, %v6103
        %v6198 = vadd.f32 %v5837, %v6108
        %v6199 = vadd.f32 %v5838, %v6111
        %v6200 = vadd.f32 %v5839, %v6116
        %v6201 = vadd.f32 %v5840, %v6119
        %v6202 = vadd.f32 %v5841, %v6124
        %v6203 = vadd.f32 %v5842, %v6127
        %v6204 = vadd.f32 %v5843, %v6132
        %v6205 = vadd.f32 %v5844, %v6135
        %v6206 = vadd.f32 %v5845, %v6140
        %v6207 = vadd.f32 %v5846, %v6143
        %v6208 = vadd.f32 %v5847, %v6148
        %v6209 = vadd.f32 %v5848, %v6151
        %v6210 = vadd.f32 %v5849, %v6156
        %v6211 = vadd.f32 %v5850, %v6159
        %v6212 = vadd.f32 %v5851, %v6164
        %v6213 = vadd.f32 %v5852, %v6167
        %v6214 = vadd.f32 %v5853, %v6172
        %v6215 = vadd.f32 %v5854, %v6175
        %v6216 = vadd.f32 %v5855, %v6180
        %v6217 = vadd.f32 %v5856, %v6183
        %v6218 = vld [vmem:[%s1885 + $0x18] sm:$0xf]
        %v6219 = vld [vmem:[%s1885 + $0x1c] sm:$0xf]
        %v6220 = vld [vmem:[%s1885 + $0x20] sm:$0xf]
        %v6221 = vld [vmem:[%s1885 + $0x24] sm:$0xf]
        %v6222 = vld [vmem:[%s1885 + $0x28] sm:$0xf]
        %v6223 = vld [vmem:[%s1885 + $0x2c] sm:$0xf]
        %v6224 = vld [vmem:[%s1885 + $0x30] sm:$0xf]
        %v6225 = vld [vmem:[%s1885 + $0x34] sm:$0xf]
        %v6226 = vld [vmem:[%s1885 + $0x38] sm:$0xf]
        %v6227 = vld [vmem:[%s1885 + $0x3c] sm:$0xf]
        %v6228 = vld [vmem:[%s1885 + $0x40] sm:$0xf]
        %v6229 = vld [vmem:[%s1885 + $0x44] sm:$0xf]
        %v6230 = vld [vmem:[%s1885 + $0x48] sm:$0xf]
        %v6231 = vld [vmem:[%s1885 + $0x4c] sm:$0xf]
        %v6232 = vld [vmem:[%s1885 + $0x50] sm:$0xf]
        %v6233 = vld [vmem:[%s1885 + $0x54] sm:$0xf]
        %v6234 = vld [vmem:[%s1885 + $0x58] sm:$0xf]
        %v6235 = vld [vmem:[%s1885 + $0x5c] sm:$0xf]
        %v6236 = vld [vmem:[%s1885 + $0x60] sm:$0xf]
        %v6237 = vld [vmem:[%s1885 + $0x64] sm:$0xf]
        %v6238 = vld [vmem:[%s1885 + $0x68] sm:$0xf]
        %v6239 = vld [vmem:[%s1885 + $0x6c] sm:$0xf]
        %v6240 = vld [vmem:[%s1885 + $0x70] sm:$0xf]
        %v6241 = vld [vmem:[%s1885 + $0x74] sm:$0xf]
        %v6242 = vld [vmem:[%s1885 + $0x78] sm:$0xf]
        %v6243 = vld [vmem:[%s1885 + $0x7c] sm:$0xf]
        %v6244 = vld [vmem:[%s1885 + $0x80] sm:$0xf]
        %v6245 = vld [vmem:[%s1885 + $0x84] sm:$0xf]
        %v6246 = vld [vmem:[%s1885 + $0x88] sm:$0xf]
        %v6247 = vld [vmem:[%s1885 + $0x8c] sm:$0xf]
        %v6248 = vld [vmem:[%s1885 + $0x90] sm:$0xf]
        %v6249 = vld [vmem:[%s1885 + $0x94] sm:$0xf]
        %v6250 = vld [vmem:[%s858 + $0x78] sm:$0xf]
        %v6251 = vld [vmem:[%s858 + $0x7c] sm:$0xf]
        %v6284 = vunpack.c.l.b16 %v6218
        %v6285 = vunpack.c.l.b16 %v6219
        %v6286 = vunpack.c.l.b16 %v6220
        %v6287 = vunpack.c.l.b16 %v6221
        %v6288 = vunpack.c.l.b16 %v6222
        %v6289 = vunpack.c.l.b16 %v6223
        %v6290 = vunpack.c.l.b16 %v6224
        %v6291 = vunpack.c.l.b16 %v6225
        %v6292 = vunpack.c.l.b16 %v6226
        %v6293 = vunpack.c.l.b16 %v6227
        %v6294 = vunpack.c.l.b16 %v6228
        %v6295 = vunpack.c.l.b16 %v6229
        %v6296 = vunpack.c.l.b16 %v6230
        %v6297 = vunpack.c.l.b16 %v6231
        %v6298 = vunpack.c.l.b16 %v6232
        %v6299 = vunpack.c.l.b16 %v6233
        %v6300 = vunpack.c.l.b16 %v6234
        %v6301 = vunpack.c.l.b16 %v6235
        %v6302 = vunpack.c.l.b16 %v6236
        %v6303 = vunpack.c.l.b16 %v6237
        %v6304 = vunpack.c.l.b16 %v6238
        %v6305 = vunpack.c.l.b16 %v6239
        %v6306 = vunpack.c.l.b16 %v6240
        %v6307 = vunpack.c.l.b16 %v6241
        %v6308 = vunpack.c.l.b16 %v6242
        %v6309 = vunpack.c.l.b16 %v6243
        %v6310 = vunpack.c.l.b16 %v6244
        %v6311 = vunpack.c.l.b16 %v6245
        %v6312 = vunpack.c.l.b16 %v6246
        %v6313 = vunpack.c.l.b16 %v6247
        %v6314 = vunpack.c.l.b16 %v6248
        %v6315 = vunpack.c.l.b16 %v6249
        %v6316 = vpack.c.b16 %v6285, %v6284
        %v6317 = vpack.c.b16 %v6287, %v6286
        %v6318 = vpack.c.b16 %v6289, %v6288
        %v6319 = vpack.c.b16 %v6291, %v6290
        %v6320 = vpack.c.b16 %v6293, %v6292
        %v6321 = vpack.c.b16 %v6295, %v6294
        %v6322 = vpack.c.b16 %v6297, %v6296
        %v6323 = vpack.c.b16 %v6299, %v6298
        %v6324 = vpack.c.b16 %v6301, %v6300
        %v6325 = vpack.c.b16 %v6303, %v6302
        %v6326 = vpack.c.b16 %v6305, %v6304
        %v6327 = vpack.c.b16 %v6307, %v6306
        %v6328 = vpack.c.b16 %v6309, %v6308
        %v6329 = vpack.c.b16 %v6311, %v6310
        %v6330 = vpack.c.b16 %v6313, %v6312
        %v6331 = vpack.c.b16 %v6315, %v6314
        %v6334 = vunpack.c.l.b16 %v6250
        %v6335 = vunpack.c.l.b16 %v6251
        %v6336 = vpack.c.b16 %v6335, %v6334
        %v6339 = vsel %vm1018, %v6316, 0
        %v6342 = vsel %vm1018, %v6317, 0
        %v6345 = vsel %vm1018, %v6318, 0
        %v6348 = vsel %vm1018, %v6319, 0
        %v6351 = vsel %vm1018, %v6320, 0
        %v6354 = vsel %vm1018, %v6321, 0
        %v6357 = vsel %vm1018, %v6322, 0
        %v6360 = vsel %vm1018, %v6323, 0
        %v6363 = vsel %vm1018, %v6324, 0
        %v6366 = vsel %vm1018, %v6325, 0
        %v6369 = vsel %vm1018, %v6326, 0
        %v6372 = vsel %vm1018, %v6327, 0
        %v6375 = vsel %vm1018, %v6328, 0
        %v6378 = vsel %vm1018, %v6329, 0
        %v6381 = vsel %vm1018, %v6330, 0
        %v6384 = vsel %vm1018, %v6331, 0
        %6386 = vmatprep.subr.bf16.mxu0 0
        %6387 = vmatpush1.bf16.msra.mxu0 0
        %6388 = vmatprep.subr.bf16.mxu0 0
        %6389 = vmatpush1.bf16.msra.mxu0 0
        %6390 = vmatprep.subr.bf16.mxu0 0
        %6391 = vmatpush1.bf16.msra.mxu0 0
        %6392 = vmatprep.subr.bf16.mxu0 0
        %6393 = vmatpush1.bf16.msra.mxu0 0
        %6394 = vmatprep.subr.bf16.mxu0 0
        %6395 = vmatpush1.bf16.msra.mxu0 0
        %6396 = vmatprep.subr.bf16.mxu0 0
        %6397 = vmatpush1.bf16.msra.mxu0 0
        %6398 = vmatprep.subr.bf16.mxu0 0
        %6399 = vmatpush1.bf16.msra.mxu0 0
        %6400 = vmatprep.subr.bf16.mxu0 0
        %6401 = vmatpush1.bf16.msra.mxu0 %v6336
        %6402 = vmatprep.subr.bf16.mxu0 0
        %6403 = vmatpush2.bf16.msra.mxu0 0
        %6404 = vmatprep.subr.bf16.mxu0 0
        %6405 = vmatpush2.bf16.msra.mxu0 0
        %6406 = vmatprep.subr.bf16.mxu0 0
        %6407 = vmatpush2.bf16.msra.mxu0 0
        %6408 = vmatprep.subr.bf16.mxu0 0
        %6409 = vmatpush2.bf16.msra.mxu0 0
        %6410 = vmatprep.subr.bf16.mxu0 0
        %6411 = vmatpush2.bf16.msra.mxu0 0
        %6412 = vmatprep.subr.bf16.mxu0 0
        %6413 = vmatpush2.bf16.msra.mxu0 0
        %6414 = vmatprep.subr.bf16.mxu0 0
        %6415 = vmatpush2.bf16.msra.mxu0 0
        %6416 = vmatprep.subr.bf16.mxu0 0
        %6417 = vmatpush2.bf16.msra.mxu0 0
        %6418 = vmatprep.mubr.bf16.mxu0 0
        %6419 = vmatmul.mubr.bf16.gmra.mxu0 %v6339
        %v6420 = vpop.f32.mrf.mxu0
        %v6421 = vadd.f32 0.0, %v6420
        %v6422 = vpop.f32.mrf.mxu0
        %v6423 = vpop.f32.mrf.mxu0
        %v6424 = vadd.f32 0.0, %v6423
        %v6425 = vpop.f32.mrf.mxu0
        %6426 = vmatprep.mubr.bf16.mxu0 0
        %6427 = vmatmul.mubr.bf16.gmra.mxu0 %v6342
        %v6428 = vpop.f32.mrf.mxu0
        %v6429 = vadd.f32 0.0, %v6428
        %v6430 = vpop.f32.mrf.mxu0
        %v6431 = vpop.f32.mrf.mxu0
        %v6432 = vadd.f32 0.0, %v6431
        %v6433 = vpop.f32.mrf.mxu0
        %6434 = vmatprep.mubr.bf16.mxu0 0
        %6435 = vmatmul.mubr.bf16.gmra.mxu0 %v6345
        %v6436 = vpop.f32.mrf.mxu0
        %v6437 = vadd.f32 0.0, %v6436
        %v6438 = vpop.f32.mrf.mxu0
        %v6439 = vpop.f32.mrf.mxu0
        %v6440 = vadd.f32 0.0, %v6439
        %v6441 = vpop.f32.mrf.mxu0
        %6442 = vmatprep.mubr.bf16.mxu0 0
        %6443 = vmatmul.mubr.bf16.gmra.mxu0 %v6348
        %v6444 = vpop.f32.mrf.mxu0
        %v6445 = vadd.f32 0.0, %v6444
        %v6446 = vpop.f32.mrf.mxu0
        %v6447 = vpop.f32.mrf.mxu0
        %v6448 = vadd.f32 0.0, %v6447
        %v6449 = vpop.f32.mrf.mxu0
        %6450 = vmatprep.mubr.bf16.mxu0 0
        %6451 = vmatmul.mubr.bf16.gmra.mxu0 %v6351
        %v6452 = vpop.f32.mrf.mxu0
        %v6453 = vadd.f32 0.0, %v6452
        %v6454 = vpop.f32.mrf.mxu0
        %v6455 = vpop.f32.mrf.mxu0
        %v6456 = vadd.f32 0.0, %v6455
        %v6457 = vpop.f32.mrf.mxu0
        %6458 = vmatprep.mubr.bf16.mxu0 0
        %6459 = vmatmul.mubr.bf16.gmra.mxu0 %v6354
        %v6460 = vpop.f32.mrf.mxu0
        %v6461 = vadd.f32 0.0, %v6460
        %v6462 = vpop.f32.mrf.mxu0
        %v6463 = vpop.f32.mrf.mxu0
        %v6464 = vadd.f32 0.0, %v6463
        %v6465 = vpop.f32.mrf.mxu0
        %6466 = vmatprep.mubr.bf16.mxu0 0
        %6467 = vmatmul.mubr.bf16.gmra.mxu0 %v6357
        %v6468 = vpop.f32.mrf.mxu0
        %v6469 = vadd.f32 0.0, %v6468
        %v6470 = vpop.f32.mrf.mxu0
        %v6471 = vpop.f32.mrf.mxu0
        %v6472 = vadd.f32 0.0, %v6471
        %v6473 = vpop.f32.mrf.mxu0
        %6474 = vmatprep.mubr.bf16.mxu0 0
        %6475 = vmatmul.mubr.bf16.gmra.mxu0 %v6360
        %v6476 = vpop.f32.mrf.mxu0
        %v6477 = vadd.f32 0.0, %v6476
        %v6478 = vpop.f32.mrf.mxu0
        %v6479 = vpop.f32.mrf.mxu0
        %v6480 = vadd.f32 0.0, %v6479
        %v6481 = vpop.f32.mrf.mxu0
        %6482 = vmatprep.mubr.bf16.mxu0 0
        %6483 = vmatmul.mubr.bf16.gmra.mxu0 %v6363
        %v6484 = vpop.f32.mrf.mxu0
        %v6485 = vadd.f32 0.0, %v6484
        %v6486 = vpop.f32.mrf.mxu0
        %v6487 = vpop.f32.mrf.mxu0
        %v6488 = vadd.f32 0.0, %v6487
        %v6489 = vpop.f32.mrf.mxu0
        %6490 = vmatprep.mubr.bf16.mxu0 0
        %6491 = vmatmul.mubr.bf16.gmra.mxu0 %v6366
        %v6492 = vpop.f32.mrf.mxu0
        %v6493 = vadd.f32 0.0, %v6492
        %v6494 = vpop.f32.mrf.mxu0
        %v6495 = vpop.f32.mrf.mxu0
        %v6496 = vadd.f32 0.0, %v6495
        %v6497 = vpop.f32.mrf.mxu0
        %6498 = vmatprep.mubr.bf16.mxu0 0
        %6499 = vmatmul.mubr.bf16.gmra.mxu0 %v6369
        %v6500 = vpop.f32.mrf.mxu0
        %v6501 = vadd.f32 0.0, %v6500
        %v6502 = vpop.f32.mrf.mxu0
        %v6503 = vpop.f32.mrf.mxu0
        %v6504 = vadd.f32 0.0, %v6503
        %v6505 = vpop.f32.mrf.mxu0
        %6506 = vmatprep.mubr.bf16.mxu0 0
        %6507 = vmatmul.mubr.bf16.gmra.mxu0 %v6372
        %v6508 = vpop.f32.mrf.mxu0
        %v6509 = vadd.f32 0.0, %v6508
        %v6510 = vpop.f32.mrf.mxu0
        %v6511 = vpop.f32.mrf.mxu0
        %v6512 = vadd.f32 0.0, %v6511
        %v6513 = vpop.f32.mrf.mxu0
        %6514 = vmatprep.mubr.bf16.mxu0 0
        %6515 = vmatmul.mubr.bf16.gmra.mxu0 %v6375
        %v6516 = vpop.f32.mrf.mxu0
        %v6517 = vadd.f32 0.0, %v6516
        %v6518 = vpop.f32.mrf.mxu0
        %v6519 = vpop.f32.mrf.mxu0
        %v6520 = vadd.f32 0.0, %v6519
        %v6521 = vpop.f32.mrf.mxu0
        %6522 = vmatprep.mubr.bf16.mxu0 0
        %6523 = vmatmul.mubr.bf16.gmra.mxu0 %v6378
        %v6524 = vpop.f32.mrf.mxu0
        %v6525 = vadd.f32 0.0, %v6524
        %v6526 = vpop.f32.mrf.mxu0
        %v6527 = vpop.f32.mrf.mxu0
        %v6528 = vadd.f32 0.0, %v6527
        %v6529 = vpop.f32.mrf.mxu0
        %6530 = vmatprep.mubr.bf16.mxu0 0
        %6531 = vmatmul.mubr.bf16.gmra.mxu0 %v6381
        %v6532 = vpop.f32.mrf.mxu0
        %v6533 = vadd.f32 0.0, %v6532
        %v6534 = vpop.f32.mrf.mxu0
        %v6535 = vpop.f32.mrf.mxu0
        %v6536 = vadd.f32 0.0, %v6535
        %v6537 = vpop.f32.mrf.mxu0
        %6538 = vmatprep.mubr.bf16.mxu0 0
        %6539 = vmatmul.mubr.bf16.gmra.mxu0 %v6384
        %v6540 = vpop.f32.mrf.mxu0
        %v6541 = vadd.f32 0.0, %v6540
        %v6542 = vpop.f32.mrf.mxu0
        %v6543 = vpop.f32.mrf.mxu0
        %v6544 = vadd.f32 0.0, %v6543
        %v6545 = vpop.f32.mrf.mxu0
        %6546 = vdwg.mxu0
        %v6547 = vadd.f32 %v6186, %v6421
        %v6548 = vadd.f32 %v6187, %v6424
        %v6549 = vadd.f32 %v6188, %v6429
        %v6550 = vadd.f32 %v6189, %v6432
        %v6551 = vadd.f32 %v6190, %v6437
        %v6552 = vadd.f32 %v6191, %v6440
        %v6553 = vadd.f32 %v6192, %v6445
        %v6554 = vadd.f32 %v6193, %v6448
        %v6555 = vadd.f32 %v6194, %v6453
        %v6556 = vadd.f32 %v6195, %v6456
        %v6557 = vadd.f32 %v6196, %v6461
        %v6558 = vadd.f32 %v6197, %v6464
        %v6559 = vadd.f32 %v6198, %v6469
        %v6560 = vadd.f32 %v6199, %v6472
        %v6561 = vadd.f32 %v6200, %v6477
        %v6562 = vadd.f32 %v6201, %v6480
        %v6563 = vadd.f32 %v6202, %v6485
        %v6564 = vadd.f32 %v6203, %v6488
        %v6565 = vadd.f32 %v6204, %v6493
        %v6566 = vadd.f32 %v6205, %v6496
        %v6567 = vadd.f32 %v6206, %v6501
        %v6568 = vadd.f32 %v6207, %v6504
        %v6569 = vadd.f32 %v6208, %v6509
        %v6570 = vadd.f32 %v6209, %v6512
        %v6571 = vadd.f32 %v6210, %v6517
        %v6572 = vadd.f32 %v6211, %v6520
        %v6573 = vadd.f32 %v6212, %v6525
        %v6574 = vadd.f32 %v6213, %v6528
        %v6575 = vadd.f32 %v6214, %v6533
        %v6576 = vadd.f32 %v6215, %v6536
        %v6577 = vadd.f32 %v6216, %v6541
        %v6578 = vadd.f32 %v6217, %v6544
        %v6579 = vld [vmem:[%s861] sm:$0x1]
        %v6581 = vlaneseq
        %v6582 = vshrl.u32 %v6581, 7
        %v6583 = vsub.s32 0, %v6582
        %v6584 = vrot.slane %v6579, %v6583
        %v6586 = vadd.f32 %v6547, %v6584
        %v6587 = vadd.f32 %v6548, %v6584
        %v6588 = vadd.f32 %v6549, %v6584
        %v6589 = vadd.f32 %v6550, %v6584
        %v6590 = vadd.f32 %v6551, %v6584
        %v6591 = vadd.f32 %v6552, %v6584
        %v6592 = vadd.f32 %v6553, %v6584
        %v6593 = vadd.f32 %v6554, %v6584
        %v6594 = vadd.f32 %v6555, %v6584
        %v6595 = vadd.f32 %v6556, %v6584
        %v6596 = vadd.f32 %v6557, %v6584
        %v6597 = vadd.f32 %v6558, %v6584
        %v6598 = vadd.f32 %v6559, %v6584
        %v6599 = vadd.f32 %v6560, %v6584
        %v6600 = vadd.f32 %v6561, %v6584
        %v6601 = vadd.f32 %v6562, %v6584
        %v6602 = vadd.f32 %v6563, %v6584
        %v6603 = vadd.f32 %v6564, %v6584
        %v6604 = vadd.f32 %v6565, %v6584
        %v6605 = vadd.f32 %v6566, %v6584
        %v6606 = vadd.f32 %v6567, %v6584
        %v6607 = vadd.f32 %v6568, %v6584
        %v6608 = vadd.f32 %v6569, %v6584
        %v6609 = vadd.f32 %v6570, %v6584
        %v6610 = vadd.f32 %v6571, %v6584
        %v6611 = vadd.f32 %v6572, %v6584
        %v6612 = vadd.f32 %v6573, %v6584
        %v6613 = vadd.f32 %v6574, %v6584
        %v6614 = vadd.f32 %v6575, %v6584
        %v6615 = vadd.f32 %v6576, %v6584
        %v6616 = vadd.f32 %v6577, %v6584
        %v6617 = vadd.f32 %v6578, %v6584
        %v6618 = vmax.f32 %v6586, 0.0
        %v6619 = vmax.f32 %v6587, 0.0
        %v6620 = vmax.f32 %v6588, 0.0
        %v6621 = vmax.f32 %v6589, 0.0
        %v6622 = vmax.f32 %v6590, 0.0
        %v6623 = vmax.f32 %v6591, 0.0
        %v6624 = vmax.f32 %v6592, 0.0
        %v6625 = vmax.f32 %v6593, 0.0
        %v6626 = vmax.f32 %v6594, 0.0
        %v6627 = vmax.f32 %v6595, 0.0
        %v6628 = vmax.f32 %v6596, 0.0
        %v6629 = vmax.f32 %v6597, 0.0
        %v6630 = vmax.f32 %v6598, 0.0
        %v6631 = vmax.f32 %v6599, 0.0
        %v6632 = vmax.f32 %v6600, 0.0
        %v6633 = vmax.f32 %v6601, 0.0
        %v6634 = vmax.f32 %v6602, 0.0
        %v6635 = vmax.f32 %v6603, 0.0
        %v6636 = vmax.f32 %v6604, 0.0
        %v6637 = vmax.f32 %v6605, 0.0
        %v6638 = vmax.f32 %v6606, 0.0
        %v6639 = vmax.f32 %v6607, 0.0
        %v6640 = vmax.f32 %v6608, 0.0
        %v6641 = vmax.f32 %v6609, 0.0
        %v6642 = vmax.f32 %v6610, 0.0
        %v6643 = vmax.f32 %v6611, 0.0
        %v6644 = vmax.f32 %v6612, 0.0
        %v6645 = vmax.f32 %v6613, 0.0
        %v6646 = vmax.f32 %v6614, 0.0
        %v6647 = vmax.f32 %v6615, 0.0
        %v6648 = vmax.f32 %v6616, 0.0
        %v6649 = vmax.f32 %v6617, 0.0
        %v6650 = vpack.c.bf16 %v6619, %v6618
        %v6651 = vpack.c.bf16 %v6621, %v6620
        %v6652 = vpack.c.bf16 %v6623, %v6622
        %v6653 = vpack.c.bf16 %v6625, %v6624
        %v6654 = vpack.c.bf16 %v6627, %v6626
        %v6655 = vpack.c.bf16 %v6629, %v6628
        %v6656 = vpack.c.bf16 %v6631, %v6630
        %v6657 = vpack.c.bf16 %v6633, %v6632
        %v6658 = vpack.c.bf16 %v6635, %v6634
        %v6659 = vpack.c.bf16 %v6637, %v6636
        %v6660 = vpack.c.bf16 %v6639, %v6638
        %v6661 = vpack.c.bf16 %v6641, %v6640
        %v6662 = vpack.c.bf16 %v6643, %v6642
        %v6663 = vpack.c.bf16 %v6645, %v6644
        %v6664 = vpack.c.bf16 %v6647, %v6646
        %v6665 = vpack.c.bf16 %v6649, %v6648
        %v6682 = vunpack.c.l.b16 %v6650
        %v6683 = vunpack.c.h.b16 %v6650
        %v6684 = vunpack.c.l.b16 %v6651
        %v6685 = vunpack.c.h.b16 %v6651
        %v6686 = vunpack.c.l.b16 %v6652
        %v6687 = vunpack.c.h.b16 %v6652
        %v6688 = vunpack.c.l.b16 %v6653
        %v6689 = vunpack.c.h.b16 %v6653
        %v6690 = vunpack.c.l.b16 %v6654
        %v6691 = vunpack.c.h.b16 %v6654
        %v6692 = vunpack.c.l.b16 %v6655
        %v6693 = vunpack.c.h.b16 %v6655
        %v6694 = vunpack.c.l.b16 %v6656
        %v6695 = vunpack.c.h.b16 %v6656
        %v6696 = vunpack.c.l.b16 %v6657
        %v6697 = vunpack.c.h.b16 %v6657
        %v6698 = vunpack.c.l.b16 %v6658
        %v6699 = vunpack.c.h.b16 %v6658
        %v6700 = vunpack.c.l.b16 %v6659
        %v6701 = vunpack.c.h.b16 %v6659
        %v6702 = vunpack.c.l.b16 %v6660
        %v6703 = vunpack.c.h.b16 %v6660
        %v6704 = vunpack.c.l.b16 %v6661
        %v6705 = vunpack.c.h.b16 %v6661
        %v6706 = vunpack.c.l.b16 %v6662
        %v6707 = vunpack.c.h.b16 %v6662
        %v6708 = vunpack.c.l.b16 %v6663
        %v6709 = vunpack.c.h.b16 %v6663
        %v6710 = vunpack.c.l.b16 %v6664
        %v6711 = vunpack.c.h.b16 %v6664
        %v6712 = vunpack.c.l.b16 %v6665
        %v6713 = vunpack.c.h.b16 %v6665
        %v6714 = vpack.c.b16 %v6682, %v6682
        %v6715 = vpack.c.b16 %v6683, %v6683
        %v6716 = vpack.c.b16 %v6684, %v6684
        %v6717 = vpack.c.b16 %v6685, %v6685
        %v6718 = vpack.c.b16 %v6686, %v6686
        %v6719 = vpack.c.b16 %v6687, %v6687
        %v6720 = vpack.c.b16 %v6688, %v6688
        %v6721 = vpack.c.b16 %v6689, %v6689
        %v6722 = vpack.c.b16 %v6690, %v6690
        %v6723 = vpack.c.b16 %v6691, %v6691
        %v6724 = vpack.c.b16 %v6692, %v6692
        %v6725 = vpack.c.b16 %v6693, %v6693
        %v6726 = vpack.c.b16 %v6694, %v6694
        %v6727 = vpack.c.b16 %v6695, %v6695
        %v6728 = vpack.c.b16 %v6696, %v6696
        %v6729 = vpack.c.b16 %v6697, %v6697
        %v6730 = vpack.c.b16 %v6698, %v6698
        %v6731 = vpack.c.b16 %v6699, %v6699
        %v6732 = vpack.c.b16 %v6700, %v6700
        %v6733 = vpack.c.b16 %v6701, %v6701
        %v6734 = vpack.c.b16 %v6702, %v6702
        %v6735 = vpack.c.b16 %v6703, %v6703
        %v6736 = vpack.c.b16 %v6704, %v6704
        %v6737 = vpack.c.b16 %v6705, %v6705
        %v6738 = vpack.c.b16 %v6706, %v6706
        %v6739 = vpack.c.b16 %v6707, %v6707
        %v6740 = vpack.c.b16 %v6708, %v6708
        %v6741 = vpack.c.b16 %v6709, %v6709
        %v6742 = vpack.c.b16 %v6710, %v6710
        %v6743 = vpack.c.b16 %v6711, %v6711
        %v6744 = vpack.c.b16 %v6712, %v6712
        %v6745 = vpack.c.b16 %v6713, %v6713
        %vm6778 = vcmask 519168
        %6779 = vst.msk [vmem:[%s854] sm:$0xf] %vm6778, %v6714
        %6780 = vst.msk [vmem:[%s854 + $0x4] sm:$0xf] %vm6778, %v6715
        %6781 = vst.msk [vmem:[%s854 + $0x8] sm:$0xf] %vm6778, %v6716
        %6782 = vst.msk [vmem:[%s854 + $0xc] sm:$0xf] %vm6778, %v6717
        %6783 = vst.msk [vmem:[%s854 + $0x10] sm:$0xf] %vm6778, %v6718
        %6784 = vst.msk [vmem:[%s854 + $0x14] sm:$0xf] %vm6778, %v6719
        %6785 = vst.msk [vmem:[%s854 + $0x18] sm:$0xf] %vm6778, %v6720
        %6786 = vst.msk [vmem:[%s854 + $0x1c] sm:$0xf] %vm6778, %v6721
        %6787 = vst.msk [vmem:[%s854 + $0x20] sm:$0xf] %vm6778, %v6722
        %6788 = vst.msk [vmem:[%s854 + $0x24] sm:$0xf] %vm6778, %v6723
        %6789 = vst.msk [vmem:[%s854 + $0x28] sm:$0xf] %vm6778, %v6724
        %6790 = vst.msk [vmem:[%s854 + $0x2c] sm:$0xf] %vm6778, %v6725
        %6791 = vst.msk [vmem:[%s854 + $0x30] sm:$0xf] %vm6778, %v6726
        %6792 = vst.msk [vmem:[%s854 + $0x34] sm:$0xf] %vm6778, %v6727
        %6793 = vst.msk [vmem:[%s854 + $0x38] sm:$0xf] %vm6778, %v6728
        %6794 = vst.msk [vmem:[%s854 + $0x3c] sm:$0xf] %vm6778, %v6729
        %6795 = vst.msk [vmem:[%s854 + $0x40] sm:$0xf] %vm6778, %v6730
        %6796 = vst.msk [vmem:[%s854 + $0x44] sm:$0xf] %vm6778, %v6731
        %6797 = vst.msk [vmem:[%s854 + $0x48] sm:$0xf] %vm6778, %v6732
        %6798 = vst.msk [vmem:[%s854 + $0x4c] sm:$0xf] %vm6778, %v6733
        %6799 = vst.msk [vmem:[%s854 + $0x50] sm:$0xf] %vm6778, %v6734
        %6800 = vst.msk [vmem:[%s854 + $0x54] sm:$0xf] %vm6778, %v6735
        %6801 = vst.msk [vmem:[%s854 + $0x58] sm:$0xf] %vm6778, %v6736
        %6802 = vst.msk [vmem:[%s854 + $0x5c] sm:$0xf] %vm6778, %v6737
        %6803 = vst.msk [vmem:[%s854 + $0x60] sm:$0xf] %vm6778, %v6738
        %6804 = vst.msk [vmem:[%s854 + $0x64] sm:$0xf] %vm6778, %v6739
        %6805 = vst.msk [vmem:[%s854 + $0x68] sm:$0xf] %vm6778, %v6740
        %6806 = vst.msk [vmem:[%s854 + $0x6c] sm:$0xf] %vm6778, %v6741
        %6807 = vst.msk [vmem:[%s854 + $0x70] sm:$0xf] %vm6778, %v6742
        %6808 = vst.msk [vmem:[%s854 + $0x74] sm:$0xf] %vm6778, %v6743
        %6809 = vst.msk [vmem:[%s854 + $0x78] sm:$0xf] %vm6778, %v6744
        %6810 = vst.msk [vmem:[%s854 + $0x7c] sm:$0xf] %vm6778, %v6745
        %s6811 = sand.u32 %s117, 1
        %s6812 = scalar_lea.sflag [#allocation4], %s6811
        %s6813 = sand.u32 %s117, 1
        %s6814 = smul.addr %s6813, 128
        %s6815 = scalar_lea.vmem [#allocation3], %s6814
        // Predicated region
        $region74: #{conv_taps.1} parent=68 // pred_check
          %p6816 = pneg %p127
        $region75: #{conv_taps.1} parent=68 // pred_check_branch
          %6818 = sbr.rel (%p6816) target = $region77
        $region76: #{conv_taps.1} parent=68 // pred_region
          %s6820 = ssub.s32 2048, 2048
          %6821 = vsyncadd %s6812, %s6820
          %s6822 = smul.addr %s21, 32
          %s6823 = sadd.s32 %s22, %s6822
          %s6824 = smul.addr %s6823, 64
          %s6825 = scalar_lea.hbm %s3, %s6824
          %s6826 = sshll.u32 %s6815, 4
          %s6827 = int_to_ptr.vmem [resolvable:$true] %s6826
          %6832 = dma.vmem_to_hbm [thread:$0]  %s6827, 2048, %s6825, %s6812, 64, 64, 4
        $region77: #{conv_taps.1} parent=68 // pred_fallthru
          _
      $region69: #{conv_taps.1} parent=5 // pred_fallthru
        _
      %p6833 = scmp.le.s32.totalorder 2, %s12
      // Predicated region
      $region78: #{conv_taps.1} parent=5 // pred_check
        %p6834 = pneg %p6833
      $region79: #{conv_taps.1} parent=5 // pred_check_branch
        %6836 = sbr.rel (%p6834) target = $region81
      $region80: #{conv_taps.1} parent=5 // pred_region
        %s6837 = ssub.s32 %s12, 2
        // Predicated region
        $region82: #{conv_taps.1} parent=80 // pred_check
          %p6838 = pneg %p133
        $region83: #{conv_taps.1} parent=80 // pred_check_branch
          %6840 = sbr.rel (%p6838) target = $region85
        $region84: #{conv_taps.1} parent=80 // pred_region
          %s6841 = sand.u32 %s118, 1
          %s6842 = scalar_lea.sflag [#allocation4], %s6841
          %s6843 = sand.u32 %s118, 1
          %s6844 = smul.addr %s6843, 128
          %s6845 = scalar_lea.vmem [#allocation3], %s6844
          %6846 = dma.done %s6842, 2048
        $region85: #{conv_taps.1} parent=80 // pred_fallthru
          _
      $region81: #{conv_taps.1} parent=5 // pred_fallthru
        _
    $region6: #{conv_taps.1} parent=1 // loop_footer
      %s16 = sadd.s32 1, %s12
    $region7: #{conv_taps.1} parent=1 // loop_footer_branch
      %11 = sbr.rel target = $region3
    $region8: #{conv_taps.1} parent=1 // loop_exit
      _
    %6847 = vsyncpa [#allocation4], 1
    %s6848 = scalar_lea.sflag [#allocation4], 1
    %6849 = vsyncpa %s6848, 1

</llo_original>
